<compile_context>
chip_gen: v7x
topology: tpu7x:2x2x1
jax: 0.10.0
libtpu: 0.0.40
codegen_flags: <defaults>
</compile_context>

<pallas_src>
import jax
import jax.numpy as jnp
from jax.experimental import pallas as pl
from jax.experimental.pallas import tpu as pltpu

# ---- concrete module configuration -----------------------------------------
C_IN = 3          # network input channels (RGB)
C_IN_PAD = 8      # zero-padded so K is sublane-aligned (multiple of 8)
C_BB1 = 8         # backbone conv1 out channels (3x3, stride 1, pad 1)
C_BB2 = 16        # backbone conv2 out channels (3x3, stride 2, pad 1)
C_AO1 = 32        # add-on 1x1 conv -> ReLU
C_AO2 = 16        # add-on 1x1 conv -> Sigmoid (module output channels)
C_AO2_PAD = 128   # output channels padded to a full 128-lane vreg (lane-dense stores)


# ---------------------------------------------------------------------------
# Fused Pallas kernel: backbone (2x 3x3 conv) + add-on (2x 1x1 conv), one image
# per grid step.  Everything is 2-D MXU matmuls; activations never leave VMEM.
# ---------------------------------------------------------------------------
def _fused_conv_extractor_kernel(
        x_ref, r_ref, t_ref,
        w1_ref, b1_ref, w2_ref, b2_ref, w3_ref, b3_ref, w4_ref, b4_ref,
        o_ref):
    f32 = jnp.float32
    bf16 = jnp.bfloat16

    x = x_ref[0]                                            # (HW, C_IN_PAD) bf16

    # --- backbone conv1: 3x3, stride 1, pad 1 (C_IN_PAD -> C_BB1) -------------
    # conv = sum_k (R_k @ x) @ W1_k ; R_k is a constant 0/1 spatial-shift matrix
    # (zero padding appears as all-zero rows), so the shift is exact in bf16.
    acc1 = jnp.zeros((r_ref.shape[1], w1_ref.shape[2]), f32)
    for k in range(9):
        shifted = jnp.dot(r_ref[k], x, preferred_element_type=f32)
        acc1 += jnp.dot(shifted.astype(bf16), w1_ref[k], preferred_element_type=f32)
    h1 = jnp.maximum(acc1 + b1_ref[...], 0.0).astype(bf16)  # (HW, C_BB1)

    # --- backbone conv2: 3x3, stride 2, pad 1 (C_BB1 -> C_BB2) ----------------
    # T_k additionally folds the stride-2 down-sampling into the selection.
    acc2 = jnp.zeros((t_ref.shape[1], w2_ref.shape[2]), f32)
    for k in range(9):
        shifted = jnp.dot(t_ref[k], h1, preferred_element_type=f32)
        acc2 += jnp.dot(shifted.astype(bf16), w2_ref[k], preferred_element_type=f32)
    h2 = jnp.maximum(acc2 + b2_ref[...], 0.0).astype(bf16)  # (HWO, C_BB2)

    # --- add-on: 1x1 Conv -> ReLU -> 1x1 Conv -> Sigmoid ----------------------
    h3 = jnp.maximum(jnp.dot(h2, w3_ref[...], preferred_element_type=f32)
                     + b3_ref[...], 0.0).astype(bf16)        # (HWO, C_AO1)
    z = jnp.dot(h3, w4_ref[...], preferred_element_type=f32) + b4_ref[...]
    # sigmoid = 1 / (1 + exp(-z)); exp and approx reciprocal both use the EUP.
    o_ref[0] = pl.reciprocal(1.0 + jnp.exp(-z), approx=True)  # (HWO, 128) f32


# ---------------------------------------------------------------------------
# Constant shift/selection operators (built once in the wrapper, constant-folded
# under jit).  S_k @ x_flat gathers the (dh, dw)-shifted window of a padded
# conv input; out-of-range positions become all-zero rows (== zero padding).
# ---------------------------------------------------------------------------
def _shift_selection_matrices(h, w, stride, ksize=3, pad=1, dtype=jnp.bfloat16):
    ho = (h + 2 * pad - ksize) // stride + 1
    wo = (w + 2 * pad - ksize) // stride + 1
    yo = jnp.repeat(jnp.arange(ho), wo)          # output pixel y
    xo = jnp.tile(jnp.arange(wo), ho)            # output pixel x
    yi = jnp.repeat(jnp.arange(h), w)            # input pixel y
    xi = jnp.tile(jnp.arange(w), h)              # input pixel x
    mats = []
    for dh in range(ksize):
        for dw in range(ksize):
            ty = stride * yo + dh - pad
            tx = stride * xo + dw - pad
            mats.append((yi[None, :] == ty[:, None]) & (xi[None, :] == tx[:, None]))
    return jnp.stack(mats).astype(dtype)         # (k*k, ho*wo, h*w)


# ---------------------------------------------------------------------------
# Parameters (deterministic, in-script)
# ---------------------------------------------------------------------------
def init_params(key):
    ks = jax.random.split(key, 8)
    scale = 0.1

    def w(k, shape):
        return (scale * jax.random.normal(k, shape)).astype(jnp.float32)

    return {
        # backbone
        "bb_w1": w(ks[0], (3, 3, 3, 8)),
        "bb_b1": w(ks[1], (8,)),
        "bb_w2": w(ks[2], (3, 3, 8, 16)),
        "bb_b2": w(ks[3], (16,)),
        # add-on (ProtoPNet style)
        "ao_w1": w(ks[4], (1, 1, 16, 32)),
        "ao_b1": w(ks[5], (32,)),
        "ao_w2": w(ks[6], (1, 1, 32, 16)),
        "ao_b2": w(ks[7], (16,)),
    }


# ---------------------------------------------------------------------------
# ConvExtractor forward
# ---------------------------------------------------------------------------
@jax.jit
def conv_extractor_forward(x_nchw, params):
    n, c_in, h, w = x_nchw.shape
    hw = h * w
    ho, wo = h // 2, w // 2
    hwo = ho * wo

    # NCHW (PyTorch) -> NHWC -> flatten spatial, zero-pad channels 3->8, bf16.
    x = jnp.transpose(x_nchw, (0, 2, 3, 1)).astype(jnp.float32)
    x = jnp.pad(x, ((0, 0), (0, 0), (0, 0), (0, C_IN_PAD - c_in)))
    x = x.reshape(n, hw, C_IN_PAD).astype(jnp.bfloat16)

    # Constant spatial shift / stride-2 selection operators.
    r_mats = _shift_selection_matrices(h, w, stride=1)       # (9, hw,  hw)
    t_mats = _shift_selection_matrices(h, w, stride=2)       # (9, hwo, hw)

    # Pack weights: bf16 matmul operands, f32 biases, padded K / lane-dense Cout.
    w1 = jnp.pad(params["bb_w1"], ((0, 0), (0, 0), (0, C_IN_PAD - c_in), (0, 0)))
    w1 = w1.reshape(9, C_IN_PAD, C_BB1).astype(jnp.bfloat16)
    w2 = params["bb_w2"].reshape(9, C_BB1, C_BB2).astype(jnp.bfloat16)
    w3 = params["ao_w1"].reshape(C_BB2, C_AO1).astype(jnp.bfloat16)
    w4 = jnp.pad(params["ao_w2"].reshape(C_AO1, C_AO2),
                 ((0, 0), (0, C_AO2_PAD - C_AO2))).astype(jnp.bfloat16)
    b1 = params["bb_b1"].reshape(1, C_BB1).astype(jnp.float32)
    b2 = params["bb_b2"].reshape(1, C_BB2).astype(jnp.float32)
    b3 = params["ao_b1"].reshape(1, C_AO1).astype(jnp.float32)
    b4 = jnp.pad(params["ao_b2"],
                 (0, C_AO2_PAD - C_AO2)).reshape(1, C_AO2_PAD).astype(jnp.float32)

    inputs = (x, r_mats, t_mats, w1, b1, w2, b2, w3, b3, w4, b4)

    flops = n * (9 * (2 * hw * hw * C_IN_PAD + 2 * hw * C_IN_PAD * C_BB1)
                 + 9 * (2 * hwo * hw * C_BB1 + 2 * hwo * C_BB1 * C_BB2)
                 + 2 * hwo * C_BB2 * C_AO1 + 2 * hwo * C_AO1 * C_AO2_PAD)
    bytes_accessed = (sum(int(a.size) * a.dtype.itemsize for a in inputs)
                      + n * hwo * C_AO2_PAD * 4)

    const3 = lambda i: (0, 0, 0)
    const2 = lambda i: (0, 0)

    out = pl.pallas_call(
        _fused_conv_extractor_kernel,
        out_shape=jax.ShapeDtypeStruct((n, hwo, C_AO2_PAD), jnp.float32),
        grid_spec=pltpu.PrefetchScalarGridSpec(
            num_scalar_prefetch=0,
            grid=(n,),                       # 2 parallel steps -> v7x megacore split
            in_specs=[
                pl.BlockSpec((1, hw, C_IN_PAD), lambda i: (i, 0, 0)),
                pl.BlockSpec((9, hw, hw), const3),
                pl.BlockSpec((9, hwo, hw), const3),
                pl.BlockSpec((9, C_IN_PAD, C_BB1), const3),
                pl.BlockSpec((1, C_BB1), const2),
                pl.BlockSpec((9, C_BB1, C_BB2), const3),
                pl.BlockSpec((1, C_BB2), const2),
                pl.BlockSpec((C_BB2, C_AO1), const2),
                pl.BlockSpec((1, C_AO1), const2),
                pl.BlockSpec((C_AO1, C_AO2_PAD), const2),
                pl.BlockSpec((1, C_AO2_PAD), const2),
            ],
            out_specs=pl.BlockSpec((1, hwo, C_AO2_PAD), lambda i: (i, 0, 0)),
        ),
        compiler_params=pltpu.CompilerParams(
            dimension_semantics=("parallel",),
            vmem_limit_bytes=32 * 1024 * 1024,   # well under v7x's 64 MiB VMEM
        ),
        cost_estimate=pl.CostEstimate(
            flops=flops,
            transcendentals=n * hwo * C_AO2_PAD,
            bytes_accessed=bytes_accessed,
        ),
    )(*inputs)

    # Strip lane padding, restore spatial dims, back to NCHW (PyTorch convention).
    feat = out[:, :, :C_AO2].reshape(n, ho, wo, C_AO2)
    return jnp.transpose(feat, (0, 3, 1, 2))


# ---------------------------------------------------------------------------
# Pure-JAX f32 reference (lax.conv) for correctness validation
# ---------------------------------------------------------------------------
def _ref_conv(x, w, b, stride, pad, act):
    y = jax.lax.conv_general_dilated(
        x, w, (stride, stride), [(pad, pad), (pad, pad)],
        dimension_numbers=("NHWC", "HWIO", "NHWC"),
    ) + b
    if act == "relu":
        y = jnp.maximum(y, 0.0)
    elif act == "sigmoid":
        y = jax.nn.sigmoid(y)
    return y


def reference_forward(x_nchw, params):
    x = jnp.transpose(x_nchw, (0, 2, 3, 1)).astype(jnp.float32)
    x = _ref_conv(x, params["bb_w1"], params["bb_b1"], 1, 1, "relu")
    x = _ref_conv(x, params["bb_w2"], params["bb_b2"], 2, 1, "relu")
    x = _ref_conv(x, params["ao_w1"], params["ao_b1"], 1, 0, "relu")
    x = _ref_conv(x, params["ao_w2"], params["ao_b2"], 1, 0, "sigmoid")
    return jnp.transpose(x, (0, 3, 1, 2))


if __name__ == "__main__":
    key = jax.random.PRNGKey(0)
    k_x, k_p = jax.random.split(key)
    # Small synthetic input: batch=2, channels=3 (RGB), spatial=16x16, NCHW.
    x = jax.random.normal(k_x, (2, 3, 16, 16), dtype=jnp.float32)
    params = init_params(k_p)

    out = jax.block_until_ready(conv_extractor_forward(x, params))
    ref = jax.block_until_ready(reference_forward(x, params))

    assert out.shape == (2, 16, 8, 8), out.shape
    # Kernel computes matmuls in bf16 (f32 accumulate); reference is pure f32.
    max_err = float(jnp.max(jnp.abs(out - ref)))
    assert jnp.allclose(out, ref, atol=2e-2, rtol=2e-2), f"mismatch vs reference: {max_err}"

    print("KERNEL_OK")
</pallas_src>

<mosaic_0001>
module attributes {stable_mosaic.version = 11 : i64} {
  func.func @_fused_conv_extractor_kernel(%arg0: i32, %arg1: memref<1x256x8xbf16, #tpu.memory_space<vmem>>, %arg2: memref<9x256x256xbf16, #tpu.memory_space<vmem>>, %arg3: memref<9x64x256xbf16, #tpu.memory_space<vmem>>, %arg4: memref<9x8x8xbf16, #tpu.memory_space<vmem>>, %arg5: memref<1x8xf32, #tpu.memory_space<vmem>>, %arg6: memref<9x8x16xbf16, #tpu.memory_space<vmem>>, %arg7: memref<1x16xf32, #tpu.memory_space<vmem>>, %arg8: memref<16x32xbf16, #tpu.memory_space<vmem>>, %arg9: memref<1x32xf32, #tpu.memory_space<vmem>>, %arg10: memref<32x128xbf16, #tpu.memory_space<vmem>>, %arg11: memref<1x128xf32, #tpu.memory_space<vmem>>, %arg12: memref<1x64x128xf32, #tpu.memory_space<vmem>>) attributes {dimension_semantics = [#tpu.dimension_semantics<parallel>], iteration_bounds = array<i64: 2>, scalar_prefetch = 0 : i64, scratch_operands = 0 : i64, tpu.core_type = #tpu.core_type<tc>, window_params = [{transform_indices = @transform_0, window_bounds = array<i64: 1, 256, 8>}, {pipeline_mode = #tpu.pipeline_mode<synchronous>, transform_indices = @transform_1, window_bounds = array<i64: 9, 256, 256>}, {pipeline_mode = #tpu.pipeline_mode<synchronous>, transform_indices = @transform_2, window_bounds = array<i64: 9, 64, 256>}, {pipeline_mode = #tpu.pipeline_mode<synchronous>, transform_indices = @transform_3, window_bounds = array<i64: 9, 8, 8>}, {pipeline_mode = #tpu.pipeline_mode<synchronous>, transform_indices = @transform_4, window_bounds = array<i64: 1, 8>}, {pipeline_mode = #tpu.pipeline_mode<synchronous>, transform_indices = @transform_5, window_bounds = array<i64: 9, 8, 16>}, {pipeline_mode = #tpu.pipeline_mode<synchronous>, transform_indices = @transform_6, window_bounds = array<i64: 1, 16>}, {pipeline_mode = #tpu.pipeline_mode<synchronous>, transform_indices = @transform_7, window_bounds = array<i64: 16, 32>}, {pipeline_mode = #tpu.pipeline_mode<synchronous>, transform_indices = @transform_8, window_bounds = array<i64: 1, 32>}, {pipeline_mode = #tpu.pipeline_mode<synchronous>, transform_indices = @transform_9, window_bounds = array<i64: 32, 128>}, {pipeline_mode = #tpu.pipeline_mode<synchronous>, transform_indices = @transform_10, window_bounds = array<i64: 1, 128>}, {transform_indices = @transform_11, window_bounds = array<i64: 1, 64, 128>}]} {
    %c0 = arith.constant 0 : index
    %c0_0 = arith.constant 0 : index
    %c0_1 = arith.constant 0 : index
    %0 = vector.load %arg1[%c0, %c0_0, %c0_1] : memref<1x256x8xbf16, #tpu.memory_space<vmem>>, vector<1x256x8xbf16>
    %1 = vector.shape_cast %0 : vector<1x256x8xbf16> to vector<256x8xbf16>
    %cst = arith.constant 0.000000e+00 : f32
    %2 = vector.broadcast %cst : f32 to vector<256x8xf32>
    %c0_2 = arith.constant 0 : index
    %c0_3 = arith.constant 0 : index
    %c0_4 = arith.constant 0 : index
    %3 = vector.load %arg2[%c0_2, %c0_3, %c0_4] : memref<9x256x256xbf16, #tpu.memory_space<vmem>>, vector<1x256x256xbf16>
    %4 = vector.shape_cast %3 : vector<1x256x256xbf16> to vector<256x256xbf16>
    %cst_5 = arith.constant dense<0.000000e+00> : vector<256x8xf32>
    %5 = tpu.matmul %4, %1, %cst_5 {dimension_numbers = #tpu.dot_dimension_numbers<[1], [0], [0], [1], [0, 0, 1, 1], [], []>} : vector<256x256xbf16>, vector<256x8xbf16>, vector<256x8xf32> -> vector<256x8xf32>
    %6 = arith.truncf %5 : vector<256x8xf32> to vector<256x8xbf16>
    %c0_6 = arith.constant 0 : index
    %c0_7 = arith.constant 0 : index
    %c0_8 = arith.constant 0 : index
    %7 = vector.load %arg4[%c0_6, %c0_7, %c0_8] : memref<9x8x8xbf16, #tpu.memory_space<vmem>>, vector<1x8x8xbf16>
    %8 = vector.shape_cast %7 : vector<1x8x8xbf16> to vector<8x8xbf16>
    %cst_9 = arith.constant dense<0.000000e+00> : vector<256x8xf32>
    %9 = tpu.matmul %6, %8, %cst_9 {dimension_numbers = #tpu.dot_dimension_numbers<[1], [0], [0], [1], [0, 0, 1, 1], [], []>} : vector<256x8xbf16>, vector<8x8xbf16>, vector<256x8xf32> -> vector<256x8xf32>
    %10 = arith.addf %2, %9 : vector<256x8xf32>
    %c1 = arith.constant 1 : index
    %c0_10 = arith.constant 0 : index
    %c0_11 = arith.constant 0 : index
    %11 = vector.load %arg2[%c1, %c0_10, %c0_11] : memref<9x256x256xbf16, #tpu.memory_space<vmem>>, vector<1x256x256xbf16>
    %12 = vector.shape_cast %11 : vector<1x256x256xbf16> to vector<256x256xbf16>
    %cst_12 = arith.constant dense<0.000000e+00> : vector<256x8xf32>
    %13 = tpu.matmul %12, %1, %cst_12 {dimension_numbers = #tpu.dot_dimension_numbers<[1], [0], [0], [1], [0, 0, 1, 1], [], []>} : vector<256x256xbf16>, vector<256x8xbf16>, vector<256x8xf32> -> vector<256x8xf32>
    %14 = arith.truncf %13 : vector<256x8xf32> to vector<256x8xbf16>
    %c1_13 = arith.constant 1 : index
    %c0_14 = arith.constant 0 : index
    %c0_15 = arith.constant 0 : index
    %15 = vector.load %arg4[%c1_13, %c0_14, %c0_15] : memref<9x8x8xbf16, #tpu.memory_space<vmem>>, vector<1x8x8xbf16>
    %16 = vector.shape_cast %15 : vector<1x8x8xbf16> to vector<8x8xbf16>
    %cst_16 = arith.constant dense<0.000000e+00> : vector<256x8xf32>
    %17 = tpu.matmul %14, %16, %cst_16 {dimension_numbers = #tpu.dot_dimension_numbers<[1], [0], [0], [1], [0, 0, 1, 1], [], []>} : vector<256x8xbf16>, vector<8x8xbf16>, vector<256x8xf32> -> vector<256x8xf32>
    %18 = arith.addf %10, %17 : vector<256x8xf32>
    %c2 = arith.constant 2 : index
    %c0_17 = arith.constant 0 : index
    %c0_18 = arith.constant 0 : index
    %19 = vector.load %arg2[%c2, %c0_17, %c0_18] : memref<9x256x256xbf16, #tpu.memory_space<vmem>>, vector<1x256x256xbf16>
    %20 = vector.shape_cast %19 : vector<1x256x256xbf16> to vector<256x256xbf16>
    %cst_19 = arith.constant dense<0.000000e+00> : vector<256x8xf32>
    %21 = tpu.matmul %20, %1, %cst_19 {dimension_numbers = #tpu.dot_dimension_numbers<[1], [0], [0], [1], [0, 0, 1, 1], [], []>} : vector<256x256xbf16>, vector<256x8xbf16>, vector<256x8xf32> -> vector<256x8xf32>
    %22 = arith.truncf %21 : vector<256x8xf32> to vector<256x8xbf16>
    %c2_20 = arith.constant 2 : index
    %c0_21 = arith.constant 0 : index
    %c0_22 = arith.constant 0 : index
    %23 = vector.load %arg4[%c2_20, %c0_21, %c0_22] : memref<9x8x8xbf16, #tpu.memory_space<vmem>>, vector<1x8x8xbf16>
    %24 = vector.shape_cast %23 : vector<1x8x8xbf16> to vector<8x8xbf16>
    %cst_23 = arith.constant dense<0.000000e+00> : vector<256x8xf32>
    %25 = tpu.matmul %22, %24, %cst_23 {dimension_numbers = #tpu.dot_dimension_numbers<[1], [0], [0], [1], [0, 0, 1, 1], [], []>} : vector<256x8xbf16>, vector<8x8xbf16>, vector<256x8xf32> -> vector<256x8xf32>
    %26 = arith.addf %18, %25 : vector<256x8xf32>
    %c3 = arith.constant 3 : index
    %c0_24 = arith.constant 0 : index
    %c0_25 = arith.constant 0 : index
    %27 = vector.load %arg2[%c3, %c0_24, %c0_25] : memref<9x256x256xbf16, #tpu.memory_space<vmem>>, vector<1x256x256xbf16>
    %28 = vector.shape_cast %27 : vector<1x256x256xbf16> to vector<256x256xbf16>
    %cst_26 = arith.constant dense<0.000000e+00> : vector<256x8xf32>
    %29 = tpu.matmul %28, %1, %cst_26 {dimension_numbers = #tpu.dot_dimension_numbers<[1], [0], [0], [1], [0, 0, 1, 1], [], []>} : vector<256x256xbf16>, vector<256x8xbf16>, vector<256x8xf32> -> vector<256x8xf32>
    %30 = arith.truncf %29 : vector<256x8xf32> to vector<256x8xbf16>
    %c3_27 = arith.constant 3 : index
    %c0_28 = arith.constant 0 : index
    %c0_29 = arith.constant 0 : index
    %31 = vector.load %arg4[%c3_27, %c0_28, %c0_29] : memref<9x8x8xbf16, #tpu.memory_space<vmem>>, vector<1x8x8xbf16>
    %32 = vector.shape_cast %31 : vector<1x8x8xbf16> to vector<8x8xbf16>
    %cst_30 = arith.constant dense<0.000000e+00> : vector<256x8xf32>
    %33 = tpu.matmul %30, %32, %cst_30 {dimension_numbers = #tpu.dot_dimension_numbers<[1], [0], [0], [1], [0, 0, 1, 1], [], []>} : vector<256x8xbf16>, vector<8x8xbf16>, vector<256x8xf32> -> vector<256x8xf32>
    %34 = arith.addf %26, %33 : vector<256x8xf32>
    %c4 = arith.constant 4 : index
    %c0_31 = arith.constant 0 : index
    %c0_32 = arith.constant 0 : index
    %35 = vector.load %arg2[%c4, %c0_31, %c0_32] : memref<9x256x256xbf16, #tpu.memory_space<vmem>>, vector<1x256x256xbf16>
    %36 = vector.shape_cast %35 : vector<1x256x256xbf16> to vector<256x256xbf16>
    %cst_33 = arith.constant dense<0.000000e+00> : vector<256x8xf32>
    %37 = tpu.matmul %36, %1, %cst_33 {dimension_numbers = #tpu.dot_dimension_numbers<[1], [0], [0], [1], [0, 0, 1, 1], [], []>} : vector<256x256xbf16>, vector<256x8xbf16>, vector<256x8xf32> -> vector<256x8xf32>
    %38 = arith.truncf %37 : vector<256x8xf32> to vector<256x8xbf16>
    %c4_34 = arith.constant 4 : index
    %c0_35 = arith.constant 0 : index
    %c0_36 = arith.constant 0 : index
    %39 = vector.load %arg4[%c4_34, %c0_35, %c0_36] : memref<9x8x8xbf16, #tpu.memory_space<vmem>>, vector<1x8x8xbf16>
    %40 = vector.shape_cast %39 : vector<1x8x8xbf16> to vector<8x8xbf16>
    %cst_37 = arith.constant dense<0.000000e+00> : vector<256x8xf32>
    %41 = tpu.matmul %38, %40, %cst_37 {dimension_numbers = #tpu.dot_dimension_numbers<[1], [0], [0], [1], [0, 0, 1, 1], [], []>} : vector<256x8xbf16>, vector<8x8xbf16>, vector<256x8xf32> -> vector<256x8xf32>
    %42 = arith.addf %34, %41 : vector<256x8xf32>
    %c5 = arith.constant 5 : index
    %c0_38 = arith.constant 0 : index
    %c0_39 = arith.constant 0 : index
    %43 = vector.load %arg2[%c5, %c0_38, %c0_39] : memref<9x256x256xbf16, #tpu.memory_space<vmem>>, vector<1x256x256xbf16>
    %44 = vector.shape_cast %43 : vector<1x256x256xbf16> to vector<256x256xbf16>
    %cst_40 = arith.constant dense<0.000000e+00> : vector<256x8xf32>
    %45 = tpu.matmul %44, %1, %cst_40 {dimension_numbers = #tpu.dot_dimension_numbers<[1], [0], [0], [1], [0, 0, 1, 1], [], []>} : vector<256x256xbf16>, vector<256x8xbf16>, vector<256x8xf32> -> vector<256x8xf32>
    %46 = arith.truncf %45 : vector<256x8xf32> to vector<256x8xbf16>
    %c5_41 = arith.constant 5 : index
    %c0_42 = arith.constant 0 : index
    %c0_43 = arith.constant 0 : index
    %47 = vector.load %arg4[%c5_41, %c0_42, %c0_43] : memref<9x8x8xbf16, #tpu.memory_space<vmem>>, vector<1x8x8xbf16>
    %48 = vector.shape_cast %47 : vector<1x8x8xbf16> to vector<8x8xbf16>
    %cst_44 = arith.constant dense<0.000000e+00> : vector<256x8xf32>
    %49 = tpu.matmul %46, %48, %cst_44 {dimension_numbers = #tpu.dot_dimension_numbers<[1], [0], [0], [1], [0, 0, 1, 1], [], []>} : vector<256x8xbf16>, vector<8x8xbf16>, vector<256x8xf32> -> vector<256x8xf32>
    %50 = arith.addf %42, %49 : vector<256x8xf32>
    %c6 = arith.constant 6 : index
    %c0_45 = arith.constant 0 : index
    %c0_46 = arith.constant 0 : index
    %51 = vector.load %arg2[%c6, %c0_45, %c0_46] : memref<9x256x256xbf16, #tpu.memory_space<vmem>>, vector<1x256x256xbf16>
    %52 = vector.shape_cast %51 : vector<1x256x256xbf16> to vector<256x256xbf16>
    %cst_47 = arith.constant dense<0.000000e+00> : vector<256x8xf32>
    %53 = tpu.matmul %52, %1, %cst_47 {dimension_numbers = #tpu.dot_dimension_numbers<[1], [0], [0], [1], [0, 0, 1, 1], [], []>} : vector<256x256xbf16>, vector<256x8xbf16>, vector<256x8xf32> -> vector<256x8xf32>
    %54 = arith.truncf %53 : vector<256x8xf32> to vector<256x8xbf16>
    %c6_48 = arith.constant 6 : index
    %c0_49 = arith.constant 0 : index
    %c0_50 = arith.constant 0 : index
    %55 = vector.load %arg4[%c6_48, %c0_49, %c0_50] : memref<9x8x8xbf16, #tpu.memory_space<vmem>>, vector<1x8x8xbf16>
    %56 = vector.shape_cast %55 : vector<1x8x8xbf16> to vector<8x8xbf16>
    %cst_51 = arith.constant dense<0.000000e+00> : vector<256x8xf32>
    %57 = tpu.matmul %54, %56, %cst_51 {dimension_numbers = #tpu.dot_dimension_numbers<[1], [0], [0], [1], [0, 0, 1, 1], [], []>} : vector<256x8xbf16>, vector<8x8xbf16>, vector<256x8xf32> -> vector<256x8xf32>
    %58 = arith.addf %50, %57 : vector<256x8xf32>
    %c7 = arith.constant 7 : index
    %c0_52 = arith.constant 0 : index
    %c0_53 = arith.constant 0 : index
    %59 = vector.load %arg2[%c7, %c0_52, %c0_53] : memref<9x256x256xbf16, #tpu.memory_space<vmem>>, vector<1x256x256xbf16>
    %60 = vector.shape_cast %59 : vector<1x256x256xbf16> to vector<256x256xbf16>
    %cst_54 = arith.constant dense<0.000000e+00> : vector<256x8xf32>
    %61 = tpu.matmul %60, %1, %cst_54 {dimension_numbers = #tpu.dot_dimension_numbers<[1], [0], [0], [1], [0, 0, 1, 1], [], []>} : vector<256x256xbf16>, vector<256x8xbf16>, vector<256x8xf32> -> vector<256x8xf32>
    %62 = arith.truncf %61 : vector<256x8xf32> to vector<256x8xbf16>
    %c7_55 = arith.constant 7 : index
    %c0_56 = arith.constant 0 : index
    %c0_57 = arith.constant 0 : index
    %63 = vector.load %arg4[%c7_55, %c0_56, %c0_57] : memref<9x8x8xbf16, #tpu.memory_space<vmem>>, vector<1x8x8xbf16>
    %64 = vector.shape_cast %63 : vector<1x8x8xbf16> to vector<8x8xbf16>
    %cst_58 = arith.constant dense<0.000000e+00> : vector<256x8xf32>
    %65 = tpu.matmul %62, %64, %cst_58 {dimension_numbers = #tpu.dot_dimension_numbers<[1], [0], [0], [1], [0, 0, 1, 1], [], []>} : vector<256x8xbf16>, vector<8x8xbf16>, vector<256x8xf32> -> vector<256x8xf32>
    %66 = arith.addf %58, %65 : vector<256x8xf32>
    %c8 = arith.constant 8 : index
    %c0_59 = arith.constant 0 : index
    %c0_60 = arith.constant 0 : index
    %67 = vector.load %arg2[%c8, %c0_59, %c0_60] : memref<9x256x256xbf16, #tpu.memory_space<vmem>>, vector<1x256x256xbf16>
    %68 = vector.shape_cast %67 : vector<1x256x256xbf16> to vector<256x256xbf16>
    %cst_61 = arith.constant dense<0.000000e+00> : vector<256x8xf32>
    %69 = tpu.matmul %68, %1, %cst_61 {dimension_numbers = #tpu.dot_dimension_numbers<[1], [0], [0], [1], [0, 0, 1, 1], [], []>} : vector<256x256xbf16>, vector<256x8xbf16>, vector<256x8xf32> -> vector<256x8xf32>
    %70 = arith.truncf %69 : vector<256x8xf32> to vector<256x8xbf16>
    %c8_62 = arith.constant 8 : index
    %c0_63 = arith.constant 0 : index
    %c0_64 = arith.constant 0 : index
    %71 = vector.load %arg4[%c8_62, %c0_63, %c0_64] : memref<9x8x8xbf16, #tpu.memory_space<vmem>>, vector<1x8x8xbf16>
    %72 = vector.shape_cast %71 : vector<1x8x8xbf16> to vector<8x8xbf16>
    %cst_65 = arith.constant dense<0.000000e+00> : vector<256x8xf32>
    %73 = tpu.matmul %70, %72, %cst_65 {dimension_numbers = #tpu.dot_dimension_numbers<[1], [0], [0], [1], [0, 0, 1, 1], [], []>} : vector<256x8xbf16>, vector<8x8xbf16>, vector<256x8xf32> -> vector<256x8xf32>
    %74 = arith.addf %66, %73 : vector<256x8xf32>
    %c0_66 = arith.constant 0 : index
    %c0_67 = arith.constant 0 : index
    %75 = vector.load %arg5[%c0_66, %c0_67] : memref<1x8xf32, #tpu.memory_space<vmem>>, vector<1x8xf32>
    %76 = vector.broadcast %75 : vector<1x8xf32> to vector<256x8xf32>
    %77 = arith.addf %74, %76 : vector<256x8xf32>
    %cst_68 = arith.constant 0.000000e+00 : f32
    %78 = vector.broadcast %cst_68 : f32 to vector<256x8xf32>
    %79 = arith.maximumf %77, %78 : vector<256x8xf32>
    %80 = arith.truncf %79 : vector<256x8xf32> to vector<256x8xbf16>
    %cst_69 = arith.constant 0.000000e+00 : f32
    %81 = vector.broadcast %cst_69 : f32 to vector<64x16xf32>
    %c0_70 = arith.constant 0 : index
    %c0_71 = arith.constant 0 : index
    %c0_72 = arith.constant 0 : index
    %82 = vector.load %arg3[%c0_70, %c0_71, %c0_72] : memref<9x64x256xbf16, #tpu.memory_space<vmem>>, vector<1x64x256xbf16>
    %83 = vector.shape_cast %82 : vector<1x64x256xbf16> to vector<64x256xbf16>
    %cst_73 = arith.constant dense<0.000000e+00> : vector<64x8xf32>
    %84 = tpu.matmul %83, %80, %cst_73 {dimension_numbers = #tpu.dot_dimension_numbers<[1], [0], [0], [1], [0, 0, 1, 1], [], []>} : vector<64x256xbf16>, vector<256x8xbf16>, vector<64x8xf32> -> vector<64x8xf32>
    %85 = arith.truncf %84 : vector<64x8xf32> to vector<64x8xbf16>
    %c0_74 = arith.constant 0 : index
    %c0_75 = arith.constant 0 : index
    %c0_76 = arith.constant 0 : index
    %86 = vector.load %arg6[%c0_74, %c0_75, %c0_76] : memref<9x8x16xbf16, #tpu.memory_space<vmem>>, vector<1x8x16xbf16>
    %87 = vector.shape_cast %86 : vector<1x8x16xbf16> to vector<8x16xbf16>
    %cst_77 = arith.constant dense<0.000000e+00> : vector<64x16xf32>
    %88 = tpu.matmul %85, %87, %cst_77 {dimension_numbers = #tpu.dot_dimension_numbers<[1], [0], [0], [1], [0, 0, 1, 1], [], []>} : vector<64x8xbf16>, vector<8x16xbf16>, vector<64x16xf32> -> vector<64x16xf32>
    %89 = arith.addf %81, %88 : vector<64x16xf32>
    %c1_78 = arith.constant 1 : index
    %c0_79 = arith.constant 0 : index
    %c0_80 = arith.constant 0 : index
    %90 = vector.load %arg3[%c1_78, %c0_79, %c0_80] : memref<9x64x256xbf16, #tpu.memory_space<vmem>>, vector<1x64x256xbf16>
    %91 = vector.shape_cast %90 : vector<1x64x256xbf16> to vector<64x256xbf16>
    %cst_81 = arith.constant dense<0.000000e+00> : vector<64x8xf32>
    %92 = tpu.matmul %91, %80, %cst_81 {dimension_numbers = #tpu.dot_dimension_numbers<[1], [0], [0], [1], [0, 0, 1, 1], [], []>} : vector<64x256xbf16>, vector<256x8xbf16>, vector<64x8xf32> -> vector<64x8xf32>
    %93 = arith.truncf %92 : vector<64x8xf32> to vector<64x8xbf16>
    %c1_82 = arith.constant 1 : index
    %c0_83 = arith.constant 0 : index
    %c0_84 = arith.constant 0 : index
    %94 = vector.load %arg6[%c1_82, %c0_83, %c0_84] : memref<9x8x16xbf16, #tpu.memory_space<vmem>>, vector<1x8x16xbf16>
    %95 = vector.shape_cast %94 : vector<1x8x16xbf16> to vector<8x16xbf16>
    %cst_85 = arith.constant dense<0.000000e+00> : vector<64x16xf32>
    %96 = tpu.matmul %93, %95, %cst_85 {dimension_numbers = #tpu.dot_dimension_numbers<[1], [0], [0], [1], [0, 0, 1, 1], [], []>} : vector<64x8xbf16>, vector<8x16xbf16>, vector<64x16xf32> -> vector<64x16xf32>
    %97 = arith.addf %89, %96 : vector<64x16xf32>
    %c2_86 = arith.constant 2 : index
    %c0_87 = arith.constant 0 : index
    %c0_88 = arith.constant 0 : index
    %98 = vector.load %arg3[%c2_86, %c0_87, %c0_88] : memref<9x64x256xbf16, #tpu.memory_space<vmem>>, vector<1x64x256xbf16>
    %99 = vector.shape_cast %98 : vector<1x64x256xbf16> to vector<64x256xbf16>
    %cst_89 = arith.constant dense<0.000000e+00> : vector<64x8xf32>
    %100 = tpu.matmul %99, %80, %cst_89 {dimension_numbers = #tpu.dot_dimension_numbers<[1], [0], [0], [1], [0, 0, 1, 1], [], []>} : vector<64x256xbf16>, vector<256x8xbf16>, vector<64x8xf32> -> vector<64x8xf32>
    %101 = arith.truncf %100 : vector<64x8xf32> to vector<64x8xbf16>
    %c2_90 = arith.constant 2 : index
    %c0_91 = arith.constant 0 : index
    %c0_92 = arith.constant 0 : index
    %102 = vector.load %arg6[%c2_90, %c0_91, %c0_92] : memref<9x8x16xbf16, #tpu.memory_space<vmem>>, vector<1x8x16xbf16>
    %103 = vector.shape_cast %102 : vector<1x8x16xbf16> to vector<8x16xbf16>
    %cst_93 = arith.constant dense<0.000000e+00> : vector<64x16xf32>
    %104 = tpu.matmul %101, %103, %cst_93 {dimension_numbers = #tpu.dot_dimension_numbers<[1], [0], [0], [1], [0, 0, 1, 1], [], []>} : vector<64x8xbf16>, vector<8x16xbf16>, vector<64x16xf32> -> vector<64x16xf32>
    %105 = arith.addf %97, %104 : vector<64x16xf32>
    %c3_94 = arith.constant 3 : index
    %c0_95 = arith.constant 0 : index
    %c0_96 = arith.constant 0 : index
    %106 = vector.load %arg3[%c3_94, %c0_95, %c0_96] : memref<9x64x256xbf16, #tpu.memory_space<vmem>>, vector<1x64x256xbf16>
    %107 = vector.shape_cast %106 : vector<1x64x256xbf16> to vector<64x256xbf16>
    %cst_97 = arith.constant dense<0.000000e+00> : vector<64x8xf32>
    %108 = tpu.matmul %107, %80, %cst_97 {dimension_numbers = #tpu.dot_dimension_numbers<[1], [0], [0], [1], [0, 0, 1, 1], [], []>} : vector<64x256xbf16>, vector<256x8xbf16>, vector<64x8xf32> -> vector<64x8xf32>
    %109 = arith.truncf %108 : vector<64x8xf32> to vector<64x8xbf16>
    %c3_98 = arith.constant 3 : index
    %c0_99 = arith.constant 0 : index
    %c0_100 = arith.constant 0 : index
    %110 = vector.load %arg6[%c3_98, %c0_99, %c0_100] : memref<9x8x16xbf16, #tpu.memory_space<vmem>>, vector<1x8x16xbf16>
    %111 = vector.shape_cast %110 : vector<1x8x16xbf16> to vector<8x16xbf16>
    %cst_101 = arith.constant dense<0.000000e+00> : vector<64x16xf32>
    %112 = tpu.matmul %109, %111, %cst_101 {dimension_numbers = #tpu.dot_dimension_numbers<[1], [0], [0], [1], [0, 0, 1, 1], [], []>} : vector<64x8xbf16>, vector<8x16xbf16>, vector<64x16xf32> -> vector<64x16xf32>
    %113 = arith.addf %105, %112 : vector<64x16xf32>
    %c4_102 = arith.constant 4 : index
    %c0_103 = arith.constant 0 : index
    %c0_104 = arith.constant 0 : index
    %114 = vector.load %arg3[%c4_102, %c0_103, %c0_104] : memref<9x64x256xbf16, #tpu.memory_space<vmem>>, vector<1x64x256xbf16>
    %115 = vector.shape_cast %114 : vector<1x64x256xbf16> to vector<64x256xbf16>
    %cst_105 = arith.constant dense<0.000000e+00> : vector<64x8xf32>
    %116 = tpu.matmul %115, %80, %cst_105 {dimension_numbers = #tpu.dot_dimension_numbers<[1], [0], [0], [1], [0, 0, 1, 1], [], []>} : vector<64x256xbf16>, vector<256x8xbf16>, vector<64x8xf32> -> vector<64x8xf32>
    %117 = arith.truncf %116 : vector<64x8xf32> to vector<64x8xbf16>
    %c4_106 = arith.constant 4 : index
    %c0_107 = arith.constant 0 : index
    %c0_108 = arith.constant 0 : index
    %118 = vector.load %arg6[%c4_106, %c0_107, %c0_108] : memref<9x8x16xbf16, #tpu.memory_space<vmem>>, vector<1x8x16xbf16>
    %119 = vector.shape_cast %118 : vector<1x8x16xbf16> to vector<8x16xbf16>
    %cst_109 = arith.constant dense<0.000000e+00> : vector<64x16xf32>
    %120 = tpu.matmul %117, %119, %cst_109 {dimension_numbers = #tpu.dot_dimension_numbers<[1], [0], [0], [1], [0, 0, 1, 1], [], []>} : vector<64x8xbf16>, vector<8x16xbf16>, vector<64x16xf32> -> vector<64x16xf32>
    %121 = arith.addf %113, %120 : vector<64x16xf32>
    %c5_110 = arith.constant 5 : index
    %c0_111 = arith.constant 0 : index
    %c0_112 = arith.constant 0 : index
    %122 = vector.load %arg3[%c5_110, %c0_111, %c0_112] : memref<9x64x256xbf16, #tpu.memory_space<vmem>>, vector<1x64x256xbf16>
    %123 = vector.shape_cast %122 : vector<1x64x256xbf16> to vector<64x256xbf16>
    %cst_113 = arith.constant dense<0.000000e+00> : vector<64x8xf32>
    %124 = tpu.matmul %123, %80, %cst_113 {dimension_numbers = #tpu.dot_dimension_numbers<[1], [0], [0], [1], [0, 0, 1, 1], [], []>} : vector<64x256xbf16>, vector<256x8xbf16>, vector<64x8xf32> -> vector<64x8xf32>
    %125 = arith.truncf %124 : vector<64x8xf32> to vector<64x8xbf16>
    %c5_114 = arith.constant 5 : index
    %c0_115 = arith.constant 0 : index
    %c0_116 = arith.constant 0 : index
    %126 = vector.load %arg6[%c5_114, %c0_115, %c0_116] : memref<9x8x16xbf16, #tpu.memory_space<vmem>>, vector<1x8x16xbf16>
    %127 = vector.shape_cast %126 : vector<1x8x16xbf16> to vector<8x16xbf16>
    %cst_117 = arith.constant dense<0.000000e+00> : vector<64x16xf32>
    %128 = tpu.matmul %125, %127, %cst_117 {dimension_numbers = #tpu.dot_dimension_numbers<[1], [0], [0], [1], [0, 0, 1, 1], [], []>} : vector<64x8xbf16>, vector<8x16xbf16>, vector<64x16xf32> -> vector<64x16xf32>
    %129 = arith.addf %121, %128 : vector<64x16xf32>
    %c6_118 = arith.constant 6 : index
    %c0_119 = arith.constant 0 : index
    %c0_120 = arith.constant 0 : index
    %130 = vector.load %arg3[%c6_118, %c0_119, %c0_120] : memref<9x64x256xbf16, #tpu.memory_space<vmem>>, vector<1x64x256xbf16>
    %131 = vector.shape_cast %130 : vector<1x64x256xbf16> to vector<64x256xbf16>
    %cst_121 = arith.constant dense<0.000000e+00> : vector<64x8xf32>
    %132 = tpu.matmul %131, %80, %cst_121 {dimension_numbers = #tpu.dot_dimension_numbers<[1], [0], [0], [1], [0, 0, 1, 1], [], []>} : vector<64x256xbf16>, vector<256x8xbf16>, vector<64x8xf32> -> vector<64x8xf32>
    %133 = arith.truncf %132 : vector<64x8xf32> to vector<64x8xbf16>
    %c6_122 = arith.constant 6 : index
    %c0_123 = arith.constant 0 : index
    %c0_124 = arith.constant 0 : index
    %134 = vector.load %arg6[%c6_122, %c0_123, %c0_124] : memref<9x8x16xbf16, #tpu.memory_space<vmem>>, vector<1x8x16xbf16>
    %135 = vector.shape_cast %134 : vector<1x8x16xbf16> to vector<8x16xbf16>
    %cst_125 = arith.constant dense<0.000000e+00> : vector<64x16xf32>
    %136 = tpu.matmul %133, %135, %cst_125 {dimension_numbers = #tpu.dot_dimension_numbers<[1], [0], [0], [1], [0, 0, 1, 1], [], []>} : vector<64x8xbf16>, vector<8x16xbf16>, vector<64x16xf32> -> vector<64x16xf32>
    %137 = arith.addf %129, %136 : vector<64x16xf32>
    %c7_126 = arith.constant 7 : index
    %c0_127 = arith.constant 0 : index
    %c0_128 = arith.constant 0 : index
    %138 = vector.load %arg3[%c7_126, %c0_127, %c0_128] : memref<9x64x256xbf16, #tpu.memory_space<vmem>>, vector<1x64x256xbf16>
    %139 = vector.shape_cast %138 : vector<1x64x256xbf16> to vector<64x256xbf16>
    %cst_129 = arith.constant dense<0.000000e+00> : vector<64x8xf32>
    %140 = tpu.matmul %139, %80, %cst_129 {dimension_numbers = #tpu.dot_dimension_numbers<[1], [0], [0], [1], [0, 0, 1, 1], [], []>} : vector<64x256xbf16>, vector<256x8xbf16>, vector<64x8xf32> -> vector<64x8xf32>
    %141 = arith.truncf %140 : vector<64x8xf32> to vector<64x8xbf16>
    %c7_130 = arith.constant 7 : index
    %c0_131 = arith.constant 0 : index
    %c0_132 = arith.constant 0 : index
    %142 = vector.load %arg6[%c7_130, %c0_131, %c0_132] : memref<9x8x16xbf16, #tpu.memory_space<vmem>>, vector<1x8x16xbf16>
    %143 = vector.shape_cast %142 : vector<1x8x16xbf16> to vector<8x16xbf16>
    %cst_133 = arith.constant dense<0.000000e+00> : vector<64x16xf32>
    %144 = tpu.matmul %141, %143, %cst_133 {dimension_numbers = #tpu.dot_dimension_numbers<[1], [0], [0], [1], [0, 0, 1, 1], [], []>} : vector<64x8xbf16>, vector<8x16xbf16>, vector<64x16xf32> -> vector<64x16xf32>
    %145 = arith.addf %137, %144 : vector<64x16xf32>
    %c8_134 = arith.constant 8 : index
    %c0_135 = arith.constant 0 : index
    %c0_136 = arith.constant 0 : index
    %146 = vector.load %arg3[%c8_134, %c0_135, %c0_136] : memref<9x64x256xbf16, #tpu.memory_space<vmem>>, vector<1x64x256xbf16>
    %147 = vector.shape_cast %146 : vector<1x64x256xbf16> to vector<64x256xbf16>
    %cst_137 = arith.constant dense<0.000000e+00> : vector<64x8xf32>
    %148 = tpu.matmul %147, %80, %cst_137 {dimension_numbers = #tpu.dot_dimension_numbers<[1], [0], [0], [1], [0, 0, 1, 1], [], []>} : vector<64x256xbf16>, vector<256x8xbf16>, vector<64x8xf32> -> vector<64x8xf32>
    %149 = arith.truncf %148 : vector<64x8xf32> to vector<64x8xbf16>
    %c8_138 = arith.constant 8 : index
    %c0_139 = arith.constant 0 : index
    %c0_140 = arith.constant 0 : index
    %150 = vector.load %arg6[%c8_138, %c0_139, %c0_140] : memref<9x8x16xbf16, #tpu.memory_space<vmem>>, vector<1x8x16xbf16>
    %151 = vector.shape_cast %150 : vector<1x8x16xbf16> to vector<8x16xbf16>
    %cst_141 = arith.constant dense<0.000000e+00> : vector<64x16xf32>
    %152 = tpu.matmul %149, %151, %cst_141 {dimension_numbers = #tpu.dot_dimension_numbers<[1], [0], [0], [1], [0, 0, 1, 1], [], []>} : vector<64x8xbf16>, vector<8x16xbf16>, vector<64x16xf32> -> vector<64x16xf32>
    %153 = arith.addf %145, %152 : vector<64x16xf32>
    %c0_142 = arith.constant 0 : index
    %c0_143 = arith.constant 0 : index
    %154 = vector.load %arg7[%c0_142, %c0_143] : memref<1x16xf32, #tpu.memory_space<vmem>>, vector<1x16xf32>
    %155 = vector.broadcast %154 : vector<1x16xf32> to vector<64x16xf32>
    %156 = arith.addf %153, %155 : vector<64x16xf32>
    %cst_144 = arith.constant 0.000000e+00 : f32
    %157 = vector.broadcast %cst_144 : f32 to vector<64x16xf32>
    %158 = arith.maximumf %156, %157 : vector<64x16xf32>
    %159 = arith.truncf %158 : vector<64x16xf32> to vector<64x16xbf16>
    %c0_145 = arith.constant 0 : index
    %c0_146 = arith.constant 0 : index
    %160 = vector.load %arg8[%c0_145, %c0_146] : memref<16x32xbf16, #tpu.memory_space<vmem>>, vector<16x32xbf16>
    %cst_147 = arith.constant dense<0.000000e+00> : vector<64x32xf32>
    %161 = tpu.matmul %159, %160, %cst_147 {dimension_numbers = #tpu.dot_dimension_numbers<[1], [0], [0], [1], [0, 0, 1, 1], [], []>} : vector<64x16xbf16>, vector<16x32xbf16>, vector<64x32xf32> -> vector<64x32xf32>
    %c0_148 = arith.constant 0 : index
    %c0_149 = arith.constant 0 : index
    %162 = vector.load %arg9[%c0_148, %c0_149] : memref<1x32xf32, #tpu.memory_space<vmem>>, vector<1x32xf32>
    %163 = vector.broadcast %162 : vector<1x32xf32> to vector<64x32xf32>
    %164 = arith.addf %161, %163 : vector<64x32xf32>
    %cst_150 = arith.constant 0.000000e+00 : f32
    %165 = vector.broadcast %cst_150 : f32 to vector<64x32xf32>
    %166 = arith.maximumf %164, %165 : vector<64x32xf32>
    %167 = arith.truncf %166 : vector<64x32xf32> to vector<64x32xbf16>
    %c0_151 = arith.constant 0 : index
    %c0_152 = arith.constant 0 : index
    %168 = vector.load %arg10[%c0_151, %c0_152] : memref<32x128xbf16, #tpu.memory_space<vmem>>, vector<32x128xbf16>
    %cst_153 = arith.constant dense<0.000000e+00> : vector<64x128xf32>
    %169 = tpu.matmul %167, %168, %cst_153 {dimension_numbers = #tpu.dot_dimension_numbers<[1], [0], [0], [1], [0, 0, 1, 1], [], []>} : vector<64x32xbf16>, vector<32x128xbf16>, vector<64x128xf32> -> vector<64x128xf32>
    %c0_154 = arith.constant 0 : index
    %c0_155 = arith.constant 0 : index
    %170 = vector.load %arg11[%c0_154, %c0_155] : memref<1x128xf32, #tpu.memory_space<vmem>>, vector<1x128xf32>
    %171 = vector.broadcast %170 : vector<1x128xf32> to vector<64x128xf32>
    %172 = arith.addf %169, %171 : vector<64x128xf32>
    %cst_156 = arith.constant 0.000000e+00 : f32
    %173 = vector.broadcast %cst_156 : f32 to vector<64x128xf32>
    %174 = arith.subf %173, %172 : vector<64x128xf32>
    %175 = math.exp %174 : vector<64x128xf32>
    %cst_157 = arith.constant 1.000000e+00 : f32
    %176 = vector.broadcast %cst_157 : f32 to vector<64x128xf32>
    %177 = arith.addf %176, %175 : vector<64x128xf32>
    %178 = tpu.reciprocal %177 {approx = true} : vector<64x128xf32> -> vector<64x128xf32>
    %c0_158 = arith.constant 0 : index
    %c0_159 = arith.constant 0 : index
    %c0_160 = arith.constant 0 : index
    %179 = vector.load %arg12[%c0_158, %c0_159, %c0_160] : memref<1x64x128xf32, #tpu.memory_space<vmem>>, vector<1x64x128xf32>
    %180 = vector.shape_cast %179 : vector<1x64x128xf32> to vector<64x128xf32>
    %181 = vector.shape_cast %178 : vector<64x128xf32> to vector<1x64x128xf32>
    tpu.vector_store %arg12[%c0_158, %c0_159, %c0_160], %181 {strides = array<i32>} : memref<1x64x128xf32, #tpu.memory_space<vmem>>, vector<1x64x128xf32>,
    return
  }
  func.func @transform_0(%arg0: i32) -> (i32, i32, i32) {
    %c0_i32 = arith.constant 0 : i32
    %c0_i32_0 = arith.constant 0 : i32
    %c0_i32_1 = arith.constant 0 : i32
    return %arg0, %c0_i32, %c0_i32_0 : i32, i32, i32
  }
  func.func @transform_1(%arg0: i32) -> (i32, i32, i32) {
    %c0_i32 = arith.constant 0 : i32
    %c0_i32_0 = arith.constant 0 : i32
    %c0_i32_1 = arith.constant 0 : i32
    %c0_i32_2 = arith.constant 0 : i32
    return %c0_i32, %c0_i32_0, %c0_i32_1 : i32, i32, i32
  }
  func.func @transform_2(%arg0: i32) -> (i32, i32, i32) {
    %c0_i32 = arith.constant 0 : i32
    %c0_i32_0 = arith.constant 0 : i32
    %c0_i32_1 = arith.constant 0 : i32
    %c0_i32_2 = arith.constant 0 : i32
    return %c0_i32, %c0_i32_0, %c0_i32_1 : i32, i32, i32
  }
  func.func @transform_3(%arg0: i32) -> (i32, i32, i32) {
    %c0_i32 = arith.constant 0 : i32
    %c0_i32_0 = arith.constant 0 : i32
    %c0_i32_1 = arith.constant 0 : i32
    %c0_i32_2 = arith.constant 0 : i32
    return %c0_i32, %c0_i32_0, %c0_i32_1 : i32, i32, i32
  }
  func.func @transform_4(%arg0: i32) -> (i32, i32) {
    %c0_i32 = arith.constant 0 : i32
    %c0_i32_0 = arith.constant 0 : i32
    %c0_i32_1 = arith.constant 0 : i32
    return %c0_i32, %c0_i32_0 : i32, i32
  }
  func.func @transform_5(%arg0: i32) -> (i32, i32, i32) {
    %c0_i32 = arith.constant 0 : i32
    %c0_i32_0 = arith.constant 0 : i32
    %c0_i32_1 = arith.constant 0 : i32
    %c0_i32_2 = arith.constant 0 : i32
    return %c0_i32, %c0_i32_0, %c0_i32_1 : i32, i32, i32
  }
  func.func @transform_6(%arg0: i32) -> (i32, i32) {
    %c0_i32 = arith.constant 0 : i32
    %c0_i32_0 = arith.constant 0 : i32
    %c0_i32_1 = arith.constant 0 : i32
    return %c0_i32, %c0_i32_0 : i32, i32
  }
  func.func @transform_7(%arg0: i32) -> (i32, i32) {
    %c0_i32 = arith.constant 0 : i32
    %c0_i32_0 = arith.constant 0 : i32
    %c0_i32_1 = arith.constant 0 : i32
    return %c0_i32, %c0_i32_0 : i32, i32
  }
  func.func @transform_8(%arg0: i32) -> (i32, i32) {
    %c0_i32 = arith.constant 0 : i32
    %c0_i32_0 = arith.constant 0 : i32
    %c0_i32_1 = arith.constant 0 : i32
    return %c0_i32, %c0_i32_0 : i32, i32
  }
  func.func @transform_9(%arg0: i32) -> (i32, i32) {
    %c0_i32 = arith.constant 0 : i32
    %c0_i32_0 = arith.constant 0 : i32
    %c0_i32_1 = arith.constant 0 : i32
    return %c0_i32, %c0_i32_0 : i32, i32
  }
  func.func @transform_10(%arg0: i32) -> (i32, i32) {
    %c0_i32 = arith.constant 0 : i32
    %c0_i32_0 = arith.constant 0 : i32
    %c0_i32_1 = arith.constant 0 : i32
    return %c0_i32, %c0_i32_0 : i32, i32
  }
  func.func @transform_11(%arg0: i32) -> (i32, i32, i32) {
    %c0_i32 = arith.constant 0 : i32
    %c0_i32_0 = arith.constant 0 : i32
    %c0_i32_1 = arith.constant 0 : i32
    return %arg0, %c0_i32, %c0_i32_0 : i32, i32, i32
  }
}

</mosaic_0001>

<llo_original>
// kernel: conv_extractor_forward.1
$region0: #{conv_extractor_forward.1}
  #allocation0 [shape = 'u32[]', space=smem, size = 0x4, offset = 0x4, fixed_abs, tag = 'smem constant byte address 0x4 - core index']
  #allocation1 [shape = 'u32[144,128]{1,0:T(1,128)}', space=vmem, size = 0x12000, scoped, tag = 'internal scratch']
  %s0 = inlined_call_operand.vmem [shape: bf16[2,256,8], index: 0, kind: input, shape index: {}]
  %s1 = inlined_call_operand.vmem [shape: bf16[9,256,256], index: 1, kind: input, shape index: {}]
  %s2 = inlined_call_operand.vmem [shape: bf16[9,64,256], index: 2, kind: input, shape index: {}]
  %s3 = inlined_call_operand.vmem [shape: bf16[9,8,8], index: 3, kind: input, shape index: {}]
  %s4 = inlined_call_operand.vmem [shape: f32[1,8], index: 4, kind: input, shape index: {}]
  %s5 = inlined_call_operand.vmem [shape: bf16[9,8,16], index: 5, kind: input, shape index: {}]
  %s6 = inlined_call_operand.vmem [shape: f32[1,16], index: 6, kind: input, shape index: {}]
  %s7 = inlined_call_operand.vmem [shape: bf16[16,32], index: 7, kind: input, shape index: {}]
  %s8 = inlined_call_operand.vmem [shape: f32[1,32], index: 8, kind: input, shape index: {}]
  %s9 = inlined_call_operand.vmem [shape: bf16[32,128], index: 9, kind: input, shape index: {}]
  %s10 = inlined_call_operand.vmem [shape: f32[1,128], index: 10, kind: input, shape index: {}]
  %s11 = inlined_call_operand.vmem [shape: f32[2,64,128], index: 11, kind: output, shape index: {}]
  %s12 = sld [smem:[#allocation0]]
  $region77: #{conv_extractor_forward.1} parent=0
    _
  %s14 = ssub.s32 1, %s12
  %s15 = scalar_select 0, %s14, %s12
  loop: start=0, step=1, limit=4
  $region2: #{conv_extractor_forward.1} parent=0 // loop_pre_header
    _
  $region3: #{conv_extractor_forward.1} parent=0 // loop_header
    %s17 = sphi 0, %s21
    %p18 = scmp.ge.s32.totalorder %s17, 4
    %s27 = sphi 0, %s29
    %s30 = sphi 0, %s27
    %s31 = sphi 0, %s30
    %s47 = sphi 0, %s31
    %s51 = sphi 0, %s51
    %s53 = sphi 0, %s51
    %s54 = sphi 0, %s53
    %s68 = sphi 0, %s54
    %s72 = sphi 0, %s72
    %s74 = sphi 0, %s72
    %s75 = sphi 0, %s74
    %s89 = sphi 0, %s75
    %s93 = sphi 0, %s93
    %s95 = sphi 0, %s93
    %s96 = sphi 0, %s95
    %s110 = sphi 0, %s96
    %s114 = sphi 0, %s114
    %s116 = sphi 0, %s114
    %s117 = sphi 0, %s116
    %s131 = sphi 0, %s117
    %s135 = sphi 0, %s135
    %s137 = sphi 0, %s135
    %s138 = sphi 0, %s137
    %s152 = sphi 0, %s138
    %s156 = sphi 0, %s156
    %s158 = sphi 0, %s156
    %s159 = sphi 0, %s158
    %s173 = sphi 0, %s159
    %s177 = sphi 0, %s177
    %s179 = sphi 0, %s177
    %s180 = sphi 0, %s179
    %s194 = sphi 0, %s180
    %s198 = sphi 0, %s198
    %s200 = sphi 0, %s198
    %s201 = sphi 0, %s200
    %s215 = sphi 0, %s201
    %s219 = sphi 0, %s219
    %s221 = sphi 0, %s219
    %s222 = sphi 0, %s221
    %s236 = sphi 0, %s222
    %s240 = sphi 0, %s240
    %s242 = sphi 0, %s240
    %s243 = sphi 0, %s242
    %s257 = sphi 0, %s243
    %s263 = sphi 0, %s265
    %s266 = sphi 0, %s263
    %s267 = sphi 0, %s266
    %s283 = sphi 0, %s267
  $region4: #{conv_extractor_forward.1} parent=0 // loop_header_branch
    %20 = sbr.rel (%p18) target = $region8
  $region5: #{conv_extractor_forward.1} parent=0 // loop_body
    %s22 = ssub.s32 %s17, 1
    %s23 = ssub.s32 %s17, 2
    %s24 = sadd.s32 %s17, 1
    %s25 = ssub.s32 %s17, %s24
    %p26 = scmp.eq.s32.totalorder %s25, 0
    %s28 = sadd.s32 %s27, 1
    %s29 = scalar_select %p26, %s27, %s28
    %p32 = pneg %p26
    %p33 = scmp.eq.s32.totalorder %s17, 1
    %p34 = por %p32, %p33
    %p35 = scmp.ne.s32.totalorder %s27, %s30
    %p36 = scmp.eq.s32.totalorder %s17, 0
    %p37 = por %p35, %p36
    %p38 = scmp.ne.s32.totalorder %s27, %s30
    %p39 = scmp.eq.s32.totalorder %s22, 1
    %p40 = por %p38, %p39
    %p41 = scmp.ne.s32.totalorder %s30, %s31
    %p42 = scmp.eq.s32.totalorder %s22, 0
    %p43 = por %p41, %p42
    %p44 = scmp.ne.s32.totalorder %s30, %s31
    %p45 = scmp.eq.s32.totalorder %s23, 1
    %p46 = por %p44, %p45
    %p48 = scmp.ne.s32.totalorder %s31, %s47
    %p49 = scmp.eq.s32.totalorder %s23, 0
    %p50 = por %p48, %p49
    %s52 = sadd.s32 %s51, 1
    %p55 = scmp.eq.s32.totalorder %s17, 1
    %p56 = scmp.ne.s32.totalorder %s51, %s53
    %p57 = scmp.eq.s32.totalorder %s17, 0
    %p58 = por %p56, %p57
    %p59 = scmp.ne.s32.totalorder %s51, %s53
    %p60 = scmp.eq.s32.totalorder %s22, 1
    %p61 = por %p59, %p60
    %p62 = scmp.ne.s32.totalorder %s53, %s54
    %p63 = scmp.eq.s32.totalorder %s22, 0
    %p64 = por %p62, %p63
    %p65 = scmp.ne.s32.totalorder %s53, %s54
    %p66 = scmp.eq.s32.totalorder %s23, 1
    %p67 = por %p65, %p66
    %p69 = scmp.ne.s32.totalorder %s54, %s68
    %p70 = scmp.eq.s32.totalorder %s23, 0
    %p71 = por %p69, %p70
    %s73 = sadd.s32 %s72, 1
    %p76 = scmp.eq.s32.totalorder %s17, 1
    %p77 = scmp.ne.s32.totalorder %s72, %s74
    %p78 = scmp.eq.s32.totalorder %s17, 0
    %p79 = por %p77, %p78
    %p80 = scmp.ne.s32.totalorder %s72, %s74
    %p81 = scmp.eq.s32.totalorder %s22, 1
    %p82 = por %p80, %p81
    %p83 = scmp.ne.s32.totalorder %s74, %s75
    %p84 = scmp.eq.s32.totalorder %s22, 0
    %p85 = por %p83, %p84
    %p86 = scmp.ne.s32.totalorder %s74, %s75
    %p87 = scmp.eq.s32.totalorder %s23, 1
    %p88 = por %p86, %p87
    %p90 = scmp.ne.s32.totalorder %s75, %s89
    %p91 = scmp.eq.s32.totalorder %s23, 0
    %p92 = por %p90, %p91
    %s94 = sadd.s32 %s93, 1
    %p97 = scmp.eq.s32.totalorder %s17, 1
    %p98 = scmp.ne.s32.totalorder %s93, %s95
    %p99 = scmp.eq.s32.totalorder %s17, 0
    %p100 = por %p98, %p99
    %p101 = scmp.ne.s32.totalorder %s93, %s95
    %p102 = scmp.eq.s32.totalorder %s22, 1
    %p103 = por %p101, %p102
    %p104 = scmp.ne.s32.totalorder %s95, %s96
    %p105 = scmp.eq.s32.totalorder %s22, 0
    %p106 = por %p104, %p105
    %p107 = scmp.ne.s32.totalorder %s95, %s96
    %p108 = scmp.eq.s32.totalorder %s23, 1
    %p109 = por %p107, %p108
    %p111 = scmp.ne.s32.totalorder %s96, %s110
    %p112 = scmp.eq.s32.totalorder %s23, 0
    %p113 = por %p111, %p112
    %s115 = sadd.s32 %s114, 1
    %p118 = scmp.eq.s32.totalorder %s17, 1
    %p119 = scmp.ne.s32.totalorder %s114, %s116
    %p120 = scmp.eq.s32.totalorder %s17, 0
    %p121 = por %p119, %p120
    %p122 = scmp.ne.s32.totalorder %s114, %s116
    %p123 = scmp.eq.s32.totalorder %s22, 1
    %p124 = por %p122, %p123
    %p125 = scmp.ne.s32.totalorder %s116, %s117
    %p126 = scmp.eq.s32.totalorder %s22, 0
    %p127 = por %p125, %p126
    %p128 = scmp.ne.s32.totalorder %s116, %s117
    %p129 = scmp.eq.s32.totalorder %s23, 1
    %p130 = por %p128, %p129
    %p132 = scmp.ne.s32.totalorder %s117, %s131
    %p133 = scmp.eq.s32.totalorder %s23, 0
    %p134 = por %p132, %p133
    %s136 = sadd.s32 %s135, 1
    %p139 = scmp.eq.s32.totalorder %s17, 1
    %p140 = scmp.ne.s32.totalorder %s135, %s137
    %p141 = scmp.eq.s32.totalorder %s17, 0
    %p142 = por %p140, %p141
    %p143 = scmp.ne.s32.totalorder %s135, %s137
    %p144 = scmp.eq.s32.totalorder %s22, 1
    %p145 = por %p143, %p144
    %p146 = scmp.ne.s32.totalorder %s137, %s138
    %p147 = scmp.eq.s32.totalorder %s22, 0
    %p148 = por %p146, %p147
    %p149 = scmp.ne.s32.totalorder %s137, %s138
    %p150 = scmp.eq.s32.totalorder %s23, 1
    %p151 = por %p149, %p150
    %p153 = scmp.ne.s32.totalorder %s138, %s152
    %p154 = scmp.eq.s32.totalorder %s23, 0
    %p155 = por %p153, %p154
    %s157 = sadd.s32 %s156, 1
    %p160 = scmp.eq.s32.totalorder %s17, 1
    %p161 = scmp.ne.s32.totalorder %s156, %s158
    %p162 = scmp.eq.s32.totalorder %s17, 0
    %p163 = por %p161, %p162
    %p164 = scmp.ne.s32.totalorder %s156, %s158
    %p165 = scmp.eq.s32.totalorder %s22, 1
    %p166 = por %p164, %p165
    %p167 = scmp.ne.s32.totalorder %s158, %s159
    %p168 = scmp.eq.s32.totalorder %s22, 0
    %p169 = por %p167, %p168
    %p170 = scmp.ne.s32.totalorder %s158, %s159
    %p171 = scmp.eq.s32.totalorder %s23, 1
    %p172 = por %p170, %p171
    %p174 = scmp.ne.s32.totalorder %s159, %s173
    %p175 = scmp.eq.s32.totalorder %s23, 0
    %p176 = por %p174, %p175
    %s178 = sadd.s32 %s177, 1
    %p181 = scmp.eq.s32.totalorder %s17, 1
    %p182 = scmp.ne.s32.totalorder %s177, %s179
    %p183 = scmp.eq.s32.totalorder %s17, 0
    %p184 = por %p182, %p183
    %p185 = scmp.ne.s32.totalorder %s177, %s179
    %p186 = scmp.eq.s32.totalorder %s22, 1
    %p187 = por %p185, %p186
    %p188 = scmp.ne.s32.totalorder %s179, %s180
    %p189 = scmp.eq.s32.totalorder %s22, 0
    %p190 = por %p188, %p189
    %p191 = scmp.ne.s32.totalorder %s179, %s180
    %p192 = scmp.eq.s32.totalorder %s23, 1
    %p193 = por %p191, %p192
    %p195 = scmp.ne.s32.totalorder %s180, %s194
    %p196 = scmp.eq.s32.totalorder %s23, 0
    %p197 = por %p195, %p196
    %s199 = sadd.s32 %s198, 1
    %p202 = scmp.eq.s32.totalorder %s17, 1
    %p203 = scmp.ne.s32.totalorder %s198, %s200
    %p204 = scmp.eq.s32.totalorder %s17, 0
    %p205 = por %p203, %p204
    %p206 = scmp.ne.s32.totalorder %s198, %s200
    %p207 = scmp.eq.s32.totalorder %s22, 1
    %p208 = por %p206, %p207
    %p209 = scmp.ne.s32.totalorder %s200, %s201
    %p210 = scmp.eq.s32.totalorder %s22, 0
    %p211 = por %p209, %p210
    %p212 = scmp.ne.s32.totalorder %s200, %s201
    %p213 = scmp.eq.s32.totalorder %s23, 1
    %p214 = por %p212, %p213
    %p216 = scmp.ne.s32.totalorder %s201, %s215
    %p217 = scmp.eq.s32.totalorder %s23, 0
    %p218 = por %p216, %p217
    %s220 = sadd.s32 %s219, 1
    %p223 = scmp.eq.s32.totalorder %s17, 1
    %p224 = scmp.ne.s32.totalorder %s219, %s221
    %p225 = scmp.eq.s32.totalorder %s17, 0
    %p226 = por %p224, %p225
    %p227 = scmp.ne.s32.totalorder %s219, %s221
    %p228 = scmp.eq.s32.totalorder %s22, 1
    %p229 = por %p227, %p228
    %p230 = scmp.ne.s32.totalorder %s221, %s222
    %p231 = scmp.eq.s32.totalorder %s22, 0
    %p232 = por %p230, %p231
    %p233 = scmp.ne.s32.totalorder %s221, %s222
    %p234 = scmp.eq.s32.totalorder %s23, 1
    %p235 = por %p233, %p234
    %p237 = scmp.ne.s32.totalorder %s222, %s236
    %p238 = scmp.eq.s32.totalorder %s23, 0
    %p239 = por %p237, %p238
    %s241 = sadd.s32 %s240, 1
    %p244 = scmp.eq.s32.totalorder %s17, 1
    %p245 = scmp.ne.s32.totalorder %s240, %s242
    %p246 = scmp.eq.s32.totalorder %s17, 0
    %p247 = por %p245, %p246
    %p248 = scmp.ne.s32.totalorder %s240, %s242
    %p249 = scmp.eq.s32.totalorder %s22, 1
    %p250 = por %p248, %p249
    %p251 = scmp.ne.s32.totalorder %s242, %s243
    %p252 = scmp.eq.s32.totalorder %s22, 0
    %p253 = por %p251, %p252
    %p254 = scmp.ne.s32.totalorder %s242, %s243
    %p255 = scmp.eq.s32.totalorder %s23, 1
    %p256 = por %p254, %p255
    %p258 = scmp.ne.s32.totalorder %s243, %s257
    %p259 = scmp.eq.s32.totalorder %s23, 0
    %p260 = por %p258, %p259
    %s261 = ssub.s32 %s17, %s24
    %p262 = scmp.eq.s32.totalorder %s261, 0
    %s264 = sadd.s32 %s263, 1
    %s265 = scalar_select %p262, %s263, %s264
    %p268 = pneg %p262
    %p269 = scmp.eq.s32.totalorder %s17, 1
    %p270 = por %p268, %p269
    %p271 = scmp.ne.s32.totalorder %s263, %s266
    %p272 = scmp.eq.s32.totalorder %s17, 0
    %p273 = por %p271, %p272
    %p274 = scmp.ne.s32.totalorder %s263, %s266
    %p275 = scmp.eq.s32.totalorder %s22, 1
    %p276 = por %p274, %p275
    %p277 = scmp.ne.s32.totalorder %s266, %s267
    %p278 = scmp.eq.s32.totalorder %s22, 0
    %p279 = por %p277, %p278
    %p280 = scmp.ne.s32.totalorder %s266, %s267
    %p281 = scmp.eq.s32.totalorder %s23, 1
    %p282 = por %p280, %p281
    %p284 = scmp.ne.s32.totalorder %s267, %s283
    %p285 = scmp.eq.s32.totalorder %s23, 0
    %p286 = por %p284, %p285
    %p287 = scmp.le.s32.totalorder 1, %s17
    %p288 = scmp.lt.s32.totalorder %s17, 3
    %p289 = pnand %p287, %p288
    %p290 = pneg %p289
    // Predicated region
    $region9: #{conv_extractor_forward.1} parent=5 // pred_check
      _
    $region10: #{conv_extractor_forward.1} parent=5 // pred_check_branch
      %292 = sbr.rel (%p289) target = $region12
    $region11: #{conv_extractor_forward.1} parent=5 // pred_region
      %s293 = ssub.s32 %s17, 1
      // Predicated region
      $region13: #{conv_extractor_forward.1} parent=11 // pred_check
        %p294 = pneg %p64
      $region14: #{conv_extractor_forward.1} parent=11 // pred_check_branch
        %296 = sbr.rel (%p294) target = $region16
      $region15: #{conv_extractor_forward.1} parent=11 // pred_region
        _
      $region16: #{conv_extractor_forward.1} parent=11 // pred_fallthru
        _
      // Predicated region
      $region17: #{conv_extractor_forward.1} parent=11 // pred_check
        %p297 = pneg %p85
      $region18: #{conv_extractor_forward.1} parent=11 // pred_check_branch
        %299 = sbr.rel (%p297) target = $region20
      $region19: #{conv_extractor_forward.1} parent=11 // pred_region
        _
      $region20: #{conv_extractor_forward.1} parent=11 // pred_fallthru
        _
      // Predicated region
      $region21: #{conv_extractor_forward.1} parent=11 // pred_check
        %p300 = pneg %p106
      $region22: #{conv_extractor_forward.1} parent=11 // pred_check_branch
        %302 = sbr.rel (%p300) target = $region24
      $region23: #{conv_extractor_forward.1} parent=11 // pred_region
        _
      $region24: #{conv_extractor_forward.1} parent=11 // pred_fallthru
        _
      // Predicated region
      $region25: #{conv_extractor_forward.1} parent=11 // pred_check
        %p303 = pneg %p127
      $region26: #{conv_extractor_forward.1} parent=11 // pred_check_branch
        %305 = sbr.rel (%p303) target = $region28
      $region27: #{conv_extractor_forward.1} parent=11 // pred_region
        _
      $region28: #{conv_extractor_forward.1} parent=11 // pred_fallthru
        _
      // Predicated region
      $region29: #{conv_extractor_forward.1} parent=11 // pred_check
        %p306 = pneg %p148
      $region30: #{conv_extractor_forward.1} parent=11 // pred_check_branch
        %308 = sbr.rel (%p306) target = $region32
      $region31: #{conv_extractor_forward.1} parent=11 // pred_region
        _
      $region32: #{conv_extractor_forward.1} parent=11 // pred_fallthru
        _
      // Predicated region
      $region33: #{conv_extractor_forward.1} parent=11 // pred_check
        %p309 = pneg %p169
      $region34: #{conv_extractor_forward.1} parent=11 // pred_check_branch
        %311 = sbr.rel (%p309) target = $region36
      $region35: #{conv_extractor_forward.1} parent=11 // pred_region
        _
      $region36: #{conv_extractor_forward.1} parent=11 // pred_fallthru
        _
      // Predicated region
      $region37: #{conv_extractor_forward.1} parent=11 // pred_check
        %p312 = pneg %p190
      $region38: #{conv_extractor_forward.1} parent=11 // pred_check_branch
        %314 = sbr.rel (%p312) target = $region40
      $region39: #{conv_extractor_forward.1} parent=11 // pred_region
        _
      $region40: #{conv_extractor_forward.1} parent=11 // pred_fallthru
        _
      // Predicated region
      $region41: #{conv_extractor_forward.1} parent=11 // pred_check
        %p315 = pneg %p211
      $region42: #{conv_extractor_forward.1} parent=11 // pred_check_branch
        %317 = sbr.rel (%p315) target = $region44
      $region43: #{conv_extractor_forward.1} parent=11 // pred_region
        _
      $region44: #{conv_extractor_forward.1} parent=11 // pred_fallthru
        _
      // Predicated region
      $region45: #{conv_extractor_forward.1} parent=11 // pred_check
        %p318 = pneg %p232
      $region46: #{conv_extractor_forward.1} parent=11 // pred_check_branch
        %320 = sbr.rel (%p318) target = $region48
      $region47: #{conv_extractor_forward.1} parent=11 // pred_region
        _
      $region48: #{conv_extractor_forward.1} parent=11 // pred_fallthru
        _
      // Predicated region
      $region49: #{conv_extractor_forward.1} parent=11 // pred_check
        %p321 = pneg %p253
      $region50: #{conv_extractor_forward.1} parent=11 // pred_check_branch
        %323 = sbr.rel (%p321) target = $region52
      $region51: #{conv_extractor_forward.1} parent=11 // pred_region
        _
      $region52: #{conv_extractor_forward.1} parent=11 // pred_fallthru
        _
    $region12: #{conv_extractor_forward.1} parent=5 // pred_fallthru
      _
    %p324 = scmp.lt.s32.totalorder %s17, 2
    // Predicated region
    $region53: #{conv_extractor_forward.1} parent=5 // pred_check
      %p325 = pneg %p324
    $region54: #{conv_extractor_forward.1} parent=5 // pred_check_branch
      %327 = sbr.rel (%p325) target = $region56
    $region55: #{conv_extractor_forward.1} parent=5 // pred_region
      // Predicated region
      $region57: #{conv_extractor_forward.1} parent=55 // pred_check
        %p328 = pneg %p37
      $region58: #{conv_extractor_forward.1} parent=55 // pred_check_branch
        %330 = sbr.rel (%p328) target = $region60
      $region59: #{conv_extractor_forward.1} parent=55 // pred_region
        %p331 = scmp.lt.s32.totalorder %s17, 1
        %s332 = scalar_select %p331, %s17, 1
        %s333 = smul.addr %s332, 32
        %s334 = smul.addr %s333, 4
        %s335 = scalar_lea.vmem %s0, %s334
      $region60: #{conv_extractor_forward.1} parent=55 // pred_fallthru
        _
    $region56: #{conv_extractor_forward.1} parent=5 // pred_fallthru
      _
    %p336 = scmp.le.s32.totalorder 1, %s17
    %p337 = scmp.lt.s32.totalorder %s17, 3
    %p338 = pnand %p336, %p337
    %p339 = pneg %p338
    // Predicated region
    $region61: #{conv_extractor_forward.1} parent=5 // pred_check
      _
    $region62: #{conv_extractor_forward.1} parent=5 // pred_check_branch
      %341 = sbr.rel (%p338) target = $region64
    $region63: #{conv_extractor_forward.1} parent=5 // pred_region
      %s342 = ssub.s32 %s17, 1
      %p343 = scmp.lt.s32.totalorder %s22, 1
      %s344 = scalar_select %p343, %s22, 1
      %s345 = smul.addr %s344, 32
      %s346 = smul.addr %s345, 4
      %s347 = scalar_lea.vmem %s0, %s346
      %p348 = pneg %p43
      %p349 = pneg %p40
      %p350 = pneg %p64
      %p351 = pneg %p61
      %p352 = pneg %p85
      %p353 = pneg %p82
      %p354 = pneg %p106
      %p355 = pneg %p103
      %p356 = pneg %p127
      %p357 = pneg %p124
      %p358 = pneg %p148
      %p359 = pneg %p145
      %p360 = pneg %p169
      %p361 = pneg %p166
      %p362 = pneg %p190
      %p363 = pneg %p187
      %p364 = pneg %p211
      %p365 = pneg %p208
      %p366 = pneg %p232
      %p367 = pneg %p229
      %p368 = pneg %p253
      %p369 = pneg %p250
      %p370 = pneg %p279
      %p371 = pneg %p276
      %p372 = scmp.lt.s32.totalorder %s22, 1
      %s373 = scalar_select %p372, %s22, 1
      %s374 = smul.addr %s373, 8
      %s375 = smul.addr %s374, 8
      %s376 = scalar_lea.vmem %s11, %s375
      %p377 = scmp.lt.s32.totalorder %s22, 1
      %s378 = scalar_select %p377, %s22, 1
      %s379 = smul.addr %s378, 32
      %s380 = smul.addr %s379, 4
      %s381 = scalar_lea.vmem %s0, %s380
      %p382 = scmp.lt.s32.totalorder %s22, 1
      %s383 = scalar_select %p382, %s22, 1
      %s384 = smul.addr %s383, 8
      %s385 = smul.addr %s384, 8
      %s386 = scalar_lea.vmem %s11, %s385
      %v388 = vld [vmem:[%s381] sm:$0xf]
      %v389 = vld [vmem:[%s381 + $0x4] sm:$0xf]
      %v390 = vld [vmem:[%s381 + $0x8] sm:$0xf]
      %v391 = vld [vmem:[%s381 + $0xc] sm:$0xf]
      %v392 = vld [vmem:[%s381 + $0x10] sm:$0xf]
      %v393 = vld [vmem:[%s381 + $0x14] sm:$0xf]
      %v394 = vld [vmem:[%s381 + $0x18] sm:$0xf]
      %v395 = vld [vmem:[%s381 + $0x1c] sm:$0xf]
      %v396 = vld [vmem:[%s381 + $0x20] sm:$0xf]
      %v397 = vld [vmem:[%s381 + $0x24] sm:$0xf]
      %v398 = vld [vmem:[%s381 + $0x28] sm:$0xf]
      %v399 = vld [vmem:[%s381 + $0x2c] sm:$0xf]
      %v400 = vld [vmem:[%s381 + $0x30] sm:$0xf]
      %v401 = vld [vmem:[%s381 + $0x34] sm:$0xf]
      %v402 = vld [vmem:[%s381 + $0x38] sm:$0xf]
      %v403 = vld [vmem:[%s381 + $0x3c] sm:$0xf]
      %v404 = vld [vmem:[%s381 + $0x40] sm:$0xf]
      %v405 = vld [vmem:[%s381 + $0x44] sm:$0xf]
      %v406 = vld [vmem:[%s381 + $0x48] sm:$0xf]
      %v407 = vld [vmem:[%s381 + $0x4c] sm:$0xf]
      %v408 = vld [vmem:[%s381 + $0x50] sm:$0xf]
      %v409 = vld [vmem:[%s381 + $0x54] sm:$0xf]
      %v410 = vld [vmem:[%s381 + $0x58] sm:$0xf]
      %v411 = vld [vmem:[%s381 + $0x5c] sm:$0xf]
      %v412 = vld [vmem:[%s381 + $0x60] sm:$0xf]
      %v413 = vld [vmem:[%s381 + $0x64] sm:$0xf]
      %v414 = vld [vmem:[%s381 + $0x68] sm:$0xf]
      %v415 = vld [vmem:[%s381 + $0x6c] sm:$0xf]
      %v416 = vld [vmem:[%s381 + $0x70] sm:$0xf]
      %v417 = vld [vmem:[%s381 + $0x74] sm:$0xf]
      %v418 = vld [vmem:[%s381 + $0x78] sm:$0xf]
      %v419 = vld [vmem:[%s381 + $0x7c] sm:$0xf]
      %v420 = vld [vmem:[%s1] sm:$0xff]
      %v421 = vld [vmem:[%s1 + $0x8] sm:$0xff]
      %v422 = vld [vmem:[%s1 + $0x10] sm:$0xff]
      %v423 = vld [vmem:[%s1 + $0x18] sm:$0xff]
      %v424 = vld [vmem:[%s1 + $0x20] sm:$0xff]
      %v425 = vld [vmem:[%s1 + $0x28] sm:$0xff]
      %v426 = vld [vmem:[%s1 + $0x30] sm:$0xff]
      %v427 = vld [vmem:[%s1 + $0x38] sm:$0xff]
      %v428 = vld [vmem:[%s1 + $0x40] sm:$0xff]
      %v429 = vld [vmem:[%s1 + $0x48] sm:$0xff]
      %v430 = vld [vmem:[%s1 + $0x50] sm:$0xff]
      %v431 = vld [vmem:[%s1 + $0x58] sm:$0xff]
      %v432 = vld [vmem:[%s1 + $0x60] sm:$0xff]
      %v433 = vld [vmem:[%s1 + $0x68] sm:$0xff]
      %v434 = vld [vmem:[%s1 + $0x70] sm:$0xff]
      %v435 = vld [vmem:[%s1 + $0x78] sm:$0xff]
      %v436 = vld [vmem:[%s1 + $0x80] sm:$0xff]
      %v437 = vld [vmem:[%s1 + $0x88] sm:$0xff]
      %v438 = vld [vmem:[%s1 + $0x90] sm:$0xff]
      %v439 = vld [vmem:[%s1 + $0x98] sm:$0xff]
      %v440 = vld [vmem:[%s1 + $0xa0] sm:$0xff]
      %v441 = vld [vmem:[%s1 + $0xa8] sm:$0xff]
      %v442 = vld [vmem:[%s1 + $0xb0] sm:$0xff]
      %v443 = vld [vmem:[%s1 + $0xb8] sm:$0xff]
      %v444 = vld [vmem:[%s1 + $0xc0] sm:$0xff]
      %v445 = vld [vmem:[%s1 + $0xc8] sm:$0xff]
      %v446 = vld [vmem:[%s1 + $0xd0] sm:$0xff]
      %v447 = vld [vmem:[%s1 + $0xd8] sm:$0xff]
      %v448 = vld [vmem:[%s1 + $0xe0] sm:$0xff]
      %v449 = vld [vmem:[%s1 + $0xe8] sm:$0xff]
      %v450 = vld [vmem:[%s1 + $0xf0] sm:$0xff]
      %v451 = vld [vmem:[%s1 + $0xf8] sm:$0xff]
      %v484 = vunpack.c.l.b16 %v420
      %v485 = vunpack.c.h.b16 %v420
      %v486 = vunpack.c.l.b16 %v421
      %v487 = vunpack.c.h.b16 %v421
      %v488 = vunpack.c.l.b16 %v422
      %v489 = vunpack.c.h.b16 %v422
      %v490 = vunpack.c.l.b16 %v423
      %v491 = vunpack.c.h.b16 %v423
      %v492 = vunpack.c.l.b16 %v424
      %v493 = vunpack.c.h.b16 %v424
      %v494 = vunpack.c.l.b16 %v425
      %v495 = vunpack.c.h.b16 %v425
      %v496 = vunpack.c.l.b16 %v426
      %v497 = vunpack.c.h.b16 %v426
      %v498 = vunpack.c.l.b16 %v427
      %v499 = vunpack.c.h.b16 %v427
      %v500 = vunpack.c.l.b16 %v428
      %v501 = vunpack.c.h.b16 %v428
      %v502 = vunpack.c.l.b16 %v429
      %v503 = vunpack.c.h.b16 %v429
      %v504 = vunpack.c.l.b16 %v430
      %v505 = vunpack.c.h.b16 %v430
      %v506 = vunpack.c.l.b16 %v431
      %v507 = vunpack.c.h.b16 %v431
      %v508 = vunpack.c.l.b16 %v432
      %v509 = vunpack.c.h.b16 %v432
      %v510 = vunpack.c.l.b16 %v433
      %v511 = vunpack.c.h.b16 %v433
      %v512 = vunpack.c.l.b16 %v434
      %v513 = vunpack.c.h.b16 %v434
      %v514 = vunpack.c.l.b16 %v435
      %v515 = vunpack.c.h.b16 %v435
      %v516 = vunpack.c.l.b16 %v436
      %v517 = vunpack.c.h.b16 %v436
      %v518 = vunpack.c.l.b16 %v437
      %v519 = vunpack.c.h.b16 %v437
      %v520 = vunpack.c.l.b16 %v438
      %v521 = vunpack.c.h.b16 %v438
      %v522 = vunpack.c.l.b16 %v439
      %v523 = vunpack.c.h.b16 %v439
      %v524 = vunpack.c.l.b16 %v440
      %v525 = vunpack.c.h.b16 %v440
      %v526 = vunpack.c.l.b16 %v441
      %v527 = vunpack.c.h.b16 %v441
      %v528 = vunpack.c.l.b16 %v442
      %v529 = vunpack.c.h.b16 %v442
      %v530 = vunpack.c.l.b16 %v443
      %v531 = vunpack.c.h.b16 %v443
      %v532 = vunpack.c.l.b16 %v444
      %v533 = vunpack.c.h.b16 %v444
      %v534 = vunpack.c.l.b16 %v445
      %v535 = vunpack.c.h.b16 %v445
      %v536 = vunpack.c.l.b16 %v446
      %v537 = vunpack.c.h.b16 %v446
      %v538 = vunpack.c.l.b16 %v447
      %v539 = vunpack.c.h.b16 %v447
      %v540 = vunpack.c.l.b16 %v448
      %v541 = vunpack.c.h.b16 %v448
      %v542 = vunpack.c.l.b16 %v449
      %v543 = vunpack.c.h.b16 %v449
      %v544 = vunpack.c.l.b16 %v450
      %v545 = vunpack.c.h.b16 %v450
      %v546 = vunpack.c.l.b16 %v451
      %v547 = vunpack.c.h.b16 %v451
      %v548 = vpack.c.b16 %v486, %v484
      %v549 = vpack.c.b16 %v487, %v485
      %v550 = vpack.c.b16 %v490, %v488
      %v551 = vpack.c.b16 %v491, %v489
      %v552 = vpack.c.b16 %v494, %v492
      %v553 = vpack.c.b16 %v495, %v493
      %v554 = vpack.c.b16 %v498, %v496
      %v555 = vpack.c.b16 %v499, %v497
      %v556 = vpack.c.b16 %v502, %v500
      %v557 = vpack.c.b16 %v503, %v501
      %v558 = vpack.c.b16 %v506, %v504
      %v559 = vpack.c.b16 %v507, %v505
      %v560 = vpack.c.b16 %v510, %v508
      %v561 = vpack.c.b16 %v511, %v509
      %v562 = vpack.c.b16 %v514, %v512
      %v563 = vpack.c.b16 %v515, %v513
      %v564 = vpack.c.b16 %v518, %v516
      %v565 = vpack.c.b16 %v519, %v517
      %v566 = vpack.c.b16 %v522, %v520
      %v567 = vpack.c.b16 %v523, %v521
      %v568 = vpack.c.b16 %v526, %v524
      %v569 = vpack.c.b16 %v527, %v525
      %v570 = vpack.c.b16 %v530, %v528
      %v571 = vpack.c.b16 %v531, %v529
      %v572 = vpack.c.b16 %v534, %v532
      %v573 = vpack.c.b16 %v535, %v533
      %v574 = vpack.c.b16 %v538, %v536
      %v575 = vpack.c.b16 %v539, %v537
      %v576 = vpack.c.b16 %v542, %v540
      %v577 = vpack.c.b16 %v543, %v541
      %v578 = vpack.c.b16 %v546, %v544
      %v579 = vpack.c.b16 %v547, %v545
      %v644 = vunpack.c.l.b16 %v388
      %v645 = vunpack.c.l.b16 %v389
      %v646 = vunpack.c.l.b16 %v390
      %v647 = vunpack.c.l.b16 %v391
      %v648 = vunpack.c.l.b16 %v392
      %v649 = vunpack.c.l.b16 %v393
      %v650 = vunpack.c.l.b16 %v394
      %v651 = vunpack.c.l.b16 %v395
      %v652 = vunpack.c.l.b16 %v396
      %v653 = vunpack.c.l.b16 %v397
      %v654 = vunpack.c.l.b16 %v398
      %v655 = vunpack.c.l.b16 %v399
      %v656 = vunpack.c.l.b16 %v400
      %v657 = vunpack.c.l.b16 %v401
      %v658 = vunpack.c.l.b16 %v402
      %v659 = vunpack.c.l.b16 %v403
      %v660 = vunpack.c.l.b16 %v404
      %v661 = vunpack.c.l.b16 %v405
      %v662 = vunpack.c.l.b16 %v406
      %v663 = vunpack.c.l.b16 %v407
      %v664 = vunpack.c.l.b16 %v408
      %v665 = vunpack.c.l.b16 %v409
      %v666 = vunpack.c.l.b16 %v410
      %v667 = vunpack.c.l.b16 %v411
      %v668 = vunpack.c.l.b16 %v412
      %v669 = vunpack.c.l.b16 %v413
      %v670 = vunpack.c.l.b16 %v414
      %v671 = vunpack.c.l.b16 %v415
      %v672 = vunpack.c.l.b16 %v416
      %v673 = vunpack.c.l.b16 %v417
      %v674 = vunpack.c.l.b16 %v418
      %v675 = vunpack.c.l.b16 %v419
      %v676 = vpack.c.b16 %v645, %v644
      %v677 = vpack.c.b16 %v647, %v646
      %v678 = vpack.c.b16 %v649, %v648
      %v679 = vpack.c.b16 %v651, %v650
      %v680 = vpack.c.b16 %v653, %v652
      %v681 = vpack.c.b16 %v655, %v654
      %v682 = vpack.c.b16 %v657, %v656
      %v683 = vpack.c.b16 %v659, %v658
      %v684 = vpack.c.b16 %v661, %v660
      %v685 = vpack.c.b16 %v663, %v662
      %v686 = vpack.c.b16 %v665, %v664
      %v687 = vpack.c.b16 %v667, %v666
      %v688 = vpack.c.b16 %v669, %v668
      %v689 = vpack.c.b16 %v671, %v670
      %v690 = vpack.c.b16 %v673, %v672
      %v691 = vpack.c.b16 %v675, %v674
      %708 = vmatprep.subr.bf16.mxu0 0
      %709 = vmatpush1.bf16.msra.mxu0 %v676
      %710 = vmatprep.subr.bf16.mxu0 0
      %711 = vmatpush1.bf16.msra.mxu0 %v677
      %712 = vmatprep.subr.bf16.mxu0 0
      %713 = vmatpush1.bf16.msra.mxu0 %v678
      %714 = vmatprep.subr.bf16.mxu0 0
      %715 = vmatpush1.bf16.msra.mxu0 %v679
      %716 = vmatprep.subr.bf16.mxu0 0
      %717 = vmatpush1.bf16.msra.mxu0 %v680
      %718 = vmatprep.subr.bf16.mxu0 0
      %719 = vmatpush1.bf16.msra.mxu0 %v681
      %720 = vmatprep.subr.bf16.mxu0 0
      %721 = vmatpush1.bf16.msra.mxu0 %v682
      %722 = vmatprep.subr.bf16.mxu0 0
      %723 = vmatpush1.bf16.msra.mxu0 %v683
      %724 = vmatprep.subr.bf16.mxu0 0
      %725 = vmatpush1.bf16.msra.mxu0 %v684
      %726 = vmatprep.subr.bf16.mxu0 0
      %727 = vmatpush1.bf16.msra.mxu0 %v685
      %728 = vmatprep.subr.bf16.mxu0 0
      %729 = vmatpush1.bf16.msra.mxu0 %v686
      %730 = vmatprep.subr.bf16.mxu0 0
      %731 = vmatpush1.bf16.msra.mxu0 %v687
      %732 = vmatprep.subr.bf16.mxu0 0
      %733 = vmatpush1.bf16.msra.mxu0 %v688
      %734 = vmatprep.subr.bf16.mxu0 0
      %735 = vmatpush1.bf16.msra.mxu0 %v689
      %736 = vmatprep.subr.bf16.mxu0 0
      %737 = vmatpush1.bf16.msra.mxu0 %v690
      %738 = vmatprep.subr.bf16.mxu0 0
      %739 = vmatpush1.bf16.msra.mxu0 %v691
      %740 = vmatprep.mubr.bf16.mxu0 %v549
      %741 = vmatmul.mubr.bf16.gmra.mrb[0].mxu0 %v548
      %v742 = vpop.f32.mrb[0].mxu0
      %v743 = vadd.f32 0.0, %v742
      %v744 = vpop.f32.mrb[0].mxu0
      %v745 = vpop.f32.mrb[0].mxu0
      %v746 = vadd.f32 0.0, %v745
      %v747 = vpop.f32.mrb[0].mxu0
      %748 = vmatprep.mubr.bf16.mxu0 %v551
      %749 = vmatmul.mubr.bf16.gmra.mrb[0].mxu0 %v550
      %v750 = vpop.f32.mrb[0].mxu0
      %v751 = vadd.f32 0.0, %v750
      %v752 = vpop.f32.mrb[0].mxu0
      %v753 = vpop.f32.mrb[0].mxu0
      %v754 = vadd.f32 0.0, %v753
      %v755 = vpop.f32.mrb[0].mxu0
      %756 = vmatprep.mubr.bf16.mxu0 %v553
      %757 = vmatmul.mubr.bf16.gmra.mrb[0].mxu0 %v552
      %v758 = vpop.f32.mrb[0].mxu0
      %v759 = vadd.f32 0.0, %v758
      %v760 = vpop.f32.mrb[0].mxu0
      %v761 = vpop.f32.mrb[0].mxu0
      %v762 = vadd.f32 0.0, %v761
      %v763 = vpop.f32.mrb[0].mxu0
      %764 = vmatprep.mubr.bf16.mxu0 %v555
      %765 = vmatmul.mubr.bf16.gmra.mrb[0].mxu0 %v554
      %v766 = vpop.f32.mrb[0].mxu0
      %v767 = vadd.f32 0.0, %v766
      %v768 = vpop.f32.mrb[0].mxu0
      %v769 = vpop.f32.mrb[0].mxu0
      %v770 = vadd.f32 0.0, %v769
      %v771 = vpop.f32.mrb[0].mxu0
      %772 = vmatprep.mubr.bf16.mxu0 %v557
      %773 = vmatmul.mubr.bf16.gmra.mrb[0].mxu0 %v556
      %v774 = vpop.f32.mrb[0].mxu0
      %v775 = vadd.f32 0.0, %v774
      %v776 = vpop.f32.mrb[0].mxu0
      %v777 = vpop.f32.mrb[0].mxu0
      %v778 = vadd.f32 0.0, %v777
      %v779 = vpop.f32.mrb[0].mxu0
      %780 = vmatprep.mubr.bf16.mxu0 %v559
      %781 = vmatmul.mubr.bf16.gmra.mrb[0].mxu0 %v558
      %v782 = vpop.f32.mrb[0].mxu0
      %v783 = vadd.f32 0.0, %v782
      %v784 = vpop.f32.mrb[0].mxu0
      %v785 = vpop.f32.mrb[0].mxu0
      %v786 = vadd.f32 0.0, %v785
      %v787 = vpop.f32.mrb[0].mxu0
      %788 = vmatprep.mubr.bf16.mxu0 %v561
      %789 = vmatmul.mubr.bf16.gmra.mrb[0].mxu0 %v560
      %v790 = vpop.f32.mrb[0].mxu0
      %v791 = vadd.f32 0.0, %v790
      %v792 = vpop.f32.mrb[0].mxu0
      %v793 = vpop.f32.mrb[0].mxu0
      %v794 = vadd.f32 0.0, %v793
      %v795 = vpop.f32.mrb[0].mxu0
      %796 = vmatprep.mubr.bf16.mxu0 %v563
      %797 = vmatmul.mubr.bf16.gmra.mrb[0].mxu0 %v562
      %v798 = vpop.f32.mrb[0].mxu0
      %v799 = vadd.f32 0.0, %v798
      %v800 = vpop.f32.mrb[0].mxu0
      %v801 = vpop.f32.mrb[0].mxu0
      %v802 = vadd.f32 0.0, %v801
      %v803 = vpop.f32.mrb[0].mxu0
      %804 = vmatprep.mubr.bf16.mxu0 %v565
      %805 = vmatmul.mubr.bf16.gmra.mrb[0].mxu0 %v564
      %v806 = vpop.f32.mrb[0].mxu0
      %v807 = vadd.f32 0.0, %v806
      %v808 = vpop.f32.mrb[0].mxu0
      %v809 = vpop.f32.mrb[0].mxu0
      %v810 = vadd.f32 0.0, %v809
      %v811 = vpop.f32.mrb[0].mxu0
      %812 = vmatprep.mubr.bf16.mxu0 %v567
      %813 = vmatmul.mubr.bf16.gmra.mrb[0].mxu0 %v566
      %v814 = vpop.f32.mrb[0].mxu0
      %v815 = vadd.f32 0.0, %v814
      %v816 = vpop.f32.mrb[0].mxu0
      %v817 = vpop.f32.mrb[0].mxu0
      %v818 = vadd.f32 0.0, %v817
      %v819 = vpop.f32.mrb[0].mxu0
      %820 = vmatprep.mubr.bf16.mxu0 %v569
      %821 = vmatmul.mubr.bf16.gmra.mrb[0].mxu0 %v568
      %v822 = vpop.f32.mrb[0].mxu0
      %v823 = vadd.f32 0.0, %v822
      %v824 = vpop.f32.mrb[0].mxu0
      %v825 = vpop.f32.mrb[0].mxu0
      %v826 = vadd.f32 0.0, %v825
      %v827 = vpop.f32.mrb[0].mxu0
      %828 = vmatprep.mubr.bf16.mxu0 %v571
      %829 = vmatmul.mubr.bf16.gmra.mrb[0].mxu0 %v570
      %v830 = vpop.f32.mrb[0].mxu0
      %v831 = vadd.f32 0.0, %v830
      %v832 = vpop.f32.mrb[0].mxu0
      %v833 = vpop.f32.mrb[0].mxu0
      %v834 = vadd.f32 0.0, %v833
      %v835 = vpop.f32.mrb[0].mxu0
      %836 = vmatprep.mubr.bf16.mxu0 %v573
      %837 = vmatmul.mubr.bf16.gmra.mrb[0].mxu0 %v572
      %v838 = vpop.f32.mrb[0].mxu0
      %v839 = vadd.f32 0.0, %v838
      %v840 = vpop.f32.mrb[0].mxu0
      %v841 = vpop.f32.mrb[0].mxu0
      %v842 = vadd.f32 0.0, %v841
      %v843 = vpop.f32.mrb[0].mxu0
      %844 = vmatprep.mubr.bf16.mxu0 %v575
      %845 = vmatmul.mubr.bf16.gmra.mrb[0].mxu0 %v574
      %v846 = vpop.f32.mrb[0].mxu0
      %v847 = vadd.f32 0.0, %v846
      %v848 = vpop.f32.mrb[0].mxu0
      %v849 = vpop.f32.mrb[0].mxu0
      %v850 = vadd.f32 0.0, %v849
      %v851 = vpop.f32.mrb[0].mxu0
      %852 = vmatprep.mubr.bf16.mxu0 %v577
      %853 = vmatmul.mubr.bf16.gmra.mrb[0].mxu0 %v576
      %v854 = vpop.f32.mrb[0].mxu0
      %v855 = vadd.f32 0.0, %v854
      %v856 = vpop.f32.mrb[0].mxu0
      %v857 = vpop.f32.mrb[0].mxu0
      %v858 = vadd.f32 0.0, %v857
      %v859 = vpop.f32.mrb[0].mxu0
      %860 = vmatprep.mubr.bf16.mxu0 %v579
      %861 = vmatmul.mubr.bf16.gmra.mrb[0].mxu0 %v578
      %v862 = vpop.f32.mrb[0].mxu0
      %v863 = vadd.f32 0.0, %v862
      %v864 = vpop.f32.mrb[0].mxu0
      %v865 = vpop.f32.mrb[0].mxu0
      %v866 = vadd.f32 0.0, %v865
      %v867 = vpop.f32.mrb[0].mxu0
      %868 = vdwg.mxu0
      %v869 = vpack.c.bf16 %v746, %v743
      %v870 = vpack.c.bf16 %v754, %v751
      %v871 = vpack.c.bf16 %v762, %v759
      %v872 = vpack.c.bf16 %v770, %v767
      %v873 = vpack.c.bf16 %v778, %v775
      %v874 = vpack.c.bf16 %v786, %v783
      %v875 = vpack.c.bf16 %v794, %v791
      %v876 = vpack.c.bf16 %v802, %v799
      %v877 = vpack.c.bf16 %v810, %v807
      %v878 = vpack.c.bf16 %v818, %v815
      %v879 = vpack.c.bf16 %v826, %v823
      %v880 = vpack.c.bf16 %v834, %v831
      %v881 = vpack.c.bf16 %v842, %v839
      %v882 = vpack.c.bf16 %v850, %v847
      %v883 = vpack.c.bf16 %v858, %v855
      %v884 = vpack.c.bf16 %v866, %v863
      %v885 = vld [vmem:[%s3] sm:$0xf]
      %s886 = scalar_lea.vmem %s1, 256
      %v887 = vld [vmem:[%s886] sm:$0xff]
      %v888 = vld [vmem:[%s886 + $0x8] sm:$0xff]
      %v889 = vld [vmem:[%s886 + $0x10] sm:$0xff]
      %v890 = vld [vmem:[%s886 + $0x18] sm:$0xff]
      %v891 = vld [vmem:[%s886 + $0x20] sm:$0xff]
      %v892 = vld [vmem:[%s886 + $0x28] sm:$0xff]
      %v893 = vld [vmem:[%s886 + $0x30] sm:$0xff]
      %v894 = vld [vmem:[%s886 + $0x38] sm:$0xff]
      %v895 = vld [vmem:[%s886 + $0x40] sm:$0xff]
      %v896 = vld [vmem:[%s886 + $0x48] sm:$0xff]
      %v897 = vld [vmem:[%s886 + $0x50] sm:$0xff]
      %v898 = vld [vmem:[%s886 + $0x58] sm:$0xff]
      %v899 = vld [vmem:[%s886 + $0x60] sm:$0xff]
      %v900 = vld [vmem:[%s886 + $0x68] sm:$0xff]
      %v901 = vld [vmem:[%s886 + $0x70] sm:$0xff]
      %v902 = vld [vmem:[%s886 + $0x78] sm:$0xff]
      %v903 = vld [vmem:[%s886 + $0x80] sm:$0xff]
      %v904 = vld [vmem:[%s886 + $0x88] sm:$0xff]
      %v905 = vld [vmem:[%s886 + $0x90] sm:$0xff]
      %v906 = vld [vmem:[%s886 + $0x98] sm:$0xff]
      %v907 = vld [vmem:[%s886 + $0xa0] sm:$0xff]
      %v908 = vld [vmem:[%s886 + $0xa8] sm:$0xff]
      %v909 = vld [vmem:[%s886 + $0xb0] sm:$0xff]
      %v910 = vld [vmem:[%s886 + $0xb8] sm:$0xff]
      %v911 = vld [vmem:[%s886 + $0xc0] sm:$0xff]
      %v912 = vld [vmem:[%s886 + $0xc8] sm:$0xff]
      %v913 = vld [vmem:[%s886 + $0xd0] sm:$0xff]
      %v914 = vld [vmem:[%s886 + $0xd8] sm:$0xff]
      %v915 = vld [vmem:[%s886 + $0xe0] sm:$0xff]
      %v916 = vld [vmem:[%s886 + $0xe8] sm:$0xff]
      %v917 = vld [vmem:[%s886 + $0xf0] sm:$0xff]
      %v918 = vld [vmem:[%s886 + $0xf8] sm:$0xff]
      %v951 = vunpack.c.l.b16 %v887
      %v952 = vunpack.c.h.b16 %v887
      %v953 = vunpack.c.l.b16 %v888
      %v954 = vunpack.c.h.b16 %v888
      %v955 = vunpack.c.l.b16 %v889
      %v956 = vunpack.c.h.b16 %v889
      %v957 = vunpack.c.l.b16 %v890
      %v958 = vunpack.c.h.b16 %v890
      %v959 = vunpack.c.l.b16 %v891
      %v960 = vunpack.c.h.b16 %v891
      %v961 = vunpack.c.l.b16 %v892
      %v962 = vunpack.c.h.b16 %v892
      %v963 = vunpack.c.l.b16 %v893
      %v964 = vunpack.c.h.b16 %v893
      %v965 = vunpack.c.l.b16 %v894
      %v966 = vunpack.c.h.b16 %v894
      %v967 = vunpack.c.l.b16 %v895
      %v968 = vunpack.c.h.b16 %v895
      %v969 = vunpack.c.l.b16 %v896
      %v970 = vunpack.c.h.b16 %v896
      %v971 = vunpack.c.l.b16 %v897
      %v972 = vunpack.c.h.b16 %v897
      %v973 = vunpack.c.l.b16 %v898
      %v974 = vunpack.c.h.b16 %v898
      %v975 = vunpack.c.l.b16 %v899
      %v976 = vunpack.c.h.b16 %v899
      %v977 = vunpack.c.l.b16 %v900
      %v978 = vunpack.c.h.b16 %v900
      %v979 = vunpack.c.l.b16 %v901
      %v980 = vunpack.c.h.b16 %v901
      %v981 = vunpack.c.l.b16 %v902
      %v982 = vunpack.c.h.b16 %v902
      %v983 = vunpack.c.l.b16 %v903
      %v984 = vunpack.c.h.b16 %v903
      %v985 = vunpack.c.l.b16 %v904
      %v986 = vunpack.c.h.b16 %v904
      %v987 = vunpack.c.l.b16 %v905
      %v988 = vunpack.c.h.b16 %v905
      %v989 = vunpack.c.l.b16 %v906
      %v990 = vunpack.c.h.b16 %v906
      %v991 = vunpack.c.l.b16 %v907
      %v992 = vunpack.c.h.b16 %v907
      %v993 = vunpack.c.l.b16 %v908
      %v994 = vunpack.c.h.b16 %v908
      %v995 = vunpack.c.l.b16 %v909
      %v996 = vunpack.c.h.b16 %v909
      %v997 = vunpack.c.l.b16 %v910
      %v998 = vunpack.c.h.b16 %v910
      %v999 = vunpack.c.l.b16 %v911
      %v1000 = vunpack.c.h.b16 %v911
      %v1001 = vunpack.c.l.b16 %v912
      %v1002 = vunpack.c.h.b16 %v912
      %v1003 = vunpack.c.l.b16 %v913
      %v1004 = vunpack.c.h.b16 %v913
      %v1005 = vunpack.c.l.b16 %v914
      %v1006 = vunpack.c.h.b16 %v914
      %v1007 = vunpack.c.l.b16 %v915
      %v1008 = vunpack.c.h.b16 %v915
      %v1009 = vunpack.c.l.b16 %v916
      %v1010 = vunpack.c.h.b16 %v916
      %v1011 = vunpack.c.l.b16 %v917
      %v1012 = vunpack.c.h.b16 %v917
      %v1013 = vunpack.c.l.b16 %v918
      %v1014 = vunpack.c.h.b16 %v918
      %v1015 = vpack.c.b16 %v953, %v951
      %v1016 = vpack.c.b16 %v954, %v952
      %v1017 = vpack.c.b16 %v957, %v955
      %v1018 = vpack.c.b16 %v958, %v956
      %v1019 = vpack.c.b16 %v961, %v959
      %v1020 = vpack.c.b16 %v962, %v960
      %v1021 = vpack.c.b16 %v965, %v963
      %v1022 = vpack.c.b16 %v966, %v964
      %v1023 = vpack.c.b16 %v969, %v967
      %v1024 = vpack.c.b16 %v970, %v968
      %v1025 = vpack.c.b16 %v973, %v971
      %v1026 = vpack.c.b16 %v974, %v972
      %v1027 = vpack.c.b16 %v977, %v975
      %v1028 = vpack.c.b16 %v978, %v976
      %v1029 = vpack.c.b16 %v981, %v979
      %v1030 = vpack.c.b16 %v982, %v980
      %v1031 = vpack.c.b16 %v985, %v983
      %v1032 = vpack.c.b16 %v986, %v984
      %v1033 = vpack.c.b16 %v989, %v987
      %v1034 = vpack.c.b16 %v990, %v988
      %v1035 = vpack.c.b16 %v993, %v991
      %v1036 = vpack.c.b16 %v994, %v992
      %v1037 = vpack.c.b16 %v997, %v995
      %v1038 = vpack.c.b16 %v998, %v996
      %v1039 = vpack.c.b16 %v1001, %v999
      %v1040 = vpack.c.b16 %v1002, %v1000
      %v1041 = vpack.c.b16 %v1005, %v1003
      %v1042 = vpack.c.b16 %v1006, %v1004
      %v1043 = vpack.c.b16 %v1009, %v1007
      %v1044 = vpack.c.b16 %v1010, %v1008
      %v1045 = vpack.c.b16 %v1013, %v1011
      %v1046 = vpack.c.b16 %v1014, %v1012
      %1079 = vmatprep.subr.bf16.mxu0 0
      %1080 = vmatpush1.bf16.msra.mxu0 %v676
      %1081 = vmatprep.subr.bf16.mxu0 0
      %1082 = vmatpush1.bf16.msra.mxu0 %v677
      %1083 = vmatprep.subr.bf16.mxu0 0
      %1084 = vmatpush1.bf16.msra.mxu0 %v678
      %1085 = vmatprep.subr.bf16.mxu0 0
      %1086 = vmatpush1.bf16.msra.mxu0 %v679
      %1087 = vmatprep.subr.bf16.mxu0 0
      %1088 = vmatpush1.bf16.msra.mxu0 %v680
      %1089 = vmatprep.subr.bf16.mxu0 0
      %1090 = vmatpush1.bf16.msra.mxu0 %v681
      %1091 = vmatprep.subr.bf16.mxu0 0
      %1092 = vmatpush1.bf16.msra.mxu0 %v682
      %1093 = vmatprep.subr.bf16.mxu0 0
      %1094 = vmatpush1.bf16.msra.mxu0 %v683
      %1095 = vmatprep.subr.bf16.mxu0 0
      %1096 = vmatpush1.bf16.msra.mxu0 %v684
      %1097 = vmatprep.subr.bf16.mxu0 0
      %1098 = vmatpush1.bf16.msra.mxu0 %v685
      %1099 = vmatprep.subr.bf16.mxu0 0
      %1100 = vmatpush1.bf16.msra.mxu0 %v686
      %1101 = vmatprep.subr.bf16.mxu0 0
      %1102 = vmatpush1.bf16.msra.mxu0 %v687
      %1103 = vmatprep.subr.bf16.mxu0 0
      %1104 = vmatpush1.bf16.msra.mxu0 %v688
      %1105 = vmatprep.subr.bf16.mxu0 0
      %1106 = vmatpush1.bf16.msra.mxu0 %v689
      %1107 = vmatprep.subr.bf16.mxu0 0
      %1108 = vmatpush1.bf16.msra.mxu0 %v690
      %1109 = vmatprep.subr.bf16.mxu0 0
      %1110 = vmatpush1.bf16.msra.mxu0 %v691
      %1111 = vmatprep.mubr.bf16.mxu0 %v1016
      %1112 = vmatmul.mubr.bf16.gmra.mrb[0].mxu0 %v1015
      %v1113 = vpop.f32.mrb[0].mxu0
      %v1114 = vadd.f32 0.0, %v1113
      %v1115 = vpop.f32.mrb[0].mxu0
      %v1116 = vpop.f32.mrb[0].mxu0
      %v1117 = vadd.f32 0.0, %v1116
      %v1118 = vpop.f32.mrb[0].mxu0
      %1119 = vmatprep.mubr.bf16.mxu0 %v1018
      %1120 = vmatmul.mubr.bf16.gmra.mrb[0].mxu0 %v1017
      %v1121 = vpop.f32.mrb[0].mxu0
      %v1122 = vadd.f32 0.0, %v1121
      %v1123 = vpop.f32.mrb[0].mxu0
      %v1124 = vpop.f32.mrb[0].mxu0
      %v1125 = vadd.f32 0.0, %v1124
      %v1126 = vpop.f32.mrb[0].mxu0
      %1127 = vmatprep.mubr.bf16.mxu0 %v1020
      %1128 = vmatmul.mubr.bf16.gmra.mrb[0].mxu0 %v1019
      %v1129 = vpop.f32.mrb[0].mxu0
      %v1130 = vadd.f32 0.0, %v1129
      %v1131 = vpop.f32.mrb[0].mxu0
      %v1132 = vpop.f32.mrb[0].mxu0
      %v1133 = vadd.f32 0.0, %v1132
      %v1134 = vpop.f32.mrb[0].mxu0
      %1135 = vmatprep.mubr.bf16.mxu0 %v1022
      %1136 = vmatmul.mubr.bf16.gmra.mrb[0].mxu0 %v1021
      %v1137 = vpop.f32.mrb[0].mxu0
      %v1138 = vadd.f32 0.0, %v1137
      %v1139 = vpop.f32.mrb[0].mxu0
      %v1140 = vpop.f32.mrb[0].mxu0
      %v1141 = vadd.f32 0.0, %v1140
      %v1142 = vpop.f32.mrb[0].mxu0
      %1143 = vmatprep.mubr.bf16.mxu0 %v1024
      %1144 = vmatmul.mubr.bf16.gmra.mrb[0].mxu0 %v1023
      %v1145 = vpop.f32.mrb[0].mxu0
      %v1146 = vadd.f32 0.0, %v1145
      %v1147 = vpop.f32.mrb[0].mxu0
      %v1148 = vpop.f32.mrb[0].mxu0
      %v1149 = vadd.f32 0.0, %v1148
      %v1150 = vpop.f32.mrb[0].mxu0
      %1151 = vmatprep.mubr.bf16.mxu0 %v1026
      %1152 = vmatmul.mubr.bf16.gmra.mrb[0].mxu0 %v1025
      %v1153 = vpop.f32.mrb[0].mxu0
      %v1154 = vadd.f32 0.0, %v1153
      %v1155 = vpop.f32.mrb[0].mxu0
      %v1156 = vpop.f32.mrb[0].mxu0
      %v1157 = vadd.f32 0.0, %v1156
      %v1158 = vpop.f32.mrb[0].mxu0
      %1159 = vmatprep.mubr.bf16.mxu0 %v1028
      %1160 = vmatmul.mubr.bf16.gmra.mrb[0].mxu0 %v1027
      %v1161 = vpop.f32.mrb[0].mxu0
      %v1162 = vadd.f32 0.0, %v1161
      %v1163 = vpop.f32.mrb[0].mxu0
      %v1164 = vpop.f32.mrb[0].mxu0
      %v1165 = vadd.f32 0.0, %v1164
      %v1166 = vpop.f32.mrb[0].mxu0
      %1167 = vmatprep.mubr.bf16.mxu0 %v1030
      %1168 = vmatmul.mubr.bf16.gmra.mrb[0].mxu0 %v1029
      %v1169 = vpop.f32.mrb[0].mxu0
      %v1170 = vadd.f32 0.0, %v1169
      %v1171 = vpop.f32.mrb[0].mxu0
      %v1172 = vpop.f32.mrb[0].mxu0
      %v1173 = vadd.f32 0.0, %v1172
      %v1174 = vpop.f32.mrb[0].mxu0
      %1175 = vmatprep.mubr.bf16.mxu0 %v1032
      %1176 = vmatmul.mubr.bf16.gmra.mrb[0].mxu0 %v1031
      %v1177 = vpop.f32.mrb[0].mxu0
      %v1178 = vadd.f32 0.0, %v1177
      %v1179 = vpop.f32.mrb[0].mxu0
      %v1180 = vpop.f32.mrb[0].mxu0
      %v1181 = vadd.f32 0.0, %v1180
      %v1182 = vpop.f32.mrb[0].mxu0
      %1183 = vmatprep.mubr.bf16.mxu0 %v1034
      %1184 = vmatmul.mubr.bf16.gmra.mrb[0].mxu0 %v1033
      %v1185 = vpop.f32.mrb[0].mxu0
      %v1186 = vadd.f32 0.0, %v1185
      %v1187 = vpop.f32.mrb[0].mxu0
      %v1188 = vpop.f32.mrb[0].mxu0
      %v1189 = vadd.f32 0.0, %v1188
      %v1190 = vpop.f32.mrb[0].mxu0
      %1191 = vmatprep.mubr.bf16.mxu0 %v1036
      %1192 = vmatmul.mubr.bf16.gmra.mrb[0].mxu0 %v1035
      %v1193 = vpop.f32.mrb[0].mxu0
      %v1194 = vadd.f32 0.0, %v1193
      %v1195 = vpop.f32.mrb[0].mxu0
      %v1196 = vpop.f32.mrb[0].mxu0
      %v1197 = vadd.f32 0.0, %v1196
      %v1198 = vpop.f32.mrb[0].mxu0
      %1199 = vmatprep.mubr.bf16.mxu0 %v1038
      %1200 = vmatmul.mubr.bf16.gmra.mrb[0].mxu0 %v1037
      %v1201 = vpop.f32.mrb[0].mxu0
      %v1202 = vadd.f32 0.0, %v1201
      %v1203 = vpop.f32.mrb[0].mxu0
      %v1204 = vpop.f32.mrb[0].mxu0
      %v1205 = vadd.f32 0.0, %v1204
      %v1206 = vpop.f32.mrb[0].mxu0
      %1207 = vmatprep.mubr.bf16.mxu0 %v1040
      %1208 = vmatmul.mubr.bf16.gmra.mrb[0].mxu0 %v1039
      %v1209 = vpop.f32.mrb[0].mxu0
      %v1210 = vadd.f32 0.0, %v1209
      %v1211 = vpop.f32.mrb[0].mxu0
      %v1212 = vpop.f32.mrb[0].mxu0
      %v1213 = vadd.f32 0.0, %v1212
      %v1214 = vpop.f32.mrb[0].mxu0
      %1215 = vmatprep.mubr.bf16.mxu0 %v1042
      %1216 = vmatmul.mubr.bf16.gmra.mrb[0].mxu0 %v1041
      %v1217 = vpop.f32.mrb[0].mxu0
      %v1218 = vadd.f32 0.0, %v1217
      %v1219 = vpop.f32.mrb[0].mxu0
      %v1220 = vpop.f32.mrb[0].mxu0
      %v1221 = vadd.f32 0.0, %v1220
      %v1222 = vpop.f32.mrb[0].mxu0
      %1223 = vmatprep.mubr.bf16.mxu0 %v1044
      %1224 = vmatmul.mubr.bf16.gmra.mrb[0].mxu0 %v1043
      %v1225 = vpop.f32.mrb[0].mxu0
      %v1226 = vadd.f32 0.0, %v1225
      %v1227 = vpop.f32.mrb[0].mxu0
      %v1228 = vpop.f32.mrb[0].mxu0
      %v1229 = vadd.f32 0.0, %v1228
      %v1230 = vpop.f32.mrb[0].mxu0
      %1231 = vmatprep.mubr.bf16.mxu0 %v1046
      %1232 = vmatmul.mubr.bf16.gmra.mrb[0].mxu0 %v1045
      %v1233 = vpop.f32.mrb[0].mxu0
      %v1234 = vadd.f32 0.0, %v1233
      %v1235 = vpop.f32.mrb[0].mxu0
      %v1236 = vpop.f32.mrb[0].mxu0
      %v1237 = vadd.f32 0.0, %v1236
      %v1238 = vpop.f32.mrb[0].mxu0
      %1239 = vdwg.mxu0
      %v1240 = vpack.c.bf16 %v1117, %v1114
      %v1241 = vpack.c.bf16 %v1125, %v1122
      %v1242 = vpack.c.bf16 %v1133, %v1130
      %v1243 = vpack.c.bf16 %v1141, %v1138
      %v1244 = vpack.c.bf16 %v1149, %v1146
      %v1245 = vpack.c.bf16 %v1157, %v1154
      %v1246 = vpack.c.bf16 %v1165, %v1162
      %v1247 = vpack.c.bf16 %v1173, %v1170
      %v1248 = vpack.c.bf16 %v1181, %v1178
      %v1249 = vpack.c.bf16 %v1189, %v1186
      %v1250 = vpack.c.bf16 %v1197, %v1194
      %v1251 = vpack.c.bf16 %v1205, %v1202
      %v1252 = vpack.c.bf16 %v1213, %v1210
      %v1253 = vpack.c.bf16 %v1221, %v1218
      %v1254 = vpack.c.bf16 %v1229, %v1226
      %v1255 = vpack.c.bf16 %v1237, %v1234
      %s1256 = scalar_lea.vmem %s3, 4
      %v1257 = vld [vmem:[%s1256] sm:$0xf]
      %vm1258 = vcmask 64512
      %v1260 = vsel %vm1258, %v1240, 0
      %v1263 = vsel %vm1258, %v1241, 0
      %v1266 = vsel %vm1258, %v1242, 0
      %v1269 = vsel %vm1258, %v1243, 0
      %v1272 = vsel %vm1258, %v1244, 0
      %v1275 = vsel %vm1258, %v1245, 0
      %v1278 = vsel %vm1258, %v1246, 0
      %v1281 = vsel %vm1258, %v1247, 0
      %v1284 = vsel %vm1258, %v1248, 0
      %v1287 = vsel %vm1258, %v1249, 0
      %v1290 = vsel %vm1258, %v1250, 0
      %v1293 = vsel %vm1258, %v1251, 0
      %v1296 = vsel %vm1258, %v1252, 0
      %v1299 = vsel %vm1258, %v1253, 0
      %v1302 = vsel %vm1258, %v1254, 0
      %v1305 = vsel %vm1258, %v1255, 0
      %vm1307 = vcmask 1043456
      %v1309 = vsel %vm1307, %v1257, 0
      %1311 = vmatprep.subr.bf16.mxu0 0
      %1312 = vmatpush1.bf16.msra.mxu0 %v1309
      %1313 = vmatprep.subr.bf16.mxu0 0
      %1314 = vmatpush1.bf16.msra.mxu0 0
      %1315 = vmatprep.subr.bf16.mxu0 0
      %1316 = vmatpush1.bf16.msra.mxu0 0
      %1317 = vmatprep.subr.bf16.mxu0 0
      %1318 = vmatpush1.bf16.msra.mxu0 0
      %1319 = vmatprep.subr.bf16.mxu0 0
      %1320 = vmatpush1.bf16.msra.mxu0 0
      %1321 = vmatprep.subr.bf16.mxu0 0
      %1322 = vmatpush1.bf16.msra.mxu0 0
      %1323 = vmatprep.subr.bf16.mxu0 0
      %1324 = vmatpush1.bf16.msra.mxu0 0
      %1325 = vmatprep.subr.bf16.mxu0 0
      %1326 = vmatpush1.bf16.msra.mxu0 0
      %1327 = vmatprep.subr.bf16.mxu0 0
      %1328 = vmatpush1.bf16.msra.mxu0 0
      %1329 = vmatprep.subr.bf16.mxu0 0
      %1330 = vmatpush1.bf16.msra.mxu0 0
      %1331 = vmatprep.subr.bf16.mxu0 0
      %1332 = vmatpush1.bf16.msra.mxu0 0
      %1333 = vmatprep.subr.bf16.mxu0 0
      %1334 = vmatpush1.bf16.msra.mxu0 0
      %1335 = vmatprep.subr.bf16.mxu0 0
      %1336 = vmatpush1.bf16.msra.mxu0 0
      %1337 = vmatprep.subr.bf16.mxu0 0
      %1338 = vmatpush1.bf16.msra.mxu0 0
      %1339 = vmatprep.subr.bf16.mxu0 0
      %1340 = vmatpush1.bf16.msra.mxu0 0
      %1341 = vmatprep.subr.bf16.mxu0 0
      %1342 = vmatpush1.bf16.msra.mxu0 0
      %1343 = vmatprep.mubr.bf16.mxu0 0
      %1344 = vmatmul.mubr.bf16.gmra.mrb[0].mxu0 %v1260
      %v1345 = vpop.f32.mrb[0].mxu0
      %v1346 = vadd.f32 0.0, %v1345
      %v1347 = vpop.f32.mrb[0].mxu0
      %v1348 = vpop.f32.mrb[0].mxu0
      %v1349 = vadd.f32 0.0, %v1348
      %v1350 = vpop.f32.mrb[0].mxu0
      %1351 = vmatprep.mubr.bf16.mxu0 0
      %1352 = vmatmul.mubr.bf16.gmra.mrb[0].mxu0 %v1263
      %v1353 = vpop.f32.mrb[0].mxu0
      %v1354 = vadd.f32 0.0, %v1353
      %v1355 = vpop.f32.mrb[0].mxu0
      %v1356 = vpop.f32.mrb[0].mxu0
      %v1357 = vadd.f32 0.0, %v1356
      %v1358 = vpop.f32.mrb[0].mxu0
      %1359 = vmatprep.mubr.bf16.mxu0 0
      %1360 = vmatmul.mubr.bf16.gmra.mrb[0].mxu0 %v1266
      %v1361 = vpop.f32.mrb[0].mxu0
      %v1362 = vadd.f32 0.0, %v1361
      %v1363 = vpop.f32.mrb[0].mxu0
      %v1364 = vpop.f32.mrb[0].mxu0
      %v1365 = vadd.f32 0.0, %v1364
      %v1366 = vpop.f32.mrb[0].mxu0
      %1367 = vmatprep.mubr.bf16.mxu0 0
      %1368 = vmatmul.mubr.bf16.gmra.mrb[0].mxu0 %v1269
      %v1369 = vpop.f32.mrb[0].mxu0
      %v1370 = vadd.f32 0.0, %v1369
      %v1371 = vpop.f32.mrb[0].mxu0
      %v1372 = vpop.f32.mrb[0].mxu0
      %v1373 = vadd.f32 0.0, %v1372
      %v1374 = vpop.f32.mrb[0].mxu0
      %1375 = vmatprep.mubr.bf16.mxu0 0
      %1376 = vmatmul.mubr.bf16.gmra.mrb[0].mxu0 %v1272
      %v1377 = vpop.f32.mrb[0].mxu0
      %v1378 = vadd.f32 0.0, %v1377
      %v1379 = vpop.f32.mrb[0].mxu0
      %v1380 = vpop.f32.mrb[0].mxu0
      %v1381 = vadd.f32 0.0, %v1380
      %v1382 = vpop.f32.mrb[0].mxu0
      %1383 = vmatprep.mubr.bf16.mxu0 0
      %1384 = vmatmul.mubr.bf16.gmra.mrb[0].mxu0 %v1275
      %v1385 = vpop.f32.mrb[0].mxu0
      %v1386 = vadd.f32 0.0, %v1385
      %v1387 = vpop.f32.mrb[0].mxu0
      %v1388 = vpop.f32.mrb[0].mxu0
      %v1389 = vadd.f32 0.0, %v1388
      %v1390 = vpop.f32.mrb[0].mxu0
      %1391 = vmatprep.mubr.bf16.mxu0 0
      %1392 = vmatmul.mubr.bf16.gmra.mrb[0].mxu0 %v1278
      %v1393 = vpop.f32.mrb[0].mxu0
      %v1394 = vadd.f32 0.0, %v1393
      %v1395 = vpop.f32.mrb[0].mxu0
      %v1396 = vpop.f32.mrb[0].mxu0
      %v1397 = vadd.f32 0.0, %v1396
      %v1398 = vpop.f32.mrb[0].mxu0
      %1399 = vmatprep.mubr.bf16.mxu0 0
      %1400 = vmatmul.mubr.bf16.gmra.mrb[0].mxu0 %v1281
      %v1401 = vpop.f32.mrb[0].mxu0
      %v1402 = vadd.f32 0.0, %v1401
      %v1403 = vpop.f32.mrb[0].mxu0
      %v1404 = vpop.f32.mrb[0].mxu0
      %v1405 = vadd.f32 0.0, %v1404
      %v1406 = vpop.f32.mrb[0].mxu0
      %1407 = vmatprep.mubr.bf16.mxu0 0
      %1408 = vmatmul.mubr.bf16.gmra.mrb[0].mxu0 %v1284
      %v1409 = vpop.f32.mrb[0].mxu0
      %v1410 = vadd.f32 0.0, %v1409
      %v1411 = vpop.f32.mrb[0].mxu0
      %v1412 = vpop.f32.mrb[0].mxu0
      %v1413 = vadd.f32 0.0, %v1412
      %v1414 = vpop.f32.mrb[0].mxu0
      %1415 = vmatprep.mubr.bf16.mxu0 0
      %1416 = vmatmul.mubr.bf16.gmra.mrb[0].mxu0 %v1287
      %v1417 = vpop.f32.mrb[0].mxu0
      %v1418 = vadd.f32 0.0, %v1417
      %v1419 = vpop.f32.mrb[0].mxu0
      %v1420 = vpop.f32.mrb[0].mxu0
      %v1421 = vadd.f32 0.0, %v1420
      %v1422 = vpop.f32.mrb[0].mxu0
      %1423 = vmatprep.mubr.bf16.mxu0 0
      %1424 = vmatmul.mubr.bf16.gmra.mrb[0].mxu0 %v1290
      %v1425 = vpop.f32.mrb[0].mxu0
      %v1426 = vadd.f32 0.0, %v1425
      %v1427 = vpop.f32.mrb[0].mxu0
      %v1428 = vpop.f32.mrb[0].mxu0
      %v1429 = vadd.f32 0.0, %v1428
      %v1430 = vpop.f32.mrb[0].mxu0
      %1431 = vmatprep.mubr.bf16.mxu0 0
      %1432 = vmatmul.mubr.bf16.gmra.mrb[0].mxu0 %v1293
      %v1433 = vpop.f32.mrb[0].mxu0
      %v1434 = vadd.f32 0.0, %v1433
      %v1435 = vpop.f32.mrb[0].mxu0
      %v1436 = vpop.f32.mrb[0].mxu0
      %v1437 = vadd.f32 0.0, %v1436
      %v1438 = vpop.f32.mrb[0].mxu0
      %1439 = vmatprep.mubr.bf16.mxu0 0
      %1440 = vmatmul.mubr.bf16.gmra.mrb[0].mxu0 %v1296
      %v1441 = vpop.f32.mrb[0].mxu0
      %v1442 = vadd.f32 0.0, %v1441
      %v1443 = vpop.f32.mrb[0].mxu0
      %v1444 = vpop.f32.mrb[0].mxu0
      %v1445 = vadd.f32 0.0, %v1444
      %v1446 = vpop.f32.mrb[0].mxu0
      %1447 = vmatprep.mubr.bf16.mxu0 0
      %1448 = vmatmul.mubr.bf16.gmra.mrb[0].mxu0 %v1299
      %v1449 = vpop.f32.mrb[0].mxu0
      %v1450 = vadd.f32 0.0, %v1449
      %v1451 = vpop.f32.mrb[0].mxu0
      %v1452 = vpop.f32.mrb[0].mxu0
      %v1453 = vadd.f32 0.0, %v1452
      %v1454 = vpop.f32.mrb[0].mxu0
      %1455 = vmatprep.mubr.bf16.mxu0 0
      %1456 = vmatmul.mubr.bf16.gmra.mrb[0].mxu0 %v1302
      %v1457 = vpop.f32.mrb[0].mxu0
      %v1458 = vadd.f32 0.0, %v1457
      %v1459 = vpop.f32.mrb[0].mxu0
      %v1460 = vpop.f32.mrb[0].mxu0
      %v1461 = vadd.f32 0.0, %v1460
      %v1462 = vpop.f32.mrb[0].mxu0
      %1463 = vmatprep.mubr.bf16.mxu0 0
      %1464 = vmatmul.mubr.bf16.gmra.mrb[0].mxu0 %v1305
      %v1465 = vpop.f32.mrb[0].mxu0
      %v1466 = vadd.f32 0.0, %v1465
      %v1467 = vpop.f32.mrb[0].mxu0
      %v1468 = vpop.f32.mrb[0].mxu0
      %v1469 = vadd.f32 0.0, %v1468
      %v1470 = vpop.f32.mrb[0].mxu0
      %1471 = vdwg.mxu0
      %v1473 = vsel %vm1258, %v869, 0
      %v1476 = vsel %vm1258, %v870, 0
      %v1479 = vsel %vm1258, %v871, 0
      %v1482 = vsel %vm1258, %v872, 0
      %v1485 = vsel %vm1258, %v873, 0
      %v1488 = vsel %vm1258, %v874, 0
      %v1491 = vsel %vm1258, %v875, 0
      %v1494 = vsel %vm1258, %v876, 0
      %v1497 = vsel %vm1258, %v877, 0
      %v1500 = vsel %vm1258, %v878, 0
      %v1503 = vsel %vm1258, %v879, 0
      %v1506 = vsel %vm1258, %v880, 0
      %v1509 = vsel %vm1258, %v881, 0
      %v1512 = vsel %vm1258, %v882, 0
      %v1515 = vsel %vm1258, %v883, 0
      %v1518 = vsel %vm1258, %v884, 0
      %v1521 = vsel %vm1307, %v885, 0
      %1523 = vmatprep.subr.bf16.mxu0 0
      %1524 = vmatpush1.bf16.msra.mxu0 %v1521
      %1525 = vmatprep.subr.bf16.mxu0 0
      %1526 = vmatpush1.bf16.msra.mxu0 0
      %1527 = vmatprep.subr.bf16.mxu0 0
      %1528 = vmatpush1.bf16.msra.mxu0 0
      %1529 = vmatprep.subr.bf16.mxu0 0
      %1530 = vmatpush1.bf16.msra.mxu0 0
      %1531 = vmatprep.subr.bf16.mxu0 0
      %1532 = vmatpush1.bf16.msra.mxu0 0
      %1533 = vmatprep.subr.bf16.mxu0 0
      %1534 = vmatpush1.bf16.msra.mxu0 0
      %1535 = vmatprep.subr.bf16.mxu0 0
      %1536 = vmatpush1.bf16.msra.mxu0 0
      %1537 = vmatprep.subr.bf16.mxu0 0
      %1538 = vmatpush1.bf16.msra.mxu0 0
      %1539 = vmatprep.subr.bf16.mxu0 0
      %1540 = vmatpush1.bf16.msra.mxu0 0
      %1541 = vmatprep.subr.bf16.mxu0 0
      %1542 = vmatpush1.bf16.msra.mxu0 0
      %1543 = vmatprep.subr.bf16.mxu0 0
      %1544 = vmatpush1.bf16.msra.mxu0 0
      %1545 = vmatprep.subr.bf16.mxu0 0
      %1546 = vmatpush1.bf16.msra.mxu0 0
      %1547 = vmatprep.subr.bf16.mxu0 0
      %1548 = vmatpush1.bf16.msra.mxu0 0
      %1549 = vmatprep.subr.bf16.mxu0 0
      %1550 = vmatpush1.bf16.msra.mxu0 0
      %1551 = vmatprep.subr.bf16.mxu0 0
      %1552 = vmatpush1.bf16.msra.mxu0 0
      %1553 = vmatprep.subr.bf16.mxu0 0
      %1554 = vmatpush1.bf16.msra.mxu0 0
      %1555 = vmatprep.mubr.bf16.mxu0 0
      %1556 = vmatmul.mubr.bf16.gmra.mrb[0].mxu0 %v1473
      %v1557 = vpop.f32.mrb[0].mxu0
      %v1558 = vadd.f32 %v1346, %v1557
      %v1559 = vpop.f32.mrb[0].mxu0
      %v1560 = vpop.f32.mrb[0].mxu0
      %v1561 = vadd.f32 %v1349, %v1560
      %v1562 = vpop.f32.mrb[0].mxu0
      %1563 = vmatprep.mubr.bf16.mxu0 0
      %1564 = vmatmul.mubr.bf16.gmra.mrb[0].mxu0 %v1476
      %v1565 = vpop.f32.mrb[0].mxu0
      %v1566 = vadd.f32 %v1354, %v1565
      %v1567 = vpop.f32.mrb[0].mxu0
      %v1568 = vpop.f32.mrb[0].mxu0
      %v1569 = vadd.f32 %v1357, %v1568
      %v1570 = vpop.f32.mrb[0].mxu0
      %1571 = vmatprep.mubr.bf16.mxu0 0
      %1572 = vmatmul.mubr.bf16.gmra.mrb[0].mxu0 %v1479
      %v1573 = vpop.f32.mrb[0].mxu0
      %v1574 = vadd.f32 %v1362, %v1573
      %v1575 = vpop.f32.mrb[0].mxu0
      %v1576 = vpop.f32.mrb[0].mxu0
      %v1577 = vadd.f32 %v1365, %v1576
      %v1578 = vpop.f32.mrb[0].mxu0
      %1579 = vmatprep.mubr.bf16.mxu0 0
      %1580 = vmatmul.mubr.bf16.gmra.mrb[0].mxu0 %v1482
      %v1581 = vpop.f32.mrb[0].mxu0
      %v1582 = vadd.f32 %v1370, %v1581
      %v1583 = vpop.f32.mrb[0].mxu0
      %v1584 = vpop.f32.mrb[0].mxu0
      %v1585 = vadd.f32 %v1373, %v1584
      %v1586 = vpop.f32.mrb[0].mxu0
      %1587 = vmatprep.mubr.bf16.mxu0 0
      %1588 = vmatmul.mubr.bf16.gmra.mrb[0].mxu0 %v1485
      %v1589 = vpop.f32.mrb[0].mxu0
      %v1590 = vadd.f32 %v1378, %v1589
      %v1591 = vpop.f32.mrb[0].mxu0
      %v1592 = vpop.f32.mrb[0].mxu0
      %v1593 = vadd.f32 %v1381, %v1592
      %v1594 = vpop.f32.mrb[0].mxu0
      %1595 = vmatprep.mubr.bf16.mxu0 0
      %1596 = vmatmul.mubr.bf16.gmra.mrb[0].mxu0 %v1488
      %v1597 = vpop.f32.mrb[0].mxu0
      %v1598 = vadd.f32 %v1386, %v1597
      %v1599 = vpop.f32.mrb[0].mxu0
      %v1600 = vpop.f32.mrb[0].mxu0
      %v1601 = vadd.f32 %v1389, %v1600
      %v1602 = vpop.f32.mrb[0].mxu0
      %1603 = vmatprep.mubr.bf16.mxu0 0
      %1604 = vmatmul.mubr.bf16.gmra.mrb[0].mxu0 %v1491
      %v1605 = vpop.f32.mrb[0].mxu0
      %v1606 = vadd.f32 %v1394, %v1605
      %v1607 = vpop.f32.mrb[0].mxu0
      %v1608 = vpop.f32.mrb[0].mxu0
      %v1609 = vadd.f32 %v1397, %v1608
      %v1610 = vpop.f32.mrb[0].mxu0
      %1611 = vmatprep.mubr.bf16.mxu0 0
      %1612 = vmatmul.mubr.bf16.gmra.mrb[0].mxu0 %v1494
      %v1613 = vpop.f32.mrb[0].mxu0
      %v1614 = vadd.f32 %v1402, %v1613
      %v1615 = vpop.f32.mrb[0].mxu0
      %v1616 = vpop.f32.mrb[0].mxu0
      %v1617 = vadd.f32 %v1405, %v1616
      %v1618 = vpop.f32.mrb[0].mxu0
      %1619 = vmatprep.mubr.bf16.mxu0 0
      %1620 = vmatmul.mubr.bf16.gmra.mrb[0].mxu0 %v1497
      %v1621 = vpop.f32.mrb[0].mxu0
      %v1622 = vadd.f32 %v1410, %v1621
      %v1623 = vpop.f32.mrb[0].mxu0
      %v1624 = vpop.f32.mrb[0].mxu0
      %v1625 = vadd.f32 %v1413, %v1624
      %v1626 = vpop.f32.mrb[0].mxu0
      %1627 = vmatprep.mubr.bf16.mxu0 0
      %1628 = vmatmul.mubr.bf16.gmra.mrb[0].mxu0 %v1500
      %v1629 = vpop.f32.mrb[0].mxu0
      %v1630 = vadd.f32 %v1418, %v1629
      %v1631 = vpop.f32.mrb[0].mxu0
      %v1632 = vpop.f32.mrb[0].mxu0
      %v1633 = vadd.f32 %v1421, %v1632
      %v1634 = vpop.f32.mrb[0].mxu0
      %1635 = vmatprep.mubr.bf16.mxu0 0
      %1636 = vmatmul.mubr.bf16.gmra.mrb[0].mxu0 %v1503
      %v1637 = vpop.f32.mrb[0].mxu0
      %v1638 = vadd.f32 %v1426, %v1637
      %v1639 = vpop.f32.mrb[0].mxu0
      %v1640 = vpop.f32.mrb[0].mxu0
      %v1641 = vadd.f32 %v1429, %v1640
      %v1642 = vpop.f32.mrb[0].mxu0
      %1643 = vmatprep.mubr.bf16.mxu0 0
      %1644 = vmatmul.mubr.bf16.gmra.mrb[0].mxu0 %v1506
      %v1645 = vpop.f32.mrb[0].mxu0
      %v1646 = vadd.f32 %v1434, %v1645
      %v1647 = vpop.f32.mrb[0].mxu0
      %v1648 = vpop.f32.mrb[0].mxu0
      %v1649 = vadd.f32 %v1437, %v1648
      %v1650 = vpop.f32.mrb[0].mxu0
      %1651 = vmatprep.mubr.bf16.mxu0 0
      %1652 = vmatmul.mubr.bf16.gmra.mrb[0].mxu0 %v1509
      %v1653 = vpop.f32.mrb[0].mxu0
      %v1654 = vadd.f32 %v1442, %v1653
      %v1655 = vpop.f32.mrb[0].mxu0
      %v1656 = vpop.f32.mrb[0].mxu0
      %v1657 = vadd.f32 %v1445, %v1656
      %v1658 = vpop.f32.mrb[0].mxu0
      %1659 = vmatprep.mubr.bf16.mxu0 0
      %1660 = vmatmul.mubr.bf16.gmra.mrb[0].mxu0 %v1512
      %v1661 = vpop.f32.mrb[0].mxu0
      %v1662 = vadd.f32 %v1450, %v1661
      %v1663 = vpop.f32.mrb[0].mxu0
      %v1664 = vpop.f32.mrb[0].mxu0
      %v1665 = vadd.f32 %v1453, %v1664
      %v1666 = vpop.f32.mrb[0].mxu0
      %1667 = vmatprep.mubr.bf16.mxu0 0
      %1668 = vmatmul.mubr.bf16.gmra.mrb[0].mxu0 %v1515
      %v1669 = vpop.f32.mrb[0].mxu0
      %v1670 = vadd.f32 %v1458, %v1669
      %v1671 = vpop.f32.mrb[0].mxu0
      %v1672 = vpop.f32.mrb[0].mxu0
      %v1673 = vadd.f32 %v1461, %v1672
      %v1674 = vpop.f32.mrb[0].mxu0
      %1675 = vmatprep.mubr.bf16.mxu0 0
      %1676 = vmatmul.mubr.bf16.gmra.mrb[0].mxu0 %v1518
      %v1677 = vpop.f32.mrb[0].mxu0
      %v1678 = vadd.f32 %v1466, %v1677
      %v1679 = vpop.f32.mrb[0].mxu0
      %v1680 = vpop.f32.mrb[0].mxu0
      %v1681 = vadd.f32 %v1469, %v1680
      %v1682 = vpop.f32.mrb[0].mxu0
      %1683 = vdwg.mxu0
      %s1684 = scalar_lea.vmem %s1, 512
      %v1685 = vld [vmem:[%s1684] sm:$0xff]
      %v1686 = vld [vmem:[%s1684 + $0x8] sm:$0xff]
      %v1687 = vld [vmem:[%s1684 + $0x10] sm:$0xff]
      %v1688 = vld [vmem:[%s1684 + $0x18] sm:$0xff]
      %v1689 = vld [vmem:[%s1684 + $0x20] sm:$0xff]
      %v1690 = vld [vmem:[%s1684 + $0x28] sm:$0xff]
      %v1691 = vld [vmem:[%s1684 + $0x30] sm:$0xff]
      %v1692 = vld [vmem:[%s1684 + $0x38] sm:$0xff]
      %v1693 = vld [vmem:[%s1684 + $0x40] sm:$0xff]
      %v1694 = vld [vmem:[%s1684 + $0x48] sm:$0xff]
      %v1695 = vld [vmem:[%s1684 + $0x50] sm:$0xff]
      %v1696 = vld [vmem:[%s1684 + $0x58] sm:$0xff]
      %v1697 = vld [vmem:[%s1684 + $0x60] sm:$0xff]
      %v1698 = vld [vmem:[%s1684 + $0x68] sm:$0xff]
      %v1699 = vld [vmem:[%s1684 + $0x70] sm:$0xff]
      %v1700 = vld [vmem:[%s1684 + $0x78] sm:$0xff]
      %v1701 = vld [vmem:[%s1684 + $0x80] sm:$0xff]
      %v1702 = vld [vmem:[%s1684 + $0x88] sm:$0xff]
      %v1703 = vld [vmem:[%s1684 + $0x90] sm:$0xff]
      %v1704 = vld [vmem:[%s1684 + $0x98] sm:$0xff]
      %v1705 = vld [vmem:[%s1684 + $0xa0] sm:$0xff]
      %v1706 = vld [vmem:[%s1684 + $0xa8] sm:$0xff]
      %v1707 = vld [vmem:[%s1684 + $0xb0] sm:$0xff]
      %v1708 = vld [vmem:[%s1684 + $0xb8] sm:$0xff]
      %v1709 = vld [vmem:[%s1684 + $0xc0] sm:$0xff]
      %v1710 = vld [vmem:[%s1684 + $0xc8] sm:$0xff]
      %v1711 = vld [vmem:[%s1684 + $0xd0] sm:$0xff]
      %v1712 = vld [vmem:[%s1684 + $0xd8] sm:$0xff]
      %v1713 = vld [vmem:[%s1684 + $0xe0] sm:$0xff]
      %v1714 = vld [vmem:[%s1684 + $0xe8] sm:$0xff]
      %v1715 = vld [vmem:[%s1684 + $0xf0] sm:$0xff]
      %v1716 = vld [vmem:[%s1684 + $0xf8] sm:$0xff]
      %v1749 = vunpack.c.l.b16 %v1685
      %v1750 = vunpack.c.h.b16 %v1685
      %v1751 = vunpack.c.l.b16 %v1686
      %v1752 = vunpack.c.h.b16 %v1686
      %v1753 = vunpack.c.l.b16 %v1687
      %v1754 = vunpack.c.h.b16 %v1687
      %v1755 = vunpack.c.l.b16 %v1688
      %v1756 = vunpack.c.h.b16 %v1688
      %v1757 = vunpack.c.l.b16 %v1689
      %v1758 = vunpack.c.h.b16 %v1689
      %v1759 = vunpack.c.l.b16 %v1690
      %v1760 = vunpack.c.h.b16 %v1690
      %v1761 = vunpack.c.l.b16 %v1691
      %v1762 = vunpack.c.h.b16 %v1691
      %v1763 = vunpack.c.l.b16 %v1692
      %v1764 = vunpack.c.h.b16 %v1692
      %v1765 = vunpack.c.l.b16 %v1693
      %v1766 = vunpack.c.h.b16 %v1693
      %v1767 = vunpack.c.l.b16 %v1694
      %v1768 = vunpack.c.h.b16 %v1694
      %v1769 = vunpack.c.l.b16 %v1695
      %v1770 = vunpack.c.h.b16 %v1695
      %v1771 = vunpack.c.l.b16 %v1696
      %v1772 = vunpack.c.h.b16 %v1696
      %v1773 = vunpack.c.l.b16 %v1697
      %v1774 = vunpack.c.h.b16 %v1697
      %v1775 = vunpack.c.l.b16 %v1698
      %v1776 = vunpack.c.h.b16 %v1698
      %v1777 = vunpack.c.l.b16 %v1699
      %v1778 = vunpack.c.h.b16 %v1699
      %v1779 = vunpack.c.l.b16 %v1700
      %v1780 = vunpack.c.h.b16 %v1700
      %v1781 = vunpack.c.l.b16 %v1701
      %v1782 = vunpack.c.h.b16 %v1701
      %v1783 = vunpack.c.l.b16 %v1702
      %v1784 = vunpack.c.h.b16 %v1702
      %v1785 = vunpack.c.l.b16 %v1703
      %v1786 = vunpack.c.h.b16 %v1703
      %v1787 = vunpack.c.l.b16 %v1704
      %v1788 = vunpack.c.h.b16 %v1704
      %v1789 = vunpack.c.l.b16 %v1705
      %v1790 = vunpack.c.h.b16 %v1705
      %v1791 = vunpack.c.l.b16 %v1706
      %v1792 = vunpack.c.h.b16 %v1706
      %v1793 = vunpack.c.l.b16 %v1707
      %v1794 = vunpack.c.h.b16 %v1707
      %v1795 = vunpack.c.l.b16 %v1708
      %v1796 = vunpack.c.h.b16 %v1708
      %v1797 = vunpack.c.l.b16 %v1709
      %v1798 = vunpack.c.h.b16 %v1709
      %v1799 = vunpack.c.l.b16 %v1710
      %v1800 = vunpack.c.h.b16 %v1710
      %v1801 = vunpack.c.l.b16 %v1711
      %v1802 = vunpack.c.h.b16 %v1711
      %v1803 = vunpack.c.l.b16 %v1712
      %v1804 = vunpack.c.h.b16 %v1712
      %v1805 = vunpack.c.l.b16 %v1713
      %v1806 = vunpack.c.h.b16 %v1713
      %v1807 = vunpack.c.l.b16 %v1714
      %v1808 = vunpack.c.h.b16 %v1714
      %v1809 = vunpack.c.l.b16 %v1715
      %v1810 = vunpack.c.h.b16 %v1715
      %v1811 = vunpack.c.l.b16 %v1716
      %v1812 = vunpack.c.h.b16 %v1716
      %v1813 = vpack.c.b16 %v1751, %v1749
      %v1814 = vpack.c.b16 %v1752, %v1750
      %v1815 = vpack.c.b16 %v1755, %v1753
      %v1816 = vpack.c.b16 %v1756, %v1754
      %v1817 = vpack.c.b16 %v1759, %v1757
      %v1818 = vpack.c.b16 %v1760, %v1758
      %v1819 = vpack.c.b16 %v1763, %v1761
      %v1820 = vpack.c.b16 %v1764, %v1762
      %v1821 = vpack.c.b16 %v1767, %v1765
      %v1822 = vpack.c.b16 %v1768, %v1766
      %v1823 = vpack.c.b16 %v1771, %v1769
      %v1824 = vpack.c.b16 %v1772, %v1770
      %v1825 = vpack.c.b16 %v1775, %v1773
      %v1826 = vpack.c.b16 %v1776, %v1774
      %v1827 = vpack.c.b16 %v1779, %v1777
      %v1828 = vpack.c.b16 %v1780, %v1778
      %v1829 = vpack.c.b16 %v1783, %v1781
      %v1830 = vpack.c.b16 %v1784, %v1782
      %v1831 = vpack.c.b16 %v1787, %v1785
      %v1832 = vpack.c.b16 %v1788, %v1786
      %v1833 = vpack.c.b16 %v1791, %v1789
      %v1834 = vpack.c.b16 %v1792, %v1790
      %v1835 = vpack.c.b16 %v1795, %v1793
      %v1836 = vpack.c.b16 %v1796, %v1794
      %v1837 = vpack.c.b16 %v1799, %v1797
      %v1838 = vpack.c.b16 %v1800, %v1798
      %v1839 = vpack.c.b16 %v1803, %v1801
      %v1840 = vpack.c.b16 %v1804, %v1802
      %v1841 = vpack.c.b16 %v1807, %v1805
      %v1842 = vpack.c.b16 %v1808, %v1806
      %v1843 = vpack.c.b16 %v1811, %v1809
      %v1844 = vpack.c.b16 %v1812, %v1810
      %1877 = vmatprep.subr.bf16.mxu0 0
      %1878 = vmatpush1.bf16.msra.mxu0 %v676
      %1879 = vmatprep.subr.bf16.mxu0 0
      %1880 = vmatpush1.bf16.msra.mxu0 %v677
      %1881 = vmatprep.subr.bf16.mxu0 0
      %1882 = vmatpush1.bf16.msra.mxu0 %v678
      %1883 = vmatprep.subr.bf16.mxu0 0
      %1884 = vmatpush1.bf16.msra.mxu0 %v679
      %1885 = vmatprep.subr.bf16.mxu0 0
      %1886 = vmatpush1.bf16.msra.mxu0 %v680
      %1887 = vmatprep.subr.bf16.mxu0 0
      %1888 = vmatpush1.bf16.msra.mxu0 %v681
      %1889 = vmatprep.subr.bf16.mxu0 0
      %1890 = vmatpush1.bf16.msra.mxu0 %v682
      %1891 = vmatprep.subr.bf16.mxu0 0
      %1892 = vmatpush1.bf16.msra.mxu0 %v683
      %1893 = vmatprep.subr.bf16.mxu0 0
      %1894 = vmatpush1.bf16.msra.mxu0 %v684
      %1895 = vmatprep.subr.bf16.mxu0 0
      %1896 = vmatpush1.bf16.msra.mxu0 %v685
      %1897 = vmatprep.subr.bf16.mxu0 0
      %1898 = vmatpush1.bf16.msra.mxu0 %v686
      %1899 = vmatprep.subr.bf16.mxu0 0
      %1900 = vmatpush1.bf16.msra.mxu0 %v687
      %1901 = vmatprep.subr.bf16.mxu0 0
      %1902 = vmatpush1.bf16.msra.mxu0 %v688
      %1903 = vmatprep.subr.bf16.mxu0 0
      %1904 = vmatpush1.bf16.msra.mxu0 %v689
      %1905 = vmatprep.subr.bf16.mxu0 0
      %1906 = vmatpush1.bf16.msra.mxu0 %v690
      %1907 = vmatprep.subr.bf16.mxu0 0
      %1908 = vmatpush1.bf16.msra.mxu0 %v691
      %1909 = vmatprep.mubr.bf16.mxu0 %v1814
      %1910 = vmatmul.mubr.bf16.gmra.mrb[0].mxu0 %v1813
      %v1911 = vpop.f32.mrb[0].mxu0
      %v1912 = vadd.f32 0.0, %v1911
      %v1913 = vpop.f32.mrb[0].mxu0
      %v1914 = vpop.f32.mrb[0].mxu0
      %v1915 = vadd.f32 0.0, %v1914
      %v1916 = vpop.f32.mrb[0].mxu0
      %1917 = vmatprep.mubr.bf16.mxu0 %v1816
      %1918 = vmatmul.mubr.bf16.gmra.mrb[0].mxu0 %v1815
      %v1919 = vpop.f32.mrb[0].mxu0
      %v1920 = vadd.f32 0.0, %v1919
      %v1921 = vpop.f32.mrb[0].mxu0
      %v1922 = vpop.f32.mrb[0].mxu0
      %v1923 = vadd.f32 0.0, %v1922
      %v1924 = vpop.f32.mrb[0].mxu0
      %1925 = vmatprep.mubr.bf16.mxu0 %v1818
      %1926 = vmatmul.mubr.bf16.gmra.mrb[0].mxu0 %v1817
      %v1927 = vpop.f32.mrb[0].mxu0
      %v1928 = vadd.f32 0.0, %v1927
      %v1929 = vpop.f32.mrb[0].mxu0
      %v1930 = vpop.f32.mrb[0].mxu0
      %v1931 = vadd.f32 0.0, %v1930
      %v1932 = vpop.f32.mrb[0].mxu0
      %1933 = vmatprep.mubr.bf16.mxu0 %v1820
      %1934 = vmatmul.mubr.bf16.gmra.mrb[0].mxu0 %v1819
      %v1935 = vpop.f32.mrb[0].mxu0
      %v1936 = vadd.f32 0.0, %v1935
      %v1937 = vpop.f32.mrb[0].mxu0
      %v1938 = vpop.f32.mrb[0].mxu0
      %v1939 = vadd.f32 0.0, %v1938
      %v1940 = vpop.f32.mrb[0].mxu0
      %1941 = vmatprep.mubr.bf16.mxu0 %v1822
      %1942 = vmatmul.mubr.bf16.gmra.mrb[0].mxu0 %v1821
      %v1943 = vpop.f32.mrb[0].mxu0
      %v1944 = vadd.f32 0.0, %v1943
      %v1945 = vpop.f32.mrb[0].mxu0
      %v1946 = vpop.f32.mrb[0].mxu0
      %v1947 = vadd.f32 0.0, %v1946
      %v1948 = vpop.f32.mrb[0].mxu0
      %1949 = vmatprep.mubr.bf16.mxu0 %v1824
      %1950 = vmatmul.mubr.bf16.gmra.mrb[0].mxu0 %v1823
      %v1951 = vpop.f32.mrb[0].mxu0
      %v1952 = vadd.f32 0.0, %v1951
      %v1953 = vpop.f32.mrb[0].mxu0
      %v1954 = vpop.f32.mrb[0].mxu0
      %v1955 = vadd.f32 0.0, %v1954
      %v1956 = vpop.f32.mrb[0].mxu0
      %1957 = vmatprep.mubr.bf16.mxu0 %v1826
      %1958 = vmatmul.mubr.bf16.gmra.mrb[0].mxu0 %v1825
      %v1959 = vpop.f32.mrb[0].mxu0
      %v1960 = vadd.f32 0.0, %v1959
      %v1961 = vpop.f32.mrb[0].mxu0
      %v1962 = vpop.f32.mrb[0].mxu0
      %v1963 = vadd.f32 0.0, %v1962
      %v1964 = vpop.f32.mrb[0].mxu0
      %1965 = vmatprep.mubr.bf16.mxu0 %v1828
      %1966 = vmatmul.mubr.bf16.gmra.mrb[0].mxu0 %v1827
      %v1967 = vpop.f32.mrb[0].mxu0
      %v1968 = vadd.f32 0.0, %v1967
      %v1969 = vpop.f32.mrb[0].mxu0
      %v1970 = vpop.f32.mrb[0].mxu0
      %v1971 = vadd.f32 0.0, %v1970
      %v1972 = vpop.f32.mrb[0].mxu0
      %1973 = vmatprep.mubr.bf16.mxu0 %v1830
      %1974 = vmatmul.mubr.bf16.gmra.mrb[0].mxu0 %v1829
      %v1975 = vpop.f32.mrb[0].mxu0
      %v1976 = vadd.f32 0.0, %v1975
      %v1977 = vpop.f32.mrb[0].mxu0
      %v1978 = vpop.f32.mrb[0].mxu0
      %v1979 = vadd.f32 0.0, %v1978
      %v1980 = vpop.f32.mrb[0].mxu0
      %1981 = vmatprep.mubr.bf16.mxu0 %v1832
      %1982 = vmatmul.mubr.bf16.gmra.mrb[0].mxu0 %v1831
      %v1983 = vpop.f32.mrb[0].mxu0
      %v1984 = vadd.f32 0.0, %v1983
      %v1985 = vpop.f32.mrb[0].mxu0
      %v1986 = vpop.f32.mrb[0].mxu0
      %v1987 = vadd.f32 0.0, %v1986
      %v1988 = vpop.f32.mrb[0].mxu0
      %1989 = vmatprep.mubr.bf16.mxu0 %v1834
      %1990 = vmatmul.mubr.bf16.gmra.mrb[0].mxu0 %v1833
      %v1991 = vpop.f32.mrb[0].mxu0
      %v1992 = vadd.f32 0.0, %v1991
      %v1993 = vpop.f32.mrb[0].mxu0
      %v1994 = vpop.f32.mrb[0].mxu0
      %v1995 = vadd.f32 0.0, %v1994
      %v1996 = vpop.f32.mrb[0].mxu0
      %1997 = vmatprep.mubr.bf16.mxu0 %v1836
      %1998 = vmatmul.mubr.bf16.gmra.mrb[0].mxu0 %v1835
      %v1999 = vpop.f32.mrb[0].mxu0
      %v2000 = vadd.f32 0.0, %v1999
      %v2001 = vpop.f32.mrb[0].mxu0
      %v2002 = vpop.f32.mrb[0].mxu0
      %v2003 = vadd.f32 0.0, %v2002
      %v2004 = vpop.f32.mrb[0].mxu0
      %2005 = vmatprep.mubr.bf16.mxu0 %v1838
      %2006 = vmatmul.mubr.bf16.gmra.mrb[0].mxu0 %v1837
      %v2007 = vpop.f32.mrb[0].mxu0
      %v2008 = vadd.f32 0.0, %v2007
      %v2009 = vpop.f32.mrb[0].mxu0
      %v2010 = vpop.f32.mrb[0].mxu0
      %v2011 = vadd.f32 0.0, %v2010
      %v2012 = vpop.f32.mrb[0].mxu0
      %2013 = vmatprep.mubr.bf16.mxu0 %v1840
      %2014 = vmatmul.mubr.bf16.gmra.mrb[0].mxu0 %v1839
      %v2015 = vpop.f32.mrb[0].mxu0
      %v2016 = vadd.f32 0.0, %v2015
      %v2017 = vpop.f32.mrb[0].mxu0
      %v2018 = vpop.f32.mrb[0].mxu0
      %v2019 = vadd.f32 0.0, %v2018
      %v2020 = vpop.f32.mrb[0].mxu0
      %2021 = vmatprep.mubr.bf16.mxu0 %v1842
      %2022 = vmatmul.mubr.bf16.gmra.mrb[0].mxu0 %v1841
      %v2023 = vpop.f32.mrb[0].mxu0
      %v2024 = vadd.f32 0.0, %v2023
      %v2025 = vpop.f32.mrb[0].mxu0
      %v2026 = vpop.f32.mrb[0].mxu0
      %v2027 = vadd.f32 0.0, %v2026
      %v2028 = vpop.f32.mrb[0].mxu0
      %2029 = vmatprep.mubr.bf16.mxu0 %v1844
      %2030 = vmatmul.mubr.bf16.gmra.mrb[0].mxu0 %v1843
      %v2031 = vpop.f32.mrb[0].mxu0
      %v2032 = vadd.f32 0.0, %v2031
      %v2033 = vpop.f32.mrb[0].mxu0
      %v2034 = vpop.f32.mrb[0].mxu0
      %v2035 = vadd.f32 0.0, %v2034
      %v2036 = vpop.f32.mrb[0].mxu0
      %2037 = vdwg.mxu0
      %v2038 = vpack.c.bf16 %v1915, %v1912
      %v2039 = vpack.c.bf16 %v1923, %v1920
      %v2040 = vpack.c.bf16 %v1931, %v1928
      %v2041 = vpack.c.bf16 %v1939, %v1936
      %v2042 = vpack.c.bf16 %v1947, %v1944
      %v2043 = vpack.c.bf16 %v1955, %v1952
      %v2044 = vpack.c.bf16 %v1963, %v1960
      %v2045 = vpack.c.bf16 %v1971, %v1968
      %v2046 = vpack.c.bf16 %v1979, %v1976
      %v2047 = vpack.c.bf16 %v1987, %v1984
      %v2048 = vpack.c.bf16 %v1995, %v1992
      %v2049 = vpack.c.bf16 %v2003, %v2000
      %v2050 = vpack.c.bf16 %v2011, %v2008
      %v2051 = vpack.c.bf16 %v2019, %v2016
      %v2052 = vpack.c.bf16 %v2027, %v2024
      %v2053 = vpack.c.bf16 %v2035, %v2032
      %s2054 = scalar_lea.vmem %s3, 8
      %v2055 = vld [vmem:[%s2054] sm:$0xf]
      %v2057 = vsel %vm1258, %v2038, 0
      %v2060 = vsel %vm1258, %v2039, 0
      %v2063 = vsel %vm1258, %v2040, 0
      %v2066 = vsel %vm1258, %v2041, 0
      %v2069 = vsel %vm1258, %v2042, 0
      %v2072 = vsel %vm1258, %v2043, 0
      %v2075 = vsel %vm1258, %v2044, 0
      %v2078 = vsel %vm1258, %v2045, 0
      %v2081 = vsel %vm1258, %v2046, 0
      %v2084 = vsel %vm1258, %v2047, 0
      %v2087 = vsel %vm1258, %v2048, 0
      %v2090 = vsel %vm1258, %v2049, 0
      %v2093 = vsel %vm1258, %v2050, 0
      %v2096 = vsel %vm1258, %v2051, 0
      %v2099 = vsel %vm1258, %v2052, 0
      %v2102 = vsel %vm1258, %v2053, 0
      %v2105 = vsel %vm1307, %v2055, 0
      %2107 = vmatprep.subr.bf16.mxu0 0
      %2108 = vmatpush1.bf16.msra.mxu0 %v2105
      %2109 = vmatprep.subr.bf16.mxu0 0
      %2110 = vmatpush1.bf16.msra.mxu0 0
      %2111 = vmatprep.subr.bf16.mxu0 0
      %2112 = vmatpush1.bf16.msra.mxu0 0
      %2113 = vmatprep.subr.bf16.mxu0 0
      %2114 = vmatpush1.bf16.msra.mxu0 0
      %2115 = vmatprep.subr.bf16.mxu0 0
      %2116 = vmatpush1.bf16.msra.mxu0 0
      %2117 = vmatprep.subr.bf16.mxu0 0
      %2118 = vmatpush1.bf16.msra.mxu0 0
      %2119 = vmatprep.subr.bf16.mxu0 0
      %2120 = vmatpush1.bf16.msra.mxu0 0
      %2121 = vmatprep.subr.bf16.mxu0 0
      %2122 = vmatpush1.bf16.msra.mxu0 0
      %2123 = vmatprep.subr.bf16.mxu0 0
      %2124 = vmatpush1.bf16.msra.mxu0 0
      %2125 = vmatprep.subr.bf16.mxu0 0
      %2126 = vmatpush1.bf16.msra.mxu0 0
      %2127 = vmatprep.subr.bf16.mxu0 0
      %2128 = vmatpush1.bf16.msra.mxu0 0
      %2129 = vmatprep.subr.bf16.mxu0 0
      %2130 = vmatpush1.bf16.msra.mxu0 0
      %2131 = vmatprep.subr.bf16.mxu0 0
      %2132 = vmatpush1.bf16.msra.mxu0 0
      %2133 = vmatprep.subr.bf16.mxu0 0
      %2134 = vmatpush1.bf16.msra.mxu0 0
      %2135 = vmatprep.subr.bf16.mxu0 0
      %2136 = vmatpush1.bf16.msra.mxu0 0
      %2137 = vmatprep.subr.bf16.mxu0 0
      %2138 = vmatpush1.bf16.msra.mxu0 0
      %2139 = vmatprep.mubr.bf16.mxu0 0
      %2140 = vmatmul.mubr.bf16.gmra.mrb[0].mxu0 %v2057
      %v2141 = vpop.f32.mrb[0].mxu0
      %v2142 = vadd.f32 0.0, %v2141
      %v2143 = vpop.f32.mrb[0].mxu0
      %v2144 = vpop.f32.mrb[0].mxu0
      %v2145 = vadd.f32 0.0, %v2144
      %v2146 = vpop.f32.mrb[0].mxu0
      %2147 = vmatprep.mubr.bf16.mxu0 0
      %2148 = vmatmul.mubr.bf16.gmra.mrb[0].mxu0 %v2060
      %v2149 = vpop.f32.mrb[0].mxu0
      %v2150 = vadd.f32 0.0, %v2149
      %v2151 = vpop.f32.mrb[0].mxu0
      %v2152 = vpop.f32.mrb[0].mxu0
      %v2153 = vadd.f32 0.0, %v2152
      %v2154 = vpop.f32.mrb[0].mxu0
      %2155 = vmatprep.mubr.bf16.mxu0 0
      %2156 = vmatmul.mubr.bf16.gmra.mrb[0].mxu0 %v2063
      %v2157 = vpop.f32.mrb[0].mxu0
      %v2158 = vadd.f32 0.0, %v2157
      %v2159 = vpop.f32.mrb[0].mxu0
      %v2160 = vpop.f32.mrb[0].mxu0
      %v2161 = vadd.f32 0.0, %v2160
      %v2162 = vpop.f32.mrb[0].mxu0
      %2163 = vmatprep.mubr.bf16.mxu0 0
      %2164 = vmatmul.mubr.bf16.gmra.mrb[0].mxu0 %v2066
      %v2165 = vpop.f32.mrb[0].mxu0
      %v2166 = vadd.f32 0.0, %v2165
      %v2167 = vpop.f32.mrb[0].mxu0
      %v2168 = vpop.f32.mrb[0].mxu0
      %v2169 = vadd.f32 0.0, %v2168
      %v2170 = vpop.f32.mrb[0].mxu0
      %2171 = vmatprep.mubr.bf16.mxu0 0
      %2172 = vmatmul.mubr.bf16.gmra.mrb[0].mxu0 %v2069
      %v2173 = vpop.f32.mrb[0].mxu0
      %v2174 = vadd.f32 0.0, %v2173
      %v2175 = vpop.f32.mrb[0].mxu0
      %v2176 = vpop.f32.mrb[0].mxu0
      %v2177 = vadd.f32 0.0, %v2176
      %v2178 = vpop.f32.mrb[0].mxu0
      %2179 = vmatprep.mubr.bf16.mxu0 0
      %2180 = vmatmul.mubr.bf16.gmra.mrb[0].mxu0 %v2072
      %v2181 = vpop.f32.mrb[0].mxu0
      %v2182 = vadd.f32 0.0, %v2181
      %v2183 = vpop.f32.mrb[0].mxu0
      %v2184 = vpop.f32.mrb[0].mxu0
      %v2185 = vadd.f32 0.0, %v2184
      %v2186 = vpop.f32.mrb[0].mxu0
      %2187 = vmatprep.mubr.bf16.mxu0 0
      %2188 = vmatmul.mubr.bf16.gmra.mrb[0].mxu0 %v2075
      %v2189 = vpop.f32.mrb[0].mxu0
      %v2190 = vadd.f32 0.0, %v2189
      %v2191 = vpop.f32.mrb[0].mxu0
      %v2192 = vpop.f32.mrb[0].mxu0
      %v2193 = vadd.f32 0.0, %v2192
      %v2194 = vpop.f32.mrb[0].mxu0
      %2195 = vmatprep.mubr.bf16.mxu0 0
      %2196 = vmatmul.mubr.bf16.gmra.mrb[0].mxu0 %v2078
      %v2197 = vpop.f32.mrb[0].mxu0
      %v2198 = vadd.f32 0.0, %v2197
      %v2199 = vpop.f32.mrb[0].mxu0
      %v2200 = vpop.f32.mrb[0].mxu0
      %v2201 = vadd.f32 0.0, %v2200
      %v2202 = vpop.f32.mrb[0].mxu0
      %2203 = vmatprep.mubr.bf16.mxu0 0
      %2204 = vmatmul.mubr.bf16.gmra.mrb[0].mxu0 %v2081
      %v2205 = vpop.f32.mrb[0].mxu0
      %v2206 = vadd.f32 0.0, %v2205
      %v2207 = vpop.f32.mrb[0].mxu0
      %v2208 = vpop.f32.mrb[0].mxu0
      %v2209 = vadd.f32 0.0, %v2208
      %v2210 = vpop.f32.mrb[0].mxu0
      %2211 = vmatprep.mubr.bf16.mxu0 0
      %2212 = vmatmul.mubr.bf16.gmra.mrb[0].mxu0 %v2084
      %v2213 = vpop.f32.mrb[0].mxu0
      %v2214 = vadd.f32 0.0, %v2213
      %v2215 = vpop.f32.mrb[0].mxu0
      %v2216 = vpop.f32.mrb[0].mxu0
      %v2217 = vadd.f32 0.0, %v2216
      %v2218 = vpop.f32.mrb[0].mxu0
      %2219 = vmatprep.mubr.bf16.mxu0 0
      %2220 = vmatmul.mubr.bf16.gmra.mrb[0].mxu0 %v2087
      %v2221 = vpop.f32.mrb[0].mxu0
      %v2222 = vadd.f32 0.0, %v2221
      %v2223 = vpop.f32.mrb[0].mxu0
      %v2224 = vpop.f32.mrb[0].mxu0
      %v2225 = vadd.f32 0.0, %v2224
      %v2226 = vpop.f32.mrb[0].mxu0
      %2227 = vmatprep.mubr.bf16.mxu0 0
      %2228 = vmatmul.mubr.bf16.gmra.mrb[0].mxu0 %v2090
      %v2229 = vpop.f32.mrb[0].mxu0
      %v2230 = vadd.f32 0.0, %v2229
      %v2231 = vpop.f32.mrb[0].mxu0
      %v2232 = vpop.f32.mrb[0].mxu0
      %v2233 = vadd.f32 0.0, %v2232
      %v2234 = vpop.f32.mrb[0].mxu0
      %2235 = vmatprep.mubr.bf16.mxu0 0
      %2236 = vmatmul.mubr.bf16.gmra.mrb[0].mxu0 %v2093
      %v2237 = vpop.f32.mrb[0].mxu0
      %v2238 = vadd.f32 0.0, %v2237
      %v2239 = vpop.f32.mrb[0].mxu0
      %v2240 = vpop.f32.mrb[0].mxu0
      %v2241 = vadd.f32 0.0, %v2240
      %v2242 = vpop.f32.mrb[0].mxu0
      %2243 = vmatprep.mubr.bf16.mxu0 0
      %2244 = vmatmul.mubr.bf16.gmra.mrb[0].mxu0 %v2096
      %v2245 = vpop.f32.mrb[0].mxu0
      %v2246 = vadd.f32 0.0, %v2245
      %v2247 = vpop.f32.mrb[0].mxu0
      %v2248 = vpop.f32.mrb[0].mxu0
      %v2249 = vadd.f32 0.0, %v2248
      %v2250 = vpop.f32.mrb[0].mxu0
      %2251 = vmatprep.mubr.bf16.mxu0 0
      %2252 = vmatmul.mubr.bf16.gmra.mrb[0].mxu0 %v2099
      %v2253 = vpop.f32.mrb[0].mxu0
      %v2254 = vadd.f32 0.0, %v2253
      %v2255 = vpop.f32.mrb[0].mxu0
      %v2256 = vpop.f32.mrb[0].mxu0
      %v2257 = vadd.f32 0.0, %v2256
      %v2258 = vpop.f32.mrb[0].mxu0
      %2259 = vmatprep.mubr.bf16.mxu0 0
      %2260 = vmatmul.mubr.bf16.gmra.mrb[0].mxu0 %v2102
      %v2261 = vpop.f32.mrb[0].mxu0
      %v2262 = vadd.f32 0.0, %v2261
      %v2263 = vpop.f32.mrb[0].mxu0
      %v2264 = vpop.f32.mrb[0].mxu0
      %v2265 = vadd.f32 0.0, %v2264
      %v2266 = vpop.f32.mrb[0].mxu0
      %2267 = vdwg.mxu0
      %v2268 = vadd.f32 %v1558, %v2142
      %v2269 = vadd.f32 %v1561, %v2145
      %v2270 = vadd.f32 %v1566, %v2150
      %v2271 = vadd.f32 %v1569, %v2153
      %v2272 = vadd.f32 %v1574, %v2158
      %v2273 = vadd.f32 %v1577, %v2161
      %v2274 = vadd.f32 %v1582, %v2166
      %v2275 = vadd.f32 %v1585, %v2169
      %v2276 = vadd.f32 %v1590, %v2174
      %v2277 = vadd.f32 %v1593, %v2177
      %v2278 = vadd.f32 %v1598, %v2182
      %v2279 = vadd.f32 %v1601, %v2185
      %v2280 = vadd.f32 %v1606, %v2190
      %v2281 = vadd.f32 %v1609, %v2193
      %v2282 = vadd.f32 %v1614, %v2198
      %v2283 = vadd.f32 %v1617, %v2201
      %v2284 = vadd.f32 %v1622, %v2206
      %v2285 = vadd.f32 %v1625, %v2209
      %v2286 = vadd.f32 %v1630, %v2214
      %v2287 = vadd.f32 %v1633, %v2217
      %v2288 = vadd.f32 %v1638, %v2222
      %v2289 = vadd.f32 %v1641, %v2225
      %v2290 = vadd.f32 %v1646, %v2230
      %v2291 = vadd.f32 %v1649, %v2233
      %v2292 = vadd.f32 %v1654, %v2238
      %v2293 = vadd.f32 %v1657, %v2241
      %v2294 = vadd.f32 %v1662, %v2246
      %v2295 = vadd.f32 %v1665, %v2249
      %v2296 = vadd.f32 %v1670, %v2254
      %v2297 = vadd.f32 %v1673, %v2257
      %v2298 = vadd.f32 %v1678, %v2262
      %v2299 = vadd.f32 %v1681, %v2265
      %s2300 = scalar_lea.vmem %s1, 768
      %v2301 = vld [vmem:[%s2300] sm:$0xff]
      %v2302 = vld [vmem:[%s2300 + $0x8] sm:$0xff]
      %v2303 = vld [vmem:[%s2300 + $0x10] sm:$0xff]
      %v2304 = vld [vmem:[%s2300 + $0x18] sm:$0xff]
      %v2305 = vld [vmem:[%s2300 + $0x20] sm:$0xff]
      %v2306 = vld [vmem:[%s2300 + $0x28] sm:$0xff]
      %v2307 = vld [vmem:[%s2300 + $0x30] sm:$0xff]
      %v2308 = vld [vmem:[%s2300 + $0x38] sm:$0xff]
      %v2309 = vld [vmem:[%s2300 + $0x40] sm:$0xff]
      %v2310 = vld [vmem:[%s2300 + $0x48] sm:$0xff]
      %v2311 = vld [vmem:[%s2300 + $0x50] sm:$0xff]
      %v2312 = vld [vmem:[%s2300 + $0x58] sm:$0xff]
      %v2313 = vld [vmem:[%s2300 + $0x60] sm:$0xff]
      %v2314 = vld [vmem:[%s2300 + $0x68] sm:$0xff]
      %v2315 = vld [vmem:[%s2300 + $0x70] sm:$0xff]
      %v2316 = vld [vmem:[%s2300 + $0x78] sm:$0xff]
      %v2317 = vld [vmem:[%s2300 + $0x80] sm:$0xff]
      %v2318 = vld [vmem:[%s2300 + $0x88] sm:$0xff]
      %v2319 = vld [vmem:[%s2300 + $0x90] sm:$0xff]
      %v2320 = vld [vmem:[%s2300 + $0x98] sm:$0xff]
      %v2321 = vld [vmem:[%s2300 + $0xa0] sm:$0xff]
      %v2322 = vld [vmem:[%s2300 + $0xa8] sm:$0xff]
      %v2323 = vld [vmem:[%s2300 + $0xb0] sm:$0xff]
      %v2324 = vld [vmem:[%s2300 + $0xb8] sm:$0xff]
      %v2325 = vld [vmem:[%s2300 + $0xc0] sm:$0xff]
      %v2326 = vld [vmem:[%s2300 + $0xc8] sm:$0xff]
      %v2327 = vld [vmem:[%s2300 + $0xd0] sm:$0xff]
      %v2328 = vld [vmem:[%s2300 + $0xd8] sm:$0xff]
      %v2329 = vld [vmem:[%s2300 + $0xe0] sm:$0xff]
      %v2330 = vld [vmem:[%s2300 + $0xe8] sm:$0xff]
      %v2331 = vld [vmem:[%s2300 + $0xf0] sm:$0xff]
      %v2332 = vld [vmem:[%s2300 + $0xf8] sm:$0xff]
      %v2365 = vunpack.c.l.b16 %v2301
      %v2366 = vunpack.c.h.b16 %v2301
      %v2367 = vunpack.c.l.b16 %v2302
      %v2368 = vunpack.c.h.b16 %v2302
      %v2369 = vunpack.c.l.b16 %v2303
      %v2370 = vunpack.c.h.b16 %v2303
      %v2371 = vunpack.c.l.b16 %v2304
      %v2372 = vunpack.c.h.b16 %v2304
      %v2373 = vunpack.c.l.b16 %v2305
      %v2374 = vunpack.c.h.b16 %v2305
      %v2375 = vunpack.c.l.b16 %v2306
      %v2376 = vunpack.c.h.b16 %v2306
      %v2377 = vunpack.c.l.b16 %v2307
      %v2378 = vunpack.c.h.b16 %v2307
      %v2379 = vunpack.c.l.b16 %v2308
      %v2380 = vunpack.c.h.b16 %v2308
      %v2381 = vunpack.c.l.b16 %v2309
      %v2382 = vunpack.c.h.b16 %v2309
      %v2383 = vunpack.c.l.b16 %v2310
      %v2384 = vunpack.c.h.b16 %v2310
      %v2385 = vunpack.c.l.b16 %v2311
      %v2386 = vunpack.c.h.b16 %v2311
      %v2387 = vunpack.c.l.b16 %v2312
      %v2388 = vunpack.c.h.b16 %v2312
      %v2389 = vunpack.c.l.b16 %v2313
      %v2390 = vunpack.c.h.b16 %v2313
      %v2391 = vunpack.c.l.b16 %v2314
      %v2392 = vunpack.c.h.b16 %v2314
      %v2393 = vunpack.c.l.b16 %v2315
      %v2394 = vunpack.c.h.b16 %v2315
      %v2395 = vunpack.c.l.b16 %v2316
      %v2396 = vunpack.c.h.b16 %v2316
      %v2397 = vunpack.c.l.b16 %v2317
      %v2398 = vunpack.c.h.b16 %v2317
      %v2399 = vunpack.c.l.b16 %v2318
      %v2400 = vunpack.c.h.b16 %v2318
      %v2401 = vunpack.c.l.b16 %v2319
      %v2402 = vunpack.c.h.b16 %v2319
      %v2403 = vunpack.c.l.b16 %v2320
      %v2404 = vunpack.c.h.b16 %v2320
      %v2405 = vunpack.c.l.b16 %v2321
      %v2406 = vunpack.c.h.b16 %v2321
      %v2407 = vunpack.c.l.b16 %v2322
      %v2408 = vunpack.c.h.b16 %v2322
      %v2409 = vunpack.c.l.b16 %v2323
      %v2410 = vunpack.c.h.b16 %v2323
      %v2411 = vunpack.c.l.b16 %v2324
      %v2412 = vunpack.c.h.b16 %v2324
      %v2413 = vunpack.c.l.b16 %v2325
      %v2414 = vunpack.c.h.b16 %v2325
      %v2415 = vunpack.c.l.b16 %v2326
      %v2416 = vunpack.c.h.b16 %v2326
      %v2417 = vunpack.c.l.b16 %v2327
      %v2418 = vunpack.c.h.b16 %v2327
      %v2419 = vunpack.c.l.b16 %v2328
      %v2420 = vunpack.c.h.b16 %v2328
      %v2421 = vunpack.c.l.b16 %v2329
      %v2422 = vunpack.c.h.b16 %v2329
      %v2423 = vunpack.c.l.b16 %v2330
      %v2424 = vunpack.c.h.b16 %v2330
      %v2425 = vunpack.c.l.b16 %v2331
      %v2426 = vunpack.c.h.b16 %v2331
      %v2427 = vunpack.c.l.b16 %v2332
      %v2428 = vunpack.c.h.b16 %v2332
      %v2429 = vpack.c.b16 %v2367, %v2365
      %v2430 = vpack.c.b16 %v2368, %v2366
      %v2431 = vpack.c.b16 %v2371, %v2369
      %v2432 = vpack.c.b16 %v2372, %v2370
      %v2433 = vpack.c.b16 %v2375, %v2373
      %v2434 = vpack.c.b16 %v2376, %v2374
      %v2435 = vpack.c.b16 %v2379, %v2377
      %v2436 = vpack.c.b16 %v2380, %v2378
      %v2437 = vpack.c.b16 %v2383, %v2381
      %v2438 = vpack.c.b16 %v2384, %v2382
      %v2439 = vpack.c.b16 %v2387, %v2385
      %v2440 = vpack.c.b16 %v2388, %v2386
      %v2441 = vpack.c.b16 %v2391, %v2389
      %v2442 = vpack.c.b16 %v2392, %v2390
      %v2443 = vpack.c.b16 %v2395, %v2393
      %v2444 = vpack.c.b16 %v2396, %v2394
      %v2445 = vpack.c.b16 %v2399, %v2397
      %v2446 = vpack.c.b16 %v2400, %v2398
      %v2447 = vpack.c.b16 %v2403, %v2401
      %v2448 = vpack.c.b16 %v2404, %v2402
      %v2449 = vpack.c.b16 %v2407, %v2405
      %v2450 = vpack.c.b16 %v2408, %v2406
      %v2451 = vpack.c.b16 %v2411, %v2409
      %v2452 = vpack.c.b16 %v2412, %v2410
      %v2453 = vpack.c.b16 %v2415, %v2413
      %v2454 = vpack.c.b16 %v2416, %v2414
      %v2455 = vpack.c.b16 %v2419, %v2417
      %v2456 = vpack.c.b16 %v2420, %v2418
      %v2457 = vpack.c.b16 %v2423, %v2421
      %v2458 = vpack.c.b16 %v2424, %v2422
      %v2459 = vpack.c.b16 %v2427, %v2425
      %v2460 = vpack.c.b16 %v2428, %v2426
      %2493 = vmatprep.subr.bf16.mxu0 0
      %2494 = vmatpush1.bf16.msra.mxu0 %v676
      %2495 = vmatprep.subr.bf16.mxu0 0
      %2496 = vmatpush1.bf16.msra.mxu0 %v677
      %2497 = vmatprep.subr.bf16.mxu0 0
      %2498 = vmatpush1.bf16.msra.mxu0 %v678
      %2499 = vmatprep.subr.bf16.mxu0 0
      %2500 = vmatpush1.bf16.msra.mxu0 %v679
      %2501 = vmatprep.subr.bf16.mxu0 0
      %2502 = vmatpush1.bf16.msra.mxu0 %v680
      %2503 = vmatprep.subr.bf16.mxu0 0
      %2504 = vmatpush1.bf16.msra.mxu0 %v681
      %2505 = vmatprep.subr.bf16.mxu0 0
      %2506 = vmatpush1.bf16.msra.mxu0 %v682
      %2507 = vmatprep.subr.bf16.mxu0 0
      %2508 = vmatpush1.bf16.msra.mxu0 %v683
      %2509 = vmatprep.subr.bf16.mxu0 0
      %2510 = vmatpush1.bf16.msra.mxu0 %v684
      %2511 = vmatprep.subr.bf16.mxu0 0
      %2512 = vmatpush1.bf16.msra.mxu0 %v685
      %2513 = vmatprep.subr.bf16.mxu0 0
      %2514 = vmatpush1.bf16.msra.mxu0 %v686
      %2515 = vmatprep.subr.bf16.mxu0 0
      %2516 = vmatpush1.bf16.msra.mxu0 %v687
      %2517 = vmatprep.subr.bf16.mxu0 0
      %2518 = vmatpush1.bf16.msra.mxu0 %v688
      %2519 = vmatprep.subr.bf16.mxu0 0
      %2520 = vmatpush1.bf16.msra.mxu0 %v689
      %2521 = vmatprep.subr.bf16.mxu0 0
      %2522 = vmatpush1.bf16.msra.mxu0 %v690
      %2523 = vmatprep.subr.bf16.mxu0 0
      %2524 = vmatpush1.bf16.msra.mxu0 %v691
      %2525 = vmatprep.mubr.bf16.mxu0 %v2430
      %2526 = vmatmul.mubr.bf16.gmra.mrb[0].mxu0 %v2429
      %v2527 = vpop.f32.mrb[0].mxu0
      %v2528 = vadd.f32 0.0, %v2527
      %v2529 = vpop.f32.mrb[0].mxu0
      %v2530 = vpop.f32.mrb[0].mxu0
      %v2531 = vadd.f32 0.0, %v2530
      %v2532 = vpop.f32.mrb[0].mxu0
      %2533 = vmatprep.mubr.bf16.mxu0 %v2432
      %2534 = vmatmul.mubr.bf16.gmra.mrb[0].mxu0 %v2431
      %v2535 = vpop.f32.mrb[0].mxu0
      %v2536 = vadd.f32 0.0, %v2535
      %v2537 = vpop.f32.mrb[0].mxu0
      %v2538 = vpop.f32.mrb[0].mxu0
      %v2539 = vadd.f32 0.0, %v2538
      %v2540 = vpop.f32.mrb[0].mxu0
      %2541 = vmatprep.mubr.bf16.mxu0 %v2434
      %2542 = vmatmul.mubr.bf16.gmra.mrb[0].mxu0 %v2433
      %v2543 = vpop.f32.mrb[0].mxu0
      %v2544 = vadd.f32 0.0, %v2543
      %v2545 = vpop.f32.mrb[0].mxu0
      %v2546 = vpop.f32.mrb[0].mxu0
      %v2547 = vadd.f32 0.0, %v2546
      %v2548 = vpop.f32.mrb[0].mxu0
      %2549 = vmatprep.mubr.bf16.mxu0 %v2436
      %2550 = vmatmul.mubr.bf16.gmra.mrb[0].mxu0 %v2435
      %v2551 = vpop.f32.mrb[0].mxu0
      %v2552 = vadd.f32 0.0, %v2551
      %v2553 = vpop.f32.mrb[0].mxu0
      %v2554 = vpop.f32.mrb[0].mxu0
      %v2555 = vadd.f32 0.0, %v2554
      %v2556 = vpop.f32.mrb[0].mxu0
      %2557 = vmatprep.mubr.bf16.mxu0 %v2438
      %2558 = vmatmul.mubr.bf16.gmra.mrb[0].mxu0 %v2437
      %v2559 = vpop.f32.mrb[0].mxu0
      %v2560 = vadd.f32 0.0, %v2559
      %v2561 = vpop.f32.mrb[0].mxu0
      %v2562 = vpop.f32.mrb[0].mxu0
      %v2563 = vadd.f32 0.0, %v2562
      %v2564 = vpop.f32.mrb[0].mxu0
      %2565 = vmatprep.mubr.bf16.mxu0 %v2440
      %2566 = vmatmul.mubr.bf16.gmra.mrb[0].mxu0 %v2439
      %v2567 = vpop.f32.mrb[0].mxu0
      %v2568 = vadd.f32 0.0, %v2567
      %v2569 = vpop.f32.mrb[0].mxu0
      %v2570 = vpop.f32.mrb[0].mxu0
      %v2571 = vadd.f32 0.0, %v2570
      %v2572 = vpop.f32.mrb[0].mxu0
      %2573 = vmatprep.mubr.bf16.mxu0 %v2442
      %2574 = vmatmul.mubr.bf16.gmra.mrb[0].mxu0 %v2441
      %v2575 = vpop.f32.mrb[0].mxu0
      %v2576 = vadd.f32 0.0, %v2575
      %v2577 = vpop.f32.mrb[0].mxu0
      %v2578 = vpop.f32.mrb[0].mxu0
      %v2579 = vadd.f32 0.0, %v2578
      %v2580 = vpop.f32.mrb[0].mxu0
      %2581 = vmatprep.mubr.bf16.mxu0 %v2444
      %2582 = vmatmul.mubr.bf16.gmra.mrb[0].mxu0 %v2443
      %v2583 = vpop.f32.mrb[0].mxu0
      %v2584 = vadd.f32 0.0, %v2583
      %v2585 = vpop.f32.mrb[0].mxu0
      %v2586 = vpop.f32.mrb[0].mxu0
      %v2587 = vadd.f32 0.0, %v2586
      %v2588 = vpop.f32.mrb[0].mxu0
      %2589 = vmatprep.mubr.bf16.mxu0 %v2446
      %2590 = vmatmul.mubr.bf16.gmra.mrb[0].mxu0 %v2445
      %v2591 = vpop.f32.mrb[0].mxu0
      %v2592 = vadd.f32 0.0, %v2591
      %v2593 = vpop.f32.mrb[0].mxu0
      %v2594 = vpop.f32.mrb[0].mxu0
      %v2595 = vadd.f32 0.0, %v2594
      %v2596 = vpop.f32.mrb[0].mxu0
      %2597 = vmatprep.mubr.bf16.mxu0 %v2448
      %2598 = vmatmul.mubr.bf16.gmra.mrb[0].mxu0 %v2447
      %v2599 = vpop.f32.mrb[0].mxu0
      %v2600 = vadd.f32 0.0, %v2599
      %v2601 = vpop.f32.mrb[0].mxu0
      %v2602 = vpop.f32.mrb[0].mxu0
      %v2603 = vadd.f32 0.0, %v2602
      %v2604 = vpop.f32.mrb[0].mxu0
      %2605 = vmatprep.mubr.bf16.mxu0 %v2450
      %2606 = vmatmul.mubr.bf16.gmra.mrb[0].mxu0 %v2449
      %v2607 = vpop.f32.mrb[0].mxu0
      %v2608 = vadd.f32 0.0, %v2607
      %v2609 = vpop.f32.mrb[0].mxu0
      %v2610 = vpop.f32.mrb[0].mxu0
      %v2611 = vadd.f32 0.0, %v2610
      %v2612 = vpop.f32.mrb[0].mxu0
      %2613 = vmatprep.mubr.bf16.mxu0 %v2452
      %2614 = vmatmul.mubr.bf16.gmra.mrb[0].mxu0 %v2451
      %v2615 = vpop.f32.mrb[0].mxu0
      %v2616 = vadd.f32 0.0, %v2615
      %v2617 = vpop.f32.mrb[0].mxu0
      %v2618 = vpop.f32.mrb[0].mxu0
      %v2619 = vadd.f32 0.0, %v2618
      %v2620 = vpop.f32.mrb[0].mxu0
      %2621 = vmatprep.mubr.bf16.mxu0 %v2454
      %2622 = vmatmul.mubr.bf16.gmra.mrb[0].mxu0 %v2453
      %v2623 = vpop.f32.mrb[0].mxu0
      %v2624 = vadd.f32 0.0, %v2623
      %v2625 = vpop.f32.mrb[0].mxu0
      %v2626 = vpop.f32.mrb[0].mxu0
      %v2627 = vadd.f32 0.0, %v2626
      %v2628 = vpop.f32.mrb[0].mxu0
      %2629 = vmatprep.mubr.bf16.mxu0 %v2456
      %2630 = vmatmul.mubr.bf16.gmra.mrb[0].mxu0 %v2455
      %v2631 = vpop.f32.mrb[0].mxu0
      %v2632 = vadd.f32 0.0, %v2631
      %v2633 = vpop.f32.mrb[0].mxu0
      %v2634 = vpop.f32.mrb[0].mxu0
      %v2635 = vadd.f32 0.0, %v2634
      %v2636 = vpop.f32.mrb[0].mxu0
      %2637 = vmatprep.mubr.bf16.mxu0 %v2458
      %2638 = vmatmul.mubr.bf16.gmra.mrb[0].mxu0 %v2457
      %v2639 = vpop.f32.mrb[0].mxu0
      %v2640 = vadd.f32 0.0, %v2639
      %v2641 = vpop.f32.mrb[0].mxu0
      %v2642 = vpop.f32.mrb[0].mxu0
      %v2643 = vadd.f32 0.0, %v2642
      %v2644 = vpop.f32.mrb[0].mxu0
      %2645 = vmatprep.mubr.bf16.mxu0 %v2460
      %2646 = vmatmul.mubr.bf16.gmra.mrb[0].mxu0 %v2459
      %v2647 = vpop.f32.mrb[0].mxu0
      %v2648 = vadd.f32 0.0, %v2647
      %v2649 = vpop.f32.mrb[0].mxu0
      %v2650 = vpop.f32.mrb[0].mxu0
      %v2651 = vadd.f32 0.0, %v2650
      %v2652 = vpop.f32.mrb[0].mxu0
      %2653 = vdwg.mxu0
      %v2654 = vpack.c.bf16 %v2531, %v2528
      %v2655 = vpack.c.bf16 %v2539, %v2536
      %v2656 = vpack.c.bf16 %v2547, %v2544
      %v2657 = vpack.c.bf16 %v2555, %v2552
      %v2658 = vpack.c.bf16 %v2563, %v2560
      %v2659 = vpack.c.bf16 %v2571, %v2568
      %v2660 = vpack.c.bf16 %v2579, %v2576
      %v2661 = vpack.c.bf16 %v2587, %v2584
      %v2662 = vpack.c.bf16 %v2595, %v2592
      %v2663 = vpack.c.bf16 %v2603, %v2600
      %v2664 = vpack.c.bf16 %v2611, %v2608
      %v2665 = vpack.c.bf16 %v2619, %v2616
      %v2666 = vpack.c.bf16 %v2627, %v2624
      %v2667 = vpack.c.bf16 %v2635, %v2632
      %v2668 = vpack.c.bf16 %v2643, %v2640
      %v2669 = vpack.c.bf16 %v2651, %v2648
      %s2670 = scalar_lea.vmem %s3, 12
      %v2671 = vld [vmem:[%s2670] sm:$0xf]
      %v2673 = vsel %vm1258, %v2654, 0
      %v2676 = vsel %vm1258, %v2655, 0
      %v2679 = vsel %vm1258, %v2656, 0
      %v2682 = vsel %vm1258, %v2657, 0
      %v2685 = vsel %vm1258, %v2658, 0
      %v2688 = vsel %vm1258, %v2659, 0
      %v2691 = vsel %vm1258, %v2660, 0
      %v2694 = vsel %vm1258, %v2661, 0
      %v2697 = vsel %vm1258, %v2662, 0
      %v2700 = vsel %vm1258, %v2663, 0
      %v2703 = vsel %vm1258, %v2664, 0
      %v2706 = vsel %vm1258, %v2665, 0
      %v2709 = vsel %vm1258, %v2666, 0
      %v2712 = vsel %vm1258, %v2667, 0
      %v2715 = vsel %vm1258, %v2668, 0
      %v2718 = vsel %vm1258, %v2669, 0
      %v2721 = vsel %vm1307, %v2671, 0
      %2723 = vmatprep.subr.bf16.mxu0 0
      %2724 = vmatpush1.bf16.msra.mxu0 %v2721
      %2725 = vmatprep.subr.bf16.mxu0 0
      %2726 = vmatpush1.bf16.msra.mxu0 0
      %2727 = vmatprep.subr.bf16.mxu0 0
      %2728 = vmatpush1.bf16.msra.mxu0 0
      %2729 = vmatprep.subr.bf16.mxu0 0
      %2730 = vmatpush1.bf16.msra.mxu0 0
      %2731 = vmatprep.subr.bf16.mxu0 0
      %2732 = vmatpush1.bf16.msra.mxu0 0
      %2733 = vmatprep.subr.bf16.mxu0 0
      %2734 = vmatpush1.bf16.msra.mxu0 0
      %2735 = vmatprep.subr.bf16.mxu0 0
      %2736 = vmatpush1.bf16.msra.mxu0 0
      %2737 = vmatprep.subr.bf16.mxu0 0
      %2738 = vmatpush1.bf16.msra.mxu0 0
      %2739 = vmatprep.subr.bf16.mxu0 0
      %2740 = vmatpush1.bf16.msra.mxu0 0
      %2741 = vmatprep.subr.bf16.mxu0 0
      %2742 = vmatpush1.bf16.msra.mxu0 0
      %2743 = vmatprep.subr.bf16.mxu0 0
      %2744 = vmatpush1.bf16.msra.mxu0 0
      %2745 = vmatprep.subr.bf16.mxu0 0
      %2746 = vmatpush1.bf16.msra.mxu0 0
      %2747 = vmatprep.subr.bf16.mxu0 0
      %2748 = vmatpush1.bf16.msra.mxu0 0
      %2749 = vmatprep.subr.bf16.mxu0 0
      %2750 = vmatpush1.bf16.msra.mxu0 0
      %2751 = vmatprep.subr.bf16.mxu0 0
      %2752 = vmatpush1.bf16.msra.mxu0 0
      %2753 = vmatprep.subr.bf16.mxu0 0
      %2754 = vmatpush1.bf16.msra.mxu0 0
      %2755 = vmatprep.mubr.bf16.mxu0 0
      %2756 = vmatmul.mubr.bf16.gmra.mrb[0].mxu0 %v2673
      %v2757 = vpop.f32.mrb[0].mxu0
      %v2758 = vadd.f32 0.0, %v2757
      %v2759 = vpop.f32.mrb[0].mxu0
      %v2760 = vpop.f32.mrb[0].mxu0
      %v2761 = vadd.f32 0.0, %v2760
      %v2762 = vpop.f32.mrb[0].mxu0
      %2763 = vmatprep.mubr.bf16.mxu0 0
      %2764 = vmatmul.mubr.bf16.gmra.mrb[0].mxu0 %v2676
      %v2765 = vpop.f32.mrb[0].mxu0
      %v2766 = vadd.f32 0.0, %v2765
      %v2767 = vpop.f32.mrb[0].mxu0
      %v2768 = vpop.f32.mrb[0].mxu0
      %v2769 = vadd.f32 0.0, %v2768
      %v2770 = vpop.f32.mrb[0].mxu0
      %2771 = vmatprep.mubr.bf16.mxu0 0
      %2772 = vmatmul.mubr.bf16.gmra.mrb[0].mxu0 %v2679
      %v2773 = vpop.f32.mrb[0].mxu0
      %v2774 = vadd.f32 0.0, %v2773
      %v2775 = vpop.f32.mrb[0].mxu0
      %v2776 = vpop.f32.mrb[0].mxu0
      %v2777 = vadd.f32 0.0, %v2776
      %v2778 = vpop.f32.mrb[0].mxu0
      %2779 = vmatprep.mubr.bf16.mxu0 0
      %2780 = vmatmul.mubr.bf16.gmra.mrb[0].mxu0 %v2682
      %v2781 = vpop.f32.mrb[0].mxu0
      %v2782 = vadd.f32 0.0, %v2781
      %v2783 = vpop.f32.mrb[0].mxu0
      %v2784 = vpop.f32.mrb[0].mxu0
      %v2785 = vadd.f32 0.0, %v2784
      %v2786 = vpop.f32.mrb[0].mxu0
      %2787 = vmatprep.mubr.bf16.mxu0 0
      %2788 = vmatmul.mubr.bf16.gmra.mrb[0].mxu0 %v2685
      %v2789 = vpop.f32.mrb[0].mxu0
      %v2790 = vadd.f32 0.0, %v2789
      %v2791 = vpop.f32.mrb[0].mxu0
      %v2792 = vpop.f32.mrb[0].mxu0
      %v2793 = vadd.f32 0.0, %v2792
      %v2794 = vpop.f32.mrb[0].mxu0
      %2795 = vmatprep.mubr.bf16.mxu0 0
      %2796 = vmatmul.mubr.bf16.gmra.mrb[0].mxu0 %v2688
      %v2797 = vpop.f32.mrb[0].mxu0
      %v2798 = vadd.f32 0.0, %v2797
      %v2799 = vpop.f32.mrb[0].mxu0
      %v2800 = vpop.f32.mrb[0].mxu0
      %v2801 = vadd.f32 0.0, %v2800
      %v2802 = vpop.f32.mrb[0].mxu0
      %2803 = vmatprep.mubr.bf16.mxu0 0
      %2804 = vmatmul.mubr.bf16.gmra.mrb[0].mxu0 %v2691
      %v2805 = vpop.f32.mrb[0].mxu0
      %v2806 = vadd.f32 0.0, %v2805
      %v2807 = vpop.f32.mrb[0].mxu0
      %v2808 = vpop.f32.mrb[0].mxu0
      %v2809 = vadd.f32 0.0, %v2808
      %v2810 = vpop.f32.mrb[0].mxu0
      %2811 = vmatprep.mubr.bf16.mxu0 0
      %2812 = vmatmul.mubr.bf16.gmra.mrb[0].mxu0 %v2694
      %v2813 = vpop.f32.mrb[0].mxu0
      %v2814 = vadd.f32 0.0, %v2813
      %v2815 = vpop.f32.mrb[0].mxu0
      %v2816 = vpop.f32.mrb[0].mxu0
      %v2817 = vadd.f32 0.0, %v2816
      %v2818 = vpop.f32.mrb[0].mxu0
      %2819 = vmatprep.mubr.bf16.mxu0 0
      %2820 = vmatmul.mubr.bf16.gmra.mrb[0].mxu0 %v2697
      %v2821 = vpop.f32.mrb[0].mxu0
      %v2822 = vadd.f32 0.0, %v2821
      %v2823 = vpop.f32.mrb[0].mxu0
      %v2824 = vpop.f32.mrb[0].mxu0
      %v2825 = vadd.f32 0.0, %v2824
      %v2826 = vpop.f32.mrb[0].mxu0
      %2827 = vmatprep.mubr.bf16.mxu0 0
      %2828 = vmatmul.mubr.bf16.gmra.mrb[0].mxu0 %v2700
      %v2829 = vpop.f32.mrb[0].mxu0
      %v2830 = vadd.f32 0.0, %v2829
      %v2831 = vpop.f32.mrb[0].mxu0
      %v2832 = vpop.f32.mrb[0].mxu0
      %v2833 = vadd.f32 0.0, %v2832
      %v2834 = vpop.f32.mrb[0].mxu0
      %2835 = vmatprep.mubr.bf16.mxu0 0
      %2836 = vmatmul.mubr.bf16.gmra.mrb[0].mxu0 %v2703
      %v2837 = vpop.f32.mrb[0].mxu0
      %v2838 = vadd.f32 0.0, %v2837
      %v2839 = vpop.f32.mrb[0].mxu0
      %v2840 = vpop.f32.mrb[0].mxu0
      %v2841 = vadd.f32 0.0, %v2840
      %v2842 = vpop.f32.mrb[0].mxu0
      %2843 = vmatprep.mubr.bf16.mxu0 0
      %2844 = vmatmul.mubr.bf16.gmra.mrb[0].mxu0 %v2706
      %v2845 = vpop.f32.mrb[0].mxu0
      %v2846 = vadd.f32 0.0, %v2845
      %v2847 = vpop.f32.mrb[0].mxu0
      %v2848 = vpop.f32.mrb[0].mxu0
      %v2849 = vadd.f32 0.0, %v2848
      %v2850 = vpop.f32.mrb[0].mxu0
      %2851 = vmatprep.mubr.bf16.mxu0 0
      %2852 = vmatmul.mubr.bf16.gmra.mrb[0].mxu0 %v2709
      %v2853 = vpop.f32.mrb[0].mxu0
      %v2854 = vadd.f32 0.0, %v2853
      %v2855 = vpop.f32.mrb[0].mxu0
      %v2856 = vpop.f32.mrb[0].mxu0
      %v2857 = vadd.f32 0.0, %v2856
      %v2858 = vpop.f32.mrb[0].mxu0
      %2859 = vmatprep.mubr.bf16.mxu0 0
      %2860 = vmatmul.mubr.bf16.gmra.mrb[0].mxu0 %v2712
      %v2861 = vpop.f32.mrb[0].mxu0
      %v2862 = vadd.f32 0.0, %v2861
      %v2863 = vpop.f32.mrb[0].mxu0
      %v2864 = vpop.f32.mrb[0].mxu0
      %v2865 = vadd.f32 0.0, %v2864
      %v2866 = vpop.f32.mrb[0].mxu0
      %2867 = vmatprep.mubr.bf16.mxu0 0
      %2868 = vmatmul.mubr.bf16.gmra.mrb[0].mxu0 %v2715
      %v2869 = vpop.f32.mrb[0].mxu0
      %v2870 = vadd.f32 0.0, %v2869
      %v2871 = vpop.f32.mrb[0].mxu0
      %v2872 = vpop.f32.mrb[0].mxu0
      %v2873 = vadd.f32 0.0, %v2872
      %v2874 = vpop.f32.mrb[0].mxu0
      %2875 = vmatprep.mubr.bf16.mxu0 0
      %2876 = vmatmul.mubr.bf16.gmra.mrb[0].mxu0 %v2718
      %v2877 = vpop.f32.mrb[0].mxu0
      %v2878 = vadd.f32 0.0, %v2877
      %v2879 = vpop.f32.mrb[0].mxu0
      %v2880 = vpop.f32.mrb[0].mxu0
      %v2881 = vadd.f32 0.0, %v2880
      %v2882 = vpop.f32.mrb[0].mxu0
      %2883 = vdwg.mxu0
      %v2884 = vadd.f32 %v2268, %v2758
      %v2885 = vadd.f32 %v2269, %v2761
      %v2886 = vadd.f32 %v2270, %v2766
      %v2887 = vadd.f32 %v2271, %v2769
      %v2888 = vadd.f32 %v2272, %v2774
      %v2889 = vadd.f32 %v2273, %v2777
      %v2890 = vadd.f32 %v2274, %v2782
      %v2891 = vadd.f32 %v2275, %v2785
      %v2892 = vadd.f32 %v2276, %v2790
      %v2893 = vadd.f32 %v2277, %v2793
      %v2894 = vadd.f32 %v2278, %v2798
      %v2895 = vadd.f32 %v2279, %v2801
      %v2896 = vadd.f32 %v2280, %v2806
      %v2897 = vadd.f32 %v2281, %v2809
      %v2898 = vadd.f32 %v2282, %v2814
      %v2899 = vadd.f32 %v2283, %v2817
      %v2900 = vadd.f32 %v2284, %v2822
      %v2901 = vadd.f32 %v2285, %v2825
      %v2902 = vadd.f32 %v2286, %v2830
      %v2903 = vadd.f32 %v2287, %v2833
      %v2904 = vadd.f32 %v2288, %v2838
      %v2905 = vadd.f32 %v2289, %v2841
      %v2906 = vadd.f32 %v2290, %v2846
      %v2907 = vadd.f32 %v2291, %v2849
      %v2908 = vadd.f32 %v2292, %v2854
      %v2909 = vadd.f32 %v2293, %v2857
      %v2910 = vadd.f32 %v2294, %v2862
      %v2911 = vadd.f32 %v2295, %v2865
      %v2912 = vadd.f32 %v2296, %v2870
      %v2913 = vadd.f32 %v2297, %v2873
      %v2914 = vadd.f32 %v2298, %v2878
      %v2915 = vadd.f32 %v2299, %v2881
      %s2916 = scalar_lea.vmem %s1, 1024
      %v2917 = vld [vmem:[%s2916] sm:$0xff]
      %v2918 = vld [vmem:[%s2916 + $0x8] sm:$0xff]
      %v2919 = vld [vmem:[%s2916 + $0x10] sm:$0xff]
      %v2920 = vld [vmem:[%s2916 + $0x18] sm:$0xff]
      %v2921 = vld [vmem:[%s2916 + $0x20] sm:$0xff]
      %v2922 = vld [vmem:[%s2916 + $0x28] sm:$0xff]
      %v2923 = vld [vmem:[%s2916 + $0x30] sm:$0xff]
      %v2924 = vld [vmem:[%s2916 + $0x38] sm:$0xff]
      %v2925 = vld [vmem:[%s2916 + $0x40] sm:$0xff]
      %v2926 = vld [vmem:[%s2916 + $0x48] sm:$0xff]
      %v2927 = vld [vmem:[%s2916 + $0x50] sm:$0xff]
      %v2928 = vld [vmem:[%s2916 + $0x58] sm:$0xff]
      %v2929 = vld [vmem:[%s2916 + $0x60] sm:$0xff]
      %v2930 = vld [vmem:[%s2916 + $0x68] sm:$0xff]
      %v2931 = vld [vmem:[%s2916 + $0x70] sm:$0xff]
      %v2932 = vld [vmem:[%s2916 + $0x78] sm:$0xff]
      %v2933 = vld [vmem:[%s2916 + $0x80] sm:$0xff]
      %v2934 = vld [vmem:[%s2916 + $0x88] sm:$0xff]
      %v2935 = vld [vmem:[%s2916 + $0x90] sm:$0xff]
      %v2936 = vld [vmem:[%s2916 + $0x98] sm:$0xff]
      %v2937 = vld [vmem:[%s2916 + $0xa0] sm:$0xff]
      %v2938 = vld [vmem:[%s2916 + $0xa8] sm:$0xff]
      %v2939 = vld [vmem:[%s2916 + $0xb0] sm:$0xff]
      %v2940 = vld [vmem:[%s2916 + $0xb8] sm:$0xff]
      %v2941 = vld [vmem:[%s2916 + $0xc0] sm:$0xff]
      %v2942 = vld [vmem:[%s2916 + $0xc8] sm:$0xff]
      %v2943 = vld [vmem:[%s2916 + $0xd0] sm:$0xff]
      %v2944 = vld [vmem:[%s2916 + $0xd8] sm:$0xff]
      %v2945 = vld [vmem:[%s2916 + $0xe0] sm:$0xff]
      %v2946 = vld [vmem:[%s2916 + $0xe8] sm:$0xff]
      %v2947 = vld [vmem:[%s2916 + $0xf0] sm:$0xff]
      %v2948 = vld [vmem:[%s2916 + $0xf8] sm:$0xff]
      %v2981 = vunpack.c.l.b16 %v2917
      %v2982 = vunpack.c.h.b16 %v2917
      %v2983 = vunpack.c.l.b16 %v2918
      %v2984 = vunpack.c.h.b16 %v2918
      %v2985 = vunpack.c.l.b16 %v2919
      %v2986 = vunpack.c.h.b16 %v2919
      %v2987 = vunpack.c.l.b16 %v2920
      %v2988 = vunpack.c.h.b16 %v2920
      %v2989 = vunpack.c.l.b16 %v2921
      %v2990 = vunpack.c.h.b16 %v2921
      %v2991 = vunpack.c.l.b16 %v2922
      %v2992 = vunpack.c.h.b16 %v2922
      %v2993 = vunpack.c.l.b16 %v2923
      %v2994 = vunpack.c.h.b16 %v2923
      %v2995 = vunpack.c.l.b16 %v2924
      %v2996 = vunpack.c.h.b16 %v2924
      %v2997 = vunpack.c.l.b16 %v2925
      %v2998 = vunpack.c.h.b16 %v2925
      %v2999 = vunpack.c.l.b16 %v2926
      %v3000 = vunpack.c.h.b16 %v2926
      %v3001 = vunpack.c.l.b16 %v2927
      %v3002 = vunpack.c.h.b16 %v2927
      %v3003 = vunpack.c.l.b16 %v2928
      %v3004 = vunpack.c.h.b16 %v2928
      %v3005 = vunpack.c.l.b16 %v2929
      %v3006 = vunpack.c.h.b16 %v2929
      %v3007 = vunpack.c.l.b16 %v2930
      %v3008 = vunpack.c.h.b16 %v2930
      %v3009 = vunpack.c.l.b16 %v2931
      %v3010 = vunpack.c.h.b16 %v2931
      %v3011 = vunpack.c.l.b16 %v2932
      %v3012 = vunpack.c.h.b16 %v2932
      %v3013 = vunpack.c.l.b16 %v2933
      %v3014 = vunpack.c.h.b16 %v2933
      %v3015 = vunpack.c.l.b16 %v2934
      %v3016 = vunpack.c.h.b16 %v2934
      %v3017 = vunpack.c.l.b16 %v2935
      %v3018 = vunpack.c.h.b16 %v2935
      %v3019 = vunpack.c.l.b16 %v2936
      %v3020 = vunpack.c.h.b16 %v2936
      %v3021 = vunpack.c.l.b16 %v2937
      %v3022 = vunpack.c.h.b16 %v2937
      %v3023 = vunpack.c.l.b16 %v2938
      %v3024 = vunpack.c.h.b16 %v2938
      %v3025 = vunpack.c.l.b16 %v2939
      %v3026 = vunpack.c.h.b16 %v2939
      %v3027 = vunpack.c.l.b16 %v2940
      %v3028 = vunpack.c.h.b16 %v2940
      %v3029 = vunpack.c.l.b16 %v2941
      %v3030 = vunpack.c.h.b16 %v2941
      %v3031 = vunpack.c.l.b16 %v2942
      %v3032 = vunpack.c.h.b16 %v2942
      %v3033 = vunpack.c.l.b16 %v2943
      %v3034 = vunpack.c.h.b16 %v2943
      %v3035 = vunpack.c.l.b16 %v2944
      %v3036 = vunpack.c.h.b16 %v2944
      %v3037 = vunpack.c.l.b16 %v2945
      %v3038 = vunpack.c.h.b16 %v2945
      %v3039 = vunpack.c.l.b16 %v2946
      %v3040 = vunpack.c.h.b16 %v2946
      %v3041 = vunpack.c.l.b16 %v2947
      %v3042 = vunpack.c.h.b16 %v2947
      %v3043 = vunpack.c.l.b16 %v2948
      %v3044 = vunpack.c.h.b16 %v2948
      %v3045 = vpack.c.b16 %v2983, %v2981
      %v3046 = vpack.c.b16 %v2984, %v2982
      %v3047 = vpack.c.b16 %v2987, %v2985
      %v3048 = vpack.c.b16 %v2988, %v2986
      %v3049 = vpack.c.b16 %v2991, %v2989
      %v3050 = vpack.c.b16 %v2992, %v2990
      %v3051 = vpack.c.b16 %v2995, %v2993
      %v3052 = vpack.c.b16 %v2996, %v2994
      %v3053 = vpack.c.b16 %v2999, %v2997
      %v3054 = vpack.c.b16 %v3000, %v2998
      %v3055 = vpack.c.b16 %v3003, %v3001
      %v3056 = vpack.c.b16 %v3004, %v3002
      %v3057 = vpack.c.b16 %v3007, %v3005
      %v3058 = vpack.c.b16 %v3008, %v3006
      %v3059 = vpack.c.b16 %v3011, %v3009
      %v3060 = vpack.c.b16 %v3012, %v3010
      %v3061 = vpack.c.b16 %v3015, %v3013
      %v3062 = vpack.c.b16 %v3016, %v3014
      %v3063 = vpack.c.b16 %v3019, %v3017
      %v3064 = vpack.c.b16 %v3020, %v3018
      %v3065 = vpack.c.b16 %v3023, %v3021
      %v3066 = vpack.c.b16 %v3024, %v3022
      %v3067 = vpack.c.b16 %v3027, %v3025
      %v3068 = vpack.c.b16 %v3028, %v3026
      %v3069 = vpack.c.b16 %v3031, %v3029
      %v3070 = vpack.c.b16 %v3032, %v3030
      %v3071 = vpack.c.b16 %v3035, %v3033
      %v3072 = vpack.c.b16 %v3036, %v3034
      %v3073 = vpack.c.b16 %v3039, %v3037
      %v3074 = vpack.c.b16 %v3040, %v3038
      %v3075 = vpack.c.b16 %v3043, %v3041
      %v3076 = vpack.c.b16 %v3044, %v3042
      %3109 = vmatprep.subr.bf16.mxu0 0
      %3110 = vmatpush1.bf16.msra.mxu0 %v676
      %3111 = vmatprep.subr.bf16.mxu0 0
      %3112 = vmatpush1.bf16.msra.mxu0 %v677
      %3113 = vmatprep.subr.bf16.mxu0 0
      %3114 = vmatpush1.bf16.msra.mxu0 %v678
      %3115 = vmatprep.subr.bf16.mxu0 0
      %3116 = vmatpush1.bf16.msra.mxu0 %v679
      %3117 = vmatprep.subr.bf16.mxu0 0
      %3118 = vmatpush1.bf16.msra.mxu0 %v680
      %3119 = vmatprep.subr.bf16.mxu0 0
      %3120 = vmatpush1.bf16.msra.mxu0 %v681
      %3121 = vmatprep.subr.bf16.mxu0 0
      %3122 = vmatpush1.bf16.msra.mxu0 %v682
      %3123 = vmatprep.subr.bf16.mxu0 0
      %3124 = vmatpush1.bf16.msra.mxu0 %v683
      %3125 = vmatprep.subr.bf16.mxu0 0
      %3126 = vmatpush1.bf16.msra.mxu0 %v684
      %3127 = vmatprep.subr.bf16.mxu0 0
      %3128 = vmatpush1.bf16.msra.mxu0 %v685
      %3129 = vmatprep.subr.bf16.mxu0 0
      %3130 = vmatpush1.bf16.msra.mxu0 %v686
      %3131 = vmatprep.subr.bf16.mxu0 0
      %3132 = vmatpush1.bf16.msra.mxu0 %v687
      %3133 = vmatprep.subr.bf16.mxu0 0
      %3134 = vmatpush1.bf16.msra.mxu0 %v688
      %3135 = vmatprep.subr.bf16.mxu0 0
      %3136 = vmatpush1.bf16.msra.mxu0 %v689
      %3137 = vmatprep.subr.bf16.mxu0 0
      %3138 = vmatpush1.bf16.msra.mxu0 %v690
      %3139 = vmatprep.subr.bf16.mxu0 0
      %3140 = vmatpush1.bf16.msra.mxu0 %v691
      %3141 = vmatprep.mubr.bf16.mxu0 %v3046
      %3142 = vmatmul.mubr.bf16.gmra.mrb[0].mxu0 %v3045
      %v3143 = vpop.f32.mrb[0].mxu0
      %v3144 = vadd.f32 0.0, %v3143
      %v3145 = vpop.f32.mrb[0].mxu0
      %v3146 = vpop.f32.mrb[0].mxu0
      %v3147 = vadd.f32 0.0, %v3146
      %v3148 = vpop.f32.mrb[0].mxu0
      %3149 = vmatprep.mubr.bf16.mxu0 %v3048
      %3150 = vmatmul.mubr.bf16.gmra.mrb[0].mxu0 %v3047
      %v3151 = vpop.f32.mrb[0].mxu0
      %v3152 = vadd.f32 0.0, %v3151
      %v3153 = vpop.f32.mrb[0].mxu0
      %v3154 = vpop.f32.mrb[0].mxu0
      %v3155 = vadd.f32 0.0, %v3154
      %v3156 = vpop.f32.mrb[0].mxu0
      %3157 = vmatprep.mubr.bf16.mxu0 %v3050
      %3158 = vmatmul.mubr.bf16.gmra.mrb[0].mxu0 %v3049
      %v3159 = vpop.f32.mrb[0].mxu0
      %v3160 = vadd.f32 0.0, %v3159
      %v3161 = vpop.f32.mrb[0].mxu0
      %v3162 = vpop.f32.mrb[0].mxu0
      %v3163 = vadd.f32 0.0, %v3162
      %v3164 = vpop.f32.mrb[0].mxu0
      %3165 = vmatprep.mubr.bf16.mxu0 %v3052
      %3166 = vmatmul.mubr.bf16.gmra.mrb[0].mxu0 %v3051
      %v3167 = vpop.f32.mrb[0].mxu0
      %v3168 = vadd.f32 0.0, %v3167
      %v3169 = vpop.f32.mrb[0].mxu0
      %v3170 = vpop.f32.mrb[0].mxu0
      %v3171 = vadd.f32 0.0, %v3170
      %v3172 = vpop.f32.mrb[0].mxu0
      %3173 = vmatprep.mubr.bf16.mxu0 %v3054
      %3174 = vmatmul.mubr.bf16.gmra.mrb[0].mxu0 %v3053
      %v3175 = vpop.f32.mrb[0].mxu0
      %v3176 = vadd.f32 0.0, %v3175
      %v3177 = vpop.f32.mrb[0].mxu0
      %v3178 = vpop.f32.mrb[0].mxu0
      %v3179 = vadd.f32 0.0, %v3178
      %v3180 = vpop.f32.mrb[0].mxu0
      %3181 = vmatprep.mubr.bf16.mxu0 %v3056
      %3182 = vmatmul.mubr.bf16.gmra.mrb[0].mxu0 %v3055
      %v3183 = vpop.f32.mrb[0].mxu0
      %v3184 = vadd.f32 0.0, %v3183
      %v3185 = vpop.f32.mrb[0].mxu0
      %v3186 = vpop.f32.mrb[0].mxu0
      %v3187 = vadd.f32 0.0, %v3186
      %v3188 = vpop.f32.mrb[0].mxu0
      %3189 = vmatprep.mubr.bf16.mxu0 %v3058
      %3190 = vmatmul.mubr.bf16.gmra.mrb[0].mxu0 %v3057
      %v3191 = vpop.f32.mrb[0].mxu0
      %v3192 = vadd.f32 0.0, %v3191
      %v3193 = vpop.f32.mrb[0].mxu0
      %v3194 = vpop.f32.mrb[0].mxu0
      %v3195 = vadd.f32 0.0, %v3194
      %v3196 = vpop.f32.mrb[0].mxu0
      %3197 = vmatprep.mubr.bf16.mxu0 %v3060
      %3198 = vmatmul.mubr.bf16.gmra.mrb[0].mxu0 %v3059
      %v3199 = vpop.f32.mrb[0].mxu0
      %v3200 = vadd.f32 0.0, %v3199
      %v3201 = vpop.f32.mrb[0].mxu0
      %v3202 = vpop.f32.mrb[0].mxu0
      %v3203 = vadd.f32 0.0, %v3202
      %v3204 = vpop.f32.mrb[0].mxu0
      %3205 = vmatprep.mubr.bf16.mxu0 %v3062
      %3206 = vmatmul.mubr.bf16.gmra.mrb[0].mxu0 %v3061
      %v3207 = vpop.f32.mrb[0].mxu0
      %v3208 = vadd.f32 0.0, %v3207
      %v3209 = vpop.f32.mrb[0].mxu0
      %v3210 = vpop.f32.mrb[0].mxu0
      %v3211 = vadd.f32 0.0, %v3210
      %v3212 = vpop.f32.mrb[0].mxu0
      %3213 = vmatprep.mubr.bf16.mxu0 %v3064
      %3214 = vmatmul.mubr.bf16.gmra.mrb[0].mxu0 %v3063
      %v3215 = vpop.f32.mrb[0].mxu0
      %v3216 = vadd.f32 0.0, %v3215
      %v3217 = vpop.f32.mrb[0].mxu0
      %v3218 = vpop.f32.mrb[0].mxu0
      %v3219 = vadd.f32 0.0, %v3218
      %v3220 = vpop.f32.mrb[0].mxu0
      %3221 = vmatprep.mubr.bf16.mxu0 %v3066
      %3222 = vmatmul.mubr.bf16.gmra.mrb[0].mxu0 %v3065
      %v3223 = vpop.f32.mrb[0].mxu0
      %v3224 = vadd.f32 0.0, %v3223
      %v3225 = vpop.f32.mrb[0].mxu0
      %v3226 = vpop.f32.mrb[0].mxu0
      %v3227 = vadd.f32 0.0, %v3226
      %v3228 = vpop.f32.mrb[0].mxu0
      %3229 = vmatprep.mubr.bf16.mxu0 %v3068
      %3230 = vmatmul.mubr.bf16.gmra.mrb[0].mxu0 %v3067
      %v3231 = vpop.f32.mrb[0].mxu0
      %v3232 = vadd.f32 0.0, %v3231
      %v3233 = vpop.f32.mrb[0].mxu0
      %v3234 = vpop.f32.mrb[0].mxu0
      %v3235 = vadd.f32 0.0, %v3234
      %v3236 = vpop.f32.mrb[0].mxu0
      %3237 = vmatprep.mubr.bf16.mxu0 %v3070
      %3238 = vmatmul.mubr.bf16.gmra.mrb[0].mxu0 %v3069
      %v3239 = vpop.f32.mrb[0].mxu0
      %v3240 = vadd.f32 0.0, %v3239
      %v3241 = vpop.f32.mrb[0].mxu0
      %v3242 = vpop.f32.mrb[0].mxu0
      %v3243 = vadd.f32 0.0, %v3242
      %v3244 = vpop.f32.mrb[0].mxu0
      %3245 = vmatprep.mubr.bf16.mxu0 %v3072
      %3246 = vmatmul.mubr.bf16.gmra.mrb[0].mxu0 %v3071
      %v3247 = vpop.f32.mrb[0].mxu0
      %v3248 = vadd.f32 0.0, %v3247
      %v3249 = vpop.f32.mrb[0].mxu0
      %v3250 = vpop.f32.mrb[0].mxu0
      %v3251 = vadd.f32 0.0, %v3250
      %v3252 = vpop.f32.mrb[0].mxu0
      %3253 = vmatprep.mubr.bf16.mxu0 %v3074
      %3254 = vmatmul.mubr.bf16.gmra.mrb[0].mxu0 %v3073
      %v3255 = vpop.f32.mrb[0].mxu0
      %v3256 = vadd.f32 0.0, %v3255
      %v3257 = vpop.f32.mrb[0].mxu0
      %v3258 = vpop.f32.mrb[0].mxu0
      %v3259 = vadd.f32 0.0, %v3258
      %v3260 = vpop.f32.mrb[0].mxu0
      %3261 = vmatprep.mubr.bf16.mxu0 %v3076
      %3262 = vmatmul.mubr.bf16.gmra.mrb[0].mxu0 %v3075
      %v3263 = vpop.f32.mrb[0].mxu0
      %v3264 = vadd.f32 0.0, %v3263
      %v3265 = vpop.f32.mrb[0].mxu0
      %v3266 = vpop.f32.mrb[0].mxu0
      %v3267 = vadd.f32 0.0, %v3266
      %v3268 = vpop.f32.mrb[0].mxu0
      %3269 = vdwg.mxu0
      %v3270 = vpack.c.bf16 %v3147, %v3144
      %v3271 = vpack.c.bf16 %v3155, %v3152
      %v3272 = vpack.c.bf16 %v3163, %v3160
      %v3273 = vpack.c.bf16 %v3171, %v3168
      %v3274 = vpack.c.bf16 %v3179, %v3176
      %v3275 = vpack.c.bf16 %v3187, %v3184
      %v3276 = vpack.c.bf16 %v3195, %v3192
      %v3277 = vpack.c.bf16 %v3203, %v3200
      %v3278 = vpack.c.bf16 %v3211, %v3208
      %v3279 = vpack.c.bf16 %v3219, %v3216
      %v3280 = vpack.c.bf16 %v3227, %v3224
      %v3281 = vpack.c.bf16 %v3235, %v3232
      %v3282 = vpack.c.bf16 %v3243, %v3240
      %v3283 = vpack.c.bf16 %v3251, %v3248
      %v3284 = vpack.c.bf16 %v3259, %v3256
      %v3285 = vpack.c.bf16 %v3267, %v3264
      %s3286 = scalar_lea.vmem %s3, 16
      %v3287 = vld [vmem:[%s3286] sm:$0xf]
      %v3289 = vsel %vm1258, %v3270, 0
      %v3292 = vsel %vm1258, %v3271, 0
      %v3295 = vsel %vm1258, %v3272, 0
      %v3298 = vsel %vm1258, %v3273, 0
      %v3301 = vsel %vm1258, %v3274, 0
      %v3304 = vsel %vm1258, %v3275, 0
      %v3307 = vsel %vm1258, %v3276, 0
      %v3310 = vsel %vm1258, %v3277, 0
      %v3313 = vsel %vm1258, %v3278, 0
      %v3316 = vsel %vm1258, %v3279, 0
      %v3319 = vsel %vm1258, %v3280, 0
      %v3322 = vsel %vm1258, %v3281, 0
      %v3325 = vsel %vm1258, %v3282, 0
      %v3328 = vsel %vm1258, %v3283, 0
      %v3331 = vsel %vm1258, %v3284, 0
      %v3334 = vsel %vm1258, %v3285, 0
      %v3337 = vsel %vm1307, %v3287, 0
      %3339 = vmatprep.subr.bf16.mxu0 0
      %3340 = vmatpush1.bf16.msra.mxu0 %v3337
      %3341 = vmatprep.subr.bf16.mxu0 0
      %3342 = vmatpush1.bf16.msra.mxu0 0
      %3343 = vmatprep.subr.bf16.mxu0 0
      %3344 = vmatpush1.bf16.msra.mxu0 0
      %3345 = vmatprep.subr.bf16.mxu0 0
      %3346 = vmatpush1.bf16.msra.mxu0 0
      %3347 = vmatprep.subr.bf16.mxu0 0
      %3348 = vmatpush1.bf16.msra.mxu0 0
      %3349 = vmatprep.subr.bf16.mxu0 0
      %3350 = vmatpush1.bf16.msra.mxu0 0
      %3351 = vmatprep.subr.bf16.mxu0 0
      %3352 = vmatpush1.bf16.msra.mxu0 0
      %3353 = vmatprep.subr.bf16.mxu0 0
      %3354 = vmatpush1.bf16.msra.mxu0 0
      %3355 = vmatprep.subr.bf16.mxu0 0
      %3356 = vmatpush1.bf16.msra.mxu0 0
      %3357 = vmatprep.subr.bf16.mxu0 0
      %3358 = vmatpush1.bf16.msra.mxu0 0
      %3359 = vmatprep.subr.bf16.mxu0 0
      %3360 = vmatpush1.bf16.msra.mxu0 0
      %3361 = vmatprep.subr.bf16.mxu0 0
      %3362 = vmatpush1.bf16.msra.mxu0 0
      %3363 = vmatprep.subr.bf16.mxu0 0
      %3364 = vmatpush1.bf16.msra.mxu0 0
      %3365 = vmatprep.subr.bf16.mxu0 0
      %3366 = vmatpush1.bf16.msra.mxu0 0
      %3367 = vmatprep.subr.bf16.mxu0 0
      %3368 = vmatpush1.bf16.msra.mxu0 0
      %3369 = vmatprep.subr.bf16.mxu0 0
      %3370 = vmatpush1.bf16.msra.mxu0 0
      %3371 = vmatprep.mubr.bf16.mxu0 0
      %3372 = vmatmul.mubr.bf16.gmra.mrb[0].mxu0 %v3289
      %v3373 = vpop.f32.mrb[0].mxu0
      %v3374 = vadd.f32 0.0, %v3373
      %v3375 = vpop.f32.mrb[0].mxu0
      %v3376 = vpop.f32.mrb[0].mxu0
      %v3377 = vadd.f32 0.0, %v3376
      %v3378 = vpop.f32.mrb[0].mxu0
      %3379 = vmatprep.mubr.bf16.mxu0 0
      %3380 = vmatmul.mubr.bf16.gmra.mrb[0].mxu0 %v3292
      %v3381 = vpop.f32.mrb[0].mxu0
      %v3382 = vadd.f32 0.0, %v3381
      %v3383 = vpop.f32.mrb[0].mxu0
      %v3384 = vpop.f32.mrb[0].mxu0
      %v3385 = vadd.f32 0.0, %v3384
      %v3386 = vpop.f32.mrb[0].mxu0
      %3387 = vmatprep.mubr.bf16.mxu0 0
      %3388 = vmatmul.mubr.bf16.gmra.mrb[0].mxu0 %v3295
      %v3389 = vpop.f32.mrb[0].mxu0
      %v3390 = vadd.f32 0.0, %v3389
      %v3391 = vpop.f32.mrb[0].mxu0
      %v3392 = vpop.f32.mrb[0].mxu0
      %v3393 = vadd.f32 0.0, %v3392
      %v3394 = vpop.f32.mrb[0].mxu0
      %3395 = vmatprep.mubr.bf16.mxu0 0
      %3396 = vmatmul.mubr.bf16.gmra.mrb[0].mxu0 %v3298
      %v3397 = vpop.f32.mrb[0].mxu0
      %v3398 = vadd.f32 0.0, %v3397
      %v3399 = vpop.f32.mrb[0].mxu0
      %v3400 = vpop.f32.mrb[0].mxu0
      %v3401 = vadd.f32 0.0, %v3400
      %v3402 = vpop.f32.mrb[0].mxu0
      %3403 = vmatprep.mubr.bf16.mxu0 0
      %3404 = vmatmul.mubr.bf16.gmra.mrb[0].mxu0 %v3301
      %v3405 = vpop.f32.mrb[0].mxu0
      %v3406 = vadd.f32 0.0, %v3405
      %v3407 = vpop.f32.mrb[0].mxu0
      %v3408 = vpop.f32.mrb[0].mxu0
      %v3409 = vadd.f32 0.0, %v3408
      %v3410 = vpop.f32.mrb[0].mxu0
      %3411 = vmatprep.mubr.bf16.mxu0 0
      %3412 = vmatmul.mubr.bf16.gmra.mrb[0].mxu0 %v3304
      %v3413 = vpop.f32.mrb[0].mxu0
      %v3414 = vadd.f32 0.0, %v3413
      %v3415 = vpop.f32.mrb[0].mxu0
      %v3416 = vpop.f32.mrb[0].mxu0
      %v3417 = vadd.f32 0.0, %v3416
      %v3418 = vpop.f32.mrb[0].mxu0
      %3419 = vmatprep.mubr.bf16.mxu0 0
      %3420 = vmatmul.mubr.bf16.gmra.mrb[0].mxu0 %v3307
      %v3421 = vpop.f32.mrb[0].mxu0
      %v3422 = vadd.f32 0.0, %v3421
      %v3423 = vpop.f32.mrb[0].mxu0
      %v3424 = vpop.f32.mrb[0].mxu0
      %v3425 = vadd.f32 0.0, %v3424
      %v3426 = vpop.f32.mrb[0].mxu0
      %3427 = vmatprep.mubr.bf16.mxu0 0
      %3428 = vmatmul.mubr.bf16.gmra.mrb[0].mxu0 %v3310
      %v3429 = vpop.f32.mrb[0].mxu0
      %v3430 = vadd.f32 0.0, %v3429
      %v3431 = vpop.f32.mrb[0].mxu0
      %v3432 = vpop.f32.mrb[0].mxu0
      %v3433 = vadd.f32 0.0, %v3432
      %v3434 = vpop.f32.mrb[0].mxu0
      %3435 = vmatprep.mubr.bf16.mxu0 0
      %3436 = vmatmul.mubr.bf16.gmra.mrb[0].mxu0 %v3313
      %v3437 = vpop.f32.mrb[0].mxu0
      %v3438 = vadd.f32 0.0, %v3437
      %v3439 = vpop.f32.mrb[0].mxu0
      %v3440 = vpop.f32.mrb[0].mxu0
      %v3441 = vadd.f32 0.0, %v3440
      %v3442 = vpop.f32.mrb[0].mxu0
      %3443 = vmatprep.mubr.bf16.mxu0 0
      %3444 = vmatmul.mubr.bf16.gmra.mrb[0].mxu0 %v3316
      %v3445 = vpop.f32.mrb[0].mxu0
      %v3446 = vadd.f32 0.0, %v3445
      %v3447 = vpop.f32.mrb[0].mxu0
      %v3448 = vpop.f32.mrb[0].mxu0
      %v3449 = vadd.f32 0.0, %v3448
      %v3450 = vpop.f32.mrb[0].mxu0
      %3451 = vmatprep.mubr.bf16.mxu0 0
      %3452 = vmatmul.mubr.bf16.gmra.mrb[0].mxu0 %v3319
      %v3453 = vpop.f32.mrb[0].mxu0
      %v3454 = vadd.f32 0.0, %v3453
      %v3455 = vpop.f32.mrb[0].mxu0
      %v3456 = vpop.f32.mrb[0].mxu0
      %v3457 = vadd.f32 0.0, %v3456
      %v3458 = vpop.f32.mrb[0].mxu0
      %3459 = vmatprep.mubr.bf16.mxu0 0
      %3460 = vmatmul.mubr.bf16.gmra.mrb[0].mxu0 %v3322
      %v3461 = vpop.f32.mrb[0].mxu0
      %v3462 = vadd.f32 0.0, %v3461
      %v3463 = vpop.f32.mrb[0].mxu0
      %v3464 = vpop.f32.mrb[0].mxu0
      %v3465 = vadd.f32 0.0, %v3464
      %v3466 = vpop.f32.mrb[0].mxu0
      %3467 = vmatprep.mubr.bf16.mxu0 0
      %3468 = vmatmul.mubr.bf16.gmra.mrb[0].mxu0 %v3325
      %v3469 = vpop.f32.mrb[0].mxu0
      %v3470 = vadd.f32 0.0, %v3469
      %v3471 = vpop.f32.mrb[0].mxu0
      %v3472 = vpop.f32.mrb[0].mxu0
      %v3473 = vadd.f32 0.0, %v3472
      %v3474 = vpop.f32.mrb[0].mxu0
      %3475 = vmatprep.mubr.bf16.mxu0 0
      %3476 = vmatmul.mubr.bf16.gmra.mrb[0].mxu0 %v3328
      %v3477 = vpop.f32.mrb[0].mxu0
      %v3478 = vadd.f32 0.0, %v3477
      %v3479 = vpop.f32.mrb[0].mxu0
      %v3480 = vpop.f32.mrb[0].mxu0
      %v3481 = vadd.f32 0.0, %v3480
      %v3482 = vpop.f32.mrb[0].mxu0
      %3483 = vmatprep.mubr.bf16.mxu0 0
      %3484 = vmatmul.mubr.bf16.gmra.mrb[0].mxu0 %v3331
      %v3485 = vpop.f32.mrb[0].mxu0
      %v3486 = vadd.f32 0.0, %v3485
      %v3487 = vpop.f32.mrb[0].mxu0
      %v3488 = vpop.f32.mrb[0].mxu0
      %v3489 = vadd.f32 0.0, %v3488
      %v3490 = vpop.f32.mrb[0].mxu0
      %3491 = vmatprep.mubr.bf16.mxu0 0
      %3492 = vmatmul.mubr.bf16.gmra.mrb[0].mxu0 %v3334
      %v3493 = vpop.f32.mrb[0].mxu0
      %v3494 = vadd.f32 0.0, %v3493
      %v3495 = vpop.f32.mrb[0].mxu0
      %v3496 = vpop.f32.mrb[0].mxu0
      %v3497 = vadd.f32 0.0, %v3496
      %v3498 = vpop.f32.mrb[0].mxu0
      %3499 = vdwg.mxu0
      %v3500 = vadd.f32 %v2884, %v3374
      %v3501 = vadd.f32 %v2885, %v3377
      %v3502 = vadd.f32 %v2886, %v3382
      %v3503 = vadd.f32 %v2887, %v3385
      %v3504 = vadd.f32 %v2888, %v3390
      %v3505 = vadd.f32 %v2889, %v3393
      %v3506 = vadd.f32 %v2890, %v3398
      %v3507 = vadd.f32 %v2891, %v3401
      %v3508 = vadd.f32 %v2892, %v3406
      %v3509 = vadd.f32 %v2893, %v3409
      %v3510 = vadd.f32 %v2894, %v3414
      %v3511 = vadd.f32 %v2895, %v3417
      %v3512 = vadd.f32 %v2896, %v3422
      %v3513 = vadd.f32 %v2897, %v3425
      %v3514 = vadd.f32 %v2898, %v3430
      %v3515 = vadd.f32 %v2899, %v3433
      %v3516 = vadd.f32 %v2900, %v3438
      %v3517 = vadd.f32 %v2901, %v3441
      %v3518 = vadd.f32 %v2902, %v3446
      %v3519 = vadd.f32 %v2903, %v3449
      %v3520 = vadd.f32 %v2904, %v3454
      %v3521 = vadd.f32 %v2905, %v3457
      %v3522 = vadd.f32 %v2906, %v3462
      %v3523 = vadd.f32 %v2907, %v3465
      %v3524 = vadd.f32 %v2908, %v3470
      %v3525 = vadd.f32 %v2909, %v3473
      %v3526 = vadd.f32 %v2910, %v3478
      %v3527 = vadd.f32 %v2911, %v3481
      %v3528 = vadd.f32 %v2912, %v3486
      %v3529 = vadd.f32 %v2913, %v3489
      %v3530 = vadd.f32 %v2914, %v3494
      %v3531 = vadd.f32 %v2915, %v3497
      %s3532 = scalar_lea.vmem %s1, 1280
      %v3533 = vld [vmem:[%s3532] sm:$0xff]
      %v3534 = vld [vmem:[%s3532 + $0x8] sm:$0xff]
      %v3535 = vld [vmem:[%s3532 + $0x10] sm:$0xff]
      %v3536 = vld [vmem:[%s3532 + $0x18] sm:$0xff]
      %v3537 = vld [vmem:[%s3532 + $0x20] sm:$0xff]
      %v3538 = vld [vmem:[%s3532 + $0x28] sm:$0xff]
      %v3539 = vld [vmem:[%s3532 + $0x30] sm:$0xff]
      %v3540 = vld [vmem:[%s3532 + $0x38] sm:$0xff]
      %v3541 = vld [vmem:[%s3532 + $0x40] sm:$0xff]
      %v3542 = vld [vmem:[%s3532 + $0x48] sm:$0xff]
      %v3543 = vld [vmem:[%s3532 + $0x50] sm:$0xff]
      %v3544 = vld [vmem:[%s3532 + $0x58] sm:$0xff]
      %v3545 = vld [vmem:[%s3532 + $0x60] sm:$0xff]
      %v3546 = vld [vmem:[%s3532 + $0x68] sm:$0xff]
      %v3547 = vld [vmem:[%s3532 + $0x70] sm:$0xff]
      %v3548 = vld [vmem:[%s3532 + $0x78] sm:$0xff]
      %v3549 = vld [vmem:[%s3532 + $0x80] sm:$0xff]
      %v3550 = vld [vmem:[%s3532 + $0x88] sm:$0xff]
      %v3551 = vld [vmem:[%s3532 + $0x90] sm:$0xff]
      %v3552 = vld [vmem:[%s3532 + $0x98] sm:$0xff]
      %v3553 = vld [vmem:[%s3532 + $0xa0] sm:$0xff]
      %v3554 = vld [vmem:[%s3532 + $0xa8] sm:$0xff]
      %v3555 = vld [vmem:[%s3532 + $0xb0] sm:$0xff]
      %v3556 = vld [vmem:[%s3532 + $0xb8] sm:$0xff]
      %v3557 = vld [vmem:[%s3532 + $0xc0] sm:$0xff]
      %v3558 = vld [vmem:[%s3532 + $0xc8] sm:$0xff]
      %v3559 = vld [vmem:[%s3532 + $0xd0] sm:$0xff]
      %v3560 = vld [vmem:[%s3532 + $0xd8] sm:$0xff]
      %v3561 = vld [vmem:[%s3532 + $0xe0] sm:$0xff]
      %v3562 = vld [vmem:[%s3532 + $0xe8] sm:$0xff]
      %v3563 = vld [vmem:[%s3532 + $0xf0] sm:$0xff]
      %v3564 = vld [vmem:[%s3532 + $0xf8] sm:$0xff]
      %v3597 = vunpack.c.l.b16 %v3533
      %v3598 = vunpack.c.h.b16 %v3533
      %v3599 = vunpack.c.l.b16 %v3534
      %v3600 = vunpack.c.h.b16 %v3534
      %v3601 = vunpack.c.l.b16 %v3535
      %v3602 = vunpack.c.h.b16 %v3535
      %v3603 = vunpack.c.l.b16 %v3536
      %v3604 = vunpack.c.h.b16 %v3536
      %v3605 = vunpack.c.l.b16 %v3537
      %v3606 = vunpack.c.h.b16 %v3537
      %v3607 = vunpack.c.l.b16 %v3538
      %v3608 = vunpack.c.h.b16 %v3538
      %v3609 = vunpack.c.l.b16 %v3539
      %v3610 = vunpack.c.h.b16 %v3539
      %v3611 = vunpack.c.l.b16 %v3540
      %v3612 = vunpack.c.h.b16 %v3540
      %v3613 = vunpack.c.l.b16 %v3541
      %v3614 = vunpack.c.h.b16 %v3541
      %v3615 = vunpack.c.l.b16 %v3542
      %v3616 = vunpack.c.h.b16 %v3542
      %v3617 = vunpack.c.l.b16 %v3543
      %v3618 = vunpack.c.h.b16 %v3543
      %v3619 = vunpack.c.l.b16 %v3544
      %v3620 = vunpack.c.h.b16 %v3544
      %v3621 = vunpack.c.l.b16 %v3545
      %v3622 = vunpack.c.h.b16 %v3545
      %v3623 = vunpack.c.l.b16 %v3546
      %v3624 = vunpack.c.h.b16 %v3546
      %v3625 = vunpack.c.l.b16 %v3547
      %v3626 = vunpack.c.h.b16 %v3547
      %v3627 = vunpack.c.l.b16 %v3548
      %v3628 = vunpack.c.h.b16 %v3548
      %v3629 = vunpack.c.l.b16 %v3549
      %v3630 = vunpack.c.h.b16 %v3549
      %v3631 = vunpack.c.l.b16 %v3550
      %v3632 = vunpack.c.h.b16 %v3550
      %v3633 = vunpack.c.l.b16 %v3551
      %v3634 = vunpack.c.h.b16 %v3551
      %v3635 = vunpack.c.l.b16 %v3552
      %v3636 = vunpack.c.h.b16 %v3552
      %v3637 = vunpack.c.l.b16 %v3553
      %v3638 = vunpack.c.h.b16 %v3553
      %v3639 = vunpack.c.l.b16 %v3554
      %v3640 = vunpack.c.h.b16 %v3554
      %v3641 = vunpack.c.l.b16 %v3555
      %v3642 = vunpack.c.h.b16 %v3555
      %v3643 = vunpack.c.l.b16 %v3556
      %v3644 = vunpack.c.h.b16 %v3556
      %v3645 = vunpack.c.l.b16 %v3557
      %v3646 = vunpack.c.h.b16 %v3557
      %v3647 = vunpack.c.l.b16 %v3558
      %v3648 = vunpack.c.h.b16 %v3558
      %v3649 = vunpack.c.l.b16 %v3559
      %v3650 = vunpack.c.h.b16 %v3559
      %v3651 = vunpack.c.l.b16 %v3560
      %v3652 = vunpack.c.h.b16 %v3560
      %v3653 = vunpack.c.l.b16 %v3561
      %v3654 = vunpack.c.h.b16 %v3561
      %v3655 = vunpack.c.l.b16 %v3562
      %v3656 = vunpack.c.h.b16 %v3562
      %v3657 = vunpack.c.l.b16 %v3563
      %v3658 = vunpack.c.h.b16 %v3563
      %v3659 = vunpack.c.l.b16 %v3564
      %v3660 = vunpack.c.h.b16 %v3564
      %v3661 = vpack.c.b16 %v3599, %v3597
      %v3662 = vpack.c.b16 %v3600, %v3598
      %v3663 = vpack.c.b16 %v3603, %v3601
      %v3664 = vpack.c.b16 %v3604, %v3602
      %v3665 = vpack.c.b16 %v3607, %v3605
      %v3666 = vpack.c.b16 %v3608, %v3606
      %v3667 = vpack.c.b16 %v3611, %v3609
      %v3668 = vpack.c.b16 %v3612, %v3610
      %v3669 = vpack.c.b16 %v3615, %v3613
      %v3670 = vpack.c.b16 %v3616, %v3614
      %v3671 = vpack.c.b16 %v3619, %v3617
      %v3672 = vpack.c.b16 %v3620, %v3618
      %v3673 = vpack.c.b16 %v3623, %v3621
      %v3674 = vpack.c.b16 %v3624, %v3622
      %v3675 = vpack.c.b16 %v3627, %v3625
      %v3676 = vpack.c.b16 %v3628, %v3626
      %v3677 = vpack.c.b16 %v3631, %v3629
      %v3678 = vpack.c.b16 %v3632, %v3630
      %v3679 = vpack.c.b16 %v3635, %v3633
      %v3680 = vpack.c.b16 %v3636, %v3634
      %v3681 = vpack.c.b16 %v3639, %v3637
      %v3682 = vpack.c.b16 %v3640, %v3638
      %v3683 = vpack.c.b16 %v3643, %v3641
      %v3684 = vpack.c.b16 %v3644, %v3642
      %v3685 = vpack.c.b16 %v3647, %v3645
      %v3686 = vpack.c.b16 %v3648, %v3646
      %v3687 = vpack.c.b16 %v3651, %v3649
      %v3688 = vpack.c.b16 %v3652, %v3650
      %v3689 = vpack.c.b16 %v3655, %v3653
      %v3690 = vpack.c.b16 %v3656, %v3654
      %v3691 = vpack.c.b16 %v3659, %v3657
      %v3692 = vpack.c.b16 %v3660, %v3658
      %3725 = vmatprep.subr.bf16.mxu0 0
      %3726 = vmatpush1.bf16.msra.mxu0 %v676
      %3727 = vmatprep.subr.bf16.mxu0 0
      %3728 = vmatpush1.bf16.msra.mxu0 %v677
      %3729 = vmatprep.subr.bf16.mxu0 0
      %3730 = vmatpush1.bf16.msra.mxu0 %v678
      %3731 = vmatprep.subr.bf16.mxu0 0
      %3732 = vmatpush1.bf16.msra.mxu0 %v679
      %3733 = vmatprep.subr.bf16.mxu0 0
      %3734 = vmatpush1.bf16.msra.mxu0 %v680
      %3735 = vmatprep.subr.bf16.mxu0 0
      %3736 = vmatpush1.bf16.msra.mxu0 %v681
      %3737 = vmatprep.subr.bf16.mxu0 0
      %3738 = vmatpush1.bf16.msra.mxu0 %v682
      %3739 = vmatprep.subr.bf16.mxu0 0
      %3740 = vmatpush1.bf16.msra.mxu0 %v683
      %3741 = vmatprep.subr.bf16.mxu0 0
      %3742 = vmatpush1.bf16.msra.mxu0 %v684
      %3743 = vmatprep.subr.bf16.mxu0 0
      %3744 = vmatpush1.bf16.msra.mxu0 %v685
      %3745 = vmatprep.subr.bf16.mxu0 0
      %3746 = vmatpush1.bf16.msra.mxu0 %v686
      %3747 = vmatprep.subr.bf16.mxu0 0
      %3748 = vmatpush1.bf16.msra.mxu0 %v687
      %3749 = vmatprep.subr.bf16.mxu0 0
      %3750 = vmatpush1.bf16.msra.mxu0 %v688
      %3751 = vmatprep.subr.bf16.mxu0 0
      %3752 = vmatpush1.bf16.msra.mxu0 %v689
      %3753 = vmatprep.subr.bf16.mxu0 0
      %3754 = vmatpush1.bf16.msra.mxu0 %v690
      %3755 = vmatprep.subr.bf16.mxu0 0
      %3756 = vmatpush1.bf16.msra.mxu0 %v691
      %3757 = vmatprep.mubr.bf16.mxu0 %v3662
      %3758 = vmatmul.mubr.bf16.gmra.mrb[0].mxu0 %v3661
      %v3759 = vpop.f32.mrb[0].mxu0
      %v3760 = vadd.f32 0.0, %v3759
      %v3761 = vpop.f32.mrb[0].mxu0
      %v3762 = vpop.f32.mrb[0].mxu0
      %v3763 = vadd.f32 0.0, %v3762
      %v3764 = vpop.f32.mrb[0].mxu0
      %3765 = vmatprep.mubr.bf16.mxu0 %v3664
      %3766 = vmatmul.mubr.bf16.gmra.mrb[0].mxu0 %v3663
      %v3767 = vpop.f32.mrb[0].mxu0
      %v3768 = vadd.f32 0.0, %v3767
      %v3769 = vpop.f32.mrb[0].mxu0
      %v3770 = vpop.f32.mrb[0].mxu0
      %v3771 = vadd.f32 0.0, %v3770
      %v3772 = vpop.f32.mrb[0].mxu0
      %3773 = vmatprep.mubr.bf16.mxu0 %v3666
      %3774 = vmatmul.mubr.bf16.gmra.mrb[0].mxu0 %v3665
      %v3775 = vpop.f32.mrb[0].mxu0
      %v3776 = vadd.f32 0.0, %v3775
      %v3777 = vpop.f32.mrb[0].mxu0
      %v3778 = vpop.f32.mrb[0].mxu0
      %v3779 = vadd.f32 0.0, %v3778
      %v3780 = vpop.f32.mrb[0].mxu0
      %3781 = vmatprep.mubr.bf16.mxu0 %v3668
      %3782 = vmatmul.mubr.bf16.gmra.mrb[0].mxu0 %v3667
      %v3783 = vpop.f32.mrb[0].mxu0
      %v3784 = vadd.f32 0.0, %v3783
      %v3785 = vpop.f32.mrb[0].mxu0
      %v3786 = vpop.f32.mrb[0].mxu0
      %v3787 = vadd.f32 0.0, %v3786
      %v3788 = vpop.f32.mrb[0].mxu0
      %3789 = vmatprep.mubr.bf16.mxu0 %v3670
      %3790 = vmatmul.mubr.bf16.gmra.mrb[0].mxu0 %v3669
      %v3791 = vpop.f32.mrb[0].mxu0
      %v3792 = vadd.f32 0.0, %v3791
      %v3793 = vpop.f32.mrb[0].mxu0
      %v3794 = vpop.f32.mrb[0].mxu0
      %v3795 = vadd.f32 0.0, %v3794
      %v3796 = vpop.f32.mrb[0].mxu0
      %3797 = vmatprep.mubr.bf16.mxu0 %v3672
      %3798 = vmatmul.mubr.bf16.gmra.mrb[0].mxu0 %v3671
      %v3799 = vpop.f32.mrb[0].mxu0
      %v3800 = vadd.f32 0.0, %v3799
      %v3801 = vpop.f32.mrb[0].mxu0
      %v3802 = vpop.f32.mrb[0].mxu0
      %v3803 = vadd.f32 0.0, %v3802
      %v3804 = vpop.f32.mrb[0].mxu0
      %3805 = vmatprep.mubr.bf16.mxu0 %v3674
      %3806 = vmatmul.mubr.bf16.gmra.mrb[0].mxu0 %v3673
      %v3807 = vpop.f32.mrb[0].mxu0
      %v3808 = vadd.f32 0.0, %v3807
      %v3809 = vpop.f32.mrb[0].mxu0
      %v3810 = vpop.f32.mrb[0].mxu0
      %v3811 = vadd.f32 0.0, %v3810
      %v3812 = vpop.f32.mrb[0].mxu0
      %3813 = vmatprep.mubr.bf16.mxu0 %v3676
      %3814 = vmatmul.mubr.bf16.gmra.mrb[0].mxu0 %v3675
      %v3815 = vpop.f32.mrb[0].mxu0
      %v3816 = vadd.f32 0.0, %v3815
      %v3817 = vpop.f32.mrb[0].mxu0
      %v3818 = vpop.f32.mrb[0].mxu0
      %v3819 = vadd.f32 0.0, %v3818
      %v3820 = vpop.f32.mrb[0].mxu0
      %3821 = vmatprep.mubr.bf16.mxu0 %v3678
      %3822 = vmatmul.mubr.bf16.gmra.mrb[0].mxu0 %v3677
      %v3823 = vpop.f32.mrb[0].mxu0
      %v3824 = vadd.f32 0.0, %v3823
      %v3825 = vpop.f32.mrb[0].mxu0
      %v3826 = vpop.f32.mrb[0].mxu0
      %v3827 = vadd.f32 0.0, %v3826
      %v3828 = vpop.f32.mrb[0].mxu0
      %3829 = vmatprep.mubr.bf16.mxu0 %v3680
      %3830 = vmatmul.mubr.bf16.gmra.mrb[0].mxu0 %v3679
      %v3831 = vpop.f32.mrb[0].mxu0
      %v3832 = vadd.f32 0.0, %v3831
      %v3833 = vpop.f32.mrb[0].mxu0
      %v3834 = vpop.f32.mrb[0].mxu0
      %v3835 = vadd.f32 0.0, %v3834
      %v3836 = vpop.f32.mrb[0].mxu0
      %3837 = vmatprep.mubr.bf16.mxu0 %v3682
      %3838 = vmatmul.mubr.bf16.gmra.mrb[0].mxu0 %v3681
      %v3839 = vpop.f32.mrb[0].mxu0
      %v3840 = vadd.f32 0.0, %v3839
      %v3841 = vpop.f32.mrb[0].mxu0
      %v3842 = vpop.f32.mrb[0].mxu0
      %v3843 = vadd.f32 0.0, %v3842
      %v3844 = vpop.f32.mrb[0].mxu0
      %3845 = vmatprep.mubr.bf16.mxu0 %v3684
      %3846 = vmatmul.mubr.bf16.gmra.mrb[0].mxu0 %v3683
      %v3847 = vpop.f32.mrb[0].mxu0
      %v3848 = vadd.f32 0.0, %v3847
      %v3849 = vpop.f32.mrb[0].mxu0
      %v3850 = vpop.f32.mrb[0].mxu0
      %v3851 = vadd.f32 0.0, %v3850
      %v3852 = vpop.f32.mrb[0].mxu0
      %3853 = vmatprep.mubr.bf16.mxu0 %v3686
      %3854 = vmatmul.mubr.bf16.gmra.mrb[0].mxu0 %v3685
      %v3855 = vpop.f32.mrb[0].mxu0
      %v3856 = vadd.f32 0.0, %v3855
      %v3857 = vpop.f32.mrb[0].mxu0
      %v3858 = vpop.f32.mrb[0].mxu0
      %v3859 = vadd.f32 0.0, %v3858
      %v3860 = vpop.f32.mrb[0].mxu0
      %3861 = vmatprep.mubr.bf16.mxu0 %v3688
      %3862 = vmatmul.mubr.bf16.gmra.mrb[0].mxu0 %v3687
      %v3863 = vpop.f32.mrb[0].mxu0
      %v3864 = vadd.f32 0.0, %v3863
      %v3865 = vpop.f32.mrb[0].mxu0
      %v3866 = vpop.f32.mrb[0].mxu0
      %v3867 = vadd.f32 0.0, %v3866
      %v3868 = vpop.f32.mrb[0].mxu0
      %3869 = vmatprep.mubr.bf16.mxu0 %v3690
      %3870 = vmatmul.mubr.bf16.gmra.mrb[0].mxu0 %v3689
      %v3871 = vpop.f32.mrb[0].mxu0
      %v3872 = vadd.f32 0.0, %v3871
      %v3873 = vpop.f32.mrb[0].mxu0
      %v3874 = vpop.f32.mrb[0].mxu0
      %v3875 = vadd.f32 0.0, %v3874
      %v3876 = vpop.f32.mrb[0].mxu0
      %3877 = vmatprep.mubr.bf16.mxu0 %v3692
      %3878 = vmatmul.mubr.bf16.gmra.mrb[0].mxu0 %v3691
      %v3879 = vpop.f32.mrb[0].mxu0
      %v3880 = vadd.f32 0.0, %v3879
      %v3881 = vpop.f32.mrb[0].mxu0
      %v3882 = vpop.f32.mrb[0].mxu0
      %v3883 = vadd.f32 0.0, %v3882
      %v3884 = vpop.f32.mrb[0].mxu0
      %3885 = vdwg.mxu0
      %v3886 = vpack.c.bf16 %v3763, %v3760
      %v3887 = vpack.c.bf16 %v3771, %v3768
      %v3888 = vpack.c.bf16 %v3779, %v3776
      %v3889 = vpack.c.bf16 %v3787, %v3784
      %v3890 = vpack.c.bf16 %v3795, %v3792
      %v3891 = vpack.c.bf16 %v3803, %v3800
      %v3892 = vpack.c.bf16 %v3811, %v3808
      %v3893 = vpack.c.bf16 %v3819, %v3816
      %v3894 = vpack.c.bf16 %v3827, %v3824
      %v3895 = vpack.c.bf16 %v3835, %v3832
      %v3896 = vpack.c.bf16 %v3843, %v3840
      %v3897 = vpack.c.bf16 %v3851, %v3848
      %v3898 = vpack.c.bf16 %v3859, %v3856
      %v3899 = vpack.c.bf16 %v3867, %v3864
      %v3900 = vpack.c.bf16 %v3875, %v3872
      %v3901 = vpack.c.bf16 %v3883, %v3880
      %s3902 = scalar_lea.vmem %s3, 20
      %v3903 = vld [vmem:[%s3902] sm:$0xf]
      %v3905 = vsel %vm1258, %v3886, 0
      %v3908 = vsel %vm1258, %v3887, 0
      %v3911 = vsel %vm1258, %v3888, 0
      %v3914 = vsel %vm1258, %v3889, 0
      %v3917 = vsel %vm1258, %v3890, 0
      %v3920 = vsel %vm1258, %v3891, 0
      %v3923 = vsel %vm1258, %v3892, 0
      %v3926 = vsel %vm1258, %v3893, 0
      %v3929 = vsel %vm1258, %v3894, 0
      %v3932 = vsel %vm1258, %v3895, 0
      %v3935 = vsel %vm1258, %v3896, 0
      %v3938 = vsel %vm1258, %v3897, 0
      %v3941 = vsel %vm1258, %v3898, 0
      %v3944 = vsel %vm1258, %v3899, 0
      %v3947 = vsel %vm1258, %v3900, 0
      %v3950 = vsel %vm1258, %v3901, 0
      %v3953 = vsel %vm1307, %v3903, 0
      %3955 = vmatprep.subr.bf16.mxu0 0
      %3956 = vmatpush1.bf16.msra.mxu0 %v3953
      %3957 = vmatprep.subr.bf16.mxu0 0
      %3958 = vmatpush1.bf16.msra.mxu0 0
      %3959 = vmatprep.subr.bf16.mxu0 0
      %3960 = vmatpush1.bf16.msra.mxu0 0
      %3961 = vmatprep.subr.bf16.mxu0 0
      %3962 = vmatpush1.bf16.msra.mxu0 0
      %3963 = vmatprep.subr.bf16.mxu0 0
      %3964 = vmatpush1.bf16.msra.mxu0 0
      %3965 = vmatprep.subr.bf16.mxu0 0
      %3966 = vmatpush1.bf16.msra.mxu0 0
      %3967 = vmatprep.subr.bf16.mxu0 0
      %3968 = vmatpush1.bf16.msra.mxu0 0
      %3969 = vmatprep.subr.bf16.mxu0 0
      %3970 = vmatpush1.bf16.msra.mxu0 0
      %3971 = vmatprep.subr.bf16.mxu0 0
      %3972 = vmatpush1.bf16.msra.mxu0 0
      %3973 = vmatprep.subr.bf16.mxu0 0
      %3974 = vmatpush1.bf16.msra.mxu0 0
      %3975 = vmatprep.subr.bf16.mxu0 0
      %3976 = vmatpush1.bf16.msra.mxu0 0
      %3977 = vmatprep.subr.bf16.mxu0 0
      %3978 = vmatpush1.bf16.msra.mxu0 0
      %3979 = vmatprep.subr.bf16.mxu0 0
      %3980 = vmatpush1.bf16.msra.mxu0 0
      %3981 = vmatprep.subr.bf16.mxu0 0
      %3982 = vmatpush1.bf16.msra.mxu0 0
      %3983 = vmatprep.subr.bf16.mxu0 0
      %3984 = vmatpush1.bf16.msra.mxu0 0
      %3985 = vmatprep.subr.bf16.mxu0 0
      %3986 = vmatpush1.bf16.msra.mxu0 0
      %3987 = vmatprep.mubr.bf16.mxu0 0
      %3988 = vmatmul.mubr.bf16.gmra.mrb[0].mxu0 %v3905
      %v3989 = vpop.f32.mrb[0].mxu0
      %v3990 = vadd.f32 0.0, %v3989
      %v3991 = vpop.f32.mrb[0].mxu0
      %v3992 = vpop.f32.mrb[0].mxu0
      %v3993 = vadd.f32 0.0, %v3992
      %v3994 = vpop.f32.mrb[0].mxu0
      %3995 = vmatprep.mubr.bf16.mxu0 0
      %3996 = vmatmul.mubr.bf16.gmra.mrb[0].mxu0 %v3908
      %v3997 = vpop.f32.mrb[0].mxu0
      %v3998 = vadd.f32 0.0, %v3997
      %v3999 = vpop.f32.mrb[0].mxu0
      %v4000 = vpop.f32.mrb[0].mxu0
      %v4001 = vadd.f32 0.0, %v4000
      %v4002 = vpop.f32.mrb[0].mxu0
      %4003 = vmatprep.mubr.bf16.mxu0 0
      %4004 = vmatmul.mubr.bf16.gmra.mrb[0].mxu0 %v3911
      %v4005 = vpop.f32.mrb[0].mxu0
      %v4006 = vadd.f32 0.0, %v4005
      %v4007 = vpop.f32.mrb[0].mxu0
      %v4008 = vpop.f32.mrb[0].mxu0
      %v4009 = vadd.f32 0.0, %v4008
      %v4010 = vpop.f32.mrb[0].mxu0
      %4011 = vmatprep.mubr.bf16.mxu0 0
      %4012 = vmatmul.mubr.bf16.gmra.mrb[0].mxu0 %v3914
      %v4013 = vpop.f32.mrb[0].mxu0
      %v4014 = vadd.f32 0.0, %v4013
      %v4015 = vpop.f32.mrb[0].mxu0
      %v4016 = vpop.f32.mrb[0].mxu0
      %v4017 = vadd.f32 0.0, %v4016
      %v4018 = vpop.f32.mrb[0].mxu0
      %4019 = vmatprep.mubr.bf16.mxu0 0
      %4020 = vmatmul.mubr.bf16.gmra.mrb[0].mxu0 %v3917
      %v4021 = vpop.f32.mrb[0].mxu0
      %v4022 = vadd.f32 0.0, %v4021
      %v4023 = vpop.f32.mrb[0].mxu0
      %v4024 = vpop.f32.mrb[0].mxu0
      %v4025 = vadd.f32 0.0, %v4024
      %v4026 = vpop.f32.mrb[0].mxu0
      %4027 = vmatprep.mubr.bf16.mxu0 0
      %4028 = vmatmul.mubr.bf16.gmra.mrb[0].mxu0 %v3920
      %v4029 = vpop.f32.mrb[0].mxu0
      %v4030 = vadd.f32 0.0, %v4029
      %v4031 = vpop.f32.mrb[0].mxu0
      %v4032 = vpop.f32.mrb[0].mxu0
      %v4033 = vadd.f32 0.0, %v4032
      %v4034 = vpop.f32.mrb[0].mxu0
      %4035 = vmatprep.mubr.bf16.mxu0 0
      %4036 = vmatmul.mubr.bf16.gmra.mrb[0].mxu0 %v3923
      %v4037 = vpop.f32.mrb[0].mxu0
      %v4038 = vadd.f32 0.0, %v4037
      %v4039 = vpop.f32.mrb[0].mxu0
      %v4040 = vpop.f32.mrb[0].mxu0
      %v4041 = vadd.f32 0.0, %v4040
      %v4042 = vpop.f32.mrb[0].mxu0
      %4043 = vmatprep.mubr.bf16.mxu0 0
      %4044 = vmatmul.mubr.bf16.gmra.mrb[0].mxu0 %v3926
      %v4045 = vpop.f32.mrb[0].mxu0
      %v4046 = vadd.f32 0.0, %v4045
      %v4047 = vpop.f32.mrb[0].mxu0
      %v4048 = vpop.f32.mrb[0].mxu0
      %v4049 = vadd.f32 0.0, %v4048
      %v4050 = vpop.f32.mrb[0].mxu0
      %4051 = vmatprep.mubr.bf16.mxu0 0
      %4052 = vmatmul.mubr.bf16.gmra.mrb[0].mxu0 %v3929
      %v4053 = vpop.f32.mrb[0].mxu0
      %v4054 = vadd.f32 0.0, %v4053
      %v4055 = vpop.f32.mrb[0].mxu0
      %v4056 = vpop.f32.mrb[0].mxu0
      %v4057 = vadd.f32 0.0, %v4056
      %v4058 = vpop.f32.mrb[0].mxu0
      %4059 = vmatprep.mubr.bf16.mxu0 0
      %4060 = vmatmul.mubr.bf16.gmra.mrb[0].mxu0 %v3932
      %v4061 = vpop.f32.mrb[0].mxu0
      %v4062 = vadd.f32 0.0, %v4061
      %v4063 = vpop.f32.mrb[0].mxu0
      %v4064 = vpop.f32.mrb[0].mxu0
      %v4065 = vadd.f32 0.0, %v4064
      %v4066 = vpop.f32.mrb[0].mxu0
      %4067 = vmatprep.mubr.bf16.mxu0 0
      %4068 = vmatmul.mubr.bf16.gmra.mrb[0].mxu0 %v3935
      %v4069 = vpop.f32.mrb[0].mxu0
      %v4070 = vadd.f32 0.0, %v4069
      %v4071 = vpop.f32.mrb[0].mxu0
      %v4072 = vpop.f32.mrb[0].mxu0
      %v4073 = vadd.f32 0.0, %v4072
      %v4074 = vpop.f32.mrb[0].mxu0
      %4075 = vmatprep.mubr.bf16.mxu0 0
      %4076 = vmatmul.mubr.bf16.gmra.mrb[0].mxu0 %v3938
      %v4077 = vpop.f32.mrb[0].mxu0
      %v4078 = vadd.f32 0.0, %v4077
      %v4079 = vpop.f32.mrb[0].mxu0
      %v4080 = vpop.f32.mrb[0].mxu0
      %v4081 = vadd.f32 0.0, %v4080
      %v4082 = vpop.f32.mrb[0].mxu0
      %4083 = vmatprep.mubr.bf16.mxu0 0
      %4084 = vmatmul.mubr.bf16.gmra.mrb[0].mxu0 %v3941
      %v4085 = vpop.f32.mrb[0].mxu0
      %v4086 = vadd.f32 0.0, %v4085
      %v4087 = vpop.f32.mrb[0].mxu0
      %v4088 = vpop.f32.mrb[0].mxu0
      %v4089 = vadd.f32 0.0, %v4088
      %v4090 = vpop.f32.mrb[0].mxu0
      %4091 = vmatprep.mubr.bf16.mxu0 0
      %4092 = vmatmul.mubr.bf16.gmra.mrb[0].mxu0 %v3944
      %v4093 = vpop.f32.mrb[0].mxu0
      %v4094 = vadd.f32 0.0, %v4093
      %v4095 = vpop.f32.mrb[0].mxu0
      %v4096 = vpop.f32.mrb[0].mxu0
      %v4097 = vadd.f32 0.0, %v4096
      %v4098 = vpop.f32.mrb[0].mxu0
      %4099 = vmatprep.mubr.bf16.mxu0 0
      %4100 = vmatmul.mubr.bf16.gmra.mrb[0].mxu0 %v3947
      %v4101 = vpop.f32.mrb[0].mxu0
      %v4102 = vadd.f32 0.0, %v4101
      %v4103 = vpop.f32.mrb[0].mxu0
      %v4104 = vpop.f32.mrb[0].mxu0
      %v4105 = vadd.f32 0.0, %v4104
      %v4106 = vpop.f32.mrb[0].mxu0
      %4107 = vmatprep.mubr.bf16.mxu0 0
      %4108 = vmatmul.mubr.bf16.gmra.mrb[0].mxu0 %v3950
      %v4109 = vpop.f32.mrb[0].mxu0
      %v4110 = vadd.f32 0.0, %v4109
      %v4111 = vpop.f32.mrb[0].mxu0
      %v4112 = vpop.f32.mrb[0].mxu0
      %v4113 = vadd.f32 0.0, %v4112
      %v4114 = vpop.f32.mrb[0].mxu0
      %4115 = vdwg.mxu0
      %v4116 = vadd.f32 %v3500, %v3990
      %v4117 = vadd.f32 %v3501, %v3993
      %v4118 = vadd.f32 %v3502, %v3998
      %v4119 = vadd.f32 %v3503, %v4001
      %v4120 = vadd.f32 %v3504, %v4006
      %v4121 = vadd.f32 %v3505, %v4009
      %v4122 = vadd.f32 %v3506, %v4014
      %v4123 = vadd.f32 %v3507, %v4017
      %v4124 = vadd.f32 %v3508, %v4022
      %v4125 = vadd.f32 %v3509, %v4025
      %v4126 = vadd.f32 %v3510, %v4030
      %v4127 = vadd.f32 %v3511, %v4033
      %v4128 = vadd.f32 %v3512, %v4038
      %v4129 = vadd.f32 %v3513, %v4041
      %v4130 = vadd.f32 %v3514, %v4046
      %v4131 = vadd.f32 %v3515, %v4049
      %v4132 = vadd.f32 %v3516, %v4054
      %v4133 = vadd.f32 %v3517, %v4057
      %v4134 = vadd.f32 %v3518, %v4062
      %v4135 = vadd.f32 %v3519, %v4065
      %v4136 = vadd.f32 %v3520, %v4070
      %v4137 = vadd.f32 %v3521, %v4073
      %v4138 = vadd.f32 %v3522, %v4078
      %v4139 = vadd.f32 %v3523, %v4081
      %v4140 = vadd.f32 %v3524, %v4086
      %v4141 = vadd.f32 %v3525, %v4089
      %v4142 = vadd.f32 %v3526, %v4094
      %v4143 = vadd.f32 %v3527, %v4097
      %v4144 = vadd.f32 %v3528, %v4102
      %v4145 = vadd.f32 %v3529, %v4105
      %v4146 = vadd.f32 %v3530, %v4110
      %v4147 = vadd.f32 %v3531, %v4113
      %s4148 = scalar_lea.vmem %s1, 1536
      %v4149 = vld [vmem:[%s4148] sm:$0xff]
      %v4150 = vld [vmem:[%s4148 + $0x8] sm:$0xff]
      %v4151 = vld [vmem:[%s4148 + $0x10] sm:$0xff]
      %v4152 = vld [vmem:[%s4148 + $0x18] sm:$0xff]
      %v4153 = vld [vmem:[%s4148 + $0x20] sm:$0xff]
      %v4154 = vld [vmem:[%s4148 + $0x28] sm:$0xff]
      %v4155 = vld [vmem:[%s4148 + $0x30] sm:$0xff]
      %v4156 = vld [vmem:[%s4148 + $0x38] sm:$0xff]
      %v4157 = vld [vmem:[%s4148 + $0x40] sm:$0xff]
      %v4158 = vld [vmem:[%s4148 + $0x48] sm:$0xff]
      %v4159 = vld [vmem:[%s4148 + $0x50] sm:$0xff]
      %v4160 = vld [vmem:[%s4148 + $0x58] sm:$0xff]
      %v4161 = vld [vmem:[%s4148 + $0x60] sm:$0xff]
      %v4162 = vld [vmem:[%s4148 + $0x68] sm:$0xff]
      %v4163 = vld [vmem:[%s4148 + $0x70] sm:$0xff]
      %v4164 = vld [vmem:[%s4148 + $0x78] sm:$0xff]
      %v4165 = vld [vmem:[%s4148 + $0x80] sm:$0xff]
      %v4166 = vld [vmem:[%s4148 + $0x88] sm:$0xff]
      %v4167 = vld [vmem:[%s4148 + $0x90] sm:$0xff]
      %v4168 = vld [vmem:[%s4148 + $0x98] sm:$0xff]
      %v4169 = vld [vmem:[%s4148 + $0xa0] sm:$0xff]
      %v4170 = vld [vmem:[%s4148 + $0xa8] sm:$0xff]
      %v4171 = vld [vmem:[%s4148 + $0xb0] sm:$0xff]
      %v4172 = vld [vmem:[%s4148 + $0xb8] sm:$0xff]
      %v4173 = vld [vmem:[%s4148 + $0xc0] sm:$0xff]
      %v4174 = vld [vmem:[%s4148 + $0xc8] sm:$0xff]
      %v4175 = vld [vmem:[%s4148 + $0xd0] sm:$0xff]
      %v4176 = vld [vmem:[%s4148 + $0xd8] sm:$0xff]
      %v4177 = vld [vmem:[%s4148 + $0xe0] sm:$0xff]
      %v4178 = vld [vmem:[%s4148 + $0xe8] sm:$0xff]
      %v4179 = vld [vmem:[%s4148 + $0xf0] sm:$0xff]
      %v4180 = vld [vmem:[%s4148 + $0xf8] sm:$0xff]
      %v4213 = vunpack.c.l.b16 %v4149
      %v4214 = vunpack.c.h.b16 %v4149
      %v4215 = vunpack.c.l.b16 %v4150
      %v4216 = vunpack.c.h.b16 %v4150
      %v4217 = vunpack.c.l.b16 %v4151
      %v4218 = vunpack.c.h.b16 %v4151
      %v4219 = vunpack.c.l.b16 %v4152
      %v4220 = vunpack.c.h.b16 %v4152
      %v4221 = vunpack.c.l.b16 %v4153
      %v4222 = vunpack.c.h.b16 %v4153
      %v4223 = vunpack.c.l.b16 %v4154
      %v4224 = vunpack.c.h.b16 %v4154
      %v4225 = vunpack.c.l.b16 %v4155
      %v4226 = vunpack.c.h.b16 %v4155
      %v4227 = vunpack.c.l.b16 %v4156
      %v4228 = vunpack.c.h.b16 %v4156
      %v4229 = vunpack.c.l.b16 %v4157
      %v4230 = vunpack.c.h.b16 %v4157
      %v4231 = vunpack.c.l.b16 %v4158
      %v4232 = vunpack.c.h.b16 %v4158
      %v4233 = vunpack.c.l.b16 %v4159
      %v4234 = vunpack.c.h.b16 %v4159
      %v4235 = vunpack.c.l.b16 %v4160
      %v4236 = vunpack.c.h.b16 %v4160
      %v4237 = vunpack.c.l.b16 %v4161
      %v4238 = vunpack.c.h.b16 %v4161
      %v4239 = vunpack.c.l.b16 %v4162
      %v4240 = vunpack.c.h.b16 %v4162
      %v4241 = vunpack.c.l.b16 %v4163
      %v4242 = vunpack.c.h.b16 %v4163
      %v4243 = vunpack.c.l.b16 %v4164
      %v4244 = vunpack.c.h.b16 %v4164
      %v4245 = vunpack.c.l.b16 %v4165
      %v4246 = vunpack.c.h.b16 %v4165
      %v4247 = vunpack.c.l.b16 %v4166
      %v4248 = vunpack.c.h.b16 %v4166
      %v4249 = vunpack.c.l.b16 %v4167
      %v4250 = vunpack.c.h.b16 %v4167
      %v4251 = vunpack.c.l.b16 %v4168
      %v4252 = vunpack.c.h.b16 %v4168
      %v4253 = vunpack.c.l.b16 %v4169
      %v4254 = vunpack.c.h.b16 %v4169
      %v4255 = vunpack.c.l.b16 %v4170
      %v4256 = vunpack.c.h.b16 %v4170
      %v4257 = vunpack.c.l.b16 %v4171
      %v4258 = vunpack.c.h.b16 %v4171
      %v4259 = vunpack.c.l.b16 %v4172
      %v4260 = vunpack.c.h.b16 %v4172
      %v4261 = vunpack.c.l.b16 %v4173
      %v4262 = vunpack.c.h.b16 %v4173
      %v4263 = vunpack.c.l.b16 %v4174
      %v4264 = vunpack.c.h.b16 %v4174
      %v4265 = vunpack.c.l.b16 %v4175
      %v4266 = vunpack.c.h.b16 %v4175
      %v4267 = vunpack.c.l.b16 %v4176
      %v4268 = vunpack.c.h.b16 %v4176
      %v4269 = vunpack.c.l.b16 %v4177
      %v4270 = vunpack.c.h.b16 %v4177
      %v4271 = vunpack.c.l.b16 %v4178
      %v4272 = vunpack.c.h.b16 %v4178
      %v4273 = vunpack.c.l.b16 %v4179
      %v4274 = vunpack.c.h.b16 %v4179
      %v4275 = vunpack.c.l.b16 %v4180
      %v4276 = vunpack.c.h.b16 %v4180
      %v4277 = vpack.c.b16 %v4215, %v4213
      %v4278 = vpack.c.b16 %v4216, %v4214
      %v4279 = vpack.c.b16 %v4219, %v4217
      %v4280 = vpack.c.b16 %v4220, %v4218
      %v4281 = vpack.c.b16 %v4223, %v4221
      %v4282 = vpack.c.b16 %v4224, %v4222
      %v4283 = vpack.c.b16 %v4227, %v4225
      %v4284 = vpack.c.b16 %v4228, %v4226
      %v4285 = vpack.c.b16 %v4231, %v4229
      %v4286 = vpack.c.b16 %v4232, %v4230
      %v4287 = vpack.c.b16 %v4235, %v4233
      %v4288 = vpack.c.b16 %v4236, %v4234
      %v4289 = vpack.c.b16 %v4239, %v4237
      %v4290 = vpack.c.b16 %v4240, %v4238
      %v4291 = vpack.c.b16 %v4243, %v4241
      %v4292 = vpack.c.b16 %v4244, %v4242
      %v4293 = vpack.c.b16 %v4247, %v4245
      %v4294 = vpack.c.b16 %v4248, %v4246
      %v4295 = vpack.c.b16 %v4251, %v4249
      %v4296 = vpack.c.b16 %v4252, %v4250
      %v4297 = vpack.c.b16 %v4255, %v4253
      %v4298 = vpack.c.b16 %v4256, %v4254
      %v4299 = vpack.c.b16 %v4259, %v4257
      %v4300 = vpack.c.b16 %v4260, %v4258
      %v4301 = vpack.c.b16 %v4263, %v4261
      %v4302 = vpack.c.b16 %v4264, %v4262
      %v4303 = vpack.c.b16 %v4267, %v4265
      %v4304 = vpack.c.b16 %v4268, %v4266
      %v4305 = vpack.c.b16 %v4271, %v4269
      %v4306 = vpack.c.b16 %v4272, %v4270
      %v4307 = vpack.c.b16 %v4275, %v4273
      %v4308 = vpack.c.b16 %v4276, %v4274
      %4341 = vmatprep.subr.bf16.mxu0 0
      %4342 = vmatpush1.bf16.msra.mxu0 %v676
      %4343 = vmatprep.subr.bf16.mxu0 0
      %4344 = vmatpush1.bf16.msra.mxu0 %v677
      %4345 = vmatprep.subr.bf16.mxu0 0
      %4346 = vmatpush1.bf16.msra.mxu0 %v678
      %4347 = vmatprep.subr.bf16.mxu0 0
      %4348 = vmatpush1.bf16.msra.mxu0 %v679
      %4349 = vmatprep.subr.bf16.mxu0 0
      %4350 = vmatpush1.bf16.msra.mxu0 %v680
      %4351 = vmatprep.subr.bf16.mxu0 0
      %4352 = vmatpush1.bf16.msra.mxu0 %v681
      %4353 = vmatprep.subr.bf16.mxu0 0
      %4354 = vmatpush1.bf16.msra.mxu0 %v682
      %4355 = vmatprep.subr.bf16.mxu0 0
      %4356 = vmatpush1.bf16.msra.mxu0 %v683
      %4357 = vmatprep.subr.bf16.mxu0 0
      %4358 = vmatpush1.bf16.msra.mxu0 %v684
      %4359 = vmatprep.subr.bf16.mxu0 0
      %4360 = vmatpush1.bf16.msra.mxu0 %v685
      %4361 = vmatprep.subr.bf16.mxu0 0
      %4362 = vmatpush1.bf16.msra.mxu0 %v686
      %4363 = vmatprep.subr.bf16.mxu0 0
      %4364 = vmatpush1.bf16.msra.mxu0 %v687
      %4365 = vmatprep.subr.bf16.mxu0 0
      %4366 = vmatpush1.bf16.msra.mxu0 %v688
      %4367 = vmatprep.subr.bf16.mxu0 0
      %4368 = vmatpush1.bf16.msra.mxu0 %v689
      %4369 = vmatprep.subr.bf16.mxu0 0
      %4370 = vmatpush1.bf16.msra.mxu0 %v690
      %4371 = vmatprep.subr.bf16.mxu0 0
      %4372 = vmatpush1.bf16.msra.mxu0 %v691
      %4373 = vmatprep.mubr.bf16.mxu0 %v4278
      %4374 = vmatmul.mubr.bf16.gmra.mrb[0].mxu0 %v4277
      %v4375 = vpop.f32.mrb[0].mxu0
      %v4376 = vadd.f32 0.0, %v4375
      %v4377 = vpop.f32.mrb[0].mxu0
      %v4378 = vpop.f32.mrb[0].mxu0
      %v4379 = vadd.f32 0.0, %v4378
      %v4380 = vpop.f32.mrb[0].mxu0
      %4381 = vmatprep.mubr.bf16.mxu0 %v4280
      %4382 = vmatmul.mubr.bf16.gmra.mrb[0].mxu0 %v4279
      %v4383 = vpop.f32.mrb[0].mxu0
      %v4384 = vadd.f32 0.0, %v4383
      %v4385 = vpop.f32.mrb[0].mxu0
      %v4386 = vpop.f32.mrb[0].mxu0
      %v4387 = vadd.f32 0.0, %v4386
      %v4388 = vpop.f32.mrb[0].mxu0
      %4389 = vmatprep.mubr.bf16.mxu0 %v4282
      %4390 = vmatmul.mubr.bf16.gmra.mrb[0].mxu0 %v4281
      %v4391 = vpop.f32.mrb[0].mxu0
      %v4392 = vadd.f32 0.0, %v4391
      %v4393 = vpop.f32.mrb[0].mxu0
      %v4394 = vpop.f32.mrb[0].mxu0
      %v4395 = vadd.f32 0.0, %v4394
      %v4396 = vpop.f32.mrb[0].mxu0
      %4397 = vmatprep.mubr.bf16.mxu0 %v4284
      %4398 = vmatmul.mubr.bf16.gmra.mrb[0].mxu0 %v4283
      %v4399 = vpop.f32.mrb[0].mxu0
      %v4400 = vadd.f32 0.0, %v4399
      %v4401 = vpop.f32.mrb[0].mxu0
      %v4402 = vpop.f32.mrb[0].mxu0
      %v4403 = vadd.f32 0.0, %v4402
      %v4404 = vpop.f32.mrb[0].mxu0
      %4405 = vmatprep.mubr.bf16.mxu0 %v4286
      %4406 = vmatmul.mubr.bf16.gmra.mrb[0].mxu0 %v4285
      %v4407 = vpop.f32.mrb[0].mxu0
      %v4408 = vadd.f32 0.0, %v4407
      %v4409 = vpop.f32.mrb[0].mxu0
      %v4410 = vpop.f32.mrb[0].mxu0
      %v4411 = vadd.f32 0.0, %v4410
      %v4412 = vpop.f32.mrb[0].mxu0
      %4413 = vmatprep.mubr.bf16.mxu0 %v4288
      %4414 = vmatmul.mubr.bf16.gmra.mrb[0].mxu0 %v4287
      %v4415 = vpop.f32.mrb[0].mxu0
      %v4416 = vadd.f32 0.0, %v4415
      %v4417 = vpop.f32.mrb[0].mxu0
      %v4418 = vpop.f32.mrb[0].mxu0
      %v4419 = vadd.f32 0.0, %v4418
      %v4420 = vpop.f32.mrb[0].mxu0
      %4421 = vmatprep.mubr.bf16.mxu0 %v4290
      %4422 = vmatmul.mubr.bf16.gmra.mrb[0].mxu0 %v4289
      %v4423 = vpop.f32.mrb[0].mxu0
      %v4424 = vadd.f32 0.0, %v4423
      %v4425 = vpop.f32.mrb[0].mxu0
      %v4426 = vpop.f32.mrb[0].mxu0
      %v4427 = vadd.f32 0.0, %v4426
      %v4428 = vpop.f32.mrb[0].mxu0
      %4429 = vmatprep.mubr.bf16.mxu0 %v4292
      %4430 = vmatmul.mubr.bf16.gmra.mrb[0].mxu0 %v4291
      %v4431 = vpop.f32.mrb[0].mxu0
      %v4432 = vadd.f32 0.0, %v4431
      %v4433 = vpop.f32.mrb[0].mxu0
      %v4434 = vpop.f32.mrb[0].mxu0
      %v4435 = vadd.f32 0.0, %v4434
      %v4436 = vpop.f32.mrb[0].mxu0
      %4437 = vmatprep.mubr.bf16.mxu0 %v4294
      %4438 = vmatmul.mubr.bf16.gmra.mrb[0].mxu0 %v4293
      %v4439 = vpop.f32.mrb[0].mxu0
      %v4440 = vadd.f32 0.0, %v4439
      %v4441 = vpop.f32.mrb[0].mxu0
      %v4442 = vpop.f32.mrb[0].mxu0
      %v4443 = vadd.f32 0.0, %v4442
      %v4444 = vpop.f32.mrb[0].mxu0
      %4445 = vmatprep.mubr.bf16.mxu0 %v4296
      %4446 = vmatmul.mubr.bf16.gmra.mrb[0].mxu0 %v4295
      %v4447 = vpop.f32.mrb[0].mxu0
      %v4448 = vadd.f32 0.0, %v4447
      %v4449 = vpop.f32.mrb[0].mxu0
      %v4450 = vpop.f32.mrb[0].mxu0
      %v4451 = vadd.f32 0.0, %v4450
      %v4452 = vpop.f32.mrb[0].mxu0
      %4453 = vmatprep.mubr.bf16.mxu0 %v4298
      %4454 = vmatmul.mubr.bf16.gmra.mrb[0].mxu0 %v4297
      %v4455 = vpop.f32.mrb[0].mxu0
      %v4456 = vadd.f32 0.0, %v4455
      %v4457 = vpop.f32.mrb[0].mxu0
      %v4458 = vpop.f32.mrb[0].mxu0
      %v4459 = vadd.f32 0.0, %v4458
      %v4460 = vpop.f32.mrb[0].mxu0
      %4461 = vmatprep.mubr.bf16.mxu0 %v4300
      %4462 = vmatmul.mubr.bf16.gmra.mrb[0].mxu0 %v4299
      %v4463 = vpop.f32.mrb[0].mxu0
      %v4464 = vadd.f32 0.0, %v4463
      %v4465 = vpop.f32.mrb[0].mxu0
      %v4466 = vpop.f32.mrb[0].mxu0
      %v4467 = vadd.f32 0.0, %v4466
      %v4468 = vpop.f32.mrb[0].mxu0
      %4469 = vmatprep.mubr.bf16.mxu0 %v4302
      %4470 = vmatmul.mubr.bf16.gmra.mrb[0].mxu0 %v4301
      %v4471 = vpop.f32.mrb[0].mxu0
      %v4472 = vadd.f32 0.0, %v4471
      %v4473 = vpop.f32.mrb[0].mxu0
      %v4474 = vpop.f32.mrb[0].mxu0
      %v4475 = vadd.f32 0.0, %v4474
      %v4476 = vpop.f32.mrb[0].mxu0
      %4477 = vmatprep.mubr.bf16.mxu0 %v4304
      %4478 = vmatmul.mubr.bf16.gmra.mrb[0].mxu0 %v4303
      %v4479 = vpop.f32.mrb[0].mxu0
      %v4480 = vadd.f32 0.0, %v4479
      %v4481 = vpop.f32.mrb[0].mxu0
      %v4482 = vpop.f32.mrb[0].mxu0
      %v4483 = vadd.f32 0.0, %v4482
      %v4484 = vpop.f32.mrb[0].mxu0
      %4485 = vmatprep.mubr.bf16.mxu0 %v4306
      %4486 = vmatmul.mubr.bf16.gmra.mrb[0].mxu0 %v4305
      %v4487 = vpop.f32.mrb[0].mxu0
      %v4488 = vadd.f32 0.0, %v4487
      %v4489 = vpop.f32.mrb[0].mxu0
      %v4490 = vpop.f32.mrb[0].mxu0
      %v4491 = vadd.f32 0.0, %v4490
      %v4492 = vpop.f32.mrb[0].mxu0
      %4493 = vmatprep.mubr.bf16.mxu0 %v4308
      %4494 = vmatmul.mubr.bf16.gmra.mrb[0].mxu0 %v4307
      %v4495 = vpop.f32.mrb[0].mxu0
      %v4496 = vadd.f32 0.0, %v4495
      %v4497 = vpop.f32.mrb[0].mxu0
      %v4498 = vpop.f32.mrb[0].mxu0
      %v4499 = vadd.f32 0.0, %v4498
      %v4500 = vpop.f32.mrb[0].mxu0
      %4501 = vdwg.mxu0
      %v4502 = vpack.c.bf16 %v4379, %v4376
      %v4503 = vpack.c.bf16 %v4387, %v4384
      %v4504 = vpack.c.bf16 %v4395, %v4392
      %v4505 = vpack.c.bf16 %v4403, %v4400
      %v4506 = vpack.c.bf16 %v4411, %v4408
      %v4507 = vpack.c.bf16 %v4419, %v4416
      %v4508 = vpack.c.bf16 %v4427, %v4424
      %v4509 = vpack.c.bf16 %v4435, %v4432
      %v4510 = vpack.c.bf16 %v4443, %v4440
      %v4511 = vpack.c.bf16 %v4451, %v4448
      %v4512 = vpack.c.bf16 %v4459, %v4456
      %v4513 = vpack.c.bf16 %v4467, %v4464
      %v4514 = vpack.c.bf16 %v4475, %v4472
      %v4515 = vpack.c.bf16 %v4483, %v4480
      %v4516 = vpack.c.bf16 %v4491, %v4488
      %v4517 = vpack.c.bf16 %v4499, %v4496
      %s4518 = scalar_lea.vmem %s3, 24
      %v4519 = vld [vmem:[%s4518] sm:$0xf]
      %v4521 = vsel %vm1258, %v4502, 0
      %v4524 = vsel %vm1258, %v4503, 0
      %v4527 = vsel %vm1258, %v4504, 0
      %v4530 = vsel %vm1258, %v4505, 0
      %v4533 = vsel %vm1258, %v4506, 0
      %v4536 = vsel %vm1258, %v4507, 0
      %v4539 = vsel %vm1258, %v4508, 0
      %v4542 = vsel %vm1258, %v4509, 0
      %v4545 = vsel %vm1258, %v4510, 0
      %v4548 = vsel %vm1258, %v4511, 0
      %v4551 = vsel %vm1258, %v4512, 0
      %v4554 = vsel %vm1258, %v4513, 0
      %v4557 = vsel %vm1258, %v4514, 0
      %v4560 = vsel %vm1258, %v4515, 0
      %v4563 = vsel %vm1258, %v4516, 0
      %v4566 = vsel %vm1258, %v4517, 0
      %v4569 = vsel %vm1307, %v4519, 0
      %4571 = vmatprep.subr.bf16.mxu0 0
      %4572 = vmatpush1.bf16.msra.mxu0 %v4569
      %4573 = vmatprep.subr.bf16.mxu0 0
      %4574 = vmatpush1.bf16.msra.mxu0 0
      %4575 = vmatprep.subr.bf16.mxu0 0
      %4576 = vmatpush1.bf16.msra.mxu0 0
      %4577 = vmatprep.subr.bf16.mxu0 0
      %4578 = vmatpush1.bf16.msra.mxu0 0
      %4579 = vmatprep.subr.bf16.mxu0 0
      %4580 = vmatpush1.bf16.msra.mxu0 0
      %4581 = vmatprep.subr.bf16.mxu0 0
      %4582 = vmatpush1.bf16.msra.mxu0 0
      %4583 = vmatprep.subr.bf16.mxu0 0
      %4584 = vmatpush1.bf16.msra.mxu0 0
      %4585 = vmatprep.subr.bf16.mxu0 0
      %4586 = vmatpush1.bf16.msra.mxu0 0
      %4587 = vmatprep.subr.bf16.mxu0 0
      %4588 = vmatpush1.bf16.msra.mxu0 0
      %4589 = vmatprep.subr.bf16.mxu0 0
      %4590 = vmatpush1.bf16.msra.mxu0 0
      %4591 = vmatprep.subr.bf16.mxu0 0
      %4592 = vmatpush1.bf16.msra.mxu0 0
      %4593 = vmatprep.subr.bf16.mxu0 0
      %4594 = vmatpush1.bf16.msra.mxu0 0
      %4595 = vmatprep.subr.bf16.mxu0 0
      %4596 = vmatpush1.bf16.msra.mxu0 0
      %4597 = vmatprep.subr.bf16.mxu0 0
      %4598 = vmatpush1.bf16.msra.mxu0 0
      %4599 = vmatprep.subr.bf16.mxu0 0
      %4600 = vmatpush1.bf16.msra.mxu0 0
      %4601 = vmatprep.subr.bf16.mxu0 0
      %4602 = vmatpush1.bf16.msra.mxu0 0
      %4603 = vmatprep.mubr.bf16.mxu0 0
      %4604 = vmatmul.mubr.bf16.gmra.mrb[0].mxu0 %v4521
      %v4605 = vpop.f32.mrb[0].mxu0
      %v4606 = vadd.f32 0.0, %v4605
      %v4607 = vpop.f32.mrb[0].mxu0
      %v4608 = vpop.f32.mrb[0].mxu0
      %v4609 = vadd.f32 0.0, %v4608
      %v4610 = vpop.f32.mrb[0].mxu0
      %4611 = vmatprep.mubr.bf16.mxu0 0
      %4612 = vmatmul.mubr.bf16.gmra.mrb[0].mxu0 %v4524
      %v4613 = vpop.f32.mrb[0].mxu0
      %v4614 = vadd.f32 0.0, %v4613
      %v4615 = vpop.f32.mrb[0].mxu0
      %v4616 = vpop.f32.mrb[0].mxu0
      %v4617 = vadd.f32 0.0, %v4616
      %v4618 = vpop.f32.mrb[0].mxu0
      %4619 = vmatprep.mubr.bf16.mxu0 0
      %4620 = vmatmul.mubr.bf16.gmra.mrb[0].mxu0 %v4527
      %v4621 = vpop.f32.mrb[0].mxu0
      %v4622 = vadd.f32 0.0, %v4621
      %v4623 = vpop.f32.mrb[0].mxu0
      %v4624 = vpop.f32.mrb[0].mxu0
      %v4625 = vadd.f32 0.0, %v4624
      %v4626 = vpop.f32.mrb[0].mxu0
      %4627 = vmatprep.mubr.bf16.mxu0 0
      %4628 = vmatmul.mubr.bf16.gmra.mrb[0].mxu0 %v4530
      %v4629 = vpop.f32.mrb[0].mxu0
      %v4630 = vadd.f32 0.0, %v4629
      %v4631 = vpop.f32.mrb[0].mxu0
      %v4632 = vpop.f32.mrb[0].mxu0
      %v4633 = vadd.f32 0.0, %v4632
      %v4634 = vpop.f32.mrb[0].mxu0
      %4635 = vmatprep.mubr.bf16.mxu0 0
      %4636 = vmatmul.mubr.bf16.gmra.mrb[0].mxu0 %v4533
      %v4637 = vpop.f32.mrb[0].mxu0
      %v4638 = vadd.f32 0.0, %v4637
      %v4639 = vpop.f32.mrb[0].mxu0
      %v4640 = vpop.f32.mrb[0].mxu0
      %v4641 = vadd.f32 0.0, %v4640
      %v4642 = vpop.f32.mrb[0].mxu0
      %4643 = vmatprep.mubr.bf16.mxu0 0
      %4644 = vmatmul.mubr.bf16.gmra.mrb[0].mxu0 %v4536
      %v4645 = vpop.f32.mrb[0].mxu0
      %v4646 = vadd.f32 0.0, %v4645
      %v4647 = vpop.f32.mrb[0].mxu0
      %v4648 = vpop.f32.mrb[0].mxu0
      %v4649 = vadd.f32 0.0, %v4648
      %v4650 = vpop.f32.mrb[0].mxu0
      %4651 = vmatprep.mubr.bf16.mxu0 0
      %4652 = vmatmul.mubr.bf16.gmra.mrb[0].mxu0 %v4539
      %v4653 = vpop.f32.mrb[0].mxu0
      %v4654 = vadd.f32 0.0, %v4653
      %v4655 = vpop.f32.mrb[0].mxu0
      %v4656 = vpop.f32.mrb[0].mxu0
      %v4657 = vadd.f32 0.0, %v4656
      %v4658 = vpop.f32.mrb[0].mxu0
      %4659 = vmatprep.mubr.bf16.mxu0 0
      %4660 = vmatmul.mubr.bf16.gmra.mrb[0].mxu0 %v4542
      %v4661 = vpop.f32.mrb[0].mxu0
      %v4662 = vadd.f32 0.0, %v4661
      %v4663 = vpop.f32.mrb[0].mxu0
      %v4664 = vpop.f32.mrb[0].mxu0
      %v4665 = vadd.f32 0.0, %v4664
      %v4666 = vpop.f32.mrb[0].mxu0
      %4667 = vmatprep.mubr.bf16.mxu0 0
      %4668 = vmatmul.mubr.bf16.gmra.mrb[0].mxu0 %v4545
      %v4669 = vpop.f32.mrb[0].mxu0
      %v4670 = vadd.f32 0.0, %v4669
      %v4671 = vpop.f32.mrb[0].mxu0
      %v4672 = vpop.f32.mrb[0].mxu0
      %v4673 = vadd.f32 0.0, %v4672
      %v4674 = vpop.f32.mrb[0].mxu0
      %4675 = vmatprep.mubr.bf16.mxu0 0
      %4676 = vmatmul.mubr.bf16.gmra.mrb[0].mxu0 %v4548
      %v4677 = vpop.f32.mrb[0].mxu0
      %v4678 = vadd.f32 0.0, %v4677
      %v4679 = vpop.f32.mrb[0].mxu0
      %v4680 = vpop.f32.mrb[0].mxu0
      %v4681 = vadd.f32 0.0, %v4680
      %v4682 = vpop.f32.mrb[0].mxu0
      %4683 = vmatprep.mubr.bf16.mxu0 0
      %4684 = vmatmul.mubr.bf16.gmra.mrb[0].mxu0 %v4551
      %v4685 = vpop.f32.mrb[0].mxu0
      %v4686 = vadd.f32 0.0, %v4685
      %v4687 = vpop.f32.mrb[0].mxu0
      %v4688 = vpop.f32.mrb[0].mxu0
      %v4689 = vadd.f32 0.0, %v4688
      %v4690 = vpop.f32.mrb[0].mxu0
      %4691 = vmatprep.mubr.bf16.mxu0 0
      %4692 = vmatmul.mubr.bf16.gmra.mrb[0].mxu0 %v4554
      %v4693 = vpop.f32.mrb[0].mxu0
      %v4694 = vadd.f32 0.0, %v4693
      %v4695 = vpop.f32.mrb[0].mxu0
      %v4696 = vpop.f32.mrb[0].mxu0
      %v4697 = vadd.f32 0.0, %v4696
      %v4698 = vpop.f32.mrb[0].mxu0
      %4699 = vmatprep.mubr.bf16.mxu0 0
      %4700 = vmatmul.mubr.bf16.gmra.mrb[0].mxu0 %v4557
      %v4701 = vpop.f32.mrb[0].mxu0
      %v4702 = vadd.f32 0.0, %v4701
      %v4703 = vpop.f32.mrb[0].mxu0
      %v4704 = vpop.f32.mrb[0].mxu0
      %v4705 = vadd.f32 0.0, %v4704
      %v4706 = vpop.f32.mrb[0].mxu0
      %4707 = vmatprep.mubr.bf16.mxu0 0
      %4708 = vmatmul.mubr.bf16.gmra.mrb[0].mxu0 %v4560
      %v4709 = vpop.f32.mrb[0].mxu0
      %v4710 = vadd.f32 0.0, %v4709
      %v4711 = vpop.f32.mrb[0].mxu0
      %v4712 = vpop.f32.mrb[0].mxu0
      %v4713 = vadd.f32 0.0, %v4712
      %v4714 = vpop.f32.mrb[0].mxu0
      %4715 = vmatprep.mubr.bf16.mxu0 0
      %4716 = vmatmul.mubr.bf16.gmra.mrb[0].mxu0 %v4563
      %v4717 = vpop.f32.mrb[0].mxu0
      %v4718 = vadd.f32 0.0, %v4717
      %v4719 = vpop.f32.mrb[0].mxu0
      %v4720 = vpop.f32.mrb[0].mxu0
      %v4721 = vadd.f32 0.0, %v4720
      %v4722 = vpop.f32.mrb[0].mxu0
      %4723 = vmatprep.mubr.bf16.mxu0 0
      %4724 = vmatmul.mubr.bf16.gmra.mrb[0].mxu0 %v4566
      %v4725 = vpop.f32.mrb[0].mxu0
      %v4726 = vadd.f32 0.0, %v4725
      %v4727 = vpop.f32.mrb[0].mxu0
      %v4728 = vpop.f32.mrb[0].mxu0
      %v4729 = vadd.f32 0.0, %v4728
      %v4730 = vpop.f32.mrb[0].mxu0
      %4731 = vdwg.mxu0
      %v4732 = vadd.f32 %v4116, %v4606
      %v4733 = vadd.f32 %v4117, %v4609
      %v4734 = vadd.f32 %v4118, %v4614
      %v4735 = vadd.f32 %v4119, %v4617
      %v4736 = vadd.f32 %v4120, %v4622
      %v4737 = vadd.f32 %v4121, %v4625
      %v4738 = vadd.f32 %v4122, %v4630
      %v4739 = vadd.f32 %v4123, %v4633
      %v4740 = vadd.f32 %v4124, %v4638
      %v4741 = vadd.f32 %v4125, %v4641
      %v4742 = vadd.f32 %v4126, %v4646
      %v4743 = vadd.f32 %v4127, %v4649
      %v4744 = vadd.f32 %v4128, %v4654
      %v4745 = vadd.f32 %v4129, %v4657
      %v4746 = vadd.f32 %v4130, %v4662
      %v4747 = vadd.f32 %v4131, %v4665
      %v4748 = vadd.f32 %v4132, %v4670
      %v4749 = vadd.f32 %v4133, %v4673
      %v4750 = vadd.f32 %v4134, %v4678
      %v4751 = vadd.f32 %v4135, %v4681
      %v4752 = vadd.f32 %v4136, %v4686
      %v4753 = vadd.f32 %v4137, %v4689
      %v4754 = vadd.f32 %v4138, %v4694
      %v4755 = vadd.f32 %v4139, %v4697
      %v4756 = vadd.f32 %v4140, %v4702
      %v4757 = vadd.f32 %v4141, %v4705
      %v4758 = vadd.f32 %v4142, %v4710
      %v4759 = vadd.f32 %v4143, %v4713
      %v4760 = vadd.f32 %v4144, %v4718
      %v4761 = vadd.f32 %v4145, %v4721
      %v4762 = vadd.f32 %v4146, %v4726
      %v4763 = vadd.f32 %v4147, %v4729
      %s4764 = scalar_lea.vmem %s1, 1792
      %v4765 = vld [vmem:[%s4764] sm:$0xff]
      %v4766 = vld [vmem:[%s4764 + $0x8] sm:$0xff]
      %v4767 = vld [vmem:[%s4764 + $0x10] sm:$0xff]
      %v4768 = vld [vmem:[%s4764 + $0x18] sm:$0xff]
      %v4769 = vld [vmem:[%s4764 + $0x20] sm:$0xff]
      %v4770 = vld [vmem:[%s4764 + $0x28] sm:$0xff]
      %v4771 = vld [vmem:[%s4764 + $0x30] sm:$0xff]
      %v4772 = vld [vmem:[%s4764 + $0x38] sm:$0xff]
      %v4773 = vld [vmem:[%s4764 + $0x40] sm:$0xff]
      %v4774 = vld [vmem:[%s4764 + $0x48] sm:$0xff]
      %v4775 = vld [vmem:[%s4764 + $0x50] sm:$0xff]
      %v4776 = vld [vmem:[%s4764 + $0x58] sm:$0xff]
      %v4777 = vld [vmem:[%s4764 + $0x60] sm:$0xff]
      %v4778 = vld [vmem:[%s4764 + $0x68] sm:$0xff]
      %v4779 = vld [vmem:[%s4764 + $0x70] sm:$0xff]
      %v4780 = vld [vmem:[%s4764 + $0x78] sm:$0xff]
      %v4781 = vld [vmem:[%s4764 + $0x80] sm:$0xff]
      %v4782 = vld [vmem:[%s4764 + $0x88] sm:$0xff]
      %v4783 = vld [vmem:[%s4764 + $0x90] sm:$0xff]
      %v4784 = vld [vmem:[%s4764 + $0x98] sm:$0xff]
      %v4785 = vld [vmem:[%s4764 + $0xa0] sm:$0xff]
      %v4786 = vld [vmem:[%s4764 + $0xa8] sm:$0xff]
      %v4787 = vld [vmem:[%s4764 + $0xb0] sm:$0xff]
      %v4788 = vld [vmem:[%s4764 + $0xb8] sm:$0xff]
      %v4789 = vld [vmem:[%s4764 + $0xc0] sm:$0xff]
      %v4790 = vld [vmem:[%s4764 + $0xc8] sm:$0xff]
      %v4791 = vld [vmem:[%s4764 + $0xd0] sm:$0xff]
      %v4792 = vld [vmem:[%s4764 + $0xd8] sm:$0xff]
      %v4793 = vld [vmem:[%s4764 + $0xe0] sm:$0xff]
      %v4794 = vld [vmem:[%s4764 + $0xe8] sm:$0xff]
      %v4795 = vld [vmem:[%s4764 + $0xf0] sm:$0xff]
      %v4796 = vld [vmem:[%s4764 + $0xf8] sm:$0xff]
      %v4829 = vunpack.c.l.b16 %v4765
      %v4830 = vunpack.c.h.b16 %v4765
      %v4831 = vunpack.c.l.b16 %v4766
      %v4832 = vunpack.c.h.b16 %v4766
      %v4833 = vunpack.c.l.b16 %v4767
      %v4834 = vunpack.c.h.b16 %v4767
      %v4835 = vunpack.c.l.b16 %v4768
      %v4836 = vunpack.c.h.b16 %v4768
      %v4837 = vunpack.c.l.b16 %v4769
      %v4838 = vunpack.c.h.b16 %v4769
      %v4839 = vunpack.c.l.b16 %v4770
      %v4840 = vunpack.c.h.b16 %v4770
      %v4841 = vunpack.c.l.b16 %v4771
      %v4842 = vunpack.c.h.b16 %v4771
      %v4843 = vunpack.c.l.b16 %v4772
      %v4844 = vunpack.c.h.b16 %v4772
      %v4845 = vunpack.c.l.b16 %v4773
      %v4846 = vunpack.c.h.b16 %v4773
      %v4847 = vunpack.c.l.b16 %v4774
      %v4848 = vunpack.c.h.b16 %v4774
      %v4849 = vunpack.c.l.b16 %v4775
      %v4850 = vunpack.c.h.b16 %v4775
      %v4851 = vunpack.c.l.b16 %v4776
      %v4852 = vunpack.c.h.b16 %v4776
      %v4853 = vunpack.c.l.b16 %v4777
      %v4854 = vunpack.c.h.b16 %v4777
      %v4855 = vunpack.c.l.b16 %v4778
      %v4856 = vunpack.c.h.b16 %v4778
      %v4857 = vunpack.c.l.b16 %v4779
      %v4858 = vunpack.c.h.b16 %v4779
      %v4859 = vunpack.c.l.b16 %v4780
      %v4860 = vunpack.c.h.b16 %v4780
      %v4861 = vunpack.c.l.b16 %v4781
      %v4862 = vunpack.c.h.b16 %v4781
      %v4863 = vunpack.c.l.b16 %v4782
      %v4864 = vunpack.c.h.b16 %v4782
      %v4865 = vunpack.c.l.b16 %v4783
      %v4866 = vunpack.c.h.b16 %v4783
      %v4867 = vunpack.c.l.b16 %v4784
      %v4868 = vunpack.c.h.b16 %v4784
      %v4869 = vunpack.c.l.b16 %v4785
      %v4870 = vunpack.c.h.b16 %v4785
      %v4871 = vunpack.c.l.b16 %v4786
      %v4872 = vunpack.c.h.b16 %v4786
      %v4873 = vunpack.c.l.b16 %v4787
      %v4874 = vunpack.c.h.b16 %v4787
      %v4875 = vunpack.c.l.b16 %v4788
      %v4876 = vunpack.c.h.b16 %v4788
      %v4877 = vunpack.c.l.b16 %v4789
      %v4878 = vunpack.c.h.b16 %v4789
      %v4879 = vunpack.c.l.b16 %v4790
      %v4880 = vunpack.c.h.b16 %v4790
      %v4881 = vunpack.c.l.b16 %v4791
      %v4882 = vunpack.c.h.b16 %v4791
      %v4883 = vunpack.c.l.b16 %v4792
      %v4884 = vunpack.c.h.b16 %v4792
      %v4885 = vunpack.c.l.b16 %v4793
      %v4886 = vunpack.c.h.b16 %v4793
      %v4887 = vunpack.c.l.b16 %v4794
      %v4888 = vunpack.c.h.b16 %v4794
      %v4889 = vunpack.c.l.b16 %v4795
      %v4890 = vunpack.c.h.b16 %v4795
      %v4891 = vunpack.c.l.b16 %v4796
      %v4892 = vunpack.c.h.b16 %v4796
      %v4893 = vpack.c.b16 %v4831, %v4829
      %v4894 = vpack.c.b16 %v4832, %v4830
      %v4895 = vpack.c.b16 %v4835, %v4833
      %v4896 = vpack.c.b16 %v4836, %v4834
      %v4897 = vpack.c.b16 %v4839, %v4837
      %v4898 = vpack.c.b16 %v4840, %v4838
      %v4899 = vpack.c.b16 %v4843, %v4841
      %v4900 = vpack.c.b16 %v4844, %v4842
      %v4901 = vpack.c.b16 %v4847, %v4845
      %v4902 = vpack.c.b16 %v4848, %v4846
      %v4903 = vpack.c.b16 %v4851, %v4849
      %v4904 = vpack.c.b16 %v4852, %v4850
      %v4905 = vpack.c.b16 %v4855, %v4853
      %v4906 = vpack.c.b16 %v4856, %v4854
      %v4907 = vpack.c.b16 %v4859, %v4857
      %v4908 = vpack.c.b16 %v4860, %v4858
      %v4909 = vpack.c.b16 %v4863, %v4861
      %v4910 = vpack.c.b16 %v4864, %v4862
      %v4911 = vpack.c.b16 %v4867, %v4865
      %v4912 = vpack.c.b16 %v4868, %v4866
      %v4913 = vpack.c.b16 %v4871, %v4869
      %v4914 = vpack.c.b16 %v4872, %v4870
      %v4915 = vpack.c.b16 %v4875, %v4873
      %v4916 = vpack.c.b16 %v4876, %v4874
      %v4917 = vpack.c.b16 %v4879, %v4877
      %v4918 = vpack.c.b16 %v4880, %v4878
      %v4919 = vpack.c.b16 %v4883, %v4881
      %v4920 = vpack.c.b16 %v4884, %v4882
      %v4921 = vpack.c.b16 %v4887, %v4885
      %v4922 = vpack.c.b16 %v4888, %v4886
      %v4923 = vpack.c.b16 %v4891, %v4889
      %v4924 = vpack.c.b16 %v4892, %v4890
      %4957 = vmatprep.subr.bf16.mxu0 0
      %4958 = vmatpush1.bf16.msra.mxu0 %v676
      %4959 = vmatprep.subr.bf16.mxu0 0
      %4960 = vmatpush1.bf16.msra.mxu0 %v677
      %4961 = vmatprep.subr.bf16.mxu0 0
      %4962 = vmatpush1.bf16.msra.mxu0 %v678
      %4963 = vmatprep.subr.bf16.mxu0 0
      %4964 = vmatpush1.bf16.msra.mxu0 %v679
      %4965 = vmatprep.subr.bf16.mxu0 0
      %4966 = vmatpush1.bf16.msra.mxu0 %v680
      %4967 = vmatprep.subr.bf16.mxu0 0
      %4968 = vmatpush1.bf16.msra.mxu0 %v681
      %4969 = vmatprep.subr.bf16.mxu0 0
      %4970 = vmatpush1.bf16.msra.mxu0 %v682
      %4971 = vmatprep.subr.bf16.mxu0 0
      %4972 = vmatpush1.bf16.msra.mxu0 %v683
      %4973 = vmatprep.subr.bf16.mxu0 0
      %4974 = vmatpush1.bf16.msra.mxu0 %v684
      %4975 = vmatprep.subr.bf16.mxu0 0
      %4976 = vmatpush1.bf16.msra.mxu0 %v685
      %4977 = vmatprep.subr.bf16.mxu0 0
      %4978 = vmatpush1.bf16.msra.mxu0 %v686
      %4979 = vmatprep.subr.bf16.mxu0 0
      %4980 = vmatpush1.bf16.msra.mxu0 %v687
      %4981 = vmatprep.subr.bf16.mxu0 0
      %4982 = vmatpush1.bf16.msra.mxu0 %v688
      %4983 = vmatprep.subr.bf16.mxu0 0
      %4984 = vmatpush1.bf16.msra.mxu0 %v689
      %4985 = vmatprep.subr.bf16.mxu0 0
      %4986 = vmatpush1.bf16.msra.mxu0 %v690
      %4987 = vmatprep.subr.bf16.mxu0 0
      %4988 = vmatpush1.bf16.msra.mxu0 %v691
      %4989 = vmatprep.mubr.bf16.mxu0 %v4894
      %4990 = vmatmul.mubr.bf16.gmra.mrb[0].mxu0 %v4893
      %v4991 = vpop.f32.mrb[0].mxu0
      %v4992 = vadd.f32 0.0, %v4991
      %v4993 = vpop.f32.mrb[0].mxu0
      %v4994 = vpop.f32.mrb[0].mxu0
      %v4995 = vadd.f32 0.0, %v4994
      %v4996 = vpop.f32.mrb[0].mxu0
      %4997 = vmatprep.mubr.bf16.mxu0 %v4896
      %4998 = vmatmul.mubr.bf16.gmra.mrb[0].mxu0 %v4895
      %v4999 = vpop.f32.mrb[0].mxu0
      %v5000 = vadd.f32 0.0, %v4999
      %v5001 = vpop.f32.mrb[0].mxu0
      %v5002 = vpop.f32.mrb[0].mxu0
      %v5003 = vadd.f32 0.0, %v5002
      %v5004 = vpop.f32.mrb[0].mxu0
      %5005 = vmatprep.mubr.bf16.mxu0 %v4898
      %5006 = vmatmul.mubr.bf16.gmra.mrb[0].mxu0 %v4897
      %v5007 = vpop.f32.mrb[0].mxu0
      %v5008 = vadd.f32 0.0, %v5007
      %v5009 = vpop.f32.mrb[0].mxu0
      %v5010 = vpop.f32.mrb[0].mxu0
      %v5011 = vadd.f32 0.0, %v5010
      %v5012 = vpop.f32.mrb[0].mxu0
      %5013 = vmatprep.mubr.bf16.mxu0 %v4900
      %5014 = vmatmul.mubr.bf16.gmra.mrb[0].mxu0 %v4899
      %v5015 = vpop.f32.mrb[0].mxu0
      %v5016 = vadd.f32 0.0, %v5015
      %v5017 = vpop.f32.mrb[0].mxu0
      %v5018 = vpop.f32.mrb[0].mxu0
      %v5019 = vadd.f32 0.0, %v5018
      %v5020 = vpop.f32.mrb[0].mxu0
      %5021 = vmatprep.mubr.bf16.mxu0 %v4902
      %5022 = vmatmul.mubr.bf16.gmra.mrb[0].mxu0 %v4901
      %v5023 = vpop.f32.mrb[0].mxu0
      %v5024 = vadd.f32 0.0, %v5023
      %v5025 = vpop.f32.mrb[0].mxu0
      %v5026 = vpop.f32.mrb[0].mxu0
      %v5027 = vadd.f32 0.0, %v5026
      %v5028 = vpop.f32.mrb[0].mxu0
      %5029 = vmatprep.mubr.bf16.mxu0 %v4904
      %5030 = vmatmul.mubr.bf16.gmra.mrb[0].mxu0 %v4903
      %v5031 = vpop.f32.mrb[0].mxu0
      %v5032 = vadd.f32 0.0, %v5031
      %v5033 = vpop.f32.mrb[0].mxu0
      %v5034 = vpop.f32.mrb[0].mxu0
      %v5035 = vadd.f32 0.0, %v5034
      %v5036 = vpop.f32.mrb[0].mxu0
      %5037 = vmatprep.mubr.bf16.mxu0 %v4906
      %5038 = vmatmul.mubr.bf16.gmra.mrb[0].mxu0 %v4905
      %v5039 = vpop.f32.mrb[0].mxu0
      %v5040 = vadd.f32 0.0, %v5039
      %v5041 = vpop.f32.mrb[0].mxu0
      %v5042 = vpop.f32.mrb[0].mxu0
      %v5043 = vadd.f32 0.0, %v5042
      %v5044 = vpop.f32.mrb[0].mxu0
      %5045 = vmatprep.mubr.bf16.mxu0 %v4908
      %5046 = vmatmul.mubr.bf16.gmra.mrb[0].mxu0 %v4907
      %v5047 = vpop.f32.mrb[0].mxu0
      %v5048 = vadd.f32 0.0, %v5047
      %v5049 = vpop.f32.mrb[0].mxu0
      %v5050 = vpop.f32.mrb[0].mxu0
      %v5051 = vadd.f32 0.0, %v5050
      %v5052 = vpop.f32.mrb[0].mxu0
      %5053 = vmatprep.mubr.bf16.mxu0 %v4910
      %5054 = vmatmul.mubr.bf16.gmra.mrb[0].mxu0 %v4909
      %v5055 = vpop.f32.mrb[0].mxu0
      %v5056 = vadd.f32 0.0, %v5055
      %v5057 = vpop.f32.mrb[0].mxu0
      %v5058 = vpop.f32.mrb[0].mxu0
      %v5059 = vadd.f32 0.0, %v5058
      %v5060 = vpop.f32.mrb[0].mxu0
      %5061 = vmatprep.mubr.bf16.mxu0 %v4912
      %5062 = vmatmul.mubr.bf16.gmra.mrb[0].mxu0 %v4911
      %v5063 = vpop.f32.mrb[0].mxu0
      %v5064 = vadd.f32 0.0, %v5063
      %v5065 = vpop.f32.mrb[0].mxu0
      %v5066 = vpop.f32.mrb[0].mxu0
      %v5067 = vadd.f32 0.0, %v5066
      %v5068 = vpop.f32.mrb[0].mxu0
      %5069 = vmatprep.mubr.bf16.mxu0 %v4914
      %5070 = vmatmul.mubr.bf16.gmra.mrb[0].mxu0 %v4913
      %v5071 = vpop.f32.mrb[0].mxu0
      %v5072 = vadd.f32 0.0, %v5071
      %v5073 = vpop.f32.mrb[0].mxu0
      %v5074 = vpop.f32.mrb[0].mxu0
      %v5075 = vadd.f32 0.0, %v5074
      %v5076 = vpop.f32.mrb[0].mxu0
      %5077 = vmatprep.mubr.bf16.mxu0 %v4916
      %5078 = vmatmul.mubr.bf16.gmra.mrb[0].mxu0 %v4915
      %v5079 = vpop.f32.mrb[0].mxu0
      %v5080 = vadd.f32 0.0, %v5079
      %v5081 = vpop.f32.mrb[0].mxu0
      %v5082 = vpop.f32.mrb[0].mxu0
      %v5083 = vadd.f32 0.0, %v5082
      %v5084 = vpop.f32.mrb[0].mxu0
      %5085 = vmatprep.mubr.bf16.mxu0 %v4918
      %5086 = vmatmul.mubr.bf16.gmra.mrb[0].mxu0 %v4917
      %v5087 = vpop.f32.mrb[0].mxu0
      %v5088 = vadd.f32 0.0, %v5087
      %v5089 = vpop.f32.mrb[0].mxu0
      %v5090 = vpop.f32.mrb[0].mxu0
      %v5091 = vadd.f32 0.0, %v5090
      %v5092 = vpop.f32.mrb[0].mxu0
      %5093 = vmatprep.mubr.bf16.mxu0 %v4920
      %5094 = vmatmul.mubr.bf16.gmra.mrb[0].mxu0 %v4919
      %v5095 = vpop.f32.mrb[0].mxu0
      %v5096 = vadd.f32 0.0, %v5095
      %v5097 = vpop.f32.mrb[0].mxu0
      %v5098 = vpop.f32.mrb[0].mxu0
      %v5099 = vadd.f32 0.0, %v5098
      %v5100 = vpop.f32.mrb[0].mxu0
      %5101 = vmatprep.mubr.bf16.mxu0 %v4922
      %5102 = vmatmul.mubr.bf16.gmra.mrb[0].mxu0 %v4921
      %v5103 = vpop.f32.mrb[0].mxu0
      %v5104 = vadd.f32 0.0, %v5103
      %v5105 = vpop.f32.mrb[0].mxu0
      %v5106 = vpop.f32.mrb[0].mxu0
      %v5107 = vadd.f32 0.0, %v5106
      %v5108 = vpop.f32.mrb[0].mxu0
      %5109 = vmatprep.mubr.bf16.mxu0 %v4924
      %5110 = vmatmul.mubr.bf16.gmra.mrb[0].mxu0 %v4923
      %v5111 = vpop.f32.mrb[0].mxu0
      %v5112 = vadd.f32 0.0, %v5111
      %v5113 = vpop.f32.mrb[0].mxu0
      %v5114 = vpop.f32.mrb[0].mxu0
      %v5115 = vadd.f32 0.0, %v5114
      %v5116 = vpop.f32.mrb[0].mxu0
      %5117 = vdwg.mxu0
      %v5118 = vpack.c.bf16 %v4995, %v4992
      %v5119 = vpack.c.bf16 %v5003, %v5000
      %v5120 = vpack.c.bf16 %v5011, %v5008
      %v5121 = vpack.c.bf16 %v5019, %v5016
      %v5122 = vpack.c.bf16 %v5027, %v5024
      %v5123 = vpack.c.bf16 %v5035, %v5032
      %v5124 = vpack.c.bf16 %v5043, %v5040
      %v5125 = vpack.c.bf16 %v5051, %v5048
      %v5126 = vpack.c.bf16 %v5059, %v5056
      %v5127 = vpack.c.bf16 %v5067, %v5064
      %v5128 = vpack.c.bf16 %v5075, %v5072
      %v5129 = vpack.c.bf16 %v5083, %v5080
      %v5130 = vpack.c.bf16 %v5091, %v5088
      %v5131 = vpack.c.bf16 %v5099, %v5096
      %v5132 = vpack.c.bf16 %v5107, %v5104
      %v5133 = vpack.c.bf16 %v5115, %v5112
      %s5134 = scalar_lea.vmem %s3, 28
      %v5135 = vld [vmem:[%s5134] sm:$0xf]
      %v5137 = vsel %vm1258, %v5118, 0
      %v5140 = vsel %vm1258, %v5119, 0
      %v5143 = vsel %vm1258, %v5120, 0
      %v5146 = vsel %vm1258, %v5121, 0
      %v5149 = vsel %vm1258, %v5122, 0
      %v5152 = vsel %vm1258, %v5123, 0
      %v5155 = vsel %vm1258, %v5124, 0
      %v5158 = vsel %vm1258, %v5125, 0
      %v5161 = vsel %vm1258, %v5126, 0
      %v5164 = vsel %vm1258, %v5127, 0
      %v5167 = vsel %vm1258, %v5128, 0
      %v5170 = vsel %vm1258, %v5129, 0
      %v5173 = vsel %vm1258, %v5130, 0
      %v5176 = vsel %vm1258, %v5131, 0
      %v5179 = vsel %vm1258, %v5132, 0
      %v5182 = vsel %vm1258, %v5133, 0
      %v5185 = vsel %vm1307, %v5135, 0
      %5187 = vmatprep.subr.bf16.mxu0 0
      %5188 = vmatpush1.bf16.msra.mxu0 %v5185
      %5189 = vmatprep.subr.bf16.mxu0 0
      %5190 = vmatpush1.bf16.msra.mxu0 0
      %5191 = vmatprep.subr.bf16.mxu0 0
      %5192 = vmatpush1.bf16.msra.mxu0 0
      %5193 = vmatprep.subr.bf16.mxu0 0
      %5194 = vmatpush1.bf16.msra.mxu0 0
      %5195 = vmatprep.subr.bf16.mxu0 0
      %5196 = vmatpush1.bf16.msra.mxu0 0
      %5197 = vmatprep.subr.bf16.mxu0 0
      %5198 = vmatpush1.bf16.msra.mxu0 0
      %5199 = vmatprep.subr.bf16.mxu0 0
      %5200 = vmatpush1.bf16.msra.mxu0 0
      %5201 = vmatprep.subr.bf16.mxu0 0
      %5202 = vmatpush1.bf16.msra.mxu0 0
      %5203 = vmatprep.subr.bf16.mxu0 0
      %5204 = vmatpush1.bf16.msra.mxu0 0
      %5205 = vmatprep.subr.bf16.mxu0 0
      %5206 = vmatpush1.bf16.msra.mxu0 0
      %5207 = vmatprep.subr.bf16.mxu0 0
      %5208 = vmatpush1.bf16.msra.mxu0 0
      %5209 = vmatprep.subr.bf16.mxu0 0
      %5210 = vmatpush1.bf16.msra.mxu0 0
      %5211 = vmatprep.subr.bf16.mxu0 0
      %5212 = vmatpush1.bf16.msra.mxu0 0
      %5213 = vmatprep.subr.bf16.mxu0 0
      %5214 = vmatpush1.bf16.msra.mxu0 0
      %5215 = vmatprep.subr.bf16.mxu0 0
      %5216 = vmatpush1.bf16.msra.mxu0 0
      %5217 = vmatprep.subr.bf16.mxu0 0
      %5218 = vmatpush1.bf16.msra.mxu0 0
      %5219 = vmatprep.mubr.bf16.mxu0 0
      %5220 = vmatmul.mubr.bf16.gmra.mrb[0].mxu0 %v5137
      %v5221 = vpop.f32.mrb[0].mxu0
      %v5222 = vadd.f32 0.0, %v5221
      %v5223 = vpop.f32.mrb[0].mxu0
      %v5224 = vpop.f32.mrb[0].mxu0
      %v5225 = vadd.f32 0.0, %v5224
      %v5226 = vpop.f32.mrb[0].mxu0
      %5227 = vmatprep.mubr.bf16.mxu0 0
      %5228 = vmatmul.mubr.bf16.gmra.mrb[0].mxu0 %v5140
      %v5229 = vpop.f32.mrb[0].mxu0
      %v5230 = vadd.f32 0.0, %v5229
      %v5231 = vpop.f32.mrb[0].mxu0
      %v5232 = vpop.f32.mrb[0].mxu0
      %v5233 = vadd.f32 0.0, %v5232
      %v5234 = vpop.f32.mrb[0].mxu0
      %5235 = vmatprep.mubr.bf16.mxu0 0
      %5236 = vmatmul.mubr.bf16.gmra.mrb[0].mxu0 %v5143
      %v5237 = vpop.f32.mrb[0].mxu0
      %v5238 = vadd.f32 0.0, %v5237
      %v5239 = vpop.f32.mrb[0].mxu0
      %v5240 = vpop.f32.mrb[0].mxu0
      %v5241 = vadd.f32 0.0, %v5240
      %v5242 = vpop.f32.mrb[0].mxu0
      %5243 = vmatprep.mubr.bf16.mxu0 0
      %5244 = vmatmul.mubr.bf16.gmra.mrb[0].mxu0 %v5146
      %v5245 = vpop.f32.mrb[0].mxu0
      %v5246 = vadd.f32 0.0, %v5245
      %v5247 = vpop.f32.mrb[0].mxu0
      %v5248 = vpop.f32.mrb[0].mxu0
      %v5249 = vadd.f32 0.0, %v5248
      %v5250 = vpop.f32.mrb[0].mxu0
      %5251 = vmatprep.mubr.bf16.mxu0 0
      %5252 = vmatmul.mubr.bf16.gmra.mrb[0].mxu0 %v5149
      %v5253 = vpop.f32.mrb[0].mxu0
      %v5254 = vadd.f32 0.0, %v5253
      %v5255 = vpop.f32.mrb[0].mxu0
      %v5256 = vpop.f32.mrb[0].mxu0
      %v5257 = vadd.f32 0.0, %v5256
      %v5258 = vpop.f32.mrb[0].mxu0
      %5259 = vmatprep.mubr.bf16.mxu0 0
      %5260 = vmatmul.mubr.bf16.gmra.mrb[0].mxu0 %v5152
      %v5261 = vpop.f32.mrb[0].mxu0
      %v5262 = vadd.f32 0.0, %v5261
      %v5263 = vpop.f32.mrb[0].mxu0
      %v5264 = vpop.f32.mrb[0].mxu0
      %v5265 = vadd.f32 0.0, %v5264
      %v5266 = vpop.f32.mrb[0].mxu0
      %5267 = vmatprep.mubr.bf16.mxu0 0
      %5268 = vmatmul.mubr.bf16.gmra.mrb[0].mxu0 %v5155
      %v5269 = vpop.f32.mrb[0].mxu0
      %v5270 = vadd.f32 0.0, %v5269
      %v5271 = vpop.f32.mrb[0].mxu0
      %v5272 = vpop.f32.mrb[0].mxu0
      %v5273 = vadd.f32 0.0, %v5272
      %v5274 = vpop.f32.mrb[0].mxu0
      %5275 = vmatprep.mubr.bf16.mxu0 0
      %5276 = vmatmul.mubr.bf16.gmra.mrb[0].mxu0 %v5158
      %v5277 = vpop.f32.mrb[0].mxu0
      %v5278 = vadd.f32 0.0, %v5277
      %v5279 = vpop.f32.mrb[0].mxu0
      %v5280 = vpop.f32.mrb[0].mxu0
      %v5281 = vadd.f32 0.0, %v5280
      %v5282 = vpop.f32.mrb[0].mxu0
      %5283 = vmatprep.mubr.bf16.mxu0 0
      %5284 = vmatmul.mubr.bf16.gmra.mrb[0].mxu0 %v5161
      %v5285 = vpop.f32.mrb[0].mxu0
      %v5286 = vadd.f32 0.0, %v5285
      %v5287 = vpop.f32.mrb[0].mxu0
      %v5288 = vpop.f32.mrb[0].mxu0
      %v5289 = vadd.f32 0.0, %v5288
      %v5290 = vpop.f32.mrb[0].mxu0
      %5291 = vmatprep.mubr.bf16.mxu0 0
      %5292 = vmatmul.mubr.bf16.gmra.mrb[0].mxu0 %v5164
      %v5293 = vpop.f32.mrb[0].mxu0
      %v5294 = vadd.f32 0.0, %v5293
      %v5295 = vpop.f32.mrb[0].mxu0
      %v5296 = vpop.f32.mrb[0].mxu0
      %v5297 = vadd.f32 0.0, %v5296
      %v5298 = vpop.f32.mrb[0].mxu0
      %5299 = vmatprep.mubr.bf16.mxu0 0
      %5300 = vmatmul.mubr.bf16.gmra.mrb[0].mxu0 %v5167
      %v5301 = vpop.f32.mrb[0].mxu0
      %v5302 = vadd.f32 0.0, %v5301
      %v5303 = vpop.f32.mrb[0].mxu0
      %v5304 = vpop.f32.mrb[0].mxu0
      %v5305 = vadd.f32 0.0, %v5304
      %v5306 = vpop.f32.mrb[0].mxu0
      %5307 = vmatprep.mubr.bf16.mxu0 0
      %5308 = vmatmul.mubr.bf16.gmra.mrb[0].mxu0 %v5170
      %v5309 = vpop.f32.mrb[0].mxu0
      %v5310 = vadd.f32 0.0, %v5309
      %v5311 = vpop.f32.mrb[0].mxu0
      %v5312 = vpop.f32.mrb[0].mxu0
      %v5313 = vadd.f32 0.0, %v5312
      %v5314 = vpop.f32.mrb[0].mxu0
      %5315 = vmatprep.mubr.bf16.mxu0 0
      %5316 = vmatmul.mubr.bf16.gmra.mrb[0].mxu0 %v5173
      %v5317 = vpop.f32.mrb[0].mxu0
      %v5318 = vadd.f32 0.0, %v5317
      %v5319 = vpop.f32.mrb[0].mxu0
      %v5320 = vpop.f32.mrb[0].mxu0
      %v5321 = vadd.f32 0.0, %v5320
      %v5322 = vpop.f32.mrb[0].mxu0
      %5323 = vmatprep.mubr.bf16.mxu0 0
      %5324 = vmatmul.mubr.bf16.gmra.mrb[0].mxu0 %v5176
      %v5325 = vpop.f32.mrb[0].mxu0
      %v5326 = vadd.f32 0.0, %v5325
      %v5327 = vpop.f32.mrb[0].mxu0
      %v5328 = vpop.f32.mrb[0].mxu0
      %v5329 = vadd.f32 0.0, %v5328
      %v5330 = vpop.f32.mrb[0].mxu0
      %5331 = vmatprep.mubr.bf16.mxu0 0
      %5332 = vmatmul.mubr.bf16.gmra.mrb[0].mxu0 %v5179
      %v5333 = vpop.f32.mrb[0].mxu0
      %v5334 = vadd.f32 0.0, %v5333
      %v5335 = vpop.f32.mrb[0].mxu0
      %v5336 = vpop.f32.mrb[0].mxu0
      %v5337 = vadd.f32 0.0, %v5336
      %v5338 = vpop.f32.mrb[0].mxu0
      %5339 = vmatprep.mubr.bf16.mxu0 0
      %5340 = vmatmul.mubr.bf16.gmra.mrb[0].mxu0 %v5182
      %v5341 = vpop.f32.mrb[0].mxu0
      %v5342 = vadd.f32 0.0, %v5341
      %v5343 = vpop.f32.mrb[0].mxu0
      %v5344 = vpop.f32.mrb[0].mxu0
      %v5345 = vadd.f32 0.0, %v5344
      %v5346 = vpop.f32.mrb[0].mxu0
      %5347 = vdwg.mxu0
      %v5348 = vadd.f32 %v4732, %v5222
      %v5349 = vadd.f32 %v4733, %v5225
      %v5350 = vadd.f32 %v4734, %v5230
      %v5351 = vadd.f32 %v4735, %v5233
      %v5352 = vadd.f32 %v4736, %v5238
      %v5353 = vadd.f32 %v4737, %v5241
      %v5354 = vadd.f32 %v4738, %v5246
      %v5355 = vadd.f32 %v4739, %v5249
      %v5356 = vadd.f32 %v4740, %v5254
      %v5357 = vadd.f32 %v4741, %v5257
      %v5358 = vadd.f32 %v4742, %v5262
      %v5359 = vadd.f32 %v4743, %v5265
      %v5360 = vadd.f32 %v4744, %v5270
      %v5361 = vadd.f32 %v4745, %v5273
      %v5362 = vadd.f32 %v4746, %v5278
      %v5363 = vadd.f32 %v4747, %v5281
      %v5364 = vadd.f32 %v4748, %v5286
      %v5365 = vadd.f32 %v4749, %v5289
      %v5366 = vadd.f32 %v4750, %v5294
      %v5367 = vadd.f32 %v4751, %v5297
      %v5368 = vadd.f32 %v4752, %v5302
      %v5369 = vadd.f32 %v4753, %v5305
      %v5370 = vadd.f32 %v4754, %v5310
      %v5371 = vadd.f32 %v4755, %v5313
      %v5372 = vadd.f32 %v4756, %v5318
      %v5373 = vadd.f32 %v4757, %v5321
      %v5374 = vadd.f32 %v4758, %v5326
      %v5375 = vadd.f32 %v4759, %v5329
      %v5376 = vadd.f32 %v4760, %v5334
      %v5377 = vadd.f32 %v4761, %v5337
      %v5378 = vadd.f32 %v4762, %v5342
      %v5379 = vadd.f32 %v4763, %v5345
      %s5380 = scalar_lea.vmem %s1, 2048
      %v5381 = vld [vmem:[%s5380] sm:$0xff]
      %v5382 = vld [vmem:[%s5380 + $0x8] sm:$0xff]
      %v5383 = vld [vmem:[%s5380 + $0x10] sm:$0xff]
      %v5384 = vld [vmem:[%s5380 + $0x18] sm:$0xff]
      %v5385 = vld [vmem:[%s5380 + $0x20] sm:$0xff]
      %v5386 = vld [vmem:[%s5380 + $0x28] sm:$0xff]
      %v5387 = vld [vmem:[%s5380 + $0x30] sm:$0xff]
      %v5388 = vld [vmem:[%s5380 + $0x38] sm:$0xff]
      %v5389 = vld [vmem:[%s5380 + $0x40] sm:$0xff]
      %v5390 = vld [vmem:[%s5380 + $0x48] sm:$0xff]
      %v5391 = vld [vmem:[%s5380 + $0x50] sm:$0xff]
      %v5392 = vld [vmem:[%s5380 + $0x58] sm:$0xff]
      %v5393 = vld [vmem:[%s5380 + $0x60] sm:$0xff]
      %v5394 = vld [vmem:[%s5380 + $0x68] sm:$0xff]
      %v5395 = vld [vmem:[%s5380 + $0x70] sm:$0xff]
      %v5396 = vld [vmem:[%s5380 + $0x78] sm:$0xff]
      %v5397 = vld [vmem:[%s5380 + $0x80] sm:$0xff]
      %v5398 = vld [vmem:[%s5380 + $0x88] sm:$0xff]
      %v5399 = vld [vmem:[%s5380 + $0x90] sm:$0xff]
      %v5400 = vld [vmem:[%s5380 + $0x98] sm:$0xff]
      %v5401 = vld [vmem:[%s5380 + $0xa0] sm:$0xff]
      %v5402 = vld [vmem:[%s5380 + $0xa8] sm:$0xff]
      %v5403 = vld [vmem:[%s5380 + $0xb0] sm:$0xff]
      %v5404 = vld [vmem:[%s5380 + $0xb8] sm:$0xff]
      %v5405 = vld [vmem:[%s5380 + $0xc0] sm:$0xff]
      %v5406 = vld [vmem:[%s5380 + $0xc8] sm:$0xff]
      %v5407 = vld [vmem:[%s5380 + $0xd0] sm:$0xff]
      %v5408 = vld [vmem:[%s5380 + $0xd8] sm:$0xff]
      %v5409 = vld [vmem:[%s5380 + $0xe0] sm:$0xff]
      %v5410 = vld [vmem:[%s5380 + $0xe8] sm:$0xff]
      %v5411 = vld [vmem:[%s5380 + $0xf0] sm:$0xff]
      %v5412 = vld [vmem:[%s5380 + $0xf8] sm:$0xff]
      %v5445 = vunpack.c.l.b16 %v5381
      %v5446 = vunpack.c.h.b16 %v5381
      %v5447 = vunpack.c.l.b16 %v5382
      %v5448 = vunpack.c.h.b16 %v5382
      %v5449 = vunpack.c.l.b16 %v5383
      %v5450 = vunpack.c.h.b16 %v5383
      %v5451 = vunpack.c.l.b16 %v5384
      %v5452 = vunpack.c.h.b16 %v5384
      %v5453 = vunpack.c.l.b16 %v5385
      %v5454 = vunpack.c.h.b16 %v5385
      %v5455 = vunpack.c.l.b16 %v5386
      %v5456 = vunpack.c.h.b16 %v5386
      %v5457 = vunpack.c.l.b16 %v5387
      %v5458 = vunpack.c.h.b16 %v5387
      %v5459 = vunpack.c.l.b16 %v5388
      %v5460 = vunpack.c.h.b16 %v5388
      %v5461 = vunpack.c.l.b16 %v5389
      %v5462 = vunpack.c.h.b16 %v5389
      %v5463 = vunpack.c.l.b16 %v5390
      %v5464 = vunpack.c.h.b16 %v5390
      %v5465 = vunpack.c.l.b16 %v5391
      %v5466 = vunpack.c.h.b16 %v5391
      %v5467 = vunpack.c.l.b16 %v5392
      %v5468 = vunpack.c.h.b16 %v5392
      %v5469 = vunpack.c.l.b16 %v5393
      %v5470 = vunpack.c.h.b16 %v5393
      %v5471 = vunpack.c.l.b16 %v5394
      %v5472 = vunpack.c.h.b16 %v5394
      %v5473 = vunpack.c.l.b16 %v5395
      %v5474 = vunpack.c.h.b16 %v5395
      %v5475 = vunpack.c.l.b16 %v5396
      %v5476 = vunpack.c.h.b16 %v5396
      %v5477 = vunpack.c.l.b16 %v5397
      %v5478 = vunpack.c.h.b16 %v5397
      %v5479 = vunpack.c.l.b16 %v5398
      %v5480 = vunpack.c.h.b16 %v5398
      %v5481 = vunpack.c.l.b16 %v5399
      %v5482 = vunpack.c.h.b16 %v5399
      %v5483 = vunpack.c.l.b16 %v5400
      %v5484 = vunpack.c.h.b16 %v5400
      %v5485 = vunpack.c.l.b16 %v5401
      %v5486 = vunpack.c.h.b16 %v5401
      %v5487 = vunpack.c.l.b16 %v5402
      %v5488 = vunpack.c.h.b16 %v5402
      %v5489 = vunpack.c.l.b16 %v5403
      %v5490 = vunpack.c.h.b16 %v5403
      %v5491 = vunpack.c.l.b16 %v5404
      %v5492 = vunpack.c.h.b16 %v5404
      %v5493 = vunpack.c.l.b16 %v5405
      %v5494 = vunpack.c.h.b16 %v5405
      %v5495 = vunpack.c.l.b16 %v5406
      %v5496 = vunpack.c.h.b16 %v5406
      %v5497 = vunpack.c.l.b16 %v5407
      %v5498 = vunpack.c.h.b16 %v5407
      %v5499 = vunpack.c.l.b16 %v5408
      %v5500 = vunpack.c.h.b16 %v5408
      %v5501 = vunpack.c.l.b16 %v5409
      %v5502 = vunpack.c.h.b16 %v5409
      %v5503 = vunpack.c.l.b16 %v5410
      %v5504 = vunpack.c.h.b16 %v5410
      %v5505 = vunpack.c.l.b16 %v5411
      %v5506 = vunpack.c.h.b16 %v5411
      %v5507 = vunpack.c.l.b16 %v5412
      %v5508 = vunpack.c.h.b16 %v5412
      %v5509 = vpack.c.b16 %v5447, %v5445
      %v5510 = vpack.c.b16 %v5448, %v5446
      %v5511 = vpack.c.b16 %v5451, %v5449
      %v5512 = vpack.c.b16 %v5452, %v5450
      %v5513 = vpack.c.b16 %v5455, %v5453
      %v5514 = vpack.c.b16 %v5456, %v5454
      %v5515 = vpack.c.b16 %v5459, %v5457
      %v5516 = vpack.c.b16 %v5460, %v5458
      %v5517 = vpack.c.b16 %v5463, %v5461
      %v5518 = vpack.c.b16 %v5464, %v5462
      %v5519 = vpack.c.b16 %v5467, %v5465
      %v5520 = vpack.c.b16 %v5468, %v5466
      %v5521 = vpack.c.b16 %v5471, %v5469
      %v5522 = vpack.c.b16 %v5472, %v5470
      %v5523 = vpack.c.b16 %v5475, %v5473
      %v5524 = vpack.c.b16 %v5476, %v5474
      %v5525 = vpack.c.b16 %v5479, %v5477
      %v5526 = vpack.c.b16 %v5480, %v5478
      %v5527 = vpack.c.b16 %v5483, %v5481
      %v5528 = vpack.c.b16 %v5484, %v5482
      %v5529 = vpack.c.b16 %v5487, %v5485
      %v5530 = vpack.c.b16 %v5488, %v5486
      %v5531 = vpack.c.b16 %v5491, %v5489
      %v5532 = vpack.c.b16 %v5492, %v5490
      %v5533 = vpack.c.b16 %v5495, %v5493
      %v5534 = vpack.c.b16 %v5496, %v5494
      %v5535 = vpack.c.b16 %v5499, %v5497
      %v5536 = vpack.c.b16 %v5500, %v5498
      %v5537 = vpack.c.b16 %v5503, %v5501
      %v5538 = vpack.c.b16 %v5504, %v5502
      %v5539 = vpack.c.b16 %v5507, %v5505
      %v5540 = vpack.c.b16 %v5508, %v5506
      %5573 = vmatprep.subr.bf16.mxu0 0
      %5574 = vmatpush1.bf16.msra.mxu0 %v676
      %5575 = vmatprep.subr.bf16.mxu0 0
      %5576 = vmatpush1.bf16.msra.mxu0 %v677
      %5577 = vmatprep.subr.bf16.mxu0 0
      %5578 = vmatpush1.bf16.msra.mxu0 %v678
      %5579 = vmatprep.subr.bf16.mxu0 0
      %5580 = vmatpush1.bf16.msra.mxu0 %v679
      %5581 = vmatprep.subr.bf16.mxu0 0
      %5582 = vmatpush1.bf16.msra.mxu0 %v680
      %5583 = vmatprep.subr.bf16.mxu0 0
      %5584 = vmatpush1.bf16.msra.mxu0 %v681
      %5585 = vmatprep.subr.bf16.mxu0 0
      %5586 = vmatpush1.bf16.msra.mxu0 %v682
      %5587 = vmatprep.subr.bf16.mxu0 0
      %5588 = vmatpush1.bf16.msra.mxu0 %v683
      %5589 = vmatprep.subr.bf16.mxu0 0
      %5590 = vmatpush1.bf16.msra.mxu0 %v684
      %5591 = vmatprep.subr.bf16.mxu0 0
      %5592 = vmatpush1.bf16.msra.mxu0 %v685
      %5593 = vmatprep.subr.bf16.mxu0 0
      %5594 = vmatpush1.bf16.msra.mxu0 %v686
      %5595 = vmatprep.subr.bf16.mxu0 0
      %5596 = vmatpush1.bf16.msra.mxu0 %v687
      %5597 = vmatprep.subr.bf16.mxu0 0
      %5598 = vmatpush1.bf16.msra.mxu0 %v688
      %5599 = vmatprep.subr.bf16.mxu0 0
      %5600 = vmatpush1.bf16.msra.mxu0 %v689
      %5601 = vmatprep.subr.bf16.mxu0 0
      %5602 = vmatpush1.bf16.msra.mxu0 %v690
      %5603 = vmatprep.subr.bf16.mxu0 0
      %5604 = vmatpush1.bf16.msra.mxu0 %v691
      %5605 = vmatprep.mubr.bf16.mxu0 %v5510
      %5606 = vmatmul.mubr.bf16.gmra.mrb[0].mxu0 %v5509
      %v5607 = vpop.f32.mrb[0].mxu0
      %v5608 = vadd.f32 0.0, %v5607
      %v5609 = vpop.f32.mrb[0].mxu0
      %v5610 = vpop.f32.mrb[0].mxu0
      %v5611 = vadd.f32 0.0, %v5610
      %v5612 = vpop.f32.mrb[0].mxu0
      %5613 = vmatprep.mubr.bf16.mxu0 %v5512
      %5614 = vmatmul.mubr.bf16.gmra.mrb[0].mxu0 %v5511
      %v5615 = vpop.f32.mrb[0].mxu0
      %v5616 = vadd.f32 0.0, %v5615
      %v5617 = vpop.f32.mrb[0].mxu0
      %v5618 = vpop.f32.mrb[0].mxu0
      %v5619 = vadd.f32 0.0, %v5618
      %v5620 = vpop.f32.mrb[0].mxu0
      %5621 = vmatprep.mubr.bf16.mxu0 %v5514
      %5622 = vmatmul.mubr.bf16.gmra.mrb[0].mxu0 %v5513
      %v5623 = vpop.f32.mrb[0].mxu0
      %v5624 = vadd.f32 0.0, %v5623
      %v5625 = vpop.f32.mrb[0].mxu0
      %v5626 = vpop.f32.mrb[0].mxu0
      %v5627 = vadd.f32 0.0, %v5626
      %v5628 = vpop.f32.mrb[0].mxu0
      %5629 = vmatprep.mubr.bf16.mxu0 %v5516
      %5630 = vmatmul.mubr.bf16.gmra.mrb[0].mxu0 %v5515
      %v5631 = vpop.f32.mrb[0].mxu0
      %v5632 = vadd.f32 0.0, %v5631
      %v5633 = vpop.f32.mrb[0].mxu0
      %v5634 = vpop.f32.mrb[0].mxu0
      %v5635 = vadd.f32 0.0, %v5634
      %v5636 = vpop.f32.mrb[0].mxu0
      %5637 = vmatprep.mubr.bf16.mxu0 %v5518
      %5638 = vmatmul.mubr.bf16.gmra.mrb[0].mxu0 %v5517
      %v5639 = vpop.f32.mrb[0].mxu0
      %v5640 = vadd.f32 0.0, %v5639
      %v5641 = vpop.f32.mrb[0].mxu0
      %v5642 = vpop.f32.mrb[0].mxu0
      %v5643 = vadd.f32 0.0, %v5642
      %v5644 = vpop.f32.mrb[0].mxu0
      %5645 = vmatprep.mubr.bf16.mxu0 %v5520
      %5646 = vmatmul.mubr.bf16.gmra.mrb[0].mxu0 %v5519
      %v5647 = vpop.f32.mrb[0].mxu0
      %v5648 = vadd.f32 0.0, %v5647
      %v5649 = vpop.f32.mrb[0].mxu0
      %v5650 = vpop.f32.mrb[0].mxu0
      %v5651 = vadd.f32 0.0, %v5650
      %v5652 = vpop.f32.mrb[0].mxu0
      %5653 = vmatprep.mubr.bf16.mxu0 %v5522
      %5654 = vmatmul.mubr.bf16.gmra.mrb[0].mxu0 %v5521
      %v5655 = vpop.f32.mrb[0].mxu0
      %v5656 = vadd.f32 0.0, %v5655
      %v5657 = vpop.f32.mrb[0].mxu0
      %v5658 = vpop.f32.mrb[0].mxu0
      %v5659 = vadd.f32 0.0, %v5658
      %v5660 = vpop.f32.mrb[0].mxu0
      %5661 = vmatprep.mubr.bf16.mxu0 %v5524
      %5662 = vmatmul.mubr.bf16.gmra.mrb[0].mxu0 %v5523
      %v5663 = vpop.f32.mrb[0].mxu0
      %v5664 = vadd.f32 0.0, %v5663
      %v5665 = vpop.f32.mrb[0].mxu0
      %v5666 = vpop.f32.mrb[0].mxu0
      %v5667 = vadd.f32 0.0, %v5666
      %v5668 = vpop.f32.mrb[0].mxu0
      %5669 = vmatprep.mubr.bf16.mxu0 %v5526
      %5670 = vmatmul.mubr.bf16.gmra.mrb[0].mxu0 %v5525
      %v5671 = vpop.f32.mrb[0].mxu0
      %v5672 = vadd.f32 0.0, %v5671
      %v5673 = vpop.f32.mrb[0].mxu0
      %v5674 = vpop.f32.mrb[0].mxu0
      %v5675 = vadd.f32 0.0, %v5674
      %v5676 = vpop.f32.mrb[0].mxu0
      %5677 = vmatprep.mubr.bf16.mxu0 %v5528
      %5678 = vmatmul.mubr.bf16.gmra.mrb[0].mxu0 %v5527
      %v5679 = vpop.f32.mrb[0].mxu0
      %v5680 = vadd.f32 0.0, %v5679
      %v5681 = vpop.f32.mrb[0].mxu0
      %v5682 = vpop.f32.mrb[0].mxu0
      %v5683 = vadd.f32 0.0, %v5682
      %v5684 = vpop.f32.mrb[0].mxu0
      %5685 = vmatprep.mubr.bf16.mxu0 %v5530
      %5686 = vmatmul.mubr.bf16.gmra.mrb[0].mxu0 %v5529
      %v5687 = vpop.f32.mrb[0].mxu0
      %v5688 = vadd.f32 0.0, %v5687
      %v5689 = vpop.f32.mrb[0].mxu0
      %v5690 = vpop.f32.mrb[0].mxu0
      %v5691 = vadd.f32 0.0, %v5690
      %v5692 = vpop.f32.mrb[0].mxu0
      %5693 = vmatprep.mubr.bf16.mxu0 %v5532
      %5694 = vmatmul.mubr.bf16.gmra.mrb[0].mxu0 %v5531
      %v5695 = vpop.f32.mrb[0].mxu0
      %v5696 = vadd.f32 0.0, %v5695
      %v5697 = vpop.f32.mrb[0].mxu0
      %v5698 = vpop.f32.mrb[0].mxu0
      %v5699 = vadd.f32 0.0, %v5698
      %v5700 = vpop.f32.mrb[0].mxu0
      %5701 = vmatprep.mubr.bf16.mxu0 %v5534
      %5702 = vmatmul.mubr.bf16.gmra.mrb[0].mxu0 %v5533
      %v5703 = vpop.f32.mrb[0].mxu0
      %v5704 = vadd.f32 0.0, %v5703
      %v5705 = vpop.f32.mrb[0].mxu0
      %v5706 = vpop.f32.mrb[0].mxu0
      %v5707 = vadd.f32 0.0, %v5706
      %v5708 = vpop.f32.mrb[0].mxu0
      %5709 = vmatprep.mubr.bf16.mxu0 %v5536
      %5710 = vmatmul.mubr.bf16.gmra.mrb[0].mxu0 %v5535
      %v5711 = vpop.f32.mrb[0].mxu0
      %v5712 = vadd.f32 0.0, %v5711
      %v5713 = vpop.f32.mrb[0].mxu0
      %v5714 = vpop.f32.mrb[0].mxu0
      %v5715 = vadd.f32 0.0, %v5714
      %v5716 = vpop.f32.mrb[0].mxu0
      %5717 = vmatprep.mubr.bf16.mxu0 %v5538
      %5718 = vmatmul.mubr.bf16.gmra.mrb[0].mxu0 %v5537
      %v5719 = vpop.f32.mrb[0].mxu0
      %v5720 = vadd.f32 0.0, %v5719
      %v5721 = vpop.f32.mrb[0].mxu0
      %v5722 = vpop.f32.mrb[0].mxu0
      %v5723 = vadd.f32 0.0, %v5722
      %v5724 = vpop.f32.mrb[0].mxu0
      %5725 = vmatprep.mubr.bf16.mxu0 %v5540
      %5726 = vmatmul.mubr.bf16.gmra.mrb[0].mxu0 %v5539
      %v5727 = vpop.f32.mrb[0].mxu0
      %v5728 = vadd.f32 0.0, %v5727
      %v5729 = vpop.f32.mrb[0].mxu0
      %v5730 = vpop.f32.mrb[0].mxu0
      %v5731 = vadd.f32 0.0, %v5730
      %v5732 = vpop.f32.mrb[0].mxu0
      %5733 = vdwg.mxu0
      %v5734 = vpack.c.bf16 %v5611, %v5608
      %v5735 = vpack.c.bf16 %v5619, %v5616
      %v5736 = vpack.c.bf16 %v5627, %v5624
      %v5737 = vpack.c.bf16 %v5635, %v5632
      %v5738 = vpack.c.bf16 %v5643, %v5640
      %v5739 = vpack.c.bf16 %v5651, %v5648
      %v5740 = vpack.c.bf16 %v5659, %v5656
      %v5741 = vpack.c.bf16 %v5667, %v5664
      %v5742 = vpack.c.bf16 %v5675, %v5672
      %v5743 = vpack.c.bf16 %v5683, %v5680
      %v5744 = vpack.c.bf16 %v5691, %v5688
      %v5745 = vpack.c.bf16 %v5699, %v5696
      %v5746 = vpack.c.bf16 %v5707, %v5704
      %v5747 = vpack.c.bf16 %v5715, %v5712
      %v5748 = vpack.c.bf16 %v5723, %v5720
      %v5749 = vpack.c.bf16 %v5731, %v5728
      %s5750 = scalar_lea.vmem %s3, 32
      %v5751 = vld [vmem:[%s5750] sm:$0xf]
      %v5753 = vsel %vm1258, %v5734, 0
      %v5756 = vsel %vm1258, %v5735, 0
      %v5759 = vsel %vm1258, %v5736, 0
      %v5762 = vsel %vm1258, %v5737, 0
      %v5765 = vsel %vm1258, %v5738, 0
      %v5768 = vsel %vm1258, %v5739, 0
      %v5771 = vsel %vm1258, %v5740, 0
      %v5774 = vsel %vm1258, %v5741, 0
      %v5777 = vsel %vm1258, %v5742, 0
      %v5780 = vsel %vm1258, %v5743, 0
      %v5783 = vsel %vm1258, %v5744, 0
      %v5786 = vsel %vm1258, %v5745, 0
      %v5789 = vsel %vm1258, %v5746, 0
      %v5792 = vsel %vm1258, %v5747, 0
      %v5795 = vsel %vm1258, %v5748, 0
      %v5798 = vsel %vm1258, %v5749, 0
      %v5801 = vsel %vm1307, %v5751, 0
      %5803 = vmatprep.subr.bf16.mxu0 0
      %5804 = vmatpush1.bf16.msra.mxu0 %v5801
      %5805 = vmatprep.subr.bf16.mxu0 0
      %5806 = vmatpush1.bf16.msra.mxu0 0
      %5807 = vmatprep.subr.bf16.mxu0 0
      %5808 = vmatpush1.bf16.msra.mxu0 0
      %5809 = vmatprep.subr.bf16.mxu0 0
      %5810 = vmatpush1.bf16.msra.mxu0 0
      %5811 = vmatprep.subr.bf16.mxu0 0
      %5812 = vmatpush1.bf16.msra.mxu0 0
      %5813 = vmatprep.subr.bf16.mxu0 0
      %5814 = vmatpush1.bf16.msra.mxu0 0
      %5815 = vmatprep.subr.bf16.mxu0 0
      %5816 = vmatpush1.bf16.msra.mxu0 0
      %5817 = vmatprep.subr.bf16.mxu0 0
      %5818 = vmatpush1.bf16.msra.mxu0 0
      %5819 = vmatprep.subr.bf16.mxu0 0
      %5820 = vmatpush1.bf16.msra.mxu0 0
      %5821 = vmatprep.subr.bf16.mxu0 0
      %5822 = vmatpush1.bf16.msra.mxu0 0
      %5823 = vmatprep.subr.bf16.mxu0 0
      %5824 = vmatpush1.bf16.msra.mxu0 0
      %5825 = vmatprep.subr.bf16.mxu0 0
      %5826 = vmatpush1.bf16.msra.mxu0 0
      %5827 = vmatprep.subr.bf16.mxu0 0
      %5828 = vmatpush1.bf16.msra.mxu0 0
      %5829 = vmatprep.subr.bf16.mxu0 0
      %5830 = vmatpush1.bf16.msra.mxu0 0
      %5831 = vmatprep.subr.bf16.mxu0 0
      %5832 = vmatpush1.bf16.msra.mxu0 0
      %5833 = vmatprep.subr.bf16.mxu0 0
      %5834 = vmatpush1.bf16.msra.mxu0 0
      %5835 = vmatprep.mubr.bf16.mxu0 0
      %5836 = vmatmul.mubr.bf16.gmra.mrb[0].mxu0 %v5753
      %v5837 = vpop.f32.mrb[0].mxu0
      %v5838 = vadd.f32 0.0, %v5837
      %v5839 = vpop.f32.mrb[0].mxu0
      %v5840 = vpop.f32.mrb[0].mxu0
      %v5841 = vadd.f32 0.0, %v5840
      %v5842 = vpop.f32.mrb[0].mxu0
      %5843 = vmatprep.mubr.bf16.mxu0 0
      %5844 = vmatmul.mubr.bf16.gmra.mrb[0].mxu0 %v5756
      %v5845 = vpop.f32.mrb[0].mxu0
      %v5846 = vadd.f32 0.0, %v5845
      %v5847 = vpop.f32.mrb[0].mxu0
      %v5848 = vpop.f32.mrb[0].mxu0
      %v5849 = vadd.f32 0.0, %v5848
      %v5850 = vpop.f32.mrb[0].mxu0
      %5851 = vmatprep.mubr.bf16.mxu0 0
      %5852 = vmatmul.mubr.bf16.gmra.mrb[0].mxu0 %v5759
      %v5853 = vpop.f32.mrb[0].mxu0
      %v5854 = vadd.f32 0.0, %v5853
      %v5855 = vpop.f32.mrb[0].mxu0
      %v5856 = vpop.f32.mrb[0].mxu0
      %v5857 = vadd.f32 0.0, %v5856
      %v5858 = vpop.f32.mrb[0].mxu0
      %5859 = vmatprep.mubr.bf16.mxu0 0
      %5860 = vmatmul.mubr.bf16.gmra.mrb[0].mxu0 %v5762
      %v5861 = vpop.f32.mrb[0].mxu0
      %v5862 = vadd.f32 0.0, %v5861
      %v5863 = vpop.f32.mrb[0].mxu0
      %v5864 = vpop.f32.mrb[0].mxu0
      %v5865 = vadd.f32 0.0, %v5864
      %v5866 = vpop.f32.mrb[0].mxu0
      %5867 = vmatprep.mubr.bf16.mxu0 0
      %5868 = vmatmul.mubr.bf16.gmra.mrb[0].mxu0 %v5765
      %v5869 = vpop.f32.mrb[0].mxu0
      %v5870 = vadd.f32 0.0, %v5869
      %v5871 = vpop.f32.mrb[0].mxu0
      %v5872 = vpop.f32.mrb[0].mxu0
      %v5873 = vadd.f32 0.0, %v5872
      %v5874 = vpop.f32.mrb[0].mxu0
      %5875 = vmatprep.mubr.bf16.mxu0 0
      %5876 = vmatmul.mubr.bf16.gmra.mrb[0].mxu0 %v5768
      %v5877 = vpop.f32.mrb[0].mxu0
      %v5878 = vadd.f32 0.0, %v5877
      %v5879 = vpop.f32.mrb[0].mxu0
      %v5880 = vpop.f32.mrb[0].mxu0
      %v5881 = vadd.f32 0.0, %v5880
      %v5882 = vpop.f32.mrb[0].mxu0
      %5883 = vmatprep.mubr.bf16.mxu0 0
      %5884 = vmatmul.mubr.bf16.gmra.mrb[0].mxu0 %v5771
      %v5885 = vpop.f32.mrb[0].mxu0
      %v5886 = vadd.f32 0.0, %v5885
      %v5887 = vpop.f32.mrb[0].mxu0
      %v5888 = vpop.f32.mrb[0].mxu0
      %v5889 = vadd.f32 0.0, %v5888
      %v5890 = vpop.f32.mrb[0].mxu0
      %5891 = vmatprep.mubr.bf16.mxu0 0
      %5892 = vmatmul.mubr.bf16.gmra.mrb[0].mxu0 %v5774
      %v5893 = vpop.f32.mrb[0].mxu0
      %v5894 = vadd.f32 0.0, %v5893
      %v5895 = vpop.f32.mrb[0].mxu0
      %v5896 = vpop.f32.mrb[0].mxu0
      %v5897 = vadd.f32 0.0, %v5896
      %v5898 = vpop.f32.mrb[0].mxu0
      %5899 = vmatprep.mubr.bf16.mxu0 0
      %5900 = vmatmul.mubr.bf16.gmra.mrb[0].mxu0 %v5777
      %v5901 = vpop.f32.mrb[0].mxu0
      %v5902 = vadd.f32 0.0, %v5901
      %v5903 = vpop.f32.mrb[0].mxu0
      %v5904 = vpop.f32.mrb[0].mxu0
      %v5905 = vadd.f32 0.0, %v5904
      %v5906 = vpop.f32.mrb[0].mxu0
      %5907 = vmatprep.mubr.bf16.mxu0 0
      %5908 = vmatmul.mubr.bf16.gmra.mrb[0].mxu0 %v5780
      %v5909 = vpop.f32.mrb[0].mxu0
      %v5910 = vadd.f32 0.0, %v5909
      %v5911 = vpop.f32.mrb[0].mxu0
      %v5912 = vpop.f32.mrb[0].mxu0
      %v5913 = vadd.f32 0.0, %v5912
      %v5914 = vpop.f32.mrb[0].mxu0
      %5915 = vmatprep.mubr.bf16.mxu0 0
      %5916 = vmatmul.mubr.bf16.gmra.mrb[0].mxu0 %v5783
      %v5917 = vpop.f32.mrb[0].mxu0
      %v5918 = vadd.f32 0.0, %v5917
      %v5919 = vpop.f32.mrb[0].mxu0
      %v5920 = vpop.f32.mrb[0].mxu0
      %v5921 = vadd.f32 0.0, %v5920
      %v5922 = vpop.f32.mrb[0].mxu0
      %5923 = vmatprep.mubr.bf16.mxu0 0
      %5924 = vmatmul.mubr.bf16.gmra.mrb[0].mxu0 %v5786
      %v5925 = vpop.f32.mrb[0].mxu0
      %v5926 = vadd.f32 0.0, %v5925
      %v5927 = vpop.f32.mrb[0].mxu0
      %v5928 = vpop.f32.mrb[0].mxu0
      %v5929 = vadd.f32 0.0, %v5928
      %v5930 = vpop.f32.mrb[0].mxu0
      %5931 = vmatprep.mubr.bf16.mxu0 0
      %5932 = vmatmul.mubr.bf16.gmra.mrb[0].mxu0 %v5789
      %v5933 = vpop.f32.mrb[0].mxu0
      %v5934 = vadd.f32 0.0, %v5933
      %v5935 = vpop.f32.mrb[0].mxu0
      %v5936 = vpop.f32.mrb[0].mxu0
      %v5937 = vadd.f32 0.0, %v5936
      %v5938 = vpop.f32.mrb[0].mxu0
      %5939 = vmatprep.mubr.bf16.mxu0 0
      %5940 = vmatmul.mubr.bf16.gmra.mrb[0].mxu0 %v5792
      %v5941 = vpop.f32.mrb[0].mxu0
      %v5942 = vadd.f32 0.0, %v5941
      %v5943 = vpop.f32.mrb[0].mxu0
      %v5944 = vpop.f32.mrb[0].mxu0
      %v5945 = vadd.f32 0.0, %v5944
      %v5946 = vpop.f32.mrb[0].mxu0
      %5947 = vmatprep.mubr.bf16.mxu0 0
      %5948 = vmatmul.mubr.bf16.gmra.mrb[0].mxu0 %v5795
      %v5949 = vpop.f32.mrb[0].mxu0
      %v5950 = vadd.f32 0.0, %v5949
      %v5951 = vpop.f32.mrb[0].mxu0
      %v5952 = vpop.f32.mrb[0].mxu0
      %v5953 = vadd.f32 0.0, %v5952
      %v5954 = vpop.f32.mrb[0].mxu0
      %5955 = vmatprep.mubr.bf16.mxu0 0
      %5956 = vmatmul.mubr.bf16.gmra.mrb[0].mxu0 %v5798
      %v5957 = vpop.f32.mrb[0].mxu0
      %v5958 = vadd.f32 0.0, %v5957
      %v5959 = vpop.f32.mrb[0].mxu0
      %v5960 = vpop.f32.mrb[0].mxu0
      %v5961 = vadd.f32 0.0, %v5960
      %v5962 = vpop.f32.mrb[0].mxu0
      %5963 = vdwg.mxu0
      %v5964 = vadd.f32 %v5348, %v5838
      %v5965 = vadd.f32 %v5349, %v5841
      %v5966 = vadd.f32 %v5350, %v5846
      %v5967 = vadd.f32 %v5351, %v5849
      %v5968 = vadd.f32 %v5352, %v5854
      %v5969 = vadd.f32 %v5353, %v5857
      %v5970 = vadd.f32 %v5354, %v5862
      %v5971 = vadd.f32 %v5355, %v5865
      %v5972 = vadd.f32 %v5356, %v5870
      %v5973 = vadd.f32 %v5357, %v5873
      %v5974 = vadd.f32 %v5358, %v5878
      %v5975 = vadd.f32 %v5359, %v5881
      %v5976 = vadd.f32 %v5360, %v5886
      %v5977 = vadd.f32 %v5361, %v5889
      %v5978 = vadd.f32 %v5362, %v5894
      %v5979 = vadd.f32 %v5363, %v5897
      %v5980 = vadd.f32 %v5364, %v5902
      %v5981 = vadd.f32 %v5365, %v5905
      %v5982 = vadd.f32 %v5366, %v5910
      %v5983 = vadd.f32 %v5367, %v5913
      %v5984 = vadd.f32 %v5368, %v5918
      %v5985 = vadd.f32 %v5369, %v5921
      %v5986 = vadd.f32 %v5370, %v5926
      %v5987 = vadd.f32 %v5371, %v5929
      %v5988 = vadd.f32 %v5372, %v5934
      %v5989 = vadd.f32 %v5373, %v5937
      %v5990 = vadd.f32 %v5374, %v5942
      %v5991 = vadd.f32 %v5375, %v5945
      %v5992 = vadd.f32 %v5376, %v5950
      %v5993 = vadd.f32 %v5377, %v5953
      %v5994 = vadd.f32 %v5378, %v5958
      %v5995 = vadd.f32 %v5379, %v5961
      %v5996 = vld [vmem:[%s4] sm:$0x1]
      %v5998 = vlaneseq
      %v5999 = vshrl.u32 %v5998, 7
      %v6000 = vsub.s32 0, %v5999
      %v6001 = vrot.slane %v5996, %v6000
      %v6003 = vadd.f32 %v5964, %v6001
      %v6004 = vadd.f32 %v5965, %v6001
      %v6005 = vadd.f32 %v5966, %v6001
      %v6006 = vadd.f32 %v5967, %v6001
      %v6007 = vadd.f32 %v5968, %v6001
      %v6008 = vadd.f32 %v5969, %v6001
      %v6009 = vadd.f32 %v5970, %v6001
      %v6010 = vadd.f32 %v5971, %v6001
      %v6011 = vadd.f32 %v5972, %v6001
      %v6012 = vadd.f32 %v5973, %v6001
      %v6013 = vadd.f32 %v5974, %v6001
      %v6014 = vadd.f32 %v5975, %v6001
      %v6015 = vadd.f32 %v5976, %v6001
      %v6016 = vadd.f32 %v5977, %v6001
      %v6017 = vadd.f32 %v5978, %v6001
      %v6018 = vadd.f32 %v5979, %v6001
      %v6019 = vadd.f32 %v5980, %v6001
      %v6020 = vadd.f32 %v5981, %v6001
      %v6021 = vadd.f32 %v5982, %v6001
      %v6022 = vadd.f32 %v5983, %v6001
      %v6023 = vadd.f32 %v5984, %v6001
      %v6024 = vadd.f32 %v5985, %v6001
      %v6025 = vadd.f32 %v5986, %v6001
      %v6026 = vadd.f32 %v5987, %v6001
      %v6027 = vadd.f32 %v5988, %v6001
      %v6028 = vadd.f32 %v5989, %v6001
      %v6029 = vadd.f32 %v5990, %v6001
      %v6030 = vadd.f32 %v5991, %v6001
      %v6031 = vadd.f32 %v5992, %v6001
      %v6032 = vadd.f32 %v5993, %v6001
      %v6033 = vadd.f32 %v5994, %v6001
      %v6034 = vadd.f32 %v5995, %v6001
      %v6035 = vmax.f32 %v6003, 0.0
      %v6036 = vmax.f32 %v6004, 0.0
      %v6037 = vmax.f32 %v6005, 0.0
      %v6038 = vmax.f32 %v6006, 0.0
      %v6039 = vmax.f32 %v6007, 0.0
      %v6040 = vmax.f32 %v6008, 0.0
      %v6041 = vmax.f32 %v6009, 0.0
      %v6042 = vmax.f32 %v6010, 0.0
      %v6043 = vmax.f32 %v6011, 0.0
      %v6044 = vmax.f32 %v6012, 0.0
      %v6045 = vmax.f32 %v6013, 0.0
      %v6046 = vmax.f32 %v6014, 0.0
      %v6047 = vmax.f32 %v6015, 0.0
      %v6048 = vmax.f32 %v6016, 0.0
      %v6049 = vmax.f32 %v6017, 0.0
      %v6050 = vmax.f32 %v6018, 0.0
      %v6051 = vmax.f32 %v6019, 0.0
      %v6052 = vmax.f32 %v6020, 0.0
      %v6053 = vmax.f32 %v6021, 0.0
      %v6054 = vmax.f32 %v6022, 0.0
      %v6055 = vmax.f32 %v6023, 0.0
      %v6056 = vmax.f32 %v6024, 0.0
      %v6057 = vmax.f32 %v6025, 0.0
      %v6058 = vmax.f32 %v6026, 0.0
      %v6059 = vmax.f32 %v6027, 0.0
      %v6060 = vmax.f32 %v6028, 0.0
      %v6061 = vmax.f32 %v6029, 0.0
      %v6062 = vmax.f32 %v6030, 0.0
      %v6063 = vmax.f32 %v6031, 0.0
      %v6064 = vmax.f32 %v6032, 0.0
      %v6065 = vmax.f32 %v6033, 0.0
      %v6066 = vmax.f32 %v6034, 0.0
      %v6067 = vpack.c.bf16 %v6036, %v6035
      %v6068 = vpack.c.bf16 %v6038, %v6037
      %v6069 = vpack.c.bf16 %v6040, %v6039
      %v6070 = vpack.c.bf16 %v6042, %v6041
      %v6071 = vpack.c.bf16 %v6044, %v6043
      %v6072 = vpack.c.bf16 %v6046, %v6045
      %v6073 = vpack.c.bf16 %v6048, %v6047
      %v6074 = vpack.c.bf16 %v6050, %v6049
      %v6075 = vpack.c.bf16 %v6052, %v6051
      %v6076 = vpack.c.bf16 %v6054, %v6053
      %v6077 = vpack.c.bf16 %v6056, %v6055
      %v6078 = vpack.c.bf16 %v6058, %v6057
      %v6079 = vpack.c.bf16 %v6060, %v6059
      %v6080 = vpack.c.bf16 %v6062, %v6061
      %v6081 = vpack.c.bf16 %v6064, %v6063
      %v6082 = vpack.c.bf16 %v6066, %v6065
      %v6083 = vld [vmem:[%s2] sm:$0xff]
      %v6084 = vld [vmem:[%s2 + $0x8] sm:$0xff]
      %v6085 = vld [vmem:[%s2 + $0x10] sm:$0xff]
      %v6086 = vld [vmem:[%s2 + $0x18] sm:$0xff]
      %v6087 = vld [vmem:[%s2 + $0x20] sm:$0xff]
      %v6088 = vld [vmem:[%s2 + $0x28] sm:$0xff]
      %v6089 = vld [vmem:[%s2 + $0x30] sm:$0xff]
      %v6090 = vld [vmem:[%s2 + $0x38] sm:$0xff]
      %v6099 = vunpack.c.l.b16 %v6083
      %v6100 = vunpack.c.h.b16 %v6083
      %v6101 = vunpack.c.l.b16 %v6084
      %v6102 = vunpack.c.h.b16 %v6084
      %v6103 = vunpack.c.l.b16 %v6085
      %v6104 = vunpack.c.h.b16 %v6085
      %v6105 = vunpack.c.l.b16 %v6086
      %v6106 = vunpack.c.h.b16 %v6086
      %v6107 = vunpack.c.l.b16 %v6087
      %v6108 = vunpack.c.h.b16 %v6087
      %v6109 = vunpack.c.l.b16 %v6088
      %v6110 = vunpack.c.h.b16 %v6088
      %v6111 = vunpack.c.l.b16 %v6089
      %v6112 = vunpack.c.h.b16 %v6089
      %v6113 = vunpack.c.l.b16 %v6090
      %v6114 = vunpack.c.h.b16 %v6090
      %v6115 = vpack.c.b16 %v6101, %v6099
      %v6116 = vpack.c.b16 %v6102, %v6100
      %v6117 = vpack.c.b16 %v6105, %v6103
      %v6118 = vpack.c.b16 %v6106, %v6104
      %v6119 = vpack.c.b16 %v6109, %v6107
      %v6120 = vpack.c.b16 %v6110, %v6108
      %v6121 = vpack.c.b16 %v6113, %v6111
      %v6122 = vpack.c.b16 %v6114, %v6112
      %6131 = vmatprep.subr.bf16.mxu0 0
      %6132 = vmatpush1.bf16.msra.mxu0 %v6067
      %6133 = vmatprep.subr.bf16.mxu0 0
      %6134 = vmatpush1.bf16.msra.mxu0 %v6068
      %6135 = vmatprep.subr.bf16.mxu0 0
      %6136 = vmatpush1.bf16.msra.mxu0 %v6069
      %6137 = vmatprep.subr.bf16.mxu0 0
      %6138 = vmatpush1.bf16.msra.mxu0 %v6070
      %6139 = vmatprep.subr.bf16.mxu0 0
      %6140 = vmatpush1.bf16.msra.mxu0 %v6071
      %6141 = vmatprep.subr.bf16.mxu0 0
      %6142 = vmatpush1.bf16.msra.mxu0 %v6072
      %6143 = vmatprep.subr.bf16.mxu0 0
      %6144 = vmatpush1.bf16.msra.mxu0 %v6073
      %6145 = vmatprep.subr.bf16.mxu0 0
      %6146 = vmatpush1.bf16.msra.mxu0 %v6074
      %6147 = vmatprep.subr.bf16.mxu0 0
      %6148 = vmatpush1.bf16.msra.mxu0 %v6075
      %6149 = vmatprep.subr.bf16.mxu0 0
      %6150 = vmatpush1.bf16.msra.mxu0 %v6076
      %6151 = vmatprep.subr.bf16.mxu0 0
      %6152 = vmatpush1.bf16.msra.mxu0 %v6077
      %6153 = vmatprep.subr.bf16.mxu0 0
      %6154 = vmatpush1.bf16.msra.mxu0 %v6078
      %6155 = vmatprep.subr.bf16.mxu0 0
      %6156 = vmatpush1.bf16.msra.mxu0 %v6079
      %6157 = vmatprep.subr.bf16.mxu0 0
      %6158 = vmatpush1.bf16.msra.mxu0 %v6080
      %6159 = vmatprep.subr.bf16.mxu0 0
      %6160 = vmatpush1.bf16.msra.mxu0 %v6081
      %6161 = vmatprep.subr.bf16.mxu0 0
      %6162 = vmatpush1.bf16.msra.mxu0 %v6082
      %6163 = vmatprep.mubr.bf16.mxu0 %v6116
      %6164 = vmatmul.mubr.bf16.gmra.mrb[0].mxu0 %v6115
      %v6165 = vpop.f32.mrb[0].mxu0
      %v6166 = vadd.f32 0.0, %v6165
      %v6167 = vpop.f32.mrb[0].mxu0
      %v6168 = vpop.f32.mrb[0].mxu0
      %v6169 = vadd.f32 0.0, %v6168
      %v6170 = vpop.f32.mrb[0].mxu0
      %6171 = vmatprep.mubr.bf16.mxu0 %v6118
      %6172 = vmatmul.mubr.bf16.gmra.mrb[0].mxu0 %v6117
      %v6173 = vpop.f32.mrb[0].mxu0
      %v6174 = vadd.f32 0.0, %v6173
      %v6175 = vpop.f32.mrb[0].mxu0
      %v6176 = vpop.f32.mrb[0].mxu0
      %v6177 = vadd.f32 0.0, %v6176
      %v6178 = vpop.f32.mrb[0].mxu0
      %6179 = vmatprep.mubr.bf16.mxu0 %v6120
      %6180 = vmatmul.mubr.bf16.gmra.mrb[0].mxu0 %v6119
      %v6181 = vpop.f32.mrb[0].mxu0
      %v6182 = vadd.f32 0.0, %v6181
      %v6183 = vpop.f32.mrb[0].mxu0
      %v6184 = vpop.f32.mrb[0].mxu0
      %v6185 = vadd.f32 0.0, %v6184
      %v6186 = vpop.f32.mrb[0].mxu0
      %6187 = vmatprep.mubr.bf16.mxu0 %v6122
      %6188 = vmatmul.mubr.bf16.gmra.mrb[0].mxu0 %v6121
      %v6189 = vpop.f32.mrb[0].mxu0
      %v6190 = vadd.f32 0.0, %v6189
      %v6191 = vpop.f32.mrb[0].mxu0
      %v6192 = vpop.f32.mrb[0].mxu0
      %v6193 = vadd.f32 0.0, %v6192
      %v6194 = vpop.f32.mrb[0].mxu0
      %6195 = vdwg.mxu0
      %v6196 = vpack.c.bf16 %v6169, %v6166
      %v6197 = vpack.c.bf16 %v6177, %v6174
      %v6198 = vpack.c.bf16 %v6185, %v6182
      %v6199 = vpack.c.bf16 %v6193, %v6190
      %v6200 = vld [vmem:[%s5] sm:$0xf]
      %s6201 = scalar_lea.vmem %s2, 64
      %v6202 = vld [vmem:[%s6201] sm:$0xff]
      %v6203 = vld [vmem:[%s6201 + $0x8] sm:$0xff]
      %v6204 = vld [vmem:[%s6201 + $0x10] sm:$0xff]
      %v6205 = vld [vmem:[%s6201 + $0x18] sm:$0xff]
      %v6206 = vld [vmem:[%s6201 + $0x20] sm:$0xff]
      %v6207 = vld [vmem:[%s6201 + $0x28] sm:$0xff]
      %v6208 = vld [vmem:[%s6201 + $0x30] sm:$0xff]
      %v6209 = vld [vmem:[%s6201 + $0x38] sm:$0xff]
      %v6218 = vunpack.c.l.b16 %v6202
      %v6219 = vunpack.c.h.b16 %v6202
      %v6220 = vunpack.c.l.b16 %v6203
      %v6221 = vunpack.c.h.b16 %v6203
      %v6222 = vunpack.c.l.b16 %v6204
      %v6223 = vunpack.c.h.b16 %v6204
      %v6224 = vunpack.c.l.b16 %v6205
      %v6225 = vunpack.c.h.b16 %v6205
      %v6226 = vunpack.c.l.b16 %v6206
      %v6227 = vunpack.c.h.b16 %v6206
      %v6228 = vunpack.c.l.b16 %v6207
      %v6229 = vunpack.c.h.b16 %v6207
      %v6230 = vunpack.c.l.b16 %v6208
      %v6231 = vunpack.c.h.b16 %v6208
      %v6232 = vunpack.c.l.b16 %v6209
      %v6233 = vunpack.c.h.b16 %v6209
      %v6234 = vpack.c.b16 %v6220, %v6218
      %v6235 = vpack.c.b16 %v6221, %v6219
      %v6236 = vpack.c.b16 %v6224, %v6222
      %v6237 = vpack.c.b16 %v6225, %v6223
      %v6238 = vpack.c.b16 %v6228, %v6226
      %v6239 = vpack.c.b16 %v6229, %v6227
      %v6240 = vpack.c.b16 %v6232, %v6230
      %v6241 = vpack.c.b16 %v6233, %v6231
      %6250 = vmatprep.subr.bf16.mxu0 0
      %6251 = vmatpush1.bf16.msra.mxu0 %v6067
      %6252 = vmatprep.subr.bf16.mxu0 0
      %6253 = vmatpush1.bf16.msra.mxu0 %v6068
      %6254 = vmatprep.subr.bf16.mxu0 0
      %6255 = vmatpush1.bf16.msra.mxu0 %v6069
      %6256 = vmatprep.subr.bf16.mxu0 0
      %6257 = vmatpush1.bf16.msra.mxu0 %v6070
      %6258 = vmatprep.subr.bf16.mxu0 0
      %6259 = vmatpush1.bf16.msra.mxu0 %v6071
      %6260 = vmatprep.subr.bf16.mxu0 0
      %6261 = vmatpush1.bf16.msra.mxu0 %v6072
      %6262 = vmatprep.subr.bf16.mxu0 0
      %6263 = vmatpush1.bf16.msra.mxu0 %v6073
      %6264 = vmatprep.subr.bf16.mxu0 0
      %6265 = vmatpush1.bf16.msra.mxu0 %v6074
      %6266 = vmatprep.subr.bf16.mxu0 0
      %6267 = vmatpush1.bf16.msra.mxu0 %v6075
      %6268 = vmatprep.subr.bf16.mxu0 0
      %6269 = vmatpush1.bf16.msra.mxu0 %v6076
      %6270 = vmatprep.subr.bf16.mxu0 0
      %6271 = vmatpush1.bf16.msra.mxu0 %v6077
      %6272 = vmatprep.subr.bf16.mxu0 0
      %6273 = vmatpush1.bf16.msra.mxu0 %v6078
      %6274 = vmatprep.subr.bf16.mxu0 0
      %6275 = vmatpush1.bf16.msra.mxu0 %v6079
      %6276 = vmatprep.subr.bf16.mxu0 0
      %6277 = vmatpush1.bf16.msra.mxu0 %v6080
      %6278 = vmatprep.subr.bf16.mxu0 0
      %6279 = vmatpush1.bf16.msra.mxu0 %v6081
      %6280 = vmatprep.subr.bf16.mxu0 0
      %6281 = vmatpush1.bf16.msra.mxu0 %v6082
      %6282 = vmatprep.mubr.bf16.mxu0 %v6235
      %6283 = vmatmul.mubr.bf16.gmra.mrb[0].mxu0 %v6234
      %v6284 = vpop.f32.mrb[0].mxu0
      %v6285 = vadd.f32 0.0, %v6284
      %v6286 = vpop.f32.mrb[0].mxu0
      %v6287 = vpop.f32.mrb[0].mxu0
      %v6288 = vadd.f32 0.0, %v6287
      %v6289 = vpop.f32.mrb[0].mxu0
      %6290 = vmatprep.mubr.bf16.mxu0 %v6237
      %6291 = vmatmul.mubr.bf16.gmra.mrb[0].mxu0 %v6236
      %v6292 = vpop.f32.mrb[0].mxu0
      %v6293 = vadd.f32 0.0, %v6292
      %v6294 = vpop.f32.mrb[0].mxu0
      %v6295 = vpop.f32.mrb[0].mxu0
      %v6296 = vadd.f32 0.0, %v6295
      %v6297 = vpop.f32.mrb[0].mxu0
      %6298 = vmatprep.mubr.bf16.mxu0 %v6239
      %6299 = vmatmul.mubr.bf16.gmra.mrb[0].mxu0 %v6238
      %v6300 = vpop.f32.mrb[0].mxu0
      %v6301 = vadd.f32 0.0, %v6300
      %v6302 = vpop.f32.mrb[0].mxu0
      %v6303 = vpop.f32.mrb[0].mxu0
      %v6304 = vadd.f32 0.0, %v6303
      %v6305 = vpop.f32.mrb[0].mxu0
      %6306 = vmatprep.mubr.bf16.mxu0 %v6241
      %6307 = vmatmul.mubr.bf16.gmra.mrb[0].mxu0 %v6240
      %v6308 = vpop.f32.mrb[0].mxu0
      %v6309 = vadd.f32 0.0, %v6308
      %v6310 = vpop.f32.mrb[0].mxu0
      %v6311 = vpop.f32.mrb[0].mxu0
      %v6312 = vadd.f32 0.0, %v6311
      %v6313 = vpop.f32.mrb[0].mxu0
      %6314 = vdwg.mxu0
      %v6315 = vpack.c.bf16 %v6288, %v6285
      %v6316 = vpack.c.bf16 %v6296, %v6293
      %v6317 = vpack.c.bf16 %v6304, %v6301
      %v6318 = vpack.c.bf16 %v6312, %v6309
      %s6319 = scalar_lea.vmem %s5, 4
      %v6320 = vld [vmem:[%s6319] sm:$0xf]
      %v6322 = vsel %vm1258, %v6315, 0
      %v6325 = vsel %vm1258, %v6316, 0
      %v6328 = vsel %vm1258, %v6317, 0
      %v6331 = vsel %vm1258, %v6318, 0
      %v6334 = vsel %vm1307, %v6320, 0
      %6336 = vmatprep.subr.bf16.mxu0 0
      %6337 = vmatpush1.bf16.msra.mxu0 %v6334
      %6338 = vmatprep.subr.bf16.mxu0 0
      %6339 = vmatpush1.bf16.msra.mxu0 0
      %6340 = vmatprep.subr.bf16.mxu0 0
      %6341 = vmatpush1.bf16.msra.mxu0 0
      %6342 = vmatprep.subr.bf16.mxu0 0
      %6343 = vmatpush1.bf16.msra.mxu0 0
      %6344 = vmatprep.subr.bf16.mxu0 0
      %6345 = vmatpush1.bf16.msra.mxu0 0
      %6346 = vmatprep.subr.bf16.mxu0 0
      %6347 = vmatpush1.bf16.msra.mxu0 0
      %6348 = vmatprep.subr.bf16.mxu0 0
      %6349 = vmatpush1.bf16.msra.mxu0 0
      %6350 = vmatprep.subr.bf16.mxu0 0
      %6351 = vmatpush1.bf16.msra.mxu0 0
      %6352 = vmatprep.subr.bf16.mxu0 0
      %6353 = vmatpush1.bf16.msra.mxu0 0
      %6354 = vmatprep.subr.bf16.mxu0 0
      %6355 = vmatpush1.bf16.msra.mxu0 0
      %6356 = vmatprep.subr.bf16.mxu0 0
      %6357 = vmatpush1.bf16.msra.mxu0 0
      %6358 = vmatprep.subr.bf16.mxu0 0
      %6359 = vmatpush1.bf16.msra.mxu0 0
      %6360 = vmatprep.subr.bf16.mxu0 0
      %6361 = vmatpush1.bf16.msra.mxu0 0
      %6362 = vmatprep.subr.bf16.mxu0 0
      %6363 = vmatpush1.bf16.msra.mxu0 0
      %6364 = vmatprep.subr.bf16.mxu0 0
      %6365 = vmatpush1.bf16.msra.mxu0 0
      %6366 = vmatprep.subr.bf16.mxu0 0
      %6367 = vmatpush1.bf16.msra.mxu0 0
      %6368 = vmatprep.mubr.bf16.mxu0 0
      %6369 = vmatmul.mubr.bf16.gmra.mrb[0].mxu0 %v6322
      %v6370 = vpop.f32.mrb[0].mxu0
      %v6371 = vadd.f32 0.0, %v6370
      %v6372 = vpop.f32.mrb[0].mxu0
      %v6373 = vpop.f32.mrb[0].mxu0
      %v6374 = vadd.f32 0.0, %v6373
      %v6375 = vpop.f32.mrb[0].mxu0
      %6376 = vmatprep.mubr.bf16.mxu0 0
      %6377 = vmatmul.mubr.bf16.gmra.mrb[0].mxu0 %v6325
      %v6378 = vpop.f32.mrb[0].mxu0
      %v6379 = vadd.f32 0.0, %v6378
      %v6380 = vpop.f32.mrb[0].mxu0
      %v6381 = vpop.f32.mrb[0].mxu0
      %v6382 = vadd.f32 0.0, %v6381
      %v6383 = vpop.f32.mrb[0].mxu0
      %6384 = vmatprep.mubr.bf16.mxu0 0
      %6385 = vmatmul.mubr.bf16.gmra.mrb[0].mxu0 %v6328
      %v6386 = vpop.f32.mrb[0].mxu0
      %v6387 = vadd.f32 0.0, %v6386
      %v6388 = vpop.f32.mrb[0].mxu0
      %v6389 = vpop.f32.mrb[0].mxu0
      %v6390 = vadd.f32 0.0, %v6389
      %v6391 = vpop.f32.mrb[0].mxu0
      %6392 = vmatprep.mubr.bf16.mxu0 0
      %6393 = vmatmul.mubr.bf16.gmra.mrb[0].mxu0 %v6331
      %v6394 = vpop.f32.mrb[0].mxu0
      %v6395 = vadd.f32 0.0, %v6394
      %v6396 = vpop.f32.mrb[0].mxu0
      %v6397 = vpop.f32.mrb[0].mxu0
      %v6398 = vadd.f32 0.0, %v6397
      %v6399 = vpop.f32.mrb[0].mxu0
      %6400 = vdwg.mxu0
      %v6402 = vsel %vm1258, %v6196, 0
      %v6405 = vsel %vm1258, %v6197, 0
      %v6408 = vsel %vm1258, %v6198, 0
      %v6411 = vsel %vm1258, %v6199, 0
      %v6414 = vsel %vm1307, %v6200, 0
      %6416 = vmatprep.subr.bf16.mxu0 0
      %6417 = vmatpush1.bf16.msra.mxu0 %v6414
      %6418 = vmatprep.subr.bf16.mxu0 0
      %6419 = vmatpush1.bf16.msra.mxu0 0
      %6420 = vmatprep.subr.bf16.mxu0 0
      %6421 = vmatpush1.bf16.msra.mxu0 0
      %6422 = vmatprep.subr.bf16.mxu0 0
      %6423 = vmatpush1.bf16.msra.mxu0 0
      %6424 = vmatprep.subr.bf16.mxu0 0
      %6425 = vmatpush1.bf16.msra.mxu0 0
      %6426 = vmatprep.subr.bf16.mxu0 0
      %6427 = vmatpush1.bf16.msra.mxu0 0
      %6428 = vmatprep.subr.bf16.mxu0 0
      %6429 = vmatpush1.bf16.msra.mxu0 0
      %6430 = vmatprep.subr.bf16.mxu0 0
      %6431 = vmatpush1.bf16.msra.mxu0 0
      %6432 = vmatprep.subr.bf16.mxu0 0
      %6433 = vmatpush1.bf16.msra.mxu0 0
      %6434 = vmatprep.subr.bf16.mxu0 0
      %6435 = vmatpush1.bf16.msra.mxu0 0
      %6436 = vmatprep.subr.bf16.mxu0 0
      %6437 = vmatpush1.bf16.msra.mxu0 0
      %6438 = vmatprep.subr.bf16.mxu0 0
      %6439 = vmatpush1.bf16.msra.mxu0 0
      %6440 = vmatprep.subr.bf16.mxu0 0
      %6441 = vmatpush1.bf16.msra.mxu0 0
      %6442 = vmatprep.subr.bf16.mxu0 0
      %6443 = vmatpush1.bf16.msra.mxu0 0
      %6444 = vmatprep.subr.bf16.mxu0 0
      %6445 = vmatpush1.bf16.msra.mxu0 0
      %6446 = vmatprep.subr.bf16.mxu0 0
      %6447 = vmatpush1.bf16.msra.mxu0 0
      %6448 = vmatprep.mubr.bf16.mxu0 0
      %6449 = vmatmul.mubr.bf16.gmra.mrb[0].mxu0 %v6402
      %v6450 = vpop.f32.mrb[0].mxu0
      %v6451 = vadd.f32 %v6371, %v6450
      %v6452 = vpop.f32.mrb[0].mxu0
      %v6453 = vpop.f32.mrb[0].mxu0
      %v6454 = vadd.f32 %v6374, %v6453
      %v6455 = vpop.f32.mrb[0].mxu0
      %6456 = vmatprep.mubr.bf16.mxu0 0
      %6457 = vmatmul.mubr.bf16.gmra.mrb[0].mxu0 %v6405
      %v6458 = vpop.f32.mrb[0].mxu0
      %v6459 = vadd.f32 %v6379, %v6458
      %v6460 = vpop.f32.mrb[0].mxu0
      %v6461 = vpop.f32.mrb[0].mxu0
      %v6462 = vadd.f32 %v6382, %v6461
      %v6463 = vpop.f32.mrb[0].mxu0
      %6464 = vmatprep.mubr.bf16.mxu0 0
      %6465 = vmatmul.mubr.bf16.gmra.mrb[0].mxu0 %v6408
      %v6466 = vpop.f32.mrb[0].mxu0
      %v6467 = vadd.f32 %v6387, %v6466
      %v6468 = vpop.f32.mrb[0].mxu0
      %v6469 = vpop.f32.mrb[0].mxu0
      %v6470 = vadd.f32 %v6390, %v6469
      %v6471 = vpop.f32.mrb[0].mxu0
      %6472 = vmatprep.mubr.bf16.mxu0 0
      %6473 = vmatmul.mubr.bf16.gmra.mrb[0].mxu0 %v6411
      %v6474 = vpop.f32.mrb[0].mxu0
      %v6475 = vadd.f32 %v6395, %v6474
      %v6476 = vpop.f32.mrb[0].mxu0
      %v6477 = vpop.f32.mrb[0].mxu0
      %v6478 = vadd.f32 %v6398, %v6477
      %v6479 = vpop.f32.mrb[0].mxu0
      %6480 = vdwg.mxu0
      %s6481 = scalar_lea.vmem %s2, 128
      %v6482 = vld [vmem:[%s6481] sm:$0xff]
      %v6483 = vld [vmem:[%s6481 + $0x8] sm:$0xff]
      %v6484 = vld [vmem:[%s6481 + $0x10] sm:$0xff]
      %v6485 = vld [vmem:[%s6481 + $0x18] sm:$0xff]
      %v6486 = vld [vmem:[%s6481 + $0x20] sm:$0xff]
      %v6487 = vld [vmem:[%s6481 + $0x28] sm:$0xff]
      %v6488 = vld [vmem:[%s6481 + $0x30] sm:$0xff]
      %v6489 = vld [vmem:[%s6481 + $0x38] sm:$0xff]
      %v6498 = vunpack.c.l.b16 %v6482
      %v6499 = vunpack.c.h.b16 %v6482
      %v6500 = vunpack.c.l.b16 %v6483
      %v6501 = vunpack.c.h.b16 %v6483
      %v6502 = vunpack.c.l.b16 %v6484
      %v6503 = vunpack.c.h.b16 %v6484
      %v6504 = vunpack.c.l.b16 %v6485
      %v6505 = vunpack.c.h.b16 %v6485
      %v6506 = vunpack.c.l.b16 %v6486
      %v6507 = vunpack.c.h.b16 %v6486
      %v6508 = vunpack.c.l.b16 %v6487
      %v6509 = vunpack.c.h.b16 %v6487
      %v6510 = vunpack.c.l.b16 %v6488
      %v6511 = vunpack.c.h.b16 %v6488
      %v6512 = vunpack.c.l.b16 %v6489
      %v6513 = vunpack.c.h.b16 %v6489
      %v6514 = vpack.c.b16 %v6500, %v6498
      %v6515 = vpack.c.b16 %v6501, %v6499
      %v6516 = vpack.c.b16 %v6504, %v6502
      %v6517 = vpack.c.b16 %v6505, %v6503
      %v6518 = vpack.c.b16 %v6508, %v6506
      %v6519 = vpack.c.b16 %v6509, %v6507
      %v6520 = vpack.c.b16 %v6512, %v6510
      %v6521 = vpack.c.b16 %v6513, %v6511
      %6530 = vmatprep.subr.bf16.mxu0 0
      %6531 = vmatpush1.bf16.msra.mxu0 %v6067
      %6532 = vmatprep.subr.bf16.mxu0 0
      %6533 = vmatpush1.bf16.msra.mxu0 %v6068
      %6534 = vmatprep.subr.bf16.mxu0 0
      %6535 = vmatpush1.bf16.msra.mxu0 %v6069
      %6536 = vmatprep.subr.bf16.mxu0 0
      %6537 = vmatpush1.bf16.msra.mxu0 %v6070
      %6538 = vmatprep.subr.bf16.mxu0 0
      %6539 = vmatpush1.bf16.msra.mxu0 %v6071
      %6540 = vmatprep.subr.bf16.mxu0 0
      %6541 = vmatpush1.bf16.msra.mxu0 %v6072
      %6542 = vmatprep.subr.bf16.mxu0 0
      %6543 = vmatpush1.bf16.msra.mxu0 %v6073
      %6544 = vmatprep.subr.bf16.mxu0 0
      %6545 = vmatpush1.bf16.msra.mxu0 %v6074
      %6546 = vmatprep.subr.bf16.mxu0 0
      %6547 = vmatpush1.bf16.msra.mxu0 %v6075
      %6548 = vmatprep.subr.bf16.mxu0 0
      %6549 = vmatpush1.bf16.msra.mxu0 %v6076
      %6550 = vmatprep.subr.bf16.mxu0 0
      %6551 = vmatpush1.bf16.msra.mxu0 %v6077
      %6552 = vmatprep.subr.bf16.mxu0 0
      %6553 = vmatpush1.bf16.msra.mxu0 %v6078
      %6554 = vmatprep.subr.bf16.mxu0 0
      %6555 = vmatpush1.bf16.msra.mxu0 %v6079
      %6556 = vmatprep.subr.bf16.mxu0 0
      %6557 = vmatpush1.bf16.msra.mxu0 %v6080
      %6558 = vmatprep.subr.bf16.mxu0 0
      %6559 = vmatpush1.bf16.msra.mxu0 %v6081
      %6560 = vmatprep.subr.bf16.mxu0 0
      %6561 = vmatpush1.bf16.msra.mxu0 %v6082
      %6562 = vmatprep.mubr.bf16.mxu0 %v6515
      %6563 = vmatmul.mubr.bf16.gmra.mrb[0].mxu0 %v6514
      %v6564 = vpop.f32.mrb[0].mxu0
      %v6565 = vadd.f32 0.0, %v6564
      %v6566 = vpop.f32.mrb[0].mxu0
      %v6567 = vpop.f32.mrb[0].mxu0
      %v6568 = vadd.f32 0.0, %v6567
      %v6569 = vpop.f32.mrb[0].mxu0
      %6570 = vmatprep.mubr.bf16.mxu0 %v6517
      %6571 = vmatmul.mubr.bf16.gmra.mrb[0].mxu0 %v6516
      %v6572 = vpop.f32.mrb[0].mxu0
      %v6573 = vadd.f32 0.0, %v6572
      %v6574 = vpop.f32.mrb[0].mxu0
      %v6575 = vpop.f32.mrb[0].mxu0
      %v6576 = vadd.f32 0.0, %v6575
      %v6577 = vpop.f32.mrb[0].mxu0
      %6578 = vmatprep.mubr.bf16.mxu0 %v6519
      %6579 = vmatmul.mubr.bf16.gmra.mrb[0].mxu0 %v6518
      %v6580 = vpop.f32.mrb[0].mxu0
      %v6581 = vadd.f32 0.0, %v6580
      %v6582 = vpop.f32.mrb[0].mxu0
      %v6583 = vpop.f32.mrb[0].mxu0
      %v6584 = vadd.f32 0.0, %v6583
      %v6585 = vpop.f32.mrb[0].mxu0
      %6586 = vmatprep.mubr.bf16.mxu0 %v6521
      %6587 = vmatmul.mubr.bf16.gmra.mrb[0].mxu0 %v6520
      %v6588 = vpop.f32.mrb[0].mxu0
      %v6589 = vadd.f32 0.0, %v6588
      %v6590 = vpop.f32.mrb[0].mxu0
      %v6591 = vpop.f32.mrb[0].mxu0
      %v6592 = vadd.f32 0.0, %v6591
      %v6593 = vpop.f32.mrb[0].mxu0
      %6594 = vdwg.mxu0
      %v6595 = vpack.c.bf16 %v6568, %v6565
      %v6596 = vpack.c.bf16 %v6576, %v6573
      %v6597 = vpack.c.bf16 %v6584, %v6581
      %v6598 = vpack.c.bf16 %v6592, %v6589
      %s6599 = scalar_lea.vmem %s5, 8
      %v6600 = vld [vmem:[%s6599] sm:$0xf]
      %v6602 = vsel %vm1258, %v6595, 0
      %v6605 = vsel %vm1258, %v6596, 0
      %v6608 = vsel %vm1258, %v6597, 0
      %v6611 = vsel %vm1258, %v6598, 0
      %v6614 = vsel %vm1307, %v6600, 0
      %6616 = vmatprep.subr.bf16.mxu0 0
      %6617 = vmatpush1.bf16.msra.mxu0 %v6614
      %6618 = vmatprep.subr.bf16.mxu0 0
      %6619 = vmatpush1.bf16.msra.mxu0 0
      %6620 = vmatprep.subr.bf16.mxu0 0
      %6621 = vmatpush1.bf16.msra.mxu0 0
      %6622 = vmatprep.subr.bf16.mxu0 0
      %6623 = vmatpush1.bf16.msra.mxu0 0
      %6624 = vmatprep.subr.bf16.mxu0 0
      %6625 = vmatpush1.bf16.msra.mxu0 0
      %6626 = vmatprep.subr.bf16.mxu0 0
      %6627 = vmatpush1.bf16.msra.mxu0 0
      %6628 = vmatprep.subr.bf16.mxu0 0
      %6629 = vmatpush1.bf16.msra.mxu0 0
      %6630 = vmatprep.subr.bf16.mxu0 0
      %6631 = vmatpush1.bf16.msra.mxu0 0
      %6632 = vmatprep.subr.bf16.mxu0 0
      %6633 = vmatpush1.bf16.msra.mxu0 0
      %6634 = vmatprep.subr.bf16.mxu0 0
      %6635 = vmatpush1.bf16.msra.mxu0 0
      %6636 = vmatprep.subr.bf16.mxu0 0
      %6637 = vmatpush1.bf16.msra.mxu0 0
      %6638 = vmatprep.subr.bf16.mxu0 0
      %6639 = vmatpush1.bf16.msra.mxu0 0
      %6640 = vmatprep.subr.bf16.mxu0 0
      %6641 = vmatpush1.bf16.msra.mxu0 0
      %6642 = vmatprep.subr.bf16.mxu0 0
      %6643 = vmatpush1.bf16.msra.mxu0 0
      %6644 = vmatprep.subr.bf16.mxu0 0
      %6645 = vmatpush1.bf16.msra.mxu0 0
      %6646 = vmatprep.subr.bf16.mxu0 0
      %6647 = vmatpush1.bf16.msra.mxu0 0
      %6648 = vmatprep.mubr.bf16.mxu0 0
      %6649 = vmatmul.mubr.bf16.gmra.mrb[0].mxu0 %v6602
      %v6650 = vpop.f32.mrb[0].mxu0
      %v6651 = vadd.f32 0.0, %v6650
      %v6652 = vpop.f32.mrb[0].mxu0
      %v6653 = vpop.f32.mrb[0].mxu0
      %v6654 = vadd.f32 0.0, %v6653
      %v6655 = vpop.f32.mrb[0].mxu0
      %6656 = vmatprep.mubr.bf16.mxu0 0
      %6657 = vmatmul.mubr.bf16.gmra.mrb[0].mxu0 %v6605
      %v6658 = vpop.f32.mrb[0].mxu0
      %v6659 = vadd.f32 0.0, %v6658
      %v6660 = vpop.f32.mrb[0].mxu0
      %v6661 = vpop.f32.mrb[0].mxu0
      %v6662 = vadd.f32 0.0, %v6661
      %v6663 = vpop.f32.mrb[0].mxu0
      %6664 = vmatprep.mubr.bf16.mxu0 0
      %6665 = vmatmul.mubr.bf16.gmra.mrb[0].mxu0 %v6608
      %v6666 = vpop.f32.mrb[0].mxu0
      %v6667 = vadd.f32 0.0, %v6666
      %v6668 = vpop.f32.mrb[0].mxu0
      %v6669 = vpop.f32.mrb[0].mxu0
      %v6670 = vadd.f32 0.0, %v6669
      %v6671 = vpop.f32.mrb[0].mxu0
      %6672 = vmatprep.mubr.bf16.mxu0 0
      %6673 = vmatmul.mubr.bf16.gmra.mrb[0].mxu0 %v6611
      %v6674 = vpop.f32.mrb[0].mxu0
      %v6675 = vadd.f32 0.0, %v6674
      %v6676 = vpop.f32.mrb[0].mxu0
      %v6677 = vpop.f32.mrb[0].mxu0
      %v6678 = vadd.f32 0.0, %v6677
      %v6679 = vpop.f32.mrb[0].mxu0
      %6680 = vdwg.mxu0
      %v6681 = vadd.f32 %v6451, %v6651
      %v6682 = vadd.f32 %v6454, %v6654
      %v6683 = vadd.f32 %v6459, %v6659
      %v6684 = vadd.f32 %v6462, %v6662
      %v6685 = vadd.f32 %v6467, %v6667
      %v6686 = vadd.f32 %v6470, %v6670
      %v6687 = vadd.f32 %v6475, %v6675
      %v6688 = vadd.f32 %v6478, %v6678
      %s6689 = scalar_lea.vmem %s2, 192
      %v6690 = vld [vmem:[%s6689] sm:$0xff]
      %v6691 = vld [vmem:[%s6689 + $0x8] sm:$0xff]
      %v6692 = vld [vmem:[%s6689 + $0x10] sm:$0xff]
      %v6693 = vld [vmem:[%s6689 + $0x18] sm:$0xff]
      %v6694 = vld [vmem:[%s6689 + $0x20] sm:$0xff]
      %v6695 = vld [vmem:[%s6689 + $0x28] sm:$0xff]
      %v6696 = vld [vmem:[%s6689 + $0x30] sm:$0xff]
      %v6697 = vld [vmem:[%s6689 + $0x38] sm:$0xff]
      %v6706 = vunpack.c.l.b16 %v6690
      %v6707 = vunpack.c.h.b16 %v6690
      %v6708 = vunpack.c.l.b16 %v6691
      %v6709 = vunpack.c.h.b16 %v6691
      %v6710 = vunpack.c.l.b16 %v6692
      %v6711 = vunpack.c.h.b16 %v6692
      %v6712 = vunpack.c.l.b16 %v6693
      %v6713 = vunpack.c.h.b16 %v6693
      %v6714 = vunpack.c.l.b16 %v6694
      %v6715 = vunpack.c.h.b16 %v6694
      %v6716 = vunpack.c.l.b16 %v6695
      %v6717 = vunpack.c.h.b16 %v6695
      %v6718 = vunpack.c.l.b16 %v6696
      %v6719 = vunpack.c.h.b16 %v6696
      %v6720 = vunpack.c.l.b16 %v6697
      %v6721 = vunpack.c.h.b16 %v6697
      %v6722 = vpack.c.b16 %v6708, %v6706
      %v6723 = vpack.c.b16 %v6709, %v6707
      %v6724 = vpack.c.b16 %v6712, %v6710
      %v6725 = vpack.c.b16 %v6713, %v6711
      %v6726 = vpack.c.b16 %v6716, %v6714
      %v6727 = vpack.c.b16 %v6717, %v6715
      %v6728 = vpack.c.b16 %v6720, %v6718
      %v6729 = vpack.c.b16 %v6721, %v6719
      %6738 = vmatprep.subr.bf16.mxu0 0
      %6739 = vmatpush1.bf16.msra.mxu0 %v6067
      %6740 = vmatprep.subr.bf16.mxu0 0
      %6741 = vmatpush1.bf16.msra.mxu0 %v6068
      %6742 = vmatprep.subr.bf16.mxu0 0
      %6743 = vmatpush1.bf16.msra.mxu0 %v6069
      %6744 = vmatprep.subr.bf16.mxu0 0
      %6745 = vmatpush1.bf16.msra.mxu0 %v6070
      %6746 = vmatprep.subr.bf16.mxu0 0
      %6747 = vmatpush1.bf16.msra.mxu0 %v6071
      %6748 = vmatprep.subr.bf16.mxu0 0
      %6749 = vmatpush1.bf16.msra.mxu0 %v6072
      %6750 = vmatprep.subr.bf16.mxu0 0
      %6751 = vmatpush1.bf16.msra.mxu0 %v6073
      %6752 = vmatprep.subr.bf16.mxu0 0
      %6753 = vmatpush1.bf16.msra.mxu0 %v6074
      %6754 = vmatprep.subr.bf16.mxu0 0
      %6755 = vmatpush1.bf16.msra.mxu0 %v6075
      %6756 = vmatprep.subr.bf16.mxu0 0
      %6757 = vmatpush1.bf16.msra.mxu0 %v6076
      %6758 = vmatprep.subr.bf16.mxu0 0
      %6759 = vmatpush1.bf16.msra.mxu0 %v6077
      %6760 = vmatprep.subr.bf16.mxu0 0
      %6761 = vmatpush1.bf16.msra.mxu0 %v6078
      %6762 = vmatprep.subr.bf16.mxu0 0
      %6763 = vmatpush1.bf16.msra.mxu0 %v6079
      %6764 = vmatprep.subr.bf16.mxu0 0
      %6765 = vmatpush1.bf16.msra.mxu0 %v6080
      %6766 = vmatprep.subr.bf16.mxu0 0
      %6767 = vmatpush1.bf16.msra.mxu0 %v6081
      %6768 = vmatprep.subr.bf16.mxu0 0
      %6769 = vmatpush1.bf16.msra.mxu0 %v6082
      %6770 = vmatprep.mubr.bf16.mxu0 %v6723
      %6771 = vmatmul.mubr.bf16.gmra.mrb[0].mxu0 %v6722
      %v6772 = vpop.f32.mrb[0].mxu0
      %v6773 = vadd.f32 0.0, %v6772
      %v6774 = vpop.f32.mrb[0].mxu0
      %v6775 = vpop.f32.mrb[0].mxu0
      %v6776 = vadd.f32 0.0, %v6775
      %v6777 = vpop.f32.mrb[0].mxu0
      %6778 = vmatprep.mubr.bf16.mxu0 %v6725
      %6779 = vmatmul.mubr.bf16.gmra.mrb[0].mxu0 %v6724
      %v6780 = vpop.f32.mrb[0].mxu0
      %v6781 = vadd.f32 0.0, %v6780
      %v6782 = vpop.f32.mrb[0].mxu0
      %v6783 = vpop.f32.mrb[0].mxu0
      %v6784 = vadd.f32 0.0, %v6783
      %v6785 = vpop.f32.mrb[0].mxu0
      %6786 = vmatprep.mubr.bf16.mxu0 %v6727
      %6787 = vmatmul.mubr.bf16.gmra.mrb[0].mxu0 %v6726
      %v6788 = vpop.f32.mrb[0].mxu0
      %v6789 = vadd.f32 0.0, %v6788
      %v6790 = vpop.f32.mrb[0].mxu0
      %v6791 = vpop.f32.mrb[0].mxu0
      %v6792 = vadd.f32 0.0, %v6791
      %v6793 = vpop.f32.mrb[0].mxu0
      %6794 = vmatprep.mubr.bf16.mxu0 %v6729
      %6795 = vmatmul.mubr.bf16.gmra.mrb[0].mxu0 %v6728
      %v6796 = vpop.f32.mrb[0].mxu0
      %v6797 = vadd.f32 0.0, %v6796
      %v6798 = vpop.f32.mrb[0].mxu0
      %v6799 = vpop.f32.mrb[0].mxu0
      %v6800 = vadd.f32 0.0, %v6799
      %v6801 = vpop.f32.mrb[0].mxu0
      %6802 = vdwg.mxu0
      %v6803 = vpack.c.bf16 %v6776, %v6773
      %v6804 = vpack.c.bf16 %v6784, %v6781
      %v6805 = vpack.c.bf16 %v6792, %v6789
      %v6806 = vpack.c.bf16 %v6800, %v6797
      %s6807 = scalar_lea.vmem %s5, 12
      %v6808 = vld [vmem:[%s6807] sm:$0xf]
      %v6810 = vsel %vm1258, %v6803, 0
      %v6813 = vsel %vm1258, %v6804, 0
      %v6816 = vsel %vm1258, %v6805, 0
      %v6819 = vsel %vm1258, %v6806, 0
      %v6822 = vsel %vm1307, %v6808, 0
      %6824 = vmatprep.subr.bf16.mxu0 0
      %6825 = vmatpush1.bf16.msra.mxu0 %v6822
      %6826 = vmatprep.subr.bf16.mxu0 0
      %6827 = vmatpush1.bf16.msra.mxu0 0
      %6828 = vmatprep.subr.bf16.mxu0 0
      %6829 = vmatpush1.bf16.msra.mxu0 0
      %6830 = vmatprep.subr.bf16.mxu0 0
      %6831 = vmatpush1.bf16.msra.mxu0 0
      %6832 = vmatprep.subr.bf16.mxu0 0
      %6833 = vmatpush1.bf16.msra.mxu0 0
      %6834 = vmatprep.subr.bf16.mxu0 0
      %6835 = vmatpush1.bf16.msra.mxu0 0
      %6836 = vmatprep.subr.bf16.mxu0 0
      %6837 = vmatpush1.bf16.msra.mxu0 0
      %6838 = vmatprep.subr.bf16.mxu0 0
      %6839 = vmatpush1.bf16.msra.mxu0 0
      %6840 = vmatprep.subr.bf16.mxu0 0
      %6841 = vmatpush1.bf16.msra.mxu0 0
      %6842 = vmatprep.subr.bf16.mxu0 0
      %6843 = vmatpush1.bf16.msra.mxu0 0
      %6844 = vmatprep.subr.bf16.mxu0 0
      %6845 = vmatpush1.bf16.msra.mxu0 0
      %6846 = vmatprep.subr.bf16.mxu0 0
      %6847 = vmatpush1.bf16.msra.mxu0 0
      %6848 = vmatprep.subr.bf16.mxu0 0
      %6849 = vmatpush1.bf16.msra.mxu0 0
      %6850 = vmatprep.subr.bf16.mxu0 0
      %6851 = vmatpush1.bf16.msra.mxu0 0
      %6852 = vmatprep.subr.bf16.mxu0 0
      %6853 = vmatpush1.bf16.msra.mxu0 0
      %6854 = vmatprep.subr.bf16.mxu0 0
      %6855 = vmatpush1.bf16.msra.mxu0 0
      %6856 = vmatprep.mubr.bf16.mxu0 0
      %6857 = vmatmul.mubr.bf16.gmra.mrb[0].mxu0 %v6810
      %v6858 = vpop.f32.mrb[0].mxu0
      %v6859 = vadd.f32 0.0, %v6858
      %v6860 = vpop.f32.mrb[0].mxu0
      %v6861 = vpop.f32.mrb[0].mxu0
      %v6862 = vadd.f32 0.0, %v6861
      %v6863 = vpop.f32.mrb[0].mxu0
      %6864 = vmatprep.mubr.bf16.mxu0 0
      %6865 = vmatmul.mubr.bf16.gmra.mrb[0].mxu0 %v6813
      %v6866 = vpop.f32.mrb[0].mxu0
      %v6867 = vadd.f32 0.0, %v6866
      %v6868 = vpop.f32.mrb[0].mxu0
      %v6869 = vpop.f32.mrb[0].mxu0
      %v6870 = vadd.f32 0.0, %v6869
      %v6871 = vpop.f32.mrb[0].mxu0
      %6872 = vmatprep.mubr.bf16.mxu0 0
      %6873 = vmatmul.mubr.bf16.gmra.mrb[0].mxu0 %v6816
      %v6874 = vpop.f32.mrb[0].mxu0
      %v6875 = vadd.f32 0.0, %v6874
      %v6876 = vpop.f32.mrb[0].mxu0
      %v6877 = vpop.f32.mrb[0].mxu0
      %v6878 = vadd.f32 0.0, %v6877
      %v6879 = vpop.f32.mrb[0].mxu0
      %6880 = vmatprep.mubr.bf16.mxu0 0
      %6881 = vmatmul.mubr.bf16.gmra.mrb[0].mxu0 %v6819
      %v6882 = vpop.f32.mrb[0].mxu0
      %v6883 = vadd.f32 0.0, %v6882
      %v6884 = vpop.f32.mrb[0].mxu0
      %v6885 = vpop.f32.mrb[0].mxu0
      %v6886 = vadd.f32 0.0, %v6885
      %v6887 = vpop.f32.mrb[0].mxu0
      %6888 = vdwg.mxu0
      %v6889 = vadd.f32 %v6681, %v6859
      %v6890 = vadd.f32 %v6682, %v6862
      %v6891 = vadd.f32 %v6683, %v6867
      %v6892 = vadd.f32 %v6684, %v6870
      %v6893 = vadd.f32 %v6685, %v6875
      %v6894 = vadd.f32 %v6686, %v6878
      %v6895 = vadd.f32 %v6687, %v6883
      %v6896 = vadd.f32 %v6688, %v6886
      %s6897 = scalar_lea.vmem %s2, 256
      %v6898 = vld [vmem:[%s6897] sm:$0xff]
      %v6899 = vld [vmem:[%s6897 + $0x8] sm:$0xff]
      %v6900 = vld [vmem:[%s6897 + $0x10] sm:$0xff]
      %v6901 = vld [vmem:[%s6897 + $0x18] sm:$0xff]
      %v6902 = vld [vmem:[%s6897 + $0x20] sm:$0xff]
      %v6903 = vld [vmem:[%s6897 + $0x28] sm:$0xff]
      %v6904 = vld [vmem:[%s6897 + $0x30] sm:$0xff]
      %v6905 = vld [vmem:[%s6897 + $0x38] sm:$0xff]
      %v6914 = vunpack.c.l.b16 %v6898
      %v6915 = vunpack.c.h.b16 %v6898
      %v6916 = vunpack.c.l.b16 %v6899
      %v6917 = vunpack.c.h.b16 %v6899
      %v6918 = vunpack.c.l.b16 %v6900
      %v6919 = vunpack.c.h.b16 %v6900
      %v6920 = vunpack.c.l.b16 %v6901
      %v6921 = vunpack.c.h.b16 %v6901
      %v6922 = vunpack.c.l.b16 %v6902
      %v6923 = vunpack.c.h.b16 %v6902
      %v6924 = vunpack.c.l.b16 %v6903
      %v6925 = vunpack.c.h.b16 %v6903
      %v6926 = vunpack.c.l.b16 %v6904
      %v6927 = vunpack.c.h.b16 %v6904
      %v6928 = vunpack.c.l.b16 %v6905
      %v6929 = vunpack.c.h.b16 %v6905
      %v6930 = vpack.c.b16 %v6916, %v6914
      %v6931 = vpack.c.b16 %v6917, %v6915
      %v6932 = vpack.c.b16 %v6920, %v6918
      %v6933 = vpack.c.b16 %v6921, %v6919
      %v6934 = vpack.c.b16 %v6924, %v6922
      %v6935 = vpack.c.b16 %v6925, %v6923
      %v6936 = vpack.c.b16 %v6928, %v6926
      %v6937 = vpack.c.b16 %v6929, %v6927
      %6946 = vmatprep.subr.bf16.mxu0 0
      %6947 = vmatpush1.bf16.msra.mxu0 %v6067
      %6948 = vmatprep.subr.bf16.mxu0 0
      %6949 = vmatpush1.bf16.msra.mxu0 %v6068
      %6950 = vmatprep.subr.bf16.mxu0 0
      %6951 = vmatpush1.bf16.msra.mxu0 %v6069
      %6952 = vmatprep.subr.bf16.mxu0 0
      %6953 = vmatpush1.bf16.msra.mxu0 %v6070
      %6954 = vmatprep.subr.bf16.mxu0 0
      %6955 = vmatpush1.bf16.msra.mxu0 %v6071
      %6956 = vmatprep.subr.bf16.mxu0 0
      %6957 = vmatpush1.bf16.msra.mxu0 %v6072
      %6958 = vmatprep.subr.bf16.mxu0 0
      %6959 = vmatpush1.bf16.msra.mxu0 %v6073
      %6960 = vmatprep.subr.bf16.mxu0 0
      %6961 = vmatpush1.bf16.msra.mxu0 %v6074
      %6962 = vmatprep.subr.bf16.mxu0 0
      %6963 = vmatpush1.bf16.msra.mxu0 %v6075
      %6964 = vmatprep.subr.bf16.mxu0 0
      %6965 = vmatpush1.bf16.msra.mxu0 %v6076
      %6966 = vmatprep.subr.bf16.mxu0 0
      %6967 = vmatpush1.bf16.msra.mxu0 %v6077
      %6968 = vmatprep.subr.bf16.mxu0 0
      %6969 = vmatpush1.bf16.msra.mxu0 %v6078
      %6970 = vmatprep.subr.bf16.mxu0 0
      %6971 = vmatpush1.bf16.msra.mxu0 %v6079
      %6972 = vmatprep.subr.bf16.mxu0 0
      %6973 = vmatpush1.bf16.msra.mxu0 %v6080
      %6974 = vmatprep.subr.bf16.mxu0 0
      %6975 = vmatpush1.bf16.msra.mxu0 %v6081
      %6976 = vmatprep.subr.bf16.mxu0 0
      %6977 = vmatpush1.bf16.msra.mxu0 %v6082
      %6978 = vmatprep.mubr.bf16.mxu0 %v6931
      %6979 = vmatmul.mubr.bf16.gmra.mrb[0].mxu0 %v6930
      %v6980 = vpop.f32.mrb[0].mxu0
      %v6981 = vadd.f32 0.0, %v6980
      %v6982 = vpop.f32.mrb[0].mxu0
      %v6983 = vpop.f32.mrb[0].mxu0
      %v6984 = vadd.f32 0.0, %v6983
      %v6985 = vpop.f32.mrb[0].mxu0
      %6986 = vmatprep.mubr.bf16.mxu0 %v6933
      %6987 = vmatmul.mubr.bf16.gmra.mrb[0].mxu0 %v6932
      %v6988 = vpop.f32.mrb[0].mxu0
      %v6989 = vadd.f32 0.0, %v6988
      %v6990 = vpop.f32.mrb[0].mxu0
      %v6991 = vpop.f32.mrb[0].mxu0
      %v6992 = vadd.f32 0.0, %v6991
      %v6993 = vpop.f32.mrb[0].mxu0
      %6994 = vmatprep.mubr.bf16.mxu0 %v6935
      %6995 = vmatmul.mubr.bf16.gmra.mrb[0].mxu0 %v6934
      %v6996 = vpop.f32.mrb[0].mxu0
      %v6997 = vadd.f32 0.0, %v6996
      %v6998 = vpop.f32.mrb[0].mxu0
      %v6999 = vpop.f32.mrb[0].mxu0
      %v7000 = vadd.f32 0.0, %v6999
      %v7001 = vpop.f32.mrb[0].mxu0
      %7002 = vmatprep.mubr.bf16.mxu0 %v6937
      %7003 = vmatmul.mubr.bf16.gmra.mrb[0].mxu0 %v6936
      %v7004 = vpop.f32.mrb[0].mxu0
      %v7005 = vadd.f32 0.0, %v7004
      %v7006 = vpop.f32.mrb[0].mxu0
      %v7007 = vpop.f32.mrb[0].mxu0
      %v7008 = vadd.f32 0.0, %v7007
      %v7009 = vpop.f32.mrb[0].mxu0
      %7010 = vdwg.mxu0
      %v7011 = vpack.c.bf16 %v6984, %v6981
      %v7012 = vpack.c.bf16 %v6992, %v6989
      %v7013 = vpack.c.bf16 %v7000, %v6997
      %v7014 = vpack.c.bf16 %v7008, %v7005
      %s7015 = scalar_lea.vmem %s5, 16
      %v7016 = vld [vmem:[%s7015] sm:$0xf]
      %v7018 = vsel %vm1258, %v7011, 0
      %v7021 = vsel %vm1258, %v7012, 0
      %v7024 = vsel %vm1258, %v7013, 0
      %v7027 = vsel %vm1258, %v7014, 0
      %v7030 = vsel %vm1307, %v7016, 0
      %7032 = vmatprep.subr.bf16.mxu0 0
      %7033 = vmatpush1.bf16.msra.mxu0 %v7030
      %7034 = vmatprep.subr.bf16.mxu0 0
      %7035 = vmatpush1.bf16.msra.mxu0 0
      %7036 = vmatprep.subr.bf16.mxu0 0
      %7037 = vmatpush1.bf16.msra.mxu0 0
      %7038 = vmatprep.subr.bf16.mxu0 0
      %7039 = vmatpush1.bf16.msra.mxu0 0
      %7040 = vmatprep.subr.bf16.mxu0 0
      %7041 = vmatpush1.bf16.msra.mxu0 0
      %7042 = vmatprep.subr.bf16.mxu0 0
      %7043 = vmatpush1.bf16.msra.mxu0 0
      %7044 = vmatprep.subr.bf16.mxu0 0
      %7045 = vmatpush1.bf16.msra.mxu0 0
      %7046 = vmatprep.subr.bf16.mxu0 0
      %7047 = vmatpush1.bf16.msra.mxu0 0
      %7048 = vmatprep.subr.bf16.mxu0 0
      %7049 = vmatpush1.bf16.msra.mxu0 0
      %7050 = vmatprep.subr.bf16.mxu0 0
      %7051 = vmatpush1.bf16.msra.mxu0 0
      %7052 = vmatprep.subr.bf16.mxu0 0
      %7053 = vmatpush1.bf16.msra.mxu0 0
      %7054 = vmatprep.subr.bf16.mxu0 0
      %7055 = vmatpush1.bf16.msra.mxu0 0
      %7056 = vmatprep.subr.bf16.mxu0 0
      %7057 = vmatpush1.bf16.msra.mxu0 0
      %7058 = vmatprep.subr.bf16.mxu0 0
      %7059 = vmatpush1.bf16.msra.mxu0 0
      %7060 = vmatprep.subr.bf16.mxu0 0
      %7061 = vmatpush1.bf16.msra.mxu0 0
      %7062 = vmatprep.subr.bf16.mxu0 0
      %7063 = vmatpush1.bf16.msra.mxu0 0
      %7064 = vmatprep.mubr.bf16.mxu0 0
      %7065 = vmatmul.mubr.bf16.gmra.mrb[0].mxu0 %v7018
      %v7066 = vpop.f32.mrb[0].mxu0
      %v7067 = vadd.f32 0.0, %v7066
      %v7068 = vpop.f32.mrb[0].mxu0
      %v7069 = vpop.f32.mrb[0].mxu0
      %v7070 = vadd.f32 0.0, %v7069
      %v7071 = vpop.f32.mrb[0].mxu0
      %7072 = vmatprep.mubr.bf16.mxu0 0
      %7073 = vmatmul.mubr.bf16.gmra.mrb[0].mxu0 %v7021
      %v7074 = vpop.f32.mrb[0].mxu0
      %v7075 = vadd.f32 0.0, %v7074
      %v7076 = vpop.f32.mrb[0].mxu0
      %v7077 = vpop.f32.mrb[0].mxu0
      %v7078 = vadd.f32 0.0, %v7077
      %v7079 = vpop.f32.mrb[0].mxu0
      %7080 = vmatprep.mubr.bf16.mxu0 0
      %7081 = vmatmul.mubr.bf16.gmra.mrb[0].mxu0 %v7024
      %v7082 = vpop.f32.mrb[0].mxu0
      %v7083 = vadd.f32 0.0, %v7082
      %v7084 = vpop.f32.mrb[0].mxu0
      %v7085 = vpop.f32.mrb[0].mxu0
      %v7086 = vadd.f32 0.0, %v7085
      %v7087 = vpop.f32.mrb[0].mxu0
      %7088 = vmatprep.mubr.bf16.mxu0 0
      %7089 = vmatmul.mubr.bf16.gmra.mrb[0].mxu0 %v7027
      %v7090 = vpop.f32.mrb[0].mxu0
      %v7091 = vadd.f32 0.0, %v7090
      %v7092 = vpop.f32.mrb[0].mxu0
      %v7093 = vpop.f32.mrb[0].mxu0
      %v7094 = vadd.f32 0.0, %v7093
      %v7095 = vpop.f32.mrb[0].mxu0
      %7096 = vdwg.mxu0
      %v7097 = vadd.f32 %v6889, %v7067
      %v7098 = vadd.f32 %v6890, %v7070
      %v7099 = vadd.f32 %v6891, %v7075
      %v7100 = vadd.f32 %v6892, %v7078
      %v7101 = vadd.f32 %v6893, %v7083
      %v7102 = vadd.f32 %v6894, %v7086
      %v7103 = vadd.f32 %v6895, %v7091
      %v7104 = vadd.f32 %v6896, %v7094
      %s7105 = scalar_lea.vmem %s2, 320
      %v7106 = vld [vmem:[%s7105] sm:$0xff]
      %v7107 = vld [vmem:[%s7105 + $0x8] sm:$0xff]
      %v7108 = vld [vmem:[%s7105 + $0x10] sm:$0xff]
      %v7109 = vld [vmem:[%s7105 + $0x18] sm:$0xff]
      %v7110 = vld [vmem:[%s7105 + $0x20] sm:$0xff]
      %v7111 = vld [vmem:[%s7105 + $0x28] sm:$0xff]
      %v7112 = vld [vmem:[%s7105 + $0x30] sm:$0xff]
      %v7113 = vld [vmem:[%s7105 + $0x38] sm:$0xff]
      %v7122 = vunpack.c.l.b16 %v7106
      %v7123 = vunpack.c.h.b16 %v7106
      %v7124 = vunpack.c.l.b16 %v7107
      %v7125 = vunpack.c.h.b16 %v7107
      %v7126 = vunpack.c.l.b16 %v7108
      %v7127 = vunpack.c.h.b16 %v7108
      %v7128 = vunpack.c.l.b16 %v7109
      %v7129 = vunpack.c.h.b16 %v7109
      %v7130 = vunpack.c.l.b16 %v7110
      %v7131 = vunpack.c.h.b16 %v7110
      %v7132 = vunpack.c.l.b16 %v7111
      %v7133 = vunpack.c.h.b16 %v7111
      %v7134 = vunpack.c.l.b16 %v7112
      %v7135 = vunpack.c.h.b16 %v7112
      %v7136 = vunpack.c.l.b16 %v7113
      %v7137 = vunpack.c.h.b16 %v7113
      %v7138 = vpack.c.b16 %v7124, %v7122
      %v7139 = vpack.c.b16 %v7125, %v7123
      %v7140 = vpack.c.b16 %v7128, %v7126
      %v7141 = vpack.c.b16 %v7129, %v7127
      %v7142 = vpack.c.b16 %v7132, %v7130
      %v7143 = vpack.c.b16 %v7133, %v7131
      %v7144 = vpack.c.b16 %v7136, %v7134
      %v7145 = vpack.c.b16 %v7137, %v7135
      %7154 = vmatprep.subr.bf16.mxu0 0
      %7155 = vmatpush1.bf16.msra.mxu0 %v6067
      %7156 = vmatprep.subr.bf16.mxu0 0
      %7157 = vmatpush1.bf16.msra.mxu0 %v6068
      %7158 = vmatprep.subr.bf16.mxu0 0
      %7159 = vmatpush1.bf16.msra.mxu0 %v6069
      %7160 = vmatprep.subr.bf16.mxu0 0
      %7161 = vmatpush1.bf16.msra.mxu0 %v6070
      %7162 = vmatprep.subr.bf16.mxu0 0
      %7163 = vmatpush1.bf16.msra.mxu0 %v6071
      %7164 = vmatprep.subr.bf16.mxu0 0
      %7165 = vmatpush1.bf16.msra.mxu0 %v6072
      %7166 = vmatprep.subr.bf16.mxu0 0
      %7167 = vmatpush1.bf16.msra.mxu0 %v6073
      %7168 = vmatprep.subr.bf16.mxu0 0
      %7169 = vmatpush1.bf16.msra.mxu0 %v6074
      %7170 = vmatprep.subr.bf16.mxu0 0
      %7171 = vmatpush1.bf16.msra.mxu0 %v6075
      %7172 = vmatprep.subr.bf16.mxu0 0
      %7173 = vmatpush1.bf16.msra.mxu0 %v6076
      %7174 = vmatprep.subr.bf16.mxu0 0
      %7175 = vmatpush1.bf16.msra.mxu0 %v6077
      %7176 = vmatprep.subr.bf16.mxu0 0
      %7177 = vmatpush1.bf16.msra.mxu0 %v6078
      %7178 = vmatprep.subr.bf16.mxu0 0
      %7179 = vmatpush1.bf16.msra.mxu0 %v6079
      %7180 = vmatprep.subr.bf16.mxu0 0
      %7181 = vmatpush1.bf16.msra.mxu0 %v6080
      %7182 = vmatprep.subr.bf16.mxu0 0
      %7183 = vmatpush1.bf16.msra.mxu0 %v6081
      %7184 = vmatprep.subr.bf16.mxu0 0
      %7185 = vmatpush1.bf16.msra.mxu0 %v6082
      %7186 = vmatprep.mubr.bf16.mxu0 %v7139
      %7187 = vmatmul.mubr.bf16.gmra.mrb[0].mxu0 %v7138
      %v7188 = vpop.f32.mrb[0].mxu0
      %v7189 = vadd.f32 0.0, %v7188
      %v7190 = vpop.f32.mrb[0].mxu0
      %v7191 = vpop.f32.mrb[0].mxu0
      %v7192 = vadd.f32 0.0, %v7191
      %v7193 = vpop.f32.mrb[0].mxu0
      %7194 = vmatprep.mubr.bf16.mxu0 %v7141
      %7195 = vmatmul.mubr.bf16.gmra.mrb[0].mxu0 %v7140
      %v7196 = vpop.f32.mrb[0].mxu0
      %v7197 = vadd.f32 0.0, %v7196
      %v7198 = vpop.f32.mrb[0].mxu0
      %v7199 = vpop.f32.mrb[0].mxu0
      %v7200 = vadd.f32 0.0, %v7199
      %v7201 = vpop.f32.mrb[0].mxu0
      %7202 = vmatprep.mubr.bf16.mxu0 %v7143
      %7203 = vmatmul.mubr.bf16.gmra.mrb[0].mxu0 %v7142
      %v7204 = vpop.f32.mrb[0].mxu0
      %v7205 = vadd.f32 0.0, %v7204
      %v7206 = vpop.f32.mrb[0].mxu0
      %v7207 = vpop.f32.mrb[0].mxu0
      %v7208 = vadd.f32 0.0, %v7207
      %v7209 = vpop.f32.mrb[0].mxu0
      %7210 = vmatprep.mubr.bf16.mxu0 %v7145
      %7211 = vmatmul.mubr.bf16.gmra.mrb[0].mxu0 %v7144
      %v7212 = vpop.f32.mrb[0].mxu0
      %v7213 = vadd.f32 0.0, %v7212
      %v7214 = vpop.f32.mrb[0].mxu0
      %v7215 = vpop.f32.mrb[0].mxu0
      %v7216 = vadd.f32 0.0, %v7215
      %v7217 = vpop.f32.mrb[0].mxu0
      %7218 = vdwg.mxu0
      %v7219 = vpack.c.bf16 %v7192, %v7189
      %v7220 = vpack.c.bf16 %v7200, %v7197
      %v7221 = vpack.c.bf16 %v7208, %v7205
      %v7222 = vpack.c.bf16 %v7216, %v7213
      %s7223 = scalar_lea.vmem %s5, 20
      %v7224 = vld [vmem:[%s7223] sm:$0xf]
      %v7226 = vsel %vm1258, %v7219, 0
      %v7229 = vsel %vm1258, %v7220, 0
      %v7232 = vsel %vm1258, %v7221, 0
      %v7235 = vsel %vm1258, %v7222, 0
      %v7238 = vsel %vm1307, %v7224, 0
      %7240 = vmatprep.subr.bf16.mxu0 0
      %7241 = vmatpush1.bf16.msra.mxu0 %v7238
      %7242 = vmatprep.subr.bf16.mxu0 0
      %7243 = vmatpush1.bf16.msra.mxu0 0
      %7244 = vmatprep.subr.bf16.mxu0 0
      %7245 = vmatpush1.bf16.msra.mxu0 0
      %7246 = vmatprep.subr.bf16.mxu0 0
      %7247 = vmatpush1.bf16.msra.mxu0 0
      %7248 = vmatprep.subr.bf16.mxu0 0
      %7249 = vmatpush1.bf16.msra.mxu0 0
      %7250 = vmatprep.subr.bf16.mxu0 0
      %7251 = vmatpush1.bf16.msra.mxu0 0
      %7252 = vmatprep.subr.bf16.mxu0 0
      %7253 = vmatpush1.bf16.msra.mxu0 0
      %7254 = vmatprep.subr.bf16.mxu0 0
      %7255 = vmatpush1.bf16.msra.mxu0 0
      %7256 = vmatprep.subr.bf16.mxu0 0
      %7257 = vmatpush1.bf16.msra.mxu0 0
      %7258 = vmatprep.subr.bf16.mxu0 0
      %7259 = vmatpush1.bf16.msra.mxu0 0
      %7260 = vmatprep.subr.bf16.mxu0 0
      %7261 = vmatpush1.bf16.msra.mxu0 0
      %7262 = vmatprep.subr.bf16.mxu0 0
      %7263 = vmatpush1.bf16.msra.mxu0 0
      %7264 = vmatprep.subr.bf16.mxu0 0
      %7265 = vmatpush1.bf16.msra.mxu0 0
      %7266 = vmatprep.subr.bf16.mxu0 0
      %7267 = vmatpush1.bf16.msra.mxu0 0
      %7268 = vmatprep.subr.bf16.mxu0 0
      %7269 = vmatpush1.bf16.msra.mxu0 0
      %7270 = vmatprep.subr.bf16.mxu0 0
      %7271 = vmatpush1.bf16.msra.mxu0 0
      %7272 = vmatprep.mubr.bf16.mxu0 0
      %7273 = vmatmul.mubr.bf16.gmra.mrb[0].mxu0 %v7226
      %v7274 = vpop.f32.mrb[0].mxu0
      %v7275 = vadd.f32 0.0, %v7274
      %v7276 = vpop.f32.mrb[0].mxu0
      %v7277 = vpop.f32.mrb[0].mxu0
      %v7278 = vadd.f32 0.0, %v7277
      %v7279 = vpop.f32.mrb[0].mxu0
      %7280 = vmatprep.mubr.bf16.mxu0 0
      %7281 = vmatmul.mubr.bf16.gmra.mrb[0].mxu0 %v7229
      %v7282 = vpop.f32.mrb[0].mxu0
      %v7283 = vadd.f32 0.0, %v7282
      %v7284 = vpop.f32.mrb[0].mxu0
      %v7285 = vpop.f32.mrb[0].mxu0
      %v7286 = vadd.f32 0.0, %v7285
      %v7287 = vpop.f32.mrb[0].mxu0
      %7288 = vmatprep.mubr.bf16.mxu0 0
      %7289 = vmatmul.mubr.bf16.gmra.mrb[0].mxu0 %v7232
      %v7290 = vpop.f32.mrb[0].mxu0
      %v7291 = vadd.f32 0.0, %v7290
      %v7292 = vpop.f32.mrb[0].mxu0
      %v7293 = vpop.f32.mrb[0].mxu0
      %v7294 = vadd.f32 0.0, %v7293
      %v7295 = vpop.f32.mrb[0].mxu0
      %7296 = vmatprep.mubr.bf16.mxu0 0
      %7297 = vmatmul.mubr.bf16.gmra.mrb[0].mxu0 %v7235
      %v7298 = vpop.f32.mrb[0].mxu0
      %v7299 = vadd.f32 0.0, %v7298
      %v7300 = vpop.f32.mrb[0].mxu0
      %v7301 = vpop.f32.mrb[0].mxu0
      %v7302 = vadd.f32 0.0, %v7301
      %v7303 = vpop.f32.mrb[0].mxu0
      %7304 = vdwg.mxu0
      %v7305 = vadd.f32 %v7097, %v7275
      %v7306 = vadd.f32 %v7098, %v7278
      %v7307 = vadd.f32 %v7099, %v7283
      %v7308 = vadd.f32 %v7100, %v7286
      %v7309 = vadd.f32 %v7101, %v7291
      %v7310 = vadd.f32 %v7102, %v7294
      %v7311 = vadd.f32 %v7103, %v7299
      %v7312 = vadd.f32 %v7104, %v7302
      %s7313 = scalar_lea.vmem %s2, 384
      %v7314 = vld [vmem:[%s7313] sm:$0xff]
      %v7315 = vld [vmem:[%s7313 + $0x8] sm:$0xff]
      %v7316 = vld [vmem:[%s7313 + $0x10] sm:$0xff]
      %v7317 = vld [vmem:[%s7313 + $0x18] sm:$0xff]
      %v7318 = vld [vmem:[%s7313 + $0x20] sm:$0xff]
      %v7319 = vld [vmem:[%s7313 + $0x28] sm:$0xff]
      %v7320 = vld [vmem:[%s7313 + $0x30] sm:$0xff]
      %v7321 = vld [vmem:[%s7313 + $0x38] sm:$0xff]
      %v7330 = vunpack.c.l.b16 %v7314
      %v7331 = vunpack.c.h.b16 %v7314
      %v7332 = vunpack.c.l.b16 %v7315
      %v7333 = vunpack.c.h.b16 %v7315
      %v7334 = vunpack.c.l.b16 %v7316
      %v7335 = vunpack.c.h.b16 %v7316
      %v7336 = vunpack.c.l.b16 %v7317
      %v7337 = vunpack.c.h.b16 %v7317
      %v7338 = vunpack.c.l.b16 %v7318
      %v7339 = vunpack.c.h.b16 %v7318
      %v7340 = vunpack.c.l.b16 %v7319
      %v7341 = vunpack.c.h.b16 %v7319
      %v7342 = vunpack.c.l.b16 %v7320
      %v7343 = vunpack.c.h.b16 %v7320
      %v7344 = vunpack.c.l.b16 %v7321
      %v7345 = vunpack.c.h.b16 %v7321
      %v7346 = vpack.c.b16 %v7332, %v7330
      %v7347 = vpack.c.b16 %v7333, %v7331
      %v7348 = vpack.c.b16 %v7336, %v7334
      %v7349 = vpack.c.b16 %v7337, %v7335
      %v7350 = vpack.c.b16 %v7340, %v7338
      %v7351 = vpack.c.b16 %v7341, %v7339
      %v7352 = vpack.c.b16 %v7344, %v7342
      %v7353 = vpack.c.b16 %v7345, %v7343
      %7362 = vmatprep.subr.bf16.mxu0 0
      %7363 = vmatpush1.bf16.msra.mxu0 %v6067
      %7364 = vmatprep.subr.bf16.mxu0 0
      %7365 = vmatpush1.bf16.msra.mxu0 %v6068
      %7366 = vmatprep.subr.bf16.mxu0 0
      %7367 = vmatpush1.bf16.msra.mxu0 %v6069
      %7368 = vmatprep.subr.bf16.mxu0 0
      %7369 = vmatpush1.bf16.msra.mxu0 %v6070
      %7370 = vmatprep.subr.bf16.mxu0 0
      %7371 = vmatpush1.bf16.msra.mxu0 %v6071
      %7372 = vmatprep.subr.bf16.mxu0 0
      %7373 = vmatpush1.bf16.msra.mxu0 %v6072
      %7374 = vmatprep.subr.bf16.mxu0 0
      %7375 = vmatpush1.bf16.msra.mxu0 %v6073
      %7376 = vmatprep.subr.bf16.mxu0 0
      %7377 = vmatpush1.bf16.msra.mxu0 %v6074
      %7378 = vmatprep.subr.bf16.mxu0 0
      %7379 = vmatpush1.bf16.msra.mxu0 %v6075
      %7380 = vmatprep.subr.bf16.mxu0 0
      %7381 = vmatpush1.bf16.msra.mxu0 %v6076
      %7382 = vmatprep.subr.bf16.mxu0 0
      %7383 = vmatpush1.bf16.msra.mxu0 %v6077
      %7384 = vmatprep.subr.bf16.mxu0 0
      %7385 = vmatpush1.bf16.msra.mxu0 %v6078
      %7386 = vmatprep.subr.bf16.mxu0 0
      %7387 = vmatpush1.bf16.msra.mxu0 %v6079
      %7388 = vmatprep.subr.bf16.mxu0 0
      %7389 = vmatpush1.bf16.msra.mxu0 %v6080
      %7390 = vmatprep.subr.bf16.mxu0 0
      %7391 = vmatpush1.bf16.msra.mxu0 %v6081
      %7392 = vmatprep.subr.bf16.mxu0 0
      %7393 = vmatpush1.bf16.msra.mxu0 %v6082
      %7394 = vmatprep.mubr.bf16.mxu0 %v7347
      %7395 = vmatmul.mubr.bf16.gmra.mrb[0].mxu0 %v7346
      %v7396 = vpop.f32.mrb[0].mxu0
      %v7397 = vadd.f32 0.0, %v7396
      %v7398 = vpop.f32.mrb[0].mxu0
      %v7399 = vpop.f32.mrb[0].mxu0
      %v7400 = vadd.f32 0.0, %v7399
      %v7401 = vpop.f32.mrb[0].mxu0
      %7402 = vmatprep.mubr.bf16.mxu0 %v7349
      %7403 = vmatmul.mubr.bf16.gmra.mrb[0].mxu0 %v7348
      %v7404 = vpop.f32.mrb[0].mxu0
      %v7405 = vadd.f32 0.0, %v7404
      %v7406 = vpop.f32.mrb[0].mxu0
      %v7407 = vpop.f32.mrb[0].mxu0
      %v7408 = vadd.f32 0.0, %v7407
      %v7409 = vpop.f32.mrb[0].mxu0
      %7410 = vmatprep.mubr.bf16.mxu0 %v7351
      %7411 = vmatmul.mubr.bf16.gmra.mrb[0].mxu0 %v7350
      %v7412 = vpop.f32.mrb[0].mxu0
      %v7413 = vadd.f32 0.0, %v7412
      %v7414 = vpop.f32.mrb[0].mxu0
      %v7415 = vpop.f32.mrb[0].mxu0
      %v7416 = vadd.f32 0.0, %v7415
      %v7417 = vpop.f32.mrb[0].mxu0
      %7418 = vmatprep.mubr.bf16.mxu0 %v7353
      %7419 = vmatmul.mubr.bf16.gmra.mrb[0].mxu0 %v7352
      %v7420 = vpop.f32.mrb[0].mxu0
      %v7421 = vadd.f32 0.0, %v7420
      %v7422 = vpop.f32.mrb[0].mxu0
      %v7423 = vpop.f32.mrb[0].mxu0
      %v7424 = vadd.f32 0.0, %v7423
      %v7425 = vpop.f32.mrb[0].mxu0
      %7426 = vdwg.mxu0
      %v7427 = vpack.c.bf16 %v7400, %v7397
      %v7428 = vpack.c.bf16 %v7408, %v7405
      %v7429 = vpack.c.bf16 %v7416, %v7413
      %v7430 = vpack.c.bf16 %v7424, %v7421
      %s7431 = scalar_lea.vmem %s5, 24
      %v7432 = vld [vmem:[%s7431] sm:$0xf]
      %v7434 = vsel %vm1258, %v7427, 0
      %v7437 = vsel %vm1258, %v7428, 0
      %v7440 = vsel %vm1258, %v7429, 0
      %v7443 = vsel %vm1258, %v7430, 0
      %v7446 = vsel %vm1307, %v7432, 0
      %7448 = vmatprep.subr.bf16.mxu0 0
      %7449 = vmatpush1.bf16.msra.mxu0 %v7446
      %7450 = vmatprep.subr.bf16.mxu0 0
      %7451 = vmatpush1.bf16.msra.mxu0 0
      %7452 = vmatprep.subr.bf16.mxu0 0
      %7453 = vmatpush1.bf16.msra.mxu0 0
      %7454 = vmatprep.subr.bf16.mxu0 0
      %7455 = vmatpush1.bf16.msra.mxu0 0
      %7456 = vmatprep.subr.bf16.mxu0 0
      %7457 = vmatpush1.bf16.msra.mxu0 0
      %7458 = vmatprep.subr.bf16.mxu0 0
      %7459 = vmatpush1.bf16.msra.mxu0 0
      %7460 = vmatprep.subr.bf16.mxu0 0
      %7461 = vmatpush1.bf16.msra.mxu0 0
      %7462 = vmatprep.subr.bf16.mxu0 0
      %7463 = vmatpush1.bf16.msra.mxu0 0
      %7464 = vmatprep.subr.bf16.mxu0 0
      %7465 = vmatpush1.bf16.msra.mxu0 0
      %7466 = vmatprep.subr.bf16.mxu0 0
      %7467 = vmatpush1.bf16.msra.mxu0 0
      %7468 = vmatprep.subr.bf16.mxu0 0
      %7469 = vmatpush1.bf16.msra.mxu0 0
      %7470 = vmatprep.subr.bf16.mxu0 0
      %7471 = vmatpush1.bf16.msra.mxu0 0
      %7472 = vmatprep.subr.bf16.mxu0 0
      %7473 = vmatpush1.bf16.msra.mxu0 0
      %7474 = vmatprep.subr.bf16.mxu0 0
      %7475 = vmatpush1.bf16.msra.mxu0 0
      %7476 = vmatprep.subr.bf16.mxu0 0
      %7477 = vmatpush1.bf16.msra.mxu0 0
      %7478 = vmatprep.subr.bf16.mxu0 0
      %7479 = vmatpush1.bf16.msra.mxu0 0
      %7480 = vmatprep.mubr.bf16.mxu0 0
      %7481 = vmatmul.mubr.bf16.gmra.mrb[0].mxu0 %v7434
      %v7482 = vpop.f32.mrb[0].mxu0
      %v7483 = vadd.f32 0.0, %v7482
      %v7484 = vpop.f32.mrb[0].mxu0
      %v7485 = vpop.f32.mrb[0].mxu0
      %v7486 = vadd.f32 0.0, %v7485
      %v7487 = vpop.f32.mrb[0].mxu0
      %7488 = vmatprep.mubr.bf16.mxu0 0
      %7489 = vmatmul.mubr.bf16.gmra.mrb[0].mxu0 %v7437
      %v7490 = vpop.f32.mrb[0].mxu0
      %v7491 = vadd.f32 0.0, %v7490
      %v7492 = vpop.f32.mrb[0].mxu0
      %v7493 = vpop.f32.mrb[0].mxu0
      %v7494 = vadd.f32 0.0, %v7493
      %v7495 = vpop.f32.mrb[0].mxu0
      %7496 = vmatprep.mubr.bf16.mxu0 0
      %7497 = vmatmul.mubr.bf16.gmra.mrb[0].mxu0 %v7440
      %v7498 = vpop.f32.mrb[0].mxu0
      %v7499 = vadd.f32 0.0, %v7498
      %v7500 = vpop.f32.mrb[0].mxu0
      %v7501 = vpop.f32.mrb[0].mxu0
      %v7502 = vadd.f32 0.0, %v7501
      %v7503 = vpop.f32.mrb[0].mxu0
      %7504 = vmatprep.mubr.bf16.mxu0 0
      %7505 = vmatmul.mubr.bf16.gmra.mrb[0].mxu0 %v7443
      %v7506 = vpop.f32.mrb[0].mxu0
      %v7507 = vadd.f32 0.0, %v7506
      %v7508 = vpop.f32.mrb[0].mxu0
      %v7509 = vpop.f32.mrb[0].mxu0
      %v7510 = vadd.f32 0.0, %v7509
      %v7511 = vpop.f32.mrb[0].mxu0
      %7512 = vdwg.mxu0
      %v7513 = vadd.f32 %v7305, %v7483
      %v7514 = vadd.f32 %v7306, %v7486
      %v7515 = vadd.f32 %v7307, %v7491
      %v7516 = vadd.f32 %v7308, %v7494
      %v7517 = vadd.f32 %v7309, %v7499
      %v7518 = vadd.f32 %v7310, %v7502
      %v7519 = vadd.f32 %v7311, %v7507
      %v7520 = vadd.f32 %v7312, %v7510
      %s7521 = scalar_lea.vmem %s2, 448
      %v7522 = vld [vmem:[%s7521] sm:$0xff]
      %v7523 = vld [vmem:[%s7521 + $0x8] sm:$0xff]
      %v7524 = vld [vmem:[%s7521 + $0x10] sm:$0xff]
      %v7525 = vld [vmem:[%s7521 + $0x18] sm:$0xff]
      %v7526 = vld [vmem:[%s7521 + $0x20] sm:$0xff]
      %v7527 = vld [vmem:[%s7521 + $0x28] sm:$0xff]
      %v7528 = vld [vmem:[%s7521 + $0x30] sm:$0xff]
      %v7529 = vld [vmem:[%s7521 + $0x38] sm:$0xff]
      %v7538 = vunpack.c.l.b16 %v7522
      %v7539 = vunpack.c.h.b16 %v7522
      %v7540 = vunpack.c.l.b16 %v7523
      %v7541 = vunpack.c.h.b16 %v7523
      %v7542 = vunpack.c.l.b16 %v7524
      %v7543 = vunpack.c.h.b16 %v7524
      %v7544 = vunpack.c.l.b16 %v7525
      %v7545 = vunpack.c.h.b16 %v7525
      %v7546 = vunpack.c.l.b16 %v7526
      %v7547 = vunpack.c.h.b16 %v7526
      %v7548 = vunpack.c.l.b16 %v7527
      %v7549 = vunpack.c.h.b16 %v7527
      %v7550 = vunpack.c.l.b16 %v7528
      %v7551 = vunpack.c.h.b16 %v7528
      %v7552 = vunpack.c.l.b16 %v7529
      %v7553 = vunpack.c.h.b16 %v7529
      %v7554 = vpack.c.b16 %v7540, %v7538
      %v7555 = vpack.c.b16 %v7541, %v7539
      %v7556 = vpack.c.b16 %v7544, %v7542
      %v7557 = vpack.c.b16 %v7545, %v7543
      %v7558 = vpack.c.b16 %v7548, %v7546
      %v7559 = vpack.c.b16 %v7549, %v7547
      %v7560 = vpack.c.b16 %v7552, %v7550
      %v7561 = vpack.c.b16 %v7553, %v7551
      %7570 = vmatprep.subr.bf16.mxu0 0
      %7571 = vmatpush1.bf16.msra.mxu0 %v6067
      %7572 = vmatprep.subr.bf16.mxu0 0
      %7573 = vmatpush1.bf16.msra.mxu0 %v6068
      %7574 = vmatprep.subr.bf16.mxu0 0
      %7575 = vmatpush1.bf16.msra.mxu0 %v6069
      %7576 = vmatprep.subr.bf16.mxu0 0
      %7577 = vmatpush1.bf16.msra.mxu0 %v6070
      %7578 = vmatprep.subr.bf16.mxu0 0
      %7579 = vmatpush1.bf16.msra.mxu0 %v6071
      %7580 = vmatprep.subr.bf16.mxu0 0
      %7581 = vmatpush1.bf16.msra.mxu0 %v6072
      %7582 = vmatprep.subr.bf16.mxu0 0
      %7583 = vmatpush1.bf16.msra.mxu0 %v6073
      %7584 = vmatprep.subr.bf16.mxu0 0
      %7585 = vmatpush1.bf16.msra.mxu0 %v6074
      %7586 = vmatprep.subr.bf16.mxu0 0
      %7587 = vmatpush1.bf16.msra.mxu0 %v6075
      %7588 = vmatprep.subr.bf16.mxu0 0
      %7589 = vmatpush1.bf16.msra.mxu0 %v6076
      %7590 = vmatprep.subr.bf16.mxu0 0
      %7591 = vmatpush1.bf16.msra.mxu0 %v6077
      %7592 = vmatprep.subr.bf16.mxu0 0
      %7593 = vmatpush1.bf16.msra.mxu0 %v6078
      %7594 = vmatprep.subr.bf16.mxu0 0
      %7595 = vmatpush1.bf16.msra.mxu0 %v6079
      %7596 = vmatprep.subr.bf16.mxu0 0
      %7597 = vmatpush1.bf16.msra.mxu0 %v6080
      %7598 = vmatprep.subr.bf16.mxu0 0
      %7599 = vmatpush1.bf16.msra.mxu0 %v6081
      %7600 = vmatprep.subr.bf16.mxu0 0
      %7601 = vmatpush1.bf16.msra.mxu0 %v6082
      %7602 = vmatprep.mubr.bf16.mxu0 %v7555
      %7603 = vmatmul.mubr.bf16.gmra.mrb[0].mxu0 %v7554
      %v7604 = vpop.f32.mrb[0].mxu0
      %v7605 = vadd.f32 0.0, %v7604
      %v7606 = vpop.f32.mrb[0].mxu0
      %v7607 = vpop.f32.mrb[0].mxu0
      %v7608 = vadd.f32 0.0, %v7607
      %v7609 = vpop.f32.mrb[0].mxu0
      %7610 = vmatprep.mubr.bf16.mxu0 %v7557
      %7611 = vmatmul.mubr.bf16.gmra.mrb[0].mxu0 %v7556
      %v7612 = vpop.f32.mrb[0].mxu0
      %v7613 = vadd.f32 0.0, %v7612
      %v7614 = vpop.f32.mrb[0].mxu0
      %v7615 = vpop.f32.mrb[0].mxu0
      %v7616 = vadd.f32 0.0, %v7615
      %v7617 = vpop.f32.mrb[0].mxu0
      %7618 = vmatprep.mubr.bf16.mxu0 %v7559
      %7619 = vmatmul.mubr.bf16.gmra.mrb[0].mxu0 %v7558
      %v7620 = vpop.f32.mrb[0].mxu0
      %v7621 = vadd.f32 0.0, %v7620
      %v7622 = vpop.f32.mrb[0].mxu0
      %v7623 = vpop.f32.mrb[0].mxu0
      %v7624 = vadd.f32 0.0, %v7623
      %v7625 = vpop.f32.mrb[0].mxu0
      %7626 = vmatprep.mubr.bf16.mxu0 %v7561
      %7627 = vmatmul.mubr.bf16.gmra.mrb[0].mxu0 %v7560
      %v7628 = vpop.f32.mrb[0].mxu0
      %v7629 = vadd.f32 0.0, %v7628
      %v7630 = vpop.f32.mrb[0].mxu0
      %v7631 = vpop.f32.mrb[0].mxu0
      %v7632 = vadd.f32 0.0, %v7631
      %v7633 = vpop.f32.mrb[0].mxu0
      %7634 = vdwg.mxu0
      %v7635 = vpack.c.bf16 %v7608, %v7605
      %v7636 = vpack.c.bf16 %v7616, %v7613
      %v7637 = vpack.c.bf16 %v7624, %v7621
      %v7638 = vpack.c.bf16 %v7632, %v7629
      %s7639 = scalar_lea.vmem %s5, 28
      %v7640 = vld [vmem:[%s7639] sm:$0xf]
      %v7642 = vsel %vm1258, %v7635, 0
      %v7645 = vsel %vm1258, %v7636, 0
      %v7648 = vsel %vm1258, %v7637, 0
      %v7651 = vsel %vm1258, %v7638, 0
      %v7654 = vsel %vm1307, %v7640, 0
      %7656 = vmatprep.subr.bf16.mxu0 0
      %7657 = vmatpush1.bf16.msra.mxu0 %v7654
      %7658 = vmatprep.subr.bf16.mxu0 0
      %7659 = vmatpush1.bf16.msra.mxu0 0
      %7660 = vmatprep.subr.bf16.mxu0 0
      %7661 = vmatpush1.bf16.msra.mxu0 0
      %7662 = vmatprep.subr.bf16.mxu0 0
      %7663 = vmatpush1.bf16.msra.mxu0 0
      %7664 = vmatprep.subr.bf16.mxu0 0
      %7665 = vmatpush1.bf16.msra.mxu0 0
      %7666 = vmatprep.subr.bf16.mxu0 0
      %7667 = vmatpush1.bf16.msra.mxu0 0
      %7668 = vmatprep.subr.bf16.mxu0 0
      %7669 = vmatpush1.bf16.msra.mxu0 0
      %7670 = vmatprep.subr.bf16.mxu0 0
      %7671 = vmatpush1.bf16.msra.mxu0 0
      %7672 = vmatprep.subr.bf16.mxu0 0
      %7673 = vmatpush1.bf16.msra.mxu0 0
      %7674 = vmatprep.subr.bf16.mxu0 0
      %7675 = vmatpush1.bf16.msra.mxu0 0
      %7676 = vmatprep.subr.bf16.mxu0 0
      %7677 = vmatpush1.bf16.msra.mxu0 0
      %7678 = vmatprep.subr.bf16.mxu0 0
      %7679 = vmatpush1.bf16.msra.mxu0 0
      %7680 = vmatprep.subr.bf16.mxu0 0
      %7681 = vmatpush1.bf16.msra.mxu0 0
      %7682 = vmatprep.subr.bf16.mxu0 0
      %7683 = vmatpush1.bf16.msra.mxu0 0
      %7684 = vmatprep.subr.bf16.mxu0 0
      %7685 = vmatpush1.bf16.msra.mxu0 0
      %7686 = vmatprep.subr.bf16.mxu0 0
      %7687 = vmatpush1.bf16.msra.mxu0 0
      %7688 = vmatprep.mubr.bf16.mxu0 0
      %7689 = vmatmul.mubr.bf16.gmra.mrb[0].mxu0 %v7642
      %v7690 = vpop.f32.mrb[0].mxu0
      %v7691 = vadd.f32 0.0, %v7690
      %v7692 = vpop.f32.mrb[0].mxu0
      %v7693 = vpop.f32.mrb[0].mxu0
      %v7694 = vadd.f32 0.0, %v7693
      %v7695 = vpop.f32.mrb[0].mxu0
      %7696 = vmatprep.mubr.bf16.mxu0 0
      %7697 = vmatmul.mubr.bf16.gmra.mrb[0].mxu0 %v7645
      %v7698 = vpop.f32.mrb[0].mxu0
      %v7699 = vadd.f32 0.0, %v7698
      %v7700 = vpop.f32.mrb[0].mxu0
      %v7701 = vpop.f32.mrb[0].mxu0
      %v7702 = vadd.f32 0.0, %v7701
      %v7703 = vpop.f32.mrb[0].mxu0
      %7704 = vmatprep.mubr.bf16.mxu0 0
      %7705 = vmatmul.mubr.bf16.gmra.mrb[0].mxu0 %v7648
      %v7706 = vpop.f32.mrb[0].mxu0
      %v7707 = vadd.f32 0.0, %v7706
      %v7708 = vpop.f32.mrb[0].mxu0
      %v7709 = vpop.f32.mrb[0].mxu0
      %v7710 = vadd.f32 0.0, %v7709
      %v7711 = vpop.f32.mrb[0].mxu0
      %7712 = vmatprep.mubr.bf16.mxu0 0
      %7713 = vmatmul.mubr.bf16.gmra.mrb[0].mxu0 %v7651
      %v7714 = vpop.f32.mrb[0].mxu0
      %v7715 = vadd.f32 0.0, %v7714
      %v7716 = vpop.f32.mrb[0].mxu0
      %v7717 = vpop.f32.mrb[0].mxu0
      %v7718 = vadd.f32 0.0, %v7717
      %v7719 = vpop.f32.mrb[0].mxu0
      %7720 = vdwg.mxu0
      %v7721 = vadd.f32 %v7513, %v7691
      %v7722 = vadd.f32 %v7514, %v7694
      %v7723 = vadd.f32 %v7515, %v7699
      %v7724 = vadd.f32 %v7516, %v7702
      %v7725 = vadd.f32 %v7517, %v7707
      %v7726 = vadd.f32 %v7518, %v7710
      %v7727 = vadd.f32 %v7519, %v7715
      %v7728 = vadd.f32 %v7520, %v7718
      %s7729 = scalar_lea.vmem %s2, 512
      %v7730 = vld [vmem:[%s7729] sm:$0xff]
      %v7731 = vld [vmem:[%s7729 + $0x8] sm:$0xff]
      %v7732 = vld [vmem:[%s7729 + $0x10] sm:$0xff]
      %v7733 = vld [vmem:[%s7729 + $0x18] sm:$0xff]
      %v7734 = vld [vmem:[%s7729 + $0x20] sm:$0xff]
      %v7735 = vld [vmem:[%s7729 + $0x28] sm:$0xff]
      %v7736 = vld [vmem:[%s7729 + $0x30] sm:$0xff]
      %v7737 = vld [vmem:[%s7729 + $0x38] sm:$0xff]
      %v7746 = vunpack.c.l.b16 %v7730
      %v7747 = vunpack.c.h.b16 %v7730
      %v7748 = vunpack.c.l.b16 %v7731
      %v7749 = vunpack.c.h.b16 %v7731
      %v7750 = vunpack.c.l.b16 %v7732
      %v7751 = vunpack.c.h.b16 %v7732
      %v7752 = vunpack.c.l.b16 %v7733
      %v7753 = vunpack.c.h.b16 %v7733
      %v7754 = vunpack.c.l.b16 %v7734
      %v7755 = vunpack.c.h.b16 %v7734
      %v7756 = vunpack.c.l.b16 %v7735
      %v7757 = vunpack.c.h.b16 %v7735
      %v7758 = vunpack.c.l.b16 %v7736
      %v7759 = vunpack.c.h.b16 %v7736
      %v7760 = vunpack.c.l.b16 %v7737
      %v7761 = vunpack.c.h.b16 %v7737
      %v7762 = vpack.c.b16 %v7748, %v7746
      %v7763 = vpack.c.b16 %v7749, %v7747
      %v7764 = vpack.c.b16 %v7752, %v7750
      %v7765 = vpack.c.b16 %v7753, %v7751
      %v7766 = vpack.c.b16 %v7756, %v7754
      %v7767 = vpack.c.b16 %v7757, %v7755
      %v7768 = vpack.c.b16 %v7760, %v7758
      %v7769 = vpack.c.b16 %v7761, %v7759
      %7778 = vmatprep.subr.bf16.mxu0 0
      %7779 = vmatpush1.bf16.msra.mxu0 %v6067
      %7780 = vmatprep.subr.bf16.mxu0 0
      %7781 = vmatpush1.bf16.msra.mxu0 %v6068
      %7782 = vmatprep.subr.bf16.mxu0 0
      %7783 = vmatpush1.bf16.msra.mxu0 %v6069
      %7784 = vmatprep.subr.bf16.mxu0 0
      %7785 = vmatpush1.bf16.msra.mxu0 %v6070
      %7786 = vmatprep.subr.bf16.mxu0 0
      %7787 = vmatpush1.bf16.msra.mxu0 %v6071
      %7788 = vmatprep.subr.bf16.mxu0 0
      %7789 = vmatpush1.bf16.msra.mxu0 %v6072
      %7790 = vmatprep.subr.bf16.mxu0 0
      %7791 = vmatpush1.bf16.msra.mxu0 %v6073
      %7792 = vmatprep.subr.bf16.mxu0 0
      %7793 = vmatpush1.bf16.msra.mxu0 %v6074
      %7794 = vmatprep.subr.bf16.mxu0 0
      %7795 = vmatpush1.bf16.msra.mxu0 %v6075
      %7796 = vmatprep.subr.bf16.mxu0 0
      %7797 = vmatpush1.bf16.msra.mxu0 %v6076
      %7798 = vmatprep.subr.bf16.mxu0 0
      %7799 = vmatpush1.bf16.msra.mxu0 %v6077
      %7800 = vmatprep.subr.bf16.mxu0 0
      %7801 = vmatpush1.bf16.msra.mxu0 %v6078
      %7802 = vmatprep.subr.bf16.mxu0 0
      %7803 = vmatpush1.bf16.msra.mxu0 %v6079
      %7804 = vmatprep.subr.bf16.mxu0 0
      %7805 = vmatpush1.bf16.msra.mxu0 %v6080
      %7806 = vmatprep.subr.bf16.mxu0 0
      %7807 = vmatpush1.bf16.msra.mxu0 %v6081
      %7808 = vmatprep.subr.bf16.mxu0 0
      %7809 = vmatpush1.bf16.msra.mxu0 %v6082
      %7810 = vmatprep.mubr.bf16.mxu0 %v7763
      %7811 = vmatmul.mubr.bf16.gmra.mrb[0].mxu0 %v7762
      %v7812 = vpop.f32.mrb[0].mxu0
      %v7813 = vadd.f32 0.0, %v7812
      %v7814 = vpop.f32.mrb[0].mxu0
      %v7815 = vpop.f32.mrb[0].mxu0
      %v7816 = vadd.f32 0.0, %v7815
      %v7817 = vpop.f32.mrb[0].mxu0
      %7818 = vmatprep.mubr.bf16.mxu0 %v7765
      %7819 = vmatmul.mubr.bf16.gmra.mrb[0].mxu0 %v7764
      %v7820 = vpop.f32.mrb[0].mxu0
      %v7821 = vadd.f32 0.0, %v7820
      %v7822 = vpop.f32.mrb[0].mxu0
      %v7823 = vpop.f32.mrb[0].mxu0
      %v7824 = vadd.f32 0.0, %v7823
      %v7825 = vpop.f32.mrb[0].mxu0
      %7826 = vmatprep.mubr.bf16.mxu0 %v7767
      %7827 = vmatmul.mubr.bf16.gmra.mrb[0].mxu0 %v7766
      %v7828 = vpop.f32.mrb[0].mxu0
      %v7829 = vadd.f32 0.0, %v7828
      %v7830 = vpop.f32.mrb[0].mxu0
      %v7831 = vpop.f32.mrb[0].mxu0
      %v7832 = vadd.f32 0.0, %v7831
      %v7833 = vpop.f32.mrb[0].mxu0
      %7834 = vmatprep.mubr.bf16.mxu0 %v7769
      %7835 = vmatmul.mubr.bf16.gmra.mrb[0].mxu0 %v7768
      %v7836 = vpop.f32.mrb[0].mxu0
      %v7837 = vadd.f32 0.0, %v7836
      %v7838 = vpop.f32.mrb[0].mxu0
      %v7839 = vpop.f32.mrb[0].mxu0
      %v7840 = vadd.f32 0.0, %v7839
      %v7841 = vpop.f32.mrb[0].mxu0
      %7842 = vdwg.mxu0
      %v7843 = vpack.c.bf16 %v7816, %v7813
      %v7844 = vpack.c.bf16 %v7824, %v7821
      %v7845 = vpack.c.bf16 %v7832, %v7829
      %v7846 = vpack.c.bf16 %v7840, %v7837
      %s7847 = scalar_lea.vmem %s5, 32
      %v7848 = vld [vmem:[%s7847] sm:$0xf]
      %v7850 = vsel %vm1258, %v7843, 0
      %v7853 = vsel %vm1258, %v7844, 0
      %v7856 = vsel %vm1258, %v7845, 0
      %v7859 = vsel %vm1258, %v7846, 0
      %v7862 = vsel %vm1307, %v7848, 0
      %7864 = vmatprep.subr.bf16.mxu0 0
      %7865 = vmatpush1.bf16.msra.mxu0 %v7862
      %7866 = vmatprep.subr.bf16.mxu0 0
      %7867 = vmatpush1.bf16.msra.mxu0 0
      %7868 = vmatprep.subr.bf16.mxu0 0
      %7869 = vmatpush1.bf16.msra.mxu0 0
      %7870 = vmatprep.subr.bf16.mxu0 0
      %7871 = vmatpush1.bf16.msra.mxu0 0
      %7872 = vmatprep.subr.bf16.mxu0 0
      %7873 = vmatpush1.bf16.msra.mxu0 0
      %7874 = vmatprep.subr.bf16.mxu0 0
      %7875 = vmatpush1.bf16.msra.mxu0 0
      %7876 = vmatprep.subr.bf16.mxu0 0
      %7877 = vmatpush1.bf16.msra.mxu0 0
      %7878 = vmatprep.subr.bf16.mxu0 0
      %7879 = vmatpush1.bf16.msra.mxu0 0
      %7880 = vmatprep.subr.bf16.mxu0 0
      %7881 = vmatpush1.bf16.msra.mxu0 0
      %7882 = vmatprep.subr.bf16.mxu0 0
      %7883 = vmatpush1.bf16.msra.mxu0 0
      %7884 = vmatprep.subr.bf16.mxu0 0
      %7885 = vmatpush1.bf16.msra.mxu0 0
      %7886 = vmatprep.subr.bf16.mxu0 0
      %7887 = vmatpush1.bf16.msra.mxu0 0
      %7888 = vmatprep.subr.bf16.mxu0 0
      %7889 = vmatpush1.bf16.msra.mxu0 0
      %7890 = vmatprep.subr.bf16.mxu0 0
      %7891 = vmatpush1.bf16.msra.mxu0 0
      %7892 = vmatprep.subr.bf16.mxu0 0
      %7893 = vmatpush1.bf16.msra.mxu0 0
      %7894 = vmatprep.subr.bf16.mxu0 0
      %7895 = vmatpush1.bf16.msra.mxu0 0
      %7896 = vmatprep.mubr.bf16.mxu0 0
      %7897 = vmatmul.mubr.bf16.gmra.mrb[0].mxu0 %v7850
      %v7898 = vpop.f32.mrb[0].mxu0
      %v7899 = vadd.f32 0.0, %v7898
      %v7900 = vpop.f32.mrb[0].mxu0
      %v7901 = vpop.f32.mrb[0].mxu0
      %v7902 = vadd.f32 0.0, %v7901
      %v7903 = vpop.f32.mrb[0].mxu0
      %7904 = vmatprep.mubr.bf16.mxu0 0
      %7905 = vmatmul.mubr.bf16.gmra.mrb[0].mxu0 %v7853
      %v7906 = vpop.f32.mrb[0].mxu0
      %v7907 = vadd.f32 0.0, %v7906
      %v7908 = vpop.f32.mrb[0].mxu0
      %v7909 = vpop.f32.mrb[0].mxu0
      %v7910 = vadd.f32 0.0, %v7909
      %v7911 = vpop.f32.mrb[0].mxu0
      %7912 = vmatprep.mubr.bf16.mxu0 0
      %7913 = vmatmul.mubr.bf16.gmra.mrb[0].mxu0 %v7856
      %v7914 = vpop.f32.mrb[0].mxu0
      %v7915 = vadd.f32 0.0, %v7914
      %v7916 = vpop.f32.mrb[0].mxu0
      %v7917 = vpop.f32.mrb[0].mxu0
      %v7918 = vadd.f32 0.0, %v7917
      %v7919 = vpop.f32.mrb[0].mxu0
      %7920 = vmatprep.mubr.bf16.mxu0 0
      %7921 = vmatmul.mubr.bf16.gmra.mrb[0].mxu0 %v7859
      %v7922 = vpop.f32.mrb[0].mxu0
      %v7923 = vadd.f32 0.0, %v7922
      %v7924 = vpop.f32.mrb[0].mxu0
      %v7925 = vpop.f32.mrb[0].mxu0
      %v7926 = vadd.f32 0.0, %v7925
      %v7927 = vpop.f32.mrb[0].mxu0
      %7928 = vdwg.mxu0
      %v7929 = vadd.f32 %v7721, %v7899
      %v7930 = vadd.f32 %v7722, %v7902
      %v7931 = vadd.f32 %v7723, %v7907
      %v7932 = vadd.f32 %v7724, %v7910
      %v7933 = vadd.f32 %v7725, %v7915
      %v7934 = vadd.f32 %v7726, %v7918
      %v7935 = vadd.f32 %v7727, %v7923
      %v7936 = vadd.f32 %v7728, %v7926
      %v7937 = vld [vmem:[%s6] sm:$0x1]
      %v7939 = vlaneseq
      %v7940 = vshrl.u32 %v7939, 7
      %v7941 = vsub.s32 0, %v7940
      %v7942 = vrot.slane %v7937, %v7941
      %v7944 = vadd.f32 %v7929, %v7942
      %v7945 = vadd.f32 %v7930, %v7942
      %v7946 = vadd.f32 %v7931, %v7942
      %v7947 = vadd.f32 %v7932, %v7942
      %v7948 = vadd.f32 %v7933, %v7942
      %v7949 = vadd.f32 %v7934, %v7942
      %v7950 = vadd.f32 %v7935, %v7942
      %v7951 = vadd.f32 %v7936, %v7942
      %v7952 = vmax.f32 %v7944, 0.0
      %v7953 = vmax.f32 %v7945, 0.0
      %v7954 = vmax.f32 %v7946, 0.0
      %v7955 = vmax.f32 %v7947, 0.0
      %v7956 = vmax.f32 %v7948, 0.0
      %v7957 = vmax.f32 %v7949, 0.0
      %v7958 = vmax.f32 %v7950, 0.0
      %v7959 = vmax.f32 %v7951, 0.0
      %v7960 = vpack.c.bf16 %v7953, %v7952
      %v7961 = vpack.c.bf16 %v7955, %v7954
      %v7962 = vpack.c.bf16 %v7957, %v7956
      %v7963 = vpack.c.bf16 %v7959, %v7958
      %v7964 = vld [vmem:[%s7] sm:$0xf]
      %v7965 = vld [vmem:[%s7 + $0x4] sm:$0xf]
      %v7966 = vld [vmem:[%s8] sm:$0x1]
      %v7968 = vlaneseq
      %v7969 = vshrl.u32 %v7968, 7
      %v7970 = vsub.s32 0, %v7969
      %v7971 = vrot.slane %v7966, %v7970
      %v7975 = vunpack.c.l.b16 %v7964
      %v7976 = vunpack.c.l.b16 %v7965
      %v7977 = vpack.c.b16 %v7976, %v7975
      %vm7979 = vcmask 130048
      %v7981 = vsel %vm7979, %v7960, 0
      %v7984 = vsel %vm7979, %v7961, 0
      %v7987 = vsel %vm7979, %v7962, 0
      %v7990 = vsel %vm7979, %v7963, 0
      %7992 = vmatprep.subr.bf16.mxu0 0
      %7993 = vmatpush1.bf16.msra.mxu0 %v7977
      %7994 = vmatprep.subr.bf16.mxu0 0
      %7995 = vmatpush1.bf16.msra.mxu0 0
      %7996 = vmatprep.subr.bf16.mxu0 0
      %7997 = vmatpush1.bf16.msra.mxu0 0
      %7998 = vmatprep.subr.bf16.mxu0 0
      %7999 = vmatpush1.bf16.msra.mxu0 0
      %8000 = vmatprep.subr.bf16.mxu0 0
      %8001 = vmatpush1.bf16.msra.mxu0 0
      %8002 = vmatprep.subr.bf16.mxu0 0
      %8003 = vmatpush1.bf16.msra.mxu0 0
      %8004 = vmatprep.subr.bf16.mxu0 0
      %8005 = vmatpush1.bf16.msra.mxu0 0
      %8006 = vmatprep.subr.bf16.mxu0 0
      %8007 = vmatpush1.bf16.msra.mxu0 0
      %8008 = vmatprep.subr.bf16.mxu0 0
      %8009 = vmatpush1.bf16.msra.mxu0 0
      %8010 = vmatprep.subr.bf16.mxu0 0
      %8011 = vmatpush1.bf16.msra.mxu0 0
      %8012 = vmatprep.subr.bf16.mxu0 0
      %8013 = vmatpush1.bf16.msra.mxu0 0
      %8014 = vmatprep.subr.bf16.mxu0 0
      %8015 = vmatpush1.bf16.msra.mxu0 0
      %8016 = vmatprep.subr.bf16.mxu0 0
      %8017 = vmatpush1.bf16.msra.mxu0 0
      %8018 = vmatprep.subr.bf16.mxu0 0
      %8019 = vmatpush1.bf16.msra.mxu0 0
      %8020 = vmatprep.subr.bf16.mxu0 0
      %8021 = vmatpush1.bf16.msra.mxu0 0
      %8022 = vmatprep.subr.bf16.mxu0 0
      %8023 = vmatpush1.bf16.msra.mxu0 0
      %8024 = vmatprep.mubr.bf16.mxu0 0
      %8025 = vmatmul.mubr.bf16.gmra.mrb[0].mxu0 %v7981
      %v8026 = vpop.f32.mrb[0].mxu0
      %v8027 = vadd.f32 %v7971, %v8026
      %v8028 = vpop.f32.mrb[0].mxu0
      %v8029 = vpop.f32.mrb[0].mxu0
      %v8030 = vadd.f32 %v7971, %v8029
      %v8031 = vpop.f32.mrb[0].mxu0
      %8032 = vmatprep.mubr.bf16.mxu0 0
      %8033 = vmatmul.mubr.bf16.gmra.mrb[0].mxu0 %v7984
      %v8034 = vpop.f32.mrb[0].mxu0
      %v8035 = vadd.f32 %v7971, %v8034
      %v8036 = vpop.f32.mrb[0].mxu0
      %v8037 = vpop.f32.mrb[0].mxu0
      %v8038 = vadd.f32 %v7971, %v8037
      %v8039 = vpop.f32.mrb[0].mxu0
      %8040 = vmatprep.mubr.bf16.mxu0 0
      %8041 = vmatmul.mubr.bf16.gmra.mrb[0].mxu0 %v7987
      %v8042 = vpop.f32.mrb[0].mxu0
      %v8043 = vadd.f32 %v7971, %v8042
      %v8044 = vpop.f32.mrb[0].mxu0
      %v8045 = vpop.f32.mrb[0].mxu0
      %v8046 = vadd.f32 %v7971, %v8045
      %v8047 = vpop.f32.mrb[0].mxu0
      %8048 = vmatprep.mubr.bf16.mxu0 0
      %8049 = vmatmul.mubr.bf16.gmra.mrb[0].mxu0 %v7990
      %v8050 = vpop.f32.mrb[0].mxu0
      %v8051 = vadd.f32 %v7971, %v8050
      %v8052 = vpop.f32.mrb[0].mxu0
      %v8053 = vpop.f32.mrb[0].mxu0
      %v8054 = vadd.f32 %v7971, %v8053
      %v8055 = vpop.f32.mrb[0].mxu0
      %8056 = vdwg.mxu0
      %v8057 = vmax.f32 %v8027, 0.0
      %v8058 = vmax.f32 %v8030, 0.0
      %v8059 = vmax.f32 %v8035, 0.0
      %v8060 = vmax.f32 %v8038, 0.0
      %v8061 = vmax.f32 %v8043, 0.0
      %v8062 = vmax.f32 %v8046, 0.0
      %v8063 = vmax.f32 %v8051, 0.0
      %v8064 = vmax.f32 %v8054, 0.0
      %v8065 = vpack.c.bf16 %v8058, %v8057
      %v8066 = vpack.c.bf16 %v8060, %v8059
      %v8067 = vpack.c.bf16 %v8062, %v8061
      %v8068 = vpack.c.bf16 %v8064, %v8063
      %v8069 = vld [vmem:[%s9] sm:$0xf]
      %v8070 = vld [vmem:[%s9 + $0x4] sm:$0xf]
      %v8071 = vld [vmem:[%s9 + $0x8] sm:$0xf]
      %v8072 = vld [vmem:[%s9 + $0xc] sm:$0xf]
      %v8073 = vld [vmem:[%s10] sm:$0x1]
      %v8075 = vlaneseq
      %v8076 = vshrl.u32 %v8075, 7
      %v8077 = vsub.s32 0, %v8076
      %v8078 = vrot.slane %v8073, %v8077
      %v8084 = vunpack.c.l.b16 %v8069
      %v8085 = vunpack.c.l.b16 %v8070
      %v8086 = vunpack.c.l.b16 %v8071
      %v8087 = vunpack.c.l.b16 %v8072
      %v8088 = vpack.c.b16 %v8085, %v8084
      %v8089 = vpack.c.b16 %v8087, %v8086
      %vm8092 = vcmask 261120
      %v8094 = vsel %vm8092, %v8065, 0
      %v8097 = vsel %vm8092, %v8066, 0
      %v8100 = vsel %vm8092, %v8067, 0
      %v8103 = vsel %vm8092, %v8068, 0
      %8105 = vmatprep.subr.bf16.mxu0 0
      %8106 = vmatpush1.bf16.msra.mxu0 %v8088
      %8107 = vmatprep.subr.bf16.mxu0 0
      %8108 = vmatpush1.bf16.msra.mxu0 %v8089
      %8109 = vmatprep.subr.bf16.mxu0 0
      %8110 = vmatpush1.bf16.msra.mxu0 0
      %8111 = vmatprep.subr.bf16.mxu0 0
      %8112 = vmatpush1.bf16.msra.mxu0 0
      %8113 = vmatprep.subr.bf16.mxu0 0
      %8114 = vmatpush1.bf16.msra.mxu0 0
      %8115 = vmatprep.subr.bf16.mxu0 0
      %8116 = vmatpush1.bf16.msra.mxu0 0
      %8117 = vmatprep.subr.bf16.mxu0 0
      %8118 = vmatpush1.bf16.msra.mxu0 0
      %8119 = vmatprep.subr.bf16.mxu0 0
      %8120 = vmatpush1.bf16.msra.mxu0 0
      %8121 = vmatprep.subr.bf16.mxu0 0
      %8122 = vmatpush1.bf16.msra.mxu0 0
      %8123 = vmatprep.subr.bf16.mxu0 0
      %8124 = vmatpush1.bf16.msra.mxu0 0
      %8125 = vmatprep.subr.bf16.mxu0 0
      %8126 = vmatpush1.bf16.msra.mxu0 0
      %8127 = vmatprep.subr.bf16.mxu0 0
      %8128 = vmatpush1.bf16.msra.mxu0 0
      %8129 = vmatprep.subr.bf16.mxu0 0
      %8130 = vmatpush1.bf16.msra.mxu0 0
      %8131 = vmatprep.subr.bf16.mxu0 0
      %8132 = vmatpush1.bf16.msra.mxu0 0
      %8133 = vmatprep.subr.bf16.mxu0 0
      %8134 = vmatpush1.bf16.msra.mxu0 0
      %8135 = vmatprep.subr.bf16.mxu0 0
      %8136 = vmatpush1.bf16.msra.mxu0 0
      %8137 = vmatprep.mubr.bf16.mxu0 0
      %8138 = vmatmul.mubr.bf16.gmra.mrb[0].mxu0 %v8094
      %v8139 = vpop.f32.mrb[0].mxu0
      %v8140 = vadd.f32 %v8078, %v8139
      %v8141 = vpop.f32.mrb[0].mxu0
      %v8142 = vpop.f32.mrb[0].mxu0
      %v8143 = vadd.f32 %v8078, %v8142
      %v8144 = vpop.f32.mrb[0].mxu0
      %8145 = vmatprep.mubr.bf16.mxu0 0
      %8146 = vmatmul.mubr.bf16.gmra.mrb[0].mxu0 %v8097
      %v8147 = vpop.f32.mrb[0].mxu0
      %v8148 = vadd.f32 %v8078, %v8147
      %v8149 = vpop.f32.mrb[0].mxu0
      %v8150 = vpop.f32.mrb[0].mxu0
      %v8151 = vadd.f32 %v8078, %v8150
      %v8152 = vpop.f32.mrb[0].mxu0
      %8153 = vmatprep.mubr.bf16.mxu0 0
      %8154 = vmatmul.mubr.bf16.gmra.mrb[0].mxu0 %v8100
      %v8155 = vpop.f32.mrb[0].mxu0
      %v8156 = vadd.f32 %v8078, %v8155
      %v8157 = vpop.f32.mrb[0].mxu0
      %v8158 = vpop.f32.mrb[0].mxu0
      %v8159 = vadd.f32 %v8078, %v8158
      %v8160 = vpop.f32.mrb[0].mxu0
      %8161 = vmatprep.mubr.bf16.mxu0 0
      %8162 = vmatmul.mubr.bf16.gmra.mrb[0].mxu0 %v8103
      %v8163 = vpop.f32.mrb[0].mxu0
      %v8164 = vadd.f32 %v8078, %v8163
      %v8165 = vpop.f32.mrb[0].mxu0
      %v8166 = vpop.f32.mrb[0].mxu0
      %v8167 = vadd.f32 %v8078, %v8166
      %v8168 = vpop.f32.mrb[0].mxu0
      %8169 = vdwg.mxu0
      %v8170 = vsub.f32 0.0, %v8140
      %v8171 = vsub.f32 0.0, %v8143
      %v8172 = vsub.f32 0.0, %v8148
      %v8173 = vsub.f32 0.0, %v8151
      %v8174 = vsub.f32 0.0, %v8156
      %v8175 = vsub.f32 0.0, %v8159
      %v8176 = vsub.f32 0.0, %v8164
      %v8177 = vsub.f32 0.0, %v8167
      %v8178 = vmul.f32 %v8170, 1.442695
      %v8179 = vpow.pop %v8178
      %v8180 = vmul.f32 %v8171, 1.442695
      %v8181 = vpow.pop %v8180
      %v8182 = vmul.f32 %v8172, 1.442695
      %v8183 = vpow.pop %v8182
      %v8184 = vmul.f32 %v8173, 1.442695
      %v8185 = vpow.pop %v8184
      %v8186 = vmul.f32 %v8174, 1.442695
      %v8187 = vpow.pop %v8186
      %v8188 = vmul.f32 %v8175, 1.442695
      %v8189 = vpow.pop %v8188
      %v8190 = vmul.f32 %v8176, 1.442695
      %v8191 = vpow.pop %v8190
      %v8192 = vmul.f32 %v8177, 1.442695
      %v8193 = vpow.pop %v8192
      %v8194 = vadd.f32 %v8179, 1.0
      %v8195 = vadd.f32 %v8181, 1.0
      %v8196 = vadd.f32 %v8183, 1.0
      %v8197 = vadd.f32 %v8185, 1.0
      %v8198 = vadd.f32 %v8187, 1.0
      %v8199 = vadd.f32 %v8189, 1.0
      %v8200 = vadd.f32 %v8191, 1.0
      %v8201 = vadd.f32 %v8193, 1.0
      %v8202 = vrcp.pop %v8194
      %v8203 = vrcp.pop %v8195
      %v8204 = vrcp.pop %v8196
      %v8205 = vrcp.pop %v8197
      %v8206 = vrcp.pop %v8198
      %v8207 = vrcp.pop %v8199
      %v8208 = vrcp.pop %v8200
      %v8209 = vrcp.pop %v8201
      %8210 = vst [vmem:[%s386] sm:$0xff] %v8202
      %8211 = vst [vmem:[%s386 + $0x8] sm:$0xff] %v8203
      %8212 = vst [vmem:[%s386 + $0x10] sm:$0xff] %v8204
      %8213 = vst [vmem:[%s386 + $0x18] sm:$0xff] %v8205
      %8214 = vst [vmem:[%s386 + $0x20] sm:$0xff] %v8206
      %8215 = vst [vmem:[%s386 + $0x28] sm:$0xff] %v8207
      %8216 = vst [vmem:[%s386 + $0x30] sm:$0xff] %v8208
      %8217 = vst [vmem:[%s386 + $0x38] sm:$0xff] %v8209
      %p8218 = scmp.lt.s32.totalorder %s22, 1
      %s8219 = scalar_select %p8218, %s22, 1
      %s8220 = smul.addr %s8219, 8
      %s8221 = smul.addr %s8220, 8
      %s8222 = scalar_lea.vmem %s11, %s8221
      // Predicated region
      $region65: #{conv_extractor_forward.1} parent=63 // pred_check
        %p8223 = pneg %p276
      $region66: #{conv_extractor_forward.1} parent=63 // pred_check_branch
        %8225 = sbr.rel (%p8223) target = $region68
      $region67: #{conv_extractor_forward.1} parent=63 // pred_region
        _
      $region68: #{conv_extractor_forward.1} parent=63 // pred_fallthru
        _
    $region64: #{conv_extractor_forward.1} parent=5 // pred_fallthru
      _
    %p8226 = scmp.le.s32.totalorder 2, %s17
    // Predicated region
    $region69: #{conv_extractor_forward.1} parent=5 // pred_check
      %p8227 = pneg %p8226
    $region70: #{conv_extractor_forward.1} parent=5 // pred_check_branch
      %8229 = sbr.rel (%p8227) target = $region72
    $region71: #{conv_extractor_forward.1} parent=5 // pred_region
      %s8230 = ssub.s32 %s17, 2
      // Predicated region
      $region73: #{conv_extractor_forward.1} parent=71 // pred_check
        %p8231 = pneg %p282
      $region74: #{conv_extractor_forward.1} parent=71 // pred_check_branch
        %8233 = sbr.rel (%p8231) target = $region76
      $region75: #{conv_extractor_forward.1} parent=71 // pred_region
        %p8234 = scmp.lt.s32.totalorder %s23, 1
        %s8235 = scalar_select %p8234, %s23, 1
        %s8236 = smul.addr %s8235, 8
        %s8237 = smul.addr %s8236, 8
        %s8238 = scalar_lea.vmem %s11, %s8237
      $region76: #{conv_extractor_forward.1} parent=71 // pred_fallthru
        _
    $region72: #{conv_extractor_forward.1} parent=5 // pred_fallthru
      _
  $region6: #{conv_extractor_forward.1} parent=0 // loop_footer
    %s21 = sadd.s32 1, %s17
  $region7: #{conv_extractor_forward.1} parent=0 // loop_footer_branch
    %16 = sbr.rel target = $region3
  $region8: #{conv_extractor_forward.1} parent=0 // loop_exit
    _

</llo_original>
